<compile_context>
chip_gen: v7x
topology: tpu7x:2x2x1
jax: 0.10.0
libtpu: 0.0.40
codegen_flags: <defaults>
</compile_context>

<pallas_src>
import functools

import numpy as np
import jax
import jax.numpy as jnp
from jax.experimental import pallas as pl
from jax.experimental.pallas import tpu as pltpu

LRELU_ALPHA = 0.2
BN_EPS = 1e-5


# ---------------------------------------------------------------------------
# The single fused kernel (whole network, one invocation, no grid)
# ---------------------------------------------------------------------------
def _patchgan_fused_kernel(*refs, cfgs, n_img, h0, w0, alpha, eps):
    """Runs the full discriminator on VMEM-resident values.

    refs = [x_ref, <per-layer refs...>, o_ref] where per-layer refs are:
      s_ref : (3, ho, h_in)          bf16  0/1 row-selection (kh shift, stride, H-pad)
      a_ref : (3, lanes_in, lanes)   bf16  banded lane-mixing weights (kw, W-stride, W-pad),
                                           block-diagonal over the images packed in lanes
      then  bias_ref (1, lanes) f32                      (layers without BN)
      or    p_ref (lanes, lanes) f32, gamma_t, beta_t    (BN layers; p = group-avg projector)
    """
    x_ref = refs[0]
    o_ref = refs[-1]
    layer_refs = refs[1:-1]

    x = x_ref[...]                       # (h0, n_img * w0 * cin0), bf16
    h, w = h0, w0
    ri = 0
    y = None
    n_layers = len(cfgs)

    for li, (cin, cout, stride, use_bn, use_lrelu) in enumerate(cfgs):
        ho, wo = h // stride, w // stride
        lanes = n_img * wo * cout

        s_ref = layer_refs[ri]
        a_ref = layer_refs[ri + 1]
        ri += 2
        if use_bn:
            p_ref = layer_refs[ri]
            g_ref = layer_refs[ri + 1]
            b_ref = layer_refs[ri + 2]
            ri += 3
        else:
            bias_ref = layer_refs[ri]
            ri += 1

        # --- 3x3 conv: sum over kh taps of (row-select @ x) @ band, f32 acc --
        acc = jnp.zeros((ho, lanes), jnp.float32)
        for kh in range(3):
            xs = jnp.dot(s_ref[kh], x, preferred_element_type=jnp.float32)
            acc = acc + jnp.dot(xs.astype(jnp.bfloat16), a_ref[kh],
                                preferred_element_type=jnp.float32)

        # --- epilogue ---------------------------------------------------------
        if use_bn:
            # Training-mode BatchNorm2d over (N, H, W); two-pass variance.
            # Conv bias is omitted for these layers (cancelled by mean-sub).
            inv_cnt = 1.0 / float(ho * n_img * wo)
            s1 = jnp.sum(acc, axis=0, keepdims=True)                    # (1, lanes)
            mean_t = jnp.dot(s1, p_ref[...],
                             preferred_element_type=jnp.float32) * inv_cnt
            d = acc - mean_t
            s2 = jnp.sum(d * d, axis=0, keepdims=True)
            var_t = jnp.dot(s2, p_ref[...],
                            preferred_element_type=jnp.float32) * inv_cnt
            y = d * (g_ref[...] * jax.lax.rsqrt(var_t + eps)) + b_ref[...]
        else:
            y = acc + bias_ref[...]
        if use_lrelu:
            y = jnp.where(y >= 0.0, y, alpha * y)

        if li + 1 < n_layers:
            x = y.astype(jnp.bfloat16)   # bf16 hidden activations (next MXU input)
            h, w = ho, wo

    o_ref[...] = y.astype(o_ref.dtype)


# ---------------------------------------------------------------------------
# Configs, parameters, one-time parameter folding
# ---------------------------------------------------------------------------
def make_layer_configs(input_channels, ndf, n_layers=3):
    # (c_in, c_out, stride, use_bn, use_lrelu)
    cfgs = [
        (input_channels, ndf, 1, False, True),
        (ndf, ndf, 2, False, True),
    ]
    nf_mult = 1
    for n in range(1, n_layers):
        nf_prev, nf_mult = nf_mult, min(2 ** n, 8)
        cfgs.append((ndf * nf_prev, ndf * nf_mult, 1, True, True))
        cfgs.append((ndf * nf_mult, ndf * nf_mult, 2, True, True))
    nf_prev, nf_mult = nf_mult, min(2 ** n_layers, 8)
    cfgs.append((ndf * nf_prev, ndf * nf_mult, 1, True, True))
    cfgs.append((ndf * nf_mult, 1, 1, False, False))   # final conv, no activation
    return cfgs


def init_params(key, cfgs):
    params = []
    for (cin, cout, _, use_bn, _) in cfgs:
        key, kw_, kb, kg = jax.random.split(key, 4)
        p = {
            # weight_init: conv weights ~ N(0, 0.002)
            "w": 0.002 * jax.random.normal(kw_, (cout, cin, 3, 3), jnp.float32),
            # conv bias: stand-in for PyTorch's default small-uniform init
            # (has zero effect on BN'd layers; see prepare_params)
            "b": 0.01 * jax.random.uniform(kb, (cout,), jnp.float32, -1.0, 1.0),
        }
        if use_bn:
            p["gamma"] = 1.0 + 0.02 * jax.random.normal(kg, (cout,), jnp.float32)
            p["beta"] = jnp.zeros((cout,), jnp.float32)
        params.append(p)
    return params


def prepare_params(params, cfgs, input_hw, n_img):
    """One-time host-side folding of torch-layout weights into the kernel's
    layout: per-kh 0/1 row-selection matrices, image-block-diagonal banded
    lane-mixing matrices, pre-tiled biases / gammas / betas, and the BN
    group-average projector.  Returns a flat list in the kernel's unpack order."""
    h, w = input_hw
    flat = []
    for p, (cin, cout, stride, use_bn, _) in zip(params, cfgs):
        assert h % stride == 0 and w % stride == 0, "stride-2 layers need even H/W"
        ho, wo = h // stride, w // stride
        lanes_in = n_img * w * cin
        lanes_out = n_img * wo * cout

        # H selection: out row i <- in row (stride*i + kh - 1), zero-pad outside.
        S = np.zeros((3, ho, h), np.float32)
        for kh in range(3):
            for i in range(ho):
                r = stride * i + kh - 1
                if 0 <= r < h:
                    S[kh, i, r] = 1.0

        # Banded lane-mixing: fold kw taps, W-stride and W zero-pad.
        wt = np.transpose(np.asarray(p["w"], np.float32), (2, 3, 1, 0))  # (kh,kw,cin,cout)
        band = np.zeros((3, w * cin, wo * cout), np.float32)
        for kh in range(3):
            for kw in range(3):
                for j in range(wo):
                    c = stride * j + kw - 1
                    if 0 <= c < w:
                        band[kh, c * cin:(c + 1) * cin, j * cout:(j + 1) * cout] += wt[kh, kw]
        # Block-diagonal over the images packed along the lane dimension.
        A = np.zeros((3, lanes_in, lanes_out), np.float32)
        for m in range(n_img):
            A[:, m * w * cin:(m + 1) * w * cin, m * wo * cout:(m + 1) * wo * cout] = band

        flat += [jnp.asarray(S, jnp.bfloat16), jnp.asarray(A, jnp.bfloat16)]

        if use_bn:
            # Group-average projector: P[l, l'] = 1 iff channel(l) == channel(l').
            lane_ch = np.arange(lanes_out) % cout
            P = (lane_ch[:, None] == lane_ch[None, :]).astype(np.float32)
            gamma_t = np.tile(np.asarray(p["gamma"], np.float32), n_img * wo)[None, :]
            beta_t = np.tile(np.asarray(p["beta"], np.float32), n_img * wo)[None, :]
            # conv bias intentionally dropped: exactly cancelled by train-mode BN.
            flat += [jnp.asarray(P, jnp.float32),
                     jnp.asarray(gamma_t, jnp.float32),
                     jnp.asarray(beta_t, jnp.float32)]
        else:
            bias_t = np.tile(np.asarray(p["b"], np.float32), n_img * wo)[None, :]
            flat += [jnp.asarray(bias_t, jnp.float32)]

        h, w = ho, wo
    return flat


# ---------------------------------------------------------------------------
# Forward pass (one pallas_call for the whole network)
# ---------------------------------------------------------------------------
def patchgan_forward(x_nchw, flat_prepped, cfgs, crop_center=None):
    if crop_center is not None:
        _, _, hh, ww = x_nchw.shape
        x0 = (hh - crop_center) // 2
        y0 = (ww - crop_center) // 2
        x_nchw = x_nchw[:, :, x0:x0 + crop_center, y0:y0 + crop_center]

    n, cin0, h, w = x_nchw.shape
    # NCHW -> (H, N*W*C) lane-fused layout, bf16 (single tiny XLA rearrange).
    x2d = jnp.transpose(x_nchw, (2, 0, 3, 1)).reshape(h, n * w * cin0).astype(jnp.bfloat16)

    ho, wo = h, w
    for (_, _, stride, _, _) in cfgs:
        ho //= stride
        wo //= stride
    cout_last = cfgs[-1][1]

    kernel = functools.partial(
        _patchgan_fused_kernel, cfgs=tuple(cfgs), n_img=n, h0=h, w0=w,
        alpha=LRELU_ALPHA, eps=BN_EPS)

    out2d = pl.pallas_call(
        kernel,
        out_shape=jax.ShapeDtypeStruct((ho, n * wo * cout_last), jnp.float32),
        # Explicit VMEM budget (headroom for larger images; usage here ~3 MiB).
        compiler_params=pltpu.CompilerParams(vmem_limit_bytes=32 * 1024 * 1024),
    )(x2d, *flat_prepped)

    # (H, N*W*C) -> NCHW
    out = out2d.reshape(ho, n, wo, cout_last).transpose(1, 3, 0, 2)
    return out


if __name__ == "__main__":
    # Small config: input_channels=4, ndf=8, n_layers=3, crop_center=None,
    # FC_bottleneck=False; input x: (2, 4, 16, 16) NCHW.
    key = jax.random.PRNGKey(0)
    k_x, k_p = jax.random.split(key)

    input_channels, ndf, n_layers = 4, 8, 3
    N, H, W = 2, 16, 16

    cfgs = make_layer_configs(input_channels, ndf, n_layers)
    params = init_params(k_p, cfgs)
    flat_prepped = prepare_params(params, cfgs, input_hw=(H, W), n_img=N)

    x = jax.random.normal(k_x, (N, input_channels, H, W), jnp.float32)

    fwd = jax.jit(functools.partial(patchgan_forward, cfgs=tuple(cfgs), crop_center=None))
    out = jax.block_until_ready(fwd(x, flat_prepped))

    assert out.shape == (N, 1, 2, 2), out.shape
    assert out.dtype == jnp.float32
    assert bool(jnp.isfinite(out).all())
    print("KERNEL_OK")
</pallas_src>

<mosaic_0001>
module attributes {stable_mosaic.version = 11 : i64} {
  func.func @_patchgan_fused_kernel(%arg0: memref<16x128xbf16, #tpu.memory_space<vmem>>, %arg1: memref<3x16x16xbf16, #tpu.memory_space<vmem>>, %arg2: memref<3x128x256xbf16, #tpu.memory_space<vmem>>, %arg3: memref<1x256xf32, #tpu.memory_space<vmem>>, %arg4: memref<3x8x16xbf16, #tpu.memory_space<vmem>>, %arg5: memref<3x256x128xbf16, #tpu.memory_space<vmem>>, %arg6: memref<1x128xf32, #tpu.memory_space<vmem>>, %arg7: memref<3x8x8xbf16, #tpu.memory_space<vmem>>, %arg8: memref<3x128x256xbf16, #tpu.memory_space<vmem>>, %arg9: memref<256x256xf32, #tpu.memory_space<vmem>>, %arg10: memref<1x256xf32, #tpu.memory_space<vmem>>, %arg11: memref<1x256xf32, #tpu.memory_space<vmem>>, %arg12: memref<3x4x8xbf16, #tpu.memory_space<vmem>>, %arg13: memref<3x256x128xbf16, #tpu.memory_space<vmem>>, %arg14: memref<128x128xf32, #tpu.memory_space<vmem>>, %arg15: memref<1x128xf32, #tpu.memory_space<vmem>>, %arg16: memref<1x128xf32, #tpu.memory_space<vmem>>, %arg17: memref<3x4x4xbf16, #tpu.memory_space<vmem>>, %arg18: memref<3x128x256xbf16, #tpu.memory_space<vmem>>, %arg19: memref<256x256xf32, #tpu.memory_space<vmem>>, %arg20: memref<1x256xf32, #tpu.memory_space<vmem>>, %arg21: memref<1x256xf32, #tpu.memory_space<vmem>>, %arg22: memref<3x2x4xbf16, #tpu.memory_space<vmem>>, %arg23: memref<3x256x128xbf16, #tpu.memory_space<vmem>>, %arg24: memref<128x128xf32, #tpu.memory_space<vmem>>, %arg25: memref<1x128xf32, #tpu.memory_space<vmem>>, %arg26: memref<1x128xf32, #tpu.memory_space<vmem>>, %arg27: memref<3x2x2xbf16, #tpu.memory_space<vmem>>, %arg28: memref<3x128x256xbf16, #tpu.memory_space<vmem>>, %arg29: memref<256x256xf32, #tpu.memory_space<vmem>>, %arg30: memref<1x256xf32, #tpu.memory_space<vmem>>, %arg31: memref<1x256xf32, #tpu.memory_space<vmem>>, %arg32: memref<3x2x2xbf16, #tpu.memory_space<vmem>>, %arg33: memref<3x256x4xbf16, #tpu.memory_space<vmem>>, %arg34: memref<1x4xf32, #tpu.memory_space<vmem>>, %arg35: memref<2x4xf32, #tpu.memory_space<vmem>>) attributes {dimension_semantics = [], scalar_prefetch = 0 : i64, scratch_operands = 0 : i64, tpu.core_type = #tpu.core_type<tc>} {
    %c0 = arith.constant 0 : index
    %c0_0 = arith.constant 0 : index
    %0 = vector.load %arg0[%c0, %c0_0] : memref<16x128xbf16, #tpu.memory_space<vmem>>, vector<16x128xbf16>
    %cst = arith.constant 0.000000e+00 : f32
    %1 = vector.broadcast %cst : f32 to vector<16x256xf32>
    %c0_1 = arith.constant 0 : index
    %c0_2 = arith.constant 0 : index
    %c0_3 = arith.constant 0 : index
    %2 = vector.load %arg1[%c0_1, %c0_2, %c0_3] : memref<3x16x16xbf16, #tpu.memory_space<vmem>>, vector<1x16x16xbf16>
    %3 = vector.shape_cast %2 : vector<1x16x16xbf16> to vector<16x16xbf16>
    %cst_4 = arith.constant dense<0.000000e+00> : vector<16x128xf32>
    %4 = tpu.matmul %3, %0, %cst_4 {dimension_numbers = #tpu.dot_dimension_numbers<[1], [0], [0], [1], [0, 0, 1, 1], [], []>} : vector<16x16xbf16>, vector<16x128xbf16>, vector<16x128xf32> -> vector<16x128xf32>
    %5 = arith.truncf %4 : vector<16x128xf32> to vector<16x128xbf16>
    %c0_5 = arith.constant 0 : index
    %c0_6 = arith.constant 0 : index
    %c0_7 = arith.constant 0 : index
    %6 = vector.load %arg2[%c0_5, %c0_6, %c0_7] : memref<3x128x256xbf16, #tpu.memory_space<vmem>>, vector<1x128x256xbf16>
    %7 = vector.shape_cast %6 : vector<1x128x256xbf16> to vector<128x256xbf16>
    %cst_8 = arith.constant dense<0.000000e+00> : vector<16x256xf32>
    %8 = tpu.matmul %5, %7, %cst_8 {dimension_numbers = #tpu.dot_dimension_numbers<[1], [0], [0], [1], [0, 0, 1, 1], [], []>} : vector<16x128xbf16>, vector<128x256xbf16>, vector<16x256xf32> -> vector<16x256xf32>
    %9 = arith.addf %1, %8 : vector<16x256xf32>
    %c1 = arith.constant 1 : index
    %c0_9 = arith.constant 0 : index
    %c0_10 = arith.constant 0 : index
    %10 = vector.load %arg1[%c1, %c0_9, %c0_10] : memref<3x16x16xbf16, #tpu.memory_space<vmem>>, vector<1x16x16xbf16>
    %11 = vector.shape_cast %10 : vector<1x16x16xbf16> to vector<16x16xbf16>
    %cst_11 = arith.constant dense<0.000000e+00> : vector<16x128xf32>
    %12 = tpu.matmul %11, %0, %cst_11 {dimension_numbers = #tpu.dot_dimension_numbers<[1], [0], [0], [1], [0, 0, 1, 1], [], []>} : vector<16x16xbf16>, vector<16x128xbf16>, vector<16x128xf32> -> vector<16x128xf32>
    %13 = arith.truncf %12 : vector<16x128xf32> to vector<16x128xbf16>
    %c1_12 = arith.constant 1 : index
    %c0_13 = arith.constant 0 : index
    %c0_14 = arith.constant 0 : index
    %14 = vector.load %arg2[%c1_12, %c0_13, %c0_14] : memref<3x128x256xbf16, #tpu.memory_space<vmem>>, vector<1x128x256xbf16>
    %15 = vector.shape_cast %14 : vector<1x128x256xbf16> to vector<128x256xbf16>
    %cst_15 = arith.constant dense<0.000000e+00> : vector<16x256xf32>
    %16 = tpu.matmul %13, %15, %cst_15 {dimension_numbers = #tpu.dot_dimension_numbers<[1], [0], [0], [1], [0, 0, 1, 1], [], []>} : vector<16x128xbf16>, vector<128x256xbf16>, vector<16x256xf32> -> vector<16x256xf32>
    %17 = arith.addf %9, %16 : vector<16x256xf32>
    %c2 = arith.constant 2 : index
    %c0_16 = arith.constant 0 : index
    %c0_17 = arith.constant 0 : index
    %18 = vector.load %arg1[%c2, %c0_16, %c0_17] : memref<3x16x16xbf16, #tpu.memory_space<vmem>>, vector<1x16x16xbf16>
    %19 = vector.shape_cast %18 : vector<1x16x16xbf16> to vector<16x16xbf16>
    %cst_18 = arith.constant dense<0.000000e+00> : vector<16x128xf32>
    %20 = tpu.matmul %19, %0, %cst_18 {dimension_numbers = #tpu.dot_dimension_numbers<[1], [0], [0], [1], [0, 0, 1, 1], [], []>} : vector<16x16xbf16>, vector<16x128xbf16>, vector<16x128xf32> -> vector<16x128xf32>
    %21 = arith.truncf %20 : vector<16x128xf32> to vector<16x128xbf16>
    %c2_19 = arith.constant 2 : index
    %c0_20 = arith.constant 0 : index
    %c0_21 = arith.constant 0 : index
    %22 = vector.load %arg2[%c2_19, %c0_20, %c0_21] : memref<3x128x256xbf16, #tpu.memory_space<vmem>>, vector<1x128x256xbf16>
    %23 = vector.shape_cast %22 : vector<1x128x256xbf16> to vector<128x256xbf16>
    %cst_22 = arith.constant dense<0.000000e+00> : vector<16x256xf32>
    %24 = tpu.matmul %21, %23, %cst_22 {dimension_numbers = #tpu.dot_dimension_numbers<[1], [0], [0], [1], [0, 0, 1, 1], [], []>} : vector<16x128xbf16>, vector<128x256xbf16>, vector<16x256xf32> -> vector<16x256xf32>
    %25 = arith.addf %17, %24 : vector<16x256xf32>
    %c0_23 = arith.constant 0 : index
    %c0_24 = arith.constant 0 : index
    %26 = vector.load %arg3[%c0_23, %c0_24] : memref<1x256xf32, #tpu.memory_space<vmem>>, vector<1x256xf32>
    %27 = vector.broadcast %26 : vector<1x256xf32> to vector<16x256xf32>
    %28 = arith.addf %25, %27 : vector<16x256xf32>
    %cst_25 = arith.constant 0.000000e+00 : f32
    %29 = vector.broadcast %cst_25 : f32 to vector<16x256xf32>
    %30 = arith.cmpf oge, %28, %29 : vector<16x256xf32>
    %cst_26 = arith.constant 2.000000e-01 : f32
    %31 = vector.broadcast %cst_26 : f32 to vector<16x256xf32>
    %32 = arith.mulf %31, %28 : vector<16x256xf32>
    %33 = arith.select %30, %28, %32 : vector<16x256xi1>, vector<16x256xf32>
    %34 = arith.truncf %33 : vector<16x256xf32> to vector<16x256xbf16>
    %cst_27 = arith.constant 0.000000e+00 : f32
    %35 = vector.broadcast %cst_27 : f32 to vector<8x128xf32>
    %c0_28 = arith.constant 0 : index
    %c0_29 = arith.constant 0 : index
    %c0_30 = arith.constant 0 : index
    %36 = vector.load %arg4[%c0_28, %c0_29, %c0_30] : memref<3x8x16xbf16, #tpu.memory_space<vmem>>, vector<1x8x16xbf16>
    %37 = vector.shape_cast %36 : vector<1x8x16xbf16> to vector<8x16xbf16>
    %cst_31 = arith.constant dense<0.000000e+00> : vector<8x256xf32>
    %38 = tpu.matmul %37, %34, %cst_31 {dimension_numbers = #tpu.dot_dimension_numbers<[1], [0], [0], [1], [0, 0, 1, 1], [], []>} : vector<8x16xbf16>, vector<16x256xbf16>, vector<8x256xf32> -> vector<8x256xf32>
    %39 = arith.truncf %38 : vector<8x256xf32> to vector<8x256xbf16>
    %c0_32 = arith.constant 0 : index
    %c0_33 = arith.constant 0 : index
    %c0_34 = arith.constant 0 : index
    %40 = vector.load %arg5[%c0_32, %c0_33, %c0_34] : memref<3x256x128xbf16, #tpu.memory_space<vmem>>, vector<1x256x128xbf16>
    %41 = vector.shape_cast %40 : vector<1x256x128xbf16> to vector<256x128xbf16>
    %cst_35 = arith.constant dense<0.000000e+00> : vector<8x128xf32>
    %42 = tpu.matmul %39, %41, %cst_35 {dimension_numbers = #tpu.dot_dimension_numbers<[1], [0], [0], [1], [0, 0, 1, 1], [], []>} : vector<8x256xbf16>, vector<256x128xbf16>, vector<8x128xf32> -> vector<8x128xf32>
    %43 = arith.addf %35, %42 : vector<8x128xf32>
    %c1_36 = arith.constant 1 : index
    %c0_37 = arith.constant 0 : index
    %c0_38 = arith.constant 0 : index
    %44 = vector.load %arg4[%c1_36, %c0_37, %c0_38] : memref<3x8x16xbf16, #tpu.memory_space<vmem>>, vector<1x8x16xbf16>
    %45 = vector.shape_cast %44 : vector<1x8x16xbf16> to vector<8x16xbf16>
    %cst_39 = arith.constant dense<0.000000e+00> : vector<8x256xf32>
    %46 = tpu.matmul %45, %34, %cst_39 {dimension_numbers = #tpu.dot_dimension_numbers<[1], [0], [0], [1], [0, 0, 1, 1], [], []>} : vector<8x16xbf16>, vector<16x256xbf16>, vector<8x256xf32> -> vector<8x256xf32>
    %47 = arith.truncf %46 : vector<8x256xf32> to vector<8x256xbf16>
    %c1_40 = arith.constant 1 : index
    %c0_41 = arith.constant 0 : index
    %c0_42 = arith.constant 0 : index
    %48 = vector.load %arg5[%c1_40, %c0_41, %c0_42] : memref<3x256x128xbf16, #tpu.memory_space<vmem>>, vector<1x256x128xbf16>
    %49 = vector.shape_cast %48 : vector<1x256x128xbf16> to vector<256x128xbf16>
    %cst_43 = arith.constant dense<0.000000e+00> : vector<8x128xf32>
    %50 = tpu.matmul %47, %49, %cst_43 {dimension_numbers = #tpu.dot_dimension_numbers<[1], [0], [0], [1], [0, 0, 1, 1], [], []>} : vector<8x256xbf16>, vector<256x128xbf16>, vector<8x128xf32> -> vector<8x128xf32>
    %51 = arith.addf %43, %50 : vector<8x128xf32>
    %c2_44 = arith.constant 2 : index
    %c0_45 = arith.constant 0 : index
    %c0_46 = arith.constant 0 : index
    %52 = vector.load %arg4[%c2_44, %c0_45, %c0_46] : memref<3x8x16xbf16, #tpu.memory_space<vmem>>, vector<1x8x16xbf16>
    %53 = vector.shape_cast %52 : vector<1x8x16xbf16> to vector<8x16xbf16>
    %cst_47 = arith.constant dense<0.000000e+00> : vector<8x256xf32>
    %54 = tpu.matmul %53, %34, %cst_47 {dimension_numbers = #tpu.dot_dimension_numbers<[1], [0], [0], [1], [0, 0, 1, 1], [], []>} : vector<8x16xbf16>, vector<16x256xbf16>, vector<8x256xf32> -> vector<8x256xf32>
    %55 = arith.truncf %54 : vector<8x256xf32> to vector<8x256xbf16>
    %c2_48 = arith.constant 2 : index
    %c0_49 = arith.constant 0 : index
    %c0_50 = arith.constant 0 : index
    %56 = vector.load %arg5[%c2_48, %c0_49, %c0_50] : memref<3x256x128xbf16, #tpu.memory_space<vmem>>, vector<1x256x128xbf16>
    %57 = vector.shape_cast %56 : vector<1x256x128xbf16> to vector<256x128xbf16>
    %cst_51 = arith.constant dense<0.000000e+00> : vector<8x128xf32>
    %58 = tpu.matmul %55, %57, %cst_51 {dimension_numbers = #tpu.dot_dimension_numbers<[1], [0], [0], [1], [0, 0, 1, 1], [], []>} : vector<8x256xbf16>, vector<256x128xbf16>, vector<8x128xf32> -> vector<8x128xf32>
    %59 = arith.addf %51, %58 : vector<8x128xf32>
    %c0_52 = arith.constant 0 : index
    %c0_53 = arith.constant 0 : index
    %60 = vector.load %arg6[%c0_52, %c0_53] : memref<1x128xf32, #tpu.memory_space<vmem>>, vector<1x128xf32>
    %61 = vector.broadcast %60 : vector<1x128xf32> to vector<8x128xf32>
    %62 = arith.addf %59, %61 : vector<8x128xf32>
    %cst_54 = arith.constant 0.000000e+00 : f32
    %63 = vector.broadcast %cst_54 : f32 to vector<8x128xf32>
    %64 = arith.cmpf oge, %62, %63 : vector<8x128xf32>
    %cst_55 = arith.constant 2.000000e-01 : f32
    %65 = vector.broadcast %cst_55 : f32 to vector<8x128xf32>
    %66 = arith.mulf %65, %62 : vector<8x128xf32>
    %67 = arith.select %64, %62, %66 : vector<8x128xi1>, vector<8x128xf32>
    %68 = arith.truncf %67 : vector<8x128xf32> to vector<8x128xbf16>
    %cst_56 = arith.constant 0.000000e+00 : f32
    %69 = vector.broadcast %cst_56 : f32 to vector<8x256xf32>
    %c0_57 = arith.constant 0 : index
    %c0_58 = arith.constant 0 : index
    %c0_59 = arith.constant 0 : index
    %70 = vector.load %arg7[%c0_57, %c0_58, %c0_59] : memref<3x8x8xbf16, #tpu.memory_space<vmem>>, vector<1x8x8xbf16>
    %71 = vector.shape_cast %70 : vector<1x8x8xbf16> to vector<8x8xbf16>
    %cst_60 = arith.constant dense<0.000000e+00> : vector<8x128xf32>
    %72 = tpu.matmul %71, %68, %cst_60 {dimension_numbers = #tpu.dot_dimension_numbers<[1], [0], [0], [1], [0, 0, 1, 1], [], []>} : vector<8x8xbf16>, vector<8x128xbf16>, vector<8x128xf32> -> vector<8x128xf32>
    %73 = arith.truncf %72 : vector<8x128xf32> to vector<8x128xbf16>
    %c0_61 = arith.constant 0 : index
    %c0_62 = arith.constant 0 : index
    %c0_63 = arith.constant 0 : index
    %74 = vector.load %arg8[%c0_61, %c0_62, %c0_63] : memref<3x128x256xbf16, #tpu.memory_space<vmem>>, vector<1x128x256xbf16>
    %75 = vector.shape_cast %74 : vector<1x128x256xbf16> to vector<128x256xbf16>
    %cst_64 = arith.constant dense<0.000000e+00> : vector<8x256xf32>
    %76 = tpu.matmul %73, %75, %cst_64 {dimension_numbers = #tpu.dot_dimension_numbers<[1], [0], [0], [1], [0, 0, 1, 1], [], []>} : vector<8x128xbf16>, vector<128x256xbf16>, vector<8x256xf32> -> vector<8x256xf32>
    %77 = arith.addf %69, %76 : vector<8x256xf32>
    %c1_65 = arith.constant 1 : index
    %c0_66 = arith.constant 0 : index
    %c0_67 = arith.constant 0 : index
    %78 = vector.load %arg7[%c1_65, %c0_66, %c0_67] : memref<3x8x8xbf16, #tpu.memory_space<vmem>>, vector<1x8x8xbf16>
    %79 = vector.shape_cast %78 : vector<1x8x8xbf16> to vector<8x8xbf16>
    %cst_68 = arith.constant dense<0.000000e+00> : vector<8x128xf32>
    %80 = tpu.matmul %79, %68, %cst_68 {dimension_numbers = #tpu.dot_dimension_numbers<[1], [0], [0], [1], [0, 0, 1, 1], [], []>} : vector<8x8xbf16>, vector<8x128xbf16>, vector<8x128xf32> -> vector<8x128xf32>
    %81 = arith.truncf %80 : vector<8x128xf32> to vector<8x128xbf16>
    %c1_69 = arith.constant 1 : index
    %c0_70 = arith.constant 0 : index
    %c0_71 = arith.constant 0 : index
    %82 = vector.load %arg8[%c1_69, %c0_70, %c0_71] : memref<3x128x256xbf16, #tpu.memory_space<vmem>>, vector<1x128x256xbf16>
    %83 = vector.shape_cast %82 : vector<1x128x256xbf16> to vector<128x256xbf16>
    %cst_72 = arith.constant dense<0.000000e+00> : vector<8x256xf32>
    %84 = tpu.matmul %81, %83, %cst_72 {dimension_numbers = #tpu.dot_dimension_numbers<[1], [0], [0], [1], [0, 0, 1, 1], [], []>} : vector<8x128xbf16>, vector<128x256xbf16>, vector<8x256xf32> -> vector<8x256xf32>
    %85 = arith.addf %77, %84 : vector<8x256xf32>
    %c2_73 = arith.constant 2 : index
    %c0_74 = arith.constant 0 : index
    %c0_75 = arith.constant 0 : index
    %86 = vector.load %arg7[%c2_73, %c0_74, %c0_75] : memref<3x8x8xbf16, #tpu.memory_space<vmem>>, vector<1x8x8xbf16>
    %87 = vector.shape_cast %86 : vector<1x8x8xbf16> to vector<8x8xbf16>
    %cst_76 = arith.constant dense<0.000000e+00> : vector<8x128xf32>
    %88 = tpu.matmul %87, %68, %cst_76 {dimension_numbers = #tpu.dot_dimension_numbers<[1], [0], [0], [1], [0, 0, 1, 1], [], []>} : vector<8x8xbf16>, vector<8x128xbf16>, vector<8x128xf32> -> vector<8x128xf32>
    %89 = arith.truncf %88 : vector<8x128xf32> to vector<8x128xbf16>
    %c2_77 = arith.constant 2 : index
    %c0_78 = arith.constant 0 : index
    %c0_79 = arith.constant 0 : index
    %90 = vector.load %arg8[%c2_77, %c0_78, %c0_79] : memref<3x128x256xbf16, #tpu.memory_space<vmem>>, vector<1x128x256xbf16>
    %91 = vector.shape_cast %90 : vector<1x128x256xbf16> to vector<128x256xbf16>
    %cst_80 = arith.constant dense<0.000000e+00> : vector<8x256xf32>
    %92 = tpu.matmul %89, %91, %cst_80 {dimension_numbers = #tpu.dot_dimension_numbers<[1], [0], [0], [1], [0, 0, 1, 1], [], []>} : vector<8x128xbf16>, vector<128x256xbf16>, vector<8x256xf32> -> vector<8x256xf32>
    %93 = arith.addf %85, %92 : vector<8x256xf32>
    %cst_81 = arith.constant dense<0.000000e+00> : vector<256xf32>
    %94 = vector.multi_reduction <add>, %93, %cst_81 [0] : vector<8x256xf32> to vector<256xf32>
    %95 = vector.shape_cast %94 : vector<256xf32> to vector<1x256xf32>
    %c0_82 = arith.constant 0 : index
    %c0_83 = arith.constant 0 : index
    %96 = vector.load %arg9[%c0_82, %c0_83] : memref<256x256xf32, #tpu.memory_space<vmem>>, vector<256x256xf32>
    %cst_84 = arith.constant dense<0.000000e+00> : vector<1x256xf32>
    %97 = tpu.matmul %95, %96, %cst_84 {dimension_numbers = #tpu.dot_dimension_numbers<[1], [0], [0], [1], [0, 0, 1, 1], [], []>} : vector<1x256xf32>, vector<256x256xf32>, vector<1x256xf32> -> vector<1x256xf32>
    %cst_85 = arith.constant 7.812500e-03 : f32
    %98 = vector.broadcast %cst_85 : f32 to vector<1x256xf32>
    %99 = arith.mulf %97, %98 : vector<1x256xf32>
    %100 = vector.broadcast %99 : vector<1x256xf32> to vector<8x256xf32>
    %101 = arith.subf %93, %100 : vector<8x256xf32>
    %102 = arith.mulf %101, %101 : vector<8x256xf32>
    %cst_86 = arith.constant dense<0.000000e+00> : vector<256xf32>
    %103 = vector.multi_reduction <add>, %102, %cst_86 [0] : vector<8x256xf32> to vector<256xf32>
    %104 = vector.shape_cast %103 : vector<256xf32> to vector<1x256xf32>
    %c0_87 = arith.constant 0 : index
    %c0_88 = arith.constant 0 : index
    %105 = vector.load %arg9[%c0_87, %c0_88] : memref<256x256xf32, #tpu.memory_space<vmem>>, vector<256x256xf32>
    %cst_89 = arith.constant dense<0.000000e+00> : vector<1x256xf32>
    %106 = tpu.matmul %104, %105, %cst_89 {dimension_numbers = #tpu.dot_dimension_numbers<[1], [0], [0], [1], [0, 0, 1, 1], [], []>} : vector<1x256xf32>, vector<256x256xf32>, vector<1x256xf32> -> vector<1x256xf32>
    %cst_90 = arith.constant 7.812500e-03 : f32
    %107 = vector.broadcast %cst_90 : f32 to vector<1x256xf32>
    %108 = arith.mulf %106, %107 : vector<1x256xf32>
    %c0_91 = arith.constant 0 : index
    %c0_92 = arith.constant 0 : index
    %109 = vector.load %arg10[%c0_91, %c0_92] : memref<1x256xf32, #tpu.memory_space<vmem>>, vector<1x256xf32>
    %cst_93 = arith.constant 9.99999974E-6 : f32
    %110 = vector.broadcast %cst_93 : f32 to vector<1x256xf32>
    %111 = arith.addf %108, %110 : vector<1x256xf32>
    %112 = math.rsqrt %111 : vector<1x256xf32>
    %113 = arith.mulf %109, %112 : vector<1x256xf32>
    %114 = vector.broadcast %113 : vector<1x256xf32> to vector<8x256xf32>
    %115 = arith.mulf %101, %114 : vector<8x256xf32>
    %c0_94 = arith.constant 0 : index
    %c0_95 = arith.constant 0 : index
    %116 = vector.load %arg11[%c0_94, %c0_95] : memref<1x256xf32, #tpu.memory_space<vmem>>, vector<1x256xf32>
    %117 = vector.broadcast %116 : vector<1x256xf32> to vector<8x256xf32>
    %118 = arith.addf %115, %117 : vector<8x256xf32>
    %cst_96 = arith.constant 0.000000e+00 : f32
    %119 = vector.broadcast %cst_96 : f32 to vector<8x256xf32>
    %120 = arith.cmpf oge, %118, %119 : vector<8x256xf32>
    %cst_97 = arith.constant 2.000000e-01 : f32
    %121 = vector.broadcast %cst_97 : f32 to vector<8x256xf32>
    %122 = arith.mulf %121, %118 : vector<8x256xf32>
    %123 = arith.select %120, %118, %122 : vector<8x256xi1>, vector<8x256xf32>
    %124 = arith.truncf %123 : vector<8x256xf32> to vector<8x256xbf16>
    %cst_98 = arith.constant 0.000000e+00 : f32
    %125 = vector.broadcast %cst_98 : f32 to vector<4x128xf32>
    %c0_99 = arith.constant 0 : index
    %c0_100 = arith.constant 0 : index
    %c0_101 = arith.constant 0 : index
    %126 = vector.load %arg12[%c0_99, %c0_100, %c0_101] : memref<3x4x8xbf16, #tpu.memory_space<vmem>>, vector<1x4x8xbf16>
    %127 = vector.shape_cast %126 : vector<1x4x8xbf16> to vector<4x8xbf16>
    %cst_102 = arith.constant dense<0.000000e+00> : vector<4x256xf32>
    %128 = tpu.matmul %127, %124, %cst_102 {dimension_numbers = #tpu.dot_dimension_numbers<[1], [0], [0], [1], [0, 0, 1, 1], [], []>} : vector<4x8xbf16>, vector<8x256xbf16>, vector<4x256xf32> -> vector<4x256xf32>
    %129 = arith.truncf %128 : vector<4x256xf32> to vector<4x256xbf16>
    %c0_103 = arith.constant 0 : index
    %c0_104 = arith.constant 0 : index
    %c0_105 = arith.constant 0 : index
    %130 = vector.load %arg13[%c0_103, %c0_104, %c0_105] : memref<3x256x128xbf16, #tpu.memory_space<vmem>>, vector<1x256x128xbf16>
    %131 = vector.shape_cast %130 : vector<1x256x128xbf16> to vector<256x128xbf16>
    %cst_106 = arith.constant dense<0.000000e+00> : vector<4x128xf32>
    %132 = tpu.matmul %129, %131, %cst_106 {dimension_numbers = #tpu.dot_dimension_numbers<[1], [0], [0], [1], [0, 0, 1, 1], [], []>} : vector<4x256xbf16>, vector<256x128xbf16>, vector<4x128xf32> -> vector<4x128xf32>
    %133 = arith.addf %125, %132 : vector<4x128xf32>
    %c1_107 = arith.constant 1 : index
    %c0_108 = arith.constant 0 : index
    %c0_109 = arith.constant 0 : index
    %134 = vector.load %arg12[%c1_107, %c0_108, %c0_109] : memref<3x4x8xbf16, #tpu.memory_space<vmem>>, vector<1x4x8xbf16>
    %135 = vector.shape_cast %134 : vector<1x4x8xbf16> to vector<4x8xbf16>
    %cst_110 = arith.constant dense<0.000000e+00> : vector<4x256xf32>
    %136 = tpu.matmul %135, %124, %cst_110 {dimension_numbers = #tpu.dot_dimension_numbers<[1], [0], [0], [1], [0, 0, 1, 1], [], []>} : vector<4x8xbf16>, vector<8x256xbf16>, vector<4x256xf32> -> vector<4x256xf32>
    %137 = arith.truncf %136 : vector<4x256xf32> to vector<4x256xbf16>
    %c1_111 = arith.constant 1 : index
    %c0_112 = arith.constant 0 : index
    %c0_113 = arith.constant 0 : index
    %138 = vector.load %arg13[%c1_111, %c0_112, %c0_113] : memref<3x256x128xbf16, #tpu.memory_space<vmem>>, vector<1x256x128xbf16>
    %139 = vector.shape_cast %138 : vector<1x256x128xbf16> to vector<256x128xbf16>
    %cst_114 = arith.constant dense<0.000000e+00> : vector<4x128xf32>
    %140 = tpu.matmul %137, %139, %cst_114 {dimension_numbers = #tpu.dot_dimension_numbers<[1], [0], [0], [1], [0, 0, 1, 1], [], []>} : vector<4x256xbf16>, vector<256x128xbf16>, vector<4x128xf32> -> vector<4x128xf32>
    %141 = arith.addf %133, %140 : vector<4x128xf32>
    %c2_115 = arith.constant 2 : index
    %c0_116 = arith.constant 0 : index
    %c0_117 = arith.constant 0 : index
    %142 = vector.load %arg12[%c2_115, %c0_116, %c0_117] : memref<3x4x8xbf16, #tpu.memory_space<vmem>>, vector<1x4x8xbf16>
    %143 = vector.shape_cast %142 : vector<1x4x8xbf16> to vector<4x8xbf16>
    %cst_118 = arith.constant dense<0.000000e+00> : vector<4x256xf32>
    %144 = tpu.matmul %143, %124, %cst_118 {dimension_numbers = #tpu.dot_dimension_numbers<[1], [0], [0], [1], [0, 0, 1, 1], [], []>} : vector<4x8xbf16>, vector<8x256xbf16>, vector<4x256xf32> -> vector<4x256xf32>
    %145 = arith.truncf %144 : vector<4x256xf32> to vector<4x256xbf16>
    %c2_119 = arith.constant 2 : index
    %c0_120 = arith.constant 0 : index
    %c0_121 = arith.constant 0 : index
    %146 = vector.load %arg13[%c2_119, %c0_120, %c0_121] : memref<3x256x128xbf16, #tpu.memory_space<vmem>>, vector<1x256x128xbf16>
    %147 = vector.shape_cast %146 : vector<1x256x128xbf16> to vector<256x128xbf16>
    %cst_122 = arith.constant dense<0.000000e+00> : vector<4x128xf32>
    %148 = tpu.matmul %145, %147, %cst_122 {dimension_numbers = #tpu.dot_dimension_numbers<[1], [0], [0], [1], [0, 0, 1, 1], [], []>} : vector<4x256xbf16>, vector<256x128xbf16>, vector<4x128xf32> -> vector<4x128xf32>
    %149 = arith.addf %141, %148 : vector<4x128xf32>
    %cst_123 = arith.constant dense<0.000000e+00> : vector<128xf32>
    %150 = vector.multi_reduction <add>, %149, %cst_123 [0] : vector<4x128xf32> to vector<128xf32>
    %151 = vector.shape_cast %150 : vector<128xf32> to vector<1x128xf32>
    %c0_124 = arith.constant 0 : index
    %c0_125 = arith.constant 0 : index
    %152 = vector.load %arg14[%c0_124, %c0_125] : memref<128x128xf32, #tpu.memory_space<vmem>>, vector<128x128xf32>
    %cst_126 = arith.constant dense<0.000000e+00> : vector<1x128xf32>
    %153 = tpu.matmul %151, %152, %cst_126 {dimension_numbers = #tpu.dot_dimension_numbers<[1], [0], [0], [1], [0, 0, 1, 1], [], []>} : vector<1x128xf32>, vector<128x128xf32>, vector<1x128xf32> -> vector<1x128xf32>
    %cst_127 = arith.constant 3.125000e-02 : f32
    %154 = vector.broadcast %cst_127 : f32 to vector<1x128xf32>
    %155 = arith.mulf %153, %154 : vector<1x128xf32>
    %156 = vector.broadcast %155 : vector<1x128xf32> to vector<4x128xf32>
    %157 = arith.subf %149, %156 : vector<4x128xf32>
    %158 = arith.mulf %157, %157 : vector<4x128xf32>
    %cst_128 = arith.constant dense<0.000000e+00> : vector<128xf32>
    %159 = vector.multi_reduction <add>, %158, %cst_128 [0] : vector<4x128xf32> to vector<128xf32>
    %160 = vector.shape_cast %159 : vector<128xf32> to vector<1x128xf32>
    %c0_129 = arith.constant 0 : index
    %c0_130 = arith.constant 0 : index
    %161 = vector.load %arg14[%c0_129, %c0_130] : memref<128x128xf32, #tpu.memory_space<vmem>>, vector<128x128xf32>
    %cst_131 = arith.constant dense<0.000000e+00> : vector<1x128xf32>
    %162 = tpu.matmul %160, %161, %cst_131 {dimension_numbers = #tpu.dot_dimension_numbers<[1], [0], [0], [1], [0, 0, 1, 1], [], []>} : vector<1x128xf32>, vector<128x128xf32>, vector<1x128xf32> -> vector<1x128xf32>
    %cst_132 = arith.constant 3.125000e-02 : f32
    %163 = vector.broadcast %cst_132 : f32 to vector<1x128xf32>
    %164 = arith.mulf %162, %163 : vector<1x128xf32>
    %c0_133 = arith.constant 0 : index
    %c0_134 = arith.constant 0 : index
    %165 = vector.load %arg15[%c0_133, %c0_134] : memref<1x128xf32, #tpu.memory_space<vmem>>, vector<1x128xf32>
    %cst_135 = arith.constant 9.99999974E-6 : f32
    %166 = vector.broadcast %cst_135 : f32 to vector<1x128xf32>
    %167 = arith.addf %164, %166 : vector<1x128xf32>
    %168 = math.rsqrt %167 : vector<1x128xf32>
    %169 = arith.mulf %165, %168 : vector<1x128xf32>
    %170 = vector.broadcast %169 : vector<1x128xf32> to vector<4x128xf32>
    %171 = arith.mulf %157, %170 : vector<4x128xf32>
    %c0_136 = arith.constant 0 : index
    %c0_137 = arith.constant 0 : index
    %172 = vector.load %arg16[%c0_136, %c0_137] : memref<1x128xf32, #tpu.memory_space<vmem>>, vector<1x128xf32>
    %173 = vector.broadcast %172 : vector<1x128xf32> to vector<4x128xf32>
    %174 = arith.addf %171, %173 : vector<4x128xf32>
    %cst_138 = arith.constant 0.000000e+00 : f32
    %175 = vector.broadcast %cst_138 : f32 to vector<4x128xf32>
    %176 = arith.cmpf oge, %174, %175 : vector<4x128xf32>
    %cst_139 = arith.constant 2.000000e-01 : f32
    %177 = vector.broadcast %cst_139 : f32 to vector<4x128xf32>
    %178 = arith.mulf %177, %174 : vector<4x128xf32>
    %179 = arith.select %176, %174, %178 : vector<4x128xi1>, vector<4x128xf32>
    %180 = arith.truncf %179 : vector<4x128xf32> to vector<4x128xbf16>
    %cst_140 = arith.constant 0.000000e+00 : f32
    %181 = vector.broadcast %cst_140 : f32 to vector<4x256xf32>
    %c0_141 = arith.constant 0 : index
    %c0_142 = arith.constant 0 : index
    %c0_143 = arith.constant 0 : index
    %182 = vector.load %arg17[%c0_141, %c0_142, %c0_143] : memref<3x4x4xbf16, #tpu.memory_space<vmem>>, vector<1x4x4xbf16>
    %183 = vector.shape_cast %182 : vector<1x4x4xbf16> to vector<4x4xbf16>
    %cst_144 = arith.constant dense<0.000000e+00> : vector<4x128xf32>
    %184 = tpu.matmul %183, %180, %cst_144 {dimension_numbers = #tpu.dot_dimension_numbers<[1], [0], [0], [1], [0, 0, 1, 1], [], []>} : vector<4x4xbf16>, vector<4x128xbf16>, vector<4x128xf32> -> vector<4x128xf32>
    %185 = arith.truncf %184 : vector<4x128xf32> to vector<4x128xbf16>
    %c0_145 = arith.constant 0 : index
    %c0_146 = arith.constant 0 : index
    %c0_147 = arith.constant 0 : index
    %186 = vector.load %arg18[%c0_145, %c0_146, %c0_147] : memref<3x128x256xbf16, #tpu.memory_space<vmem>>, vector<1x128x256xbf16>
    %187 = vector.shape_cast %186 : vector<1x128x256xbf16> to vector<128x256xbf16>
    %cst_148 = arith.constant dense<0.000000e+00> : vector<4x256xf32>
    %188 = tpu.matmul %185, %187, %cst_148 {dimension_numbers = #tpu.dot_dimension_numbers<[1], [0], [0], [1], [0, 0, 1, 1], [], []>} : vector<4x128xbf16>, vector<128x256xbf16>, vector<4x256xf32> -> vector<4x256xf32>
    %189 = arith.addf %181, %188 : vector<4x256xf32>
    %c1_149 = arith.constant 1 : index
    %c0_150 = arith.constant 0 : index
    %c0_151 = arith.constant 0 : index
    %190 = vector.load %arg17[%c1_149, %c0_150, %c0_151] : memref<3x4x4xbf16, #tpu.memory_space<vmem>>, vector<1x4x4xbf16>
    %191 = vector.shape_cast %190 : vector<1x4x4xbf16> to vector<4x4xbf16>
    %cst_152 = arith.constant dense<0.000000e+00> : vector<4x128xf32>
    %192 = tpu.matmul %191, %180, %cst_152 {dimension_numbers = #tpu.dot_dimension_numbers<[1], [0], [0], [1], [0, 0, 1, 1], [], []>} : vector<4x4xbf16>, vector<4x128xbf16>, vector<4x128xf32> -> vector<4x128xf32>
    %193 = arith.truncf %192 : vector<4x128xf32> to vector<4x128xbf16>
    %c1_153 = arith.constant 1 : index
    %c0_154 = arith.constant 0 : index
    %c0_155 = arith.constant 0 : index
    %194 = vector.load %arg18[%c1_153, %c0_154, %c0_155] : memref<3x128x256xbf16, #tpu.memory_space<vmem>>, vector<1x128x256xbf16>
    %195 = vector.shape_cast %194 : vector<1x128x256xbf16> to vector<128x256xbf16>
    %cst_156 = arith.constant dense<0.000000e+00> : vector<4x256xf32>
    %196 = tpu.matmul %193, %195, %cst_156 {dimension_numbers = #tpu.dot_dimension_numbers<[1], [0], [0], [1], [0, 0, 1, 1], [], []>} : vector<4x128xbf16>, vector<128x256xbf16>, vector<4x256xf32> -> vector<4x256xf32>
    %197 = arith.addf %189, %196 : vector<4x256xf32>
    %c2_157 = arith.constant 2 : index
    %c0_158 = arith.constant 0 : index
    %c0_159 = arith.constant 0 : index
    %198 = vector.load %arg17[%c2_157, %c0_158, %c0_159] : memref<3x4x4xbf16, #tpu.memory_space<vmem>>, vector<1x4x4xbf16>
    %199 = vector.shape_cast %198 : vector<1x4x4xbf16> to vector<4x4xbf16>
    %cst_160 = arith.constant dense<0.000000e+00> : vector<4x128xf32>
    %200 = tpu.matmul %199, %180, %cst_160 {dimension_numbers = #tpu.dot_dimension_numbers<[1], [0], [0], [1], [0, 0, 1, 1], [], []>} : vector<4x4xbf16>, vector<4x128xbf16>, vector<4x128xf32> -> vector<4x128xf32>
    %201 = arith.truncf %200 : vector<4x128xf32> to vector<4x128xbf16>
    %c2_161 = arith.constant 2 : index
    %c0_162 = arith.constant 0 : index
    %c0_163 = arith.constant 0 : index
    %202 = vector.load %arg18[%c2_161, %c0_162, %c0_163] : memref<3x128x256xbf16, #tpu.memory_space<vmem>>, vector<1x128x256xbf16>
    %203 = vector.shape_cast %202 : vector<1x128x256xbf16> to vector<128x256xbf16>
    %cst_164 = arith.constant dense<0.000000e+00> : vector<4x256xf32>
    %204 = tpu.matmul %201, %203, %cst_164 {dimension_numbers = #tpu.dot_dimension_numbers<[1], [0], [0], [1], [0, 0, 1, 1], [], []>} : vector<4x128xbf16>, vector<128x256xbf16>, vector<4x256xf32> -> vector<4x256xf32>
    %205 = arith.addf %197, %204 : vector<4x256xf32>
    %cst_165 = arith.constant dense<0.000000e+00> : vector<256xf32>
    %206 = vector.multi_reduction <add>, %205, %cst_165 [0] : vector<4x256xf32> to vector<256xf32>
    %207 = vector.shape_cast %206 : vector<256xf32> to vector<1x256xf32>
    %c0_166 = arith.constant 0 : index
    %c0_167 = arith.constant 0 : index
    %208 = vector.load %arg19[%c0_166, %c0_167] : memref<256x256xf32, #tpu.memory_space<vmem>>, vector<256x256xf32>
    %cst_168 = arith.constant dense<0.000000e+00> : vector<1x256xf32>
    %209 = tpu.matmul %207, %208, %cst_168 {dimension_numbers = #tpu.dot_dimension_numbers<[1], [0], [0], [1], [0, 0, 1, 1], [], []>} : vector<1x256xf32>, vector<256x256xf32>, vector<1x256xf32> -> vector<1x256xf32>
    %cst_169 = arith.constant 3.125000e-02 : f32
    %210 = vector.broadcast %cst_169 : f32 to vector<1x256xf32>
    %211 = arith.mulf %209, %210 : vector<1x256xf32>
    %212 = vector.broadcast %211 : vector<1x256xf32> to vector<4x256xf32>
    %213 = arith.subf %205, %212 : vector<4x256xf32>
    %214 = arith.mulf %213, %213 : vector<4x256xf32>
    %cst_170 = arith.constant dense<0.000000e+00> : vector<256xf32>
    %215 = vector.multi_reduction <add>, %214, %cst_170 [0] : vector<4x256xf32> to vector<256xf32>
    %216 = vector.shape_cast %215 : vector<256xf32> to vector<1x256xf32>
    %c0_171 = arith.constant 0 : index
    %c0_172 = arith.constant 0 : index
    %217 = vector.load %arg19[%c0_171, %c0_172] : memref<256x256xf32, #tpu.memory_space<vmem>>, vector<256x256xf32>
    %cst_173 = arith.constant dense<0.000000e+00> : vector<1x256xf32>
    %218 = tpu.matmul %216, %217, %cst_173 {dimension_numbers = #tpu.dot_dimension_numbers<[1], [0], [0], [1], [0, 0, 1, 1], [], []>} : vector<1x256xf32>, vector<256x256xf32>, vector<1x256xf32> -> vector<1x256xf32>
    %cst_174 = arith.constant 3.125000e-02 : f32
    %219 = vector.broadcast %cst_174 : f32 to vector<1x256xf32>
    %220 = arith.mulf %218, %219 : vector<1x256xf32>
    %c0_175 = arith.constant 0 : index
    %c0_176 = arith.constant 0 : index
    %221 = vector.load %arg20[%c0_175, %c0_176] : memref<1x256xf32, #tpu.memory_space<vmem>>, vector<1x256xf32>
    %cst_177 = arith.constant 9.99999974E-6 : f32
    %222 = vector.broadcast %cst_177 : f32 to vector<1x256xf32>
    %223 = arith.addf %220, %222 : vector<1x256xf32>
    %224 = math.rsqrt %223 : vector<1x256xf32>
    %225 = arith.mulf %221, %224 : vector<1x256xf32>
    %226 = vector.broadcast %225 : vector<1x256xf32> to vector<4x256xf32>
    %227 = arith.mulf %213, %226 : vector<4x256xf32>
    %c0_178 = arith.constant 0 : index
    %c0_179 = arith.constant 0 : index
    %228 = vector.load %arg21[%c0_178, %c0_179] : memref<1x256xf32, #tpu.memory_space<vmem>>, vector<1x256xf32>
    %229 = vector.broadcast %228 : vector<1x256xf32> to vector<4x256xf32>
    %230 = arith.addf %227, %229 : vector<4x256xf32>
    %cst_180 = arith.constant 0.000000e+00 : f32
    %231 = vector.broadcast %cst_180 : f32 to vector<4x256xf32>
    %232 = arith.cmpf oge, %230, %231 : vector<4x256xf32>
    %cst_181 = arith.constant 2.000000e-01 : f32
    %233 = vector.broadcast %cst_181 : f32 to vector<4x256xf32>
    %234 = arith.mulf %233, %230 : vector<4x256xf32>
    %235 = arith.select %232, %230, %234 : vector<4x256xi1>, vector<4x256xf32>
    %236 = arith.truncf %235 : vector<4x256xf32> to vector<4x256xbf16>
    %cst_182 = arith.constant 0.000000e+00 : f32
    %237 = vector.broadcast %cst_182 : f32 to vector<2x128xf32>
    %c0_183 = arith.constant 0 : index
    %c0_184 = arith.constant 0 : index
    %c0_185 = arith.constant 0 : index
    %238 = vector.load %arg22[%c0_183, %c0_184, %c0_185] : memref<3x2x4xbf16, #tpu.memory_space<vmem>>, vector<1x2x4xbf16>
    %239 = vector.shape_cast %238 : vector<1x2x4xbf16> to vector<2x4xbf16>
    %cst_186 = arith.constant dense<0.000000e+00> : vector<2x256xf32>
    %240 = tpu.matmul %239, %236, %cst_186 {dimension_numbers = #tpu.dot_dimension_numbers<[1], [0], [0], [1], [0, 0, 1, 1], [], []>} : vector<2x4xbf16>, vector<4x256xbf16>, vector<2x256xf32> -> vector<2x256xf32>
    %241 = arith.truncf %240 : vector<2x256xf32> to vector<2x256xbf16>
    %c0_187 = arith.constant 0 : index
    %c0_188 = arith.constant 0 : index
    %c0_189 = arith.constant 0 : index
    %242 = vector.load %arg23[%c0_187, %c0_188, %c0_189] : memref<3x256x128xbf16, #tpu.memory_space<vmem>>, vector<1x256x128xbf16>
    %243 = vector.shape_cast %242 : vector<1x256x128xbf16> to vector<256x128xbf16>
    %cst_190 = arith.constant dense<0.000000e+00> : vector<2x128xf32>
    %244 = tpu.matmul %241, %243, %cst_190 {dimension_numbers = #tpu.dot_dimension_numbers<[1], [0], [0], [1], [0, 0, 1, 1], [], []>} : vector<2x256xbf16>, vector<256x128xbf16>, vector<2x128xf32> -> vector<2x128xf32>
    %245 = arith.addf %237, %244 : vector<2x128xf32>
    %c1_191 = arith.constant 1 : index
    %c0_192 = arith.constant 0 : index
    %c0_193 = arith.constant 0 : index
    %246 = vector.load %arg22[%c1_191, %c0_192, %c0_193] : memref<3x2x4xbf16, #tpu.memory_space<vmem>>, vector<1x2x4xbf16>
    %247 = vector.shape_cast %246 : vector<1x2x4xbf16> to vector<2x4xbf16>
    %cst_194 = arith.constant dense<0.000000e+00> : vector<2x256xf32>
    %248 = tpu.matmul %247, %236, %cst_194 {dimension_numbers = #tpu.dot_dimension_numbers<[1], [0], [0], [1], [0, 0, 1, 1], [], []>} : vector<2x4xbf16>, vector<4x256xbf16>, vector<2x256xf32> -> vector<2x256xf32>
    %249 = arith.truncf %248 : vector<2x256xf32> to vector<2x256xbf16>
    %c1_195 = arith.constant 1 : index
    %c0_196 = arith.constant 0 : index
    %c0_197 = arith.constant 0 : index
    %250 = vector.load %arg23[%c1_195, %c0_196, %c0_197] : memref<3x256x128xbf16, #tpu.memory_space<vmem>>, vector<1x256x128xbf16>
    %251 = vector.shape_cast %250 : vector<1x256x128xbf16> to vector<256x128xbf16>
    %cst_198 = arith.constant dense<0.000000e+00> : vector<2x128xf32>
    %252 = tpu.matmul %249, %251, %cst_198 {dimension_numbers = #tpu.dot_dimension_numbers<[1], [0], [0], [1], [0, 0, 1, 1], [], []>} : vector<2x256xbf16>, vector<256x128xbf16>, vector<2x128xf32> -> vector<2x128xf32>
    %253 = arith.addf %245, %252 : vector<2x128xf32>
    %c2_199 = arith.constant 2 : index
    %c0_200 = arith.constant 0 : index
    %c0_201 = arith.constant 0 : index
    %254 = vector.load %arg22[%c2_199, %c0_200, %c0_201] : memref<3x2x4xbf16, #tpu.memory_space<vmem>>, vector<1x2x4xbf16>
    %255 = vector.shape_cast %254 : vector<1x2x4xbf16> to vector<2x4xbf16>
    %cst_202 = arith.constant dense<0.000000e+00> : vector<2x256xf32>
    %256 = tpu.matmul %255, %236, %cst_202 {dimension_numbers = #tpu.dot_dimension_numbers<[1], [0], [0], [1], [0, 0, 1, 1], [], []>} : vector<2x4xbf16>, vector<4x256xbf16>, vector<2x256xf32> -> vector<2x256xf32>
    %257 = arith.truncf %256 : vector<2x256xf32> to vector<2x256xbf16>
    %c2_203 = arith.constant 2 : index
    %c0_204 = arith.constant 0 : index
    %c0_205 = arith.constant 0 : index
    %258 = vector.load %arg23[%c2_203, %c0_204, %c0_205] : memref<3x256x128xbf16, #tpu.memory_space<vmem>>, vector<1x256x128xbf16>
    %259 = vector.shape_cast %258 : vector<1x256x128xbf16> to vector<256x128xbf16>
    %cst_206 = arith.constant dense<0.000000e+00> : vector<2x128xf32>
    %260 = tpu.matmul %257, %259, %cst_206 {dimension_numbers = #tpu.dot_dimension_numbers<[1], [0], [0], [1], [0, 0, 1, 1], [], []>} : vector<2x256xbf16>, vector<256x128xbf16>, vector<2x128xf32> -> vector<2x128xf32>
    %261 = arith.addf %253, %260 : vector<2x128xf32>
    %cst_207 = arith.constant dense<0.000000e+00> : vector<128xf32>
    %262 = vector.multi_reduction <add>, %261, %cst_207 [0] : vector<2x128xf32> to vector<128xf32>
    %263 = vector.shape_cast %262 : vector<128xf32> to vector<1x128xf32>
    %c0_208 = arith.constant 0 : index
    %c0_209 = arith.constant 0 : index
    %264 = vector.load %arg24[%c0_208, %c0_209] : memref<128x128xf32, #tpu.memory_space<vmem>>, vector<128x128xf32>
    %cst_210 = arith.constant dense<0.000000e+00> : vector<1x128xf32>
    %265 = tpu.matmul %263, %264, %cst_210 {dimension_numbers = #tpu.dot_dimension_numbers<[1], [0], [0], [1], [0, 0, 1, 1], [], []>} : vector<1x128xf32>, vector<128x128xf32>, vector<1x128xf32> -> vector<1x128xf32>
    %cst_211 = arith.constant 1.250000e-01 : f32
    %266 = vector.broadcast %cst_211 : f32 to vector<1x128xf32>
    %267 = arith.mulf %265, %266 : vector<1x128xf32>
    %268 = vector.broadcast %267 : vector<1x128xf32> to vector<2x128xf32>
    %269 = arith.subf %261, %268 : vector<2x128xf32>
    %270 = arith.mulf %269, %269 : vector<2x128xf32>
    %cst_212 = arith.constant dense<0.000000e+00> : vector<128xf32>
    %271 = vector.multi_reduction <add>, %270, %cst_212 [0] : vector<2x128xf32> to vector<128xf32>
    %272 = vector.shape_cast %271 : vector<128xf32> to vector<1x128xf32>
    %c0_213 = arith.constant 0 : index
    %c0_214 = arith.constant 0 : index
    %273 = vector.load %arg24[%c0_213, %c0_214] : memref<128x128xf32, #tpu.memory_space<vmem>>, vector<128x128xf32>
    %cst_215 = arith.constant dense<0.000000e+00> : vector<1x128xf32>
    %274 = tpu.matmul %272, %273, %cst_215 {dimension_numbers = #tpu.dot_dimension_numbers<[1], [0], [0], [1], [0, 0, 1, 1], [], []>} : vector<1x128xf32>, vector<128x128xf32>, vector<1x128xf32> -> vector<1x128xf32>
    %cst_216 = arith.constant 1.250000e-01 : f32
    %275 = vector.broadcast %cst_216 : f32 to vector<1x128xf32>
    %276 = arith.mulf %274, %275 : vector<1x128xf32>
    %c0_217 = arith.constant 0 : index
    %c0_218 = arith.constant 0 : index
    %277 = vector.load %arg25[%c0_217, %c0_218] : memref<1x128xf32, #tpu.memory_space<vmem>>, vector<1x128xf32>
    %cst_219 = arith.constant 9.99999974E-6 : f32
    %278 = vector.broadcast %cst_219 : f32 to vector<1x128xf32>
    %279 = arith.addf %276, %278 : vector<1x128xf32>
    %280 = math.rsqrt %279 : vector<1x128xf32>
    %281 = arith.mulf %277, %280 : vector<1x128xf32>
    %282 = vector.broadcast %281 : vector<1x128xf32> to vector<2x128xf32>
    %283 = arith.mulf %269, %282 : vector<2x128xf32>
    %c0_220 = arith.constant 0 : index
    %c0_221 = arith.constant 0 : index
    %284 = vector.load %arg26[%c0_220, %c0_221] : memref<1x128xf32, #tpu.memory_space<vmem>>, vector<1x128xf32>
    %285 = vector.broadcast %284 : vector<1x128xf32> to vector<2x128xf32>
    %286 = arith.addf %283, %285 : vector<2x128xf32>
    %cst_222 = arith.constant 0.000000e+00 : f32
    %287 = vector.broadcast %cst_222 : f32 to vector<2x128xf32>
    %288 = arith.cmpf oge, %286, %287 : vector<2x128xf32>
    %cst_223 = arith.constant 2.000000e-01 : f32
    %289 = vector.broadcast %cst_223 : f32 to vector<2x128xf32>
    %290 = arith.mulf %289, %286 : vector<2x128xf32>
    %291 = arith.select %288, %286, %290 : vector<2x128xi1>, vector<2x128xf32>
    %292 = arith.truncf %291 : vector<2x128xf32> to vector<2x128xbf16>
    %cst_224 = arith.constant 0.000000e+00 : f32
    %293 = vector.broadcast %cst_224 : f32 to vector<2x256xf32>
    %c0_225 = arith.constant 0 : index
    %c0_226 = arith.constant 0 : index
    %c0_227 = arith.constant 0 : index
    %294 = vector.load %arg27[%c0_225, %c0_226, %c0_227] : memref<3x2x2xbf16, #tpu.memory_space<vmem>>, vector<1x2x2xbf16>
    %295 = vector.shape_cast %294 : vector<1x2x2xbf16> to vector<2x2xbf16>
    %cst_228 = arith.constant dense<0.000000e+00> : vector<2x128xf32>
    %296 = tpu.matmul %295, %292, %cst_228 {dimension_numbers = #tpu.dot_dimension_numbers<[1], [0], [0], [1], [0, 0, 1, 1], [], []>} : vector<2x2xbf16>, vector<2x128xbf16>, vector<2x128xf32> -> vector<2x128xf32>
    %297 = arith.truncf %296 : vector<2x128xf32> to vector<2x128xbf16>
    %c0_229 = arith.constant 0 : index
    %c0_230 = arith.constant 0 : index
    %c0_231 = arith.constant 0 : index
    %298 = vector.load %arg28[%c0_229, %c0_230, %c0_231] : memref<3x128x256xbf16, #tpu.memory_space<vmem>>, vector<1x128x256xbf16>
    %299 = vector.shape_cast %298 : vector<1x128x256xbf16> to vector<128x256xbf16>
    %cst_232 = arith.constant dense<0.000000e+00> : vector<2x256xf32>
    %300 = tpu.matmul %297, %299, %cst_232 {dimension_numbers = #tpu.dot_dimension_numbers<[1], [0], [0], [1], [0, 0, 1, 1], [], []>} : vector<2x128xbf16>, vector<128x256xbf16>, vector<2x256xf32> -> vector<2x256xf32>
    %301 = arith.addf %293, %300 : vector<2x256xf32>
    %c1_233 = arith.constant 1 : index
    %c0_234 = arith.constant 0 : index
    %c0_235 = arith.constant 0 : index
    %302 = vector.load %arg27[%c1_233, %c0_234, %c0_235] : memref<3x2x2xbf16, #tpu.memory_space<vmem>>, vector<1x2x2xbf16>
    %303 = vector.shape_cast %302 : vector<1x2x2xbf16> to vector<2x2xbf16>
    %cst_236 = arith.constant dense<0.000000e+00> : vector<2x128xf32>
    %304 = tpu.matmul %303, %292, %cst_236 {dimension_numbers = #tpu.dot_dimension_numbers<[1], [0], [0], [1], [0, 0, 1, 1], [], []>} : vector<2x2xbf16>, vector<2x128xbf16>, vector<2x128xf32> -> vector<2x128xf32>
    %305 = arith.truncf %304 : vector<2x128xf32> to vector<2x128xbf16>
    %c1_237 = arith.constant 1 : index
    %c0_238 = arith.constant 0 : index
    %c0_239 = arith.constant 0 : index
    %306 = vector.load %arg28[%c1_237, %c0_238, %c0_239] : memref<3x128x256xbf16, #tpu.memory_space<vmem>>, vector<1x128x256xbf16>
    %307 = vector.shape_cast %306 : vector<1x128x256xbf16> to vector<128x256xbf16>
    %cst_240 = arith.constant dense<0.000000e+00> : vector<2x256xf32>
    %308 = tpu.matmul %305, %307, %cst_240 {dimension_numbers = #tpu.dot_dimension_numbers<[1], [0], [0], [1], [0, 0, 1, 1], [], []>} : vector<2x128xbf16>, vector<128x256xbf16>, vector<2x256xf32> -> vector<2x256xf32>
    %309 = arith.addf %301, %308 : vector<2x256xf32>
    %c2_241 = arith.constant 2 : index
    %c0_242 = arith.constant 0 : index
    %c0_243 = arith.constant 0 : index
    %310 = vector.load %arg27[%c2_241, %c0_242, %c0_243] : memref<3x2x2xbf16, #tpu.memory_space<vmem>>, vector<1x2x2xbf16>
    %311 = vector.shape_cast %310 : vector<1x2x2xbf16> to vector<2x2xbf16>
    %cst_244 = arith.constant dense<0.000000e+00> : vector<2x128xf32>
    %312 = tpu.matmul %311, %292, %cst_244 {dimension_numbers = #tpu.dot_dimension_numbers<[1], [0], [0], [1], [0, 0, 1, 1], [], []>} : vector<2x2xbf16>, vector<2x128xbf16>, vector<2x128xf32> -> vector<2x128xf32>
    %313 = arith.truncf %312 : vector<2x128xf32> to vector<2x128xbf16>
    %c2_245 = arith.constant 2 : index
    %c0_246 = arith.constant 0 : index
    %c0_247 = arith.constant 0 : index
    %314 = vector.load %arg28[%c2_245, %c0_246, %c0_247] : memref<3x128x256xbf16, #tpu.memory_space<vmem>>, vector<1x128x256xbf16>
    %315 = vector.shape_cast %314 : vector<1x128x256xbf16> to vector<128x256xbf16>
    %cst_248 = arith.constant dense<0.000000e+00> : vector<2x256xf32>
    %316 = tpu.matmul %313, %315, %cst_248 {dimension_numbers = #tpu.dot_dimension_numbers<[1], [0], [0], [1], [0, 0, 1, 1], [], []>} : vector<2x128xbf16>, vector<128x256xbf16>, vector<2x256xf32> -> vector<2x256xf32>
    %317 = arith.addf %309, %316 : vector<2x256xf32>
    %cst_249 = arith.constant dense<0.000000e+00> : vector<256xf32>
    %318 = vector.multi_reduction <add>, %317, %cst_249 [0] : vector<2x256xf32> to vector<256xf32>
    %319 = vector.shape_cast %318 : vector<256xf32> to vector<1x256xf32>
    %c0_250 = arith.constant 0 : index
    %c0_251 = arith.constant 0 : index
    %320 = vector.load %arg29[%c0_250, %c0_251] : memref<256x256xf32, #tpu.memory_space<vmem>>, vector<256x256xf32>
    %cst_252 = arith.constant dense<0.000000e+00> : vector<1x256xf32>
    %321 = tpu.matmul %319, %320, %cst_252 {dimension_numbers = #tpu.dot_dimension_numbers<[1], [0], [0], [1], [0, 0, 1, 1], [], []>} : vector<1x256xf32>, vector<256x256xf32>, vector<1x256xf32> -> vector<1x256xf32>
    %cst_253 = arith.constant 1.250000e-01 : f32
    %322 = vector.broadcast %cst_253 : f32 to vector<1x256xf32>
    %323 = arith.mulf %321, %322 : vector<1x256xf32>
    %324 = vector.broadcast %323 : vector<1x256xf32> to vector<2x256xf32>
    %325 = arith.subf %317, %324 : vector<2x256xf32>
    %326 = arith.mulf %325, %325 : vector<2x256xf32>
    %cst_254 = arith.constant dense<0.000000e+00> : vector<256xf32>
    %327 = vector.multi_reduction <add>, %326, %cst_254 [0] : vector<2x256xf32> to vector<256xf32>
    %328 = vector.shape_cast %327 : vector<256xf32> to vector<1x256xf32>
    %c0_255 = arith.constant 0 : index
    %c0_256 = arith.constant 0 : index
    %329 = vector.load %arg29[%c0_255, %c0_256] : memref<256x256xf32, #tpu.memory_space<vmem>>, vector<256x256xf32>
    %cst_257 = arith.constant dense<0.000000e+00> : vector<1x256xf32>
    %330 = tpu.matmul %328, %329, %cst_257 {dimension_numbers = #tpu.dot_dimension_numbers<[1], [0], [0], [1], [0, 0, 1, 1], [], []>} : vector<1x256xf32>, vector<256x256xf32>, vector<1x256xf32> -> vector<1x256xf32>
    %cst_258 = arith.constant 1.250000e-01 : f32
    %331 = vector.broadcast %cst_258 : f32 to vector<1x256xf32>
    %332 = arith.mulf %330, %331 : vector<1x256xf32>
    %c0_259 = arith.constant 0 : index
    %c0_260 = arith.constant 0 : index
    %333 = vector.load %arg30[%c0_259, %c0_260] : memref<1x256xf32, #tpu.memory_space<vmem>>, vector<1x256xf32>
    %cst_261 = arith.constant 9.99999974E-6 : f32
    %334 = vector.broadcast %cst_261 : f32 to vector<1x256xf32>
    %335 = arith.addf %332, %334 : vector<1x256xf32>
    %336 = math.rsqrt %335 : vector<1x256xf32>
    %337 = arith.mulf %333, %336 : vector<1x256xf32>
    %338 = vector.broadcast %337 : vector<1x256xf32> to vector<2x256xf32>
    %339 = arith.mulf %325, %338 : vector<2x256xf32>
    %c0_262 = arith.constant 0 : index
    %c0_263 = arith.constant 0 : index
    %340 = vector.load %arg31[%c0_262, %c0_263] : memref<1x256xf32, #tpu.memory_space<vmem>>, vector<1x256xf32>
    %341 = vector.broadcast %340 : vector<1x256xf32> to vector<2x256xf32>
    %342 = arith.addf %339, %341 : vector<2x256xf32>
    %cst_264 = arith.constant 0.000000e+00 : f32
    %343 = vector.broadcast %cst_264 : f32 to vector<2x256xf32>
    %344 = arith.cmpf oge, %342, %343 : vector<2x256xf32>
    %cst_265 = arith.constant 2.000000e-01 : f32
    %345 = vector.broadcast %cst_265 : f32 to vector<2x256xf32>
    %346 = arith.mulf %345, %342 : vector<2x256xf32>
    %347 = arith.select %344, %342, %346 : vector<2x256xi1>, vector<2x256xf32>
    %348 = arith.truncf %347 : vector<2x256xf32> to vector<2x256xbf16>
    %cst_266 = arith.constant 0.000000e+00 : f32
    %349 = vector.broadcast %cst_266 : f32 to vector<2x4xf32>
    %c0_267 = arith.constant 0 : index
    %c0_268 = arith.constant 0 : index
    %c0_269 = arith.constant 0 : index
    %350 = vector.load %arg32[%c0_267, %c0_268, %c0_269] : memref<3x2x2xbf16, #tpu.memory_space<vmem>>, vector<1x2x2xbf16>
    %351 = vector.shape_cast %350 : vector<1x2x2xbf16> to vector<2x2xbf16>
    %cst_270 = arith.constant dense<0.000000e+00> : vector<2x256xf32>
    %352 = tpu.matmul %351, %348, %cst_270 {dimension_numbers = #tpu.dot_dimension_numbers<[1], [0], [0], [1], [0, 0, 1, 1], [], []>} : vector<2x2xbf16>, vector<2x256xbf16>, vector<2x256xf32> -> vector<2x256xf32>
    %353 = arith.truncf %352 : vector<2x256xf32> to vector<2x256xbf16>
    %c0_271 = arith.constant 0 : index
    %c0_272 = arith.constant 0 : index
    %c0_273 = arith.constant 0 : index
    %354 = vector.load %arg33[%c0_271, %c0_272, %c0_273] : memref<3x256x4xbf16, #tpu.memory_space<vmem>>, vector<1x256x4xbf16>
    %355 = vector.shape_cast %354 : vector<1x256x4xbf16> to vector<256x4xbf16>
    %cst_274 = arith.constant dense<0.000000e+00> : vector<2x4xf32>
    %356 = tpu.matmul %353, %355, %cst_274 {dimension_numbers = #tpu.dot_dimension_numbers<[1], [0], [0], [1], [0, 0, 1, 1], [], []>} : vector<2x256xbf16>, vector<256x4xbf16>, vector<2x4xf32> -> vector<2x4xf32>
    %357 = arith.addf %349, %356 : vector<2x4xf32>
    %c1_275 = arith.constant 1 : index
    %c0_276 = arith.constant 0 : index
    %c0_277 = arith.constant 0 : index
    %358 = vector.load %arg32[%c1_275, %c0_276, %c0_277] : memref<3x2x2xbf16, #tpu.memory_space<vmem>>, vector<1x2x2xbf16>
    %359 = vector.shape_cast %358 : vector<1x2x2xbf16> to vector<2x2xbf16>
    %cst_278 = arith.constant dense<0.000000e+00> : vector<2x256xf32>
    %360 = tpu.matmul %359, %348, %cst_278 {dimension_numbers = #tpu.dot_dimension_numbers<[1], [0], [0], [1], [0, 0, 1, 1], [], []>} : vector<2x2xbf16>, vector<2x256xbf16>, vector<2x256xf32> -> vector<2x256xf32>
    %361 = arith.truncf %360 : vector<2x256xf32> to vector<2x256xbf16>
    %c1_279 = arith.constant 1 : index
    %c0_280 = arith.constant 0 : index
    %c0_281 = arith.constant 0 : index
    %362 = vector.load %arg33[%c1_279, %c0_280, %c0_281] : memref<3x256x4xbf16, #tpu.memory_space<vmem>>, vector<1x256x4xbf16>
    %363 = vector.shape_cast %362 : vector<1x256x4xbf16> to vector<256x4xbf16>
    %cst_282 = arith.constant dense<0.000000e+00> : vector<2x4xf32>
    %364 = tpu.matmul %361, %363, %cst_282 {dimension_numbers = #tpu.dot_dimension_numbers<[1], [0], [0], [1], [0, 0, 1, 1], [], []>} : vector<2x256xbf16>, vector<256x4xbf16>, vector<2x4xf32> -> vector<2x4xf32>
    %365 = arith.addf %357, %364 : vector<2x4xf32>
    %c2_283 = arith.constant 2 : index
    %c0_284 = arith.constant 0 : index
    %c0_285 = arith.constant 0 : index
    %366 = vector.load %arg32[%c2_283, %c0_284, %c0_285] : memref<3x2x2xbf16, #tpu.memory_space<vmem>>, vector<1x2x2xbf16>
    %367 = vector.shape_cast %366 : vector<1x2x2xbf16> to vector<2x2xbf16>
    %cst_286 = arith.constant dense<0.000000e+00> : vector<2x256xf32>
    %368 = tpu.matmul %367, %348, %cst_286 {dimension_numbers = #tpu.dot_dimension_numbers<[1], [0], [0], [1], [0, 0, 1, 1], [], []>} : vector<2x2xbf16>, vector<2x256xbf16>, vector<2x256xf32> -> vector<2x256xf32>
    %369 = arith.truncf %368 : vector<2x256xf32> to vector<2x256xbf16>
    %c2_287 = arith.constant 2 : index
    %c0_288 = arith.constant 0 : index
    %c0_289 = arith.constant 0 : index
    %370 = vector.load %arg33[%c2_287, %c0_288, %c0_289] : memref<3x256x4xbf16, #tpu.memory_space<vmem>>, vector<1x256x4xbf16>
    %371 = vector.shape_cast %370 : vector<1x256x4xbf16> to vector<256x4xbf16>
    %cst_290 = arith.constant dense<0.000000e+00> : vector<2x4xf32>
    %372 = tpu.matmul %369, %371, %cst_290 {dimension_numbers = #tpu.dot_dimension_numbers<[1], [0], [0], [1], [0, 0, 1, 1], [], []>} : vector<2x256xbf16>, vector<256x4xbf16>, vector<2x4xf32> -> vector<2x4xf32>
    %373 = arith.addf %365, %372 : vector<2x4xf32>
    %c0_291 = arith.constant 0 : index
    %c0_292 = arith.constant 0 : index
    %374 = vector.load %arg34[%c0_291, %c0_292] : memref<1x4xf32, #tpu.memory_space<vmem>>, vector<1x4xf32>
    %375 = vector.broadcast %374 : vector<1x4xf32> to vector<2x4xf32>
    %376 = arith.addf %373, %375 : vector<2x4xf32>
    %c0_293 = arith.constant 0 : index
    %c0_294 = arith.constant 0 : index
    %377 = vector.load %arg35[%c0_293, %c0_294] : memref<2x4xf32, #tpu.memory_space<vmem>>, vector<2x4xf32>
    tpu.vector_store %arg35[%c0_293, %c0_294], %376 {strides = array<i32>} : memref<2x4xf32, #tpu.memory_space<vmem>>, vector<2x4xf32>,
    return
  }
}

</mosaic_0001>

<llo_original>
// kernel: patchgan_forward.1
$region0: #{patchgan_forward.1}
  #allocation0 [shape = 'u32[]', space=smem, size = 0x4, offset = 0x4, fixed_abs, tag = 'smem constant byte address 0x4 - core index']
  #allocation1 [shape = 'u32[144,128]{1,0:T(1,128)}', space=vmem, size = 0x12000, scoped, tag = 'internal scratch']
  %s0 = inlined_call_operand.smem [shape: u32[36], index: -1, kind: input, shape index: {}]
  %s1 = sld [smem:[%s0]]
  %s2 = scalar_lea.smem %s0, 1
  %s3 = sld [smem:[%s2]]
  %s4 = scalar_lea.smem %s0, 2
  %s5 = sld [smem:[%s4]]
  %s6 = scalar_lea.smem %s0, 3
  %s7 = sld [smem:[%s6]]
  %s8 = scalar_lea.smem %s0, 4
  %s9 = sld [smem:[%s8]]
  %s10 = scalar_lea.smem %s0, 5
  %s11 = sld [smem:[%s10]]
  %s12 = scalar_lea.smem %s0, 6
  %s13 = sld [smem:[%s12]]
  %s14 = scalar_lea.smem %s0, 7
  %s15 = sld [smem:[%s14]]
  %s16 = scalar_lea.smem %s0, 8
  %s17 = sld [smem:[%s16]]
  %s18 = scalar_lea.smem %s0, 9
  %s19 = sld [smem:[%s18]]
  %s20 = scalar_lea.smem %s0, 10
  %s21 = sld [smem:[%s20]]
  %s22 = scalar_lea.smem %s0, 11
  %s23 = sld [smem:[%s22]]
  %s24 = scalar_lea.smem %s0, 12
  %s25 = sld [smem:[%s24]]
  %s26 = scalar_lea.smem %s0, 13
  %s27 = sld [smem:[%s26]]
  %s28 = scalar_lea.smem %s0, 14
  %s29 = sld [smem:[%s28]]
  %s30 = scalar_lea.smem %s0, 15
  %s31 = sld [smem:[%s30]]
  %s32 = scalar_lea.smem %s0, 16
  %s33 = sld [smem:[%s32]]
  %s34 = scalar_lea.smem %s0, 17
  %s35 = sld [smem:[%s34]]
  %s36 = scalar_lea.smem %s0, 18
  %s37 = sld [smem:[%s36]]
  %s38 = scalar_lea.smem %s0, 19
  %s39 = sld [smem:[%s38]]
  %s40 = scalar_lea.smem %s0, 20
  %s41 = sld [smem:[%s40]]
  %s42 = scalar_lea.smem %s0, 21
  %s43 = sld [smem:[%s42]]
  %s44 = scalar_lea.smem %s0, 22
  %s45 = sld [smem:[%s44]]
  %s46 = scalar_lea.smem %s0, 23
  %s47 = sld [smem:[%s46]]
  %s48 = scalar_lea.smem %s0, 24
  %s49 = sld [smem:[%s48]]
  %s50 = scalar_lea.smem %s0, 25
  %s51 = sld [smem:[%s50]]
  %s52 = scalar_lea.smem %s0, 26
  %s53 = sld [smem:[%s52]]
  %s54 = scalar_lea.smem %s0, 27
  %s55 = sld [smem:[%s54]]
  %s56 = scalar_lea.smem %s0, 28
  %s57 = sld [smem:[%s56]]
  %s58 = scalar_lea.smem %s0, 29
  %s59 = sld [smem:[%s58]]
  %s60 = scalar_lea.smem %s0, 30
  %s61 = sld [smem:[%s60]]
  %s62 = scalar_lea.smem %s0, 31
  %s63 = sld [smem:[%s62]]
  %s64 = scalar_lea.smem %s0, 32
  %s65 = sld [smem:[%s64]]
  %s66 = scalar_lea.smem %s0, 33
  %s67 = sld [smem:[%s66]]
  %s68 = scalar_lea.smem %s0, 34
  %s69 = sld [smem:[%s68]]
  %s70 = scalar_lea.smem %s0, 35
  %s71 = sld [smem:[%s70]]
  %s72 = sld [smem:[#allocation0]]
  $region250: #{patchgan_forward.1} parent=0
    _
  %s74 = ssub.s32 1, %s72
  %s75 = scalar_select 0, %s74, %s72
  $region1: #{patchgan_forward.1} parent=0
    #allocation2 [shape = 'u8[12288]{0}', space=vmem, size = 0x3000, scoped, tag = 'input window, operand 1, single buffered']
    #allocation3 [shape = 's32[1]{0}', space=sflag, size = 0x4, scoped, tag = 'scoped memory for patchgan_forward.1']
    #allocation4 [shape = 'u8[196608]{0}', space=vmem, size = 0x30000, scoped, tag = 'input window, operand 2, single buffered']
    #allocation5 [shape = 's32[1]{0}', space=sflag, size = 0x4, scoped, tag = 'scoped memory for patchgan_forward.1']
    #allocation6 [shape = 'u8[1024]{0}', space=vmem, size = 0x400, scoped, tag = 'input window, operand 3, single buffered']
    #allocation7 [shape = 'u8[6144]{0}', space=vmem, size = 0x1800, scoped, tag = 'input window, operand 4, single buffered']
    #allocation8 [shape = 's32[1]{0}', space=sflag, size = 0x4, scoped, tag = 'scoped memory for patchgan_forward.1']
    #allocation9 [shape = 'u8[196608]{0}', space=vmem, size = 0x30000, scoped, tag = 'input window, operand 5, single buffered']
    #allocation10 [shape = 'u8[512]{0}', space=vmem, size = 0x400, scoped, tag = 'input window, operand 6, single buffered']
    #allocation11 [shape = 's32[1]{0}', space=sflag, size = 0x4, scoped, tag = 'scoped memory for patchgan_forward.1']
    #allocation12 [shape = 'u8[6144]{0}', space=vmem, size = 0x1800, scoped, tag = 'input window, operand 7, single buffered']
    #allocation13 [shape = 'u8[196608]{0}', space=vmem, size = 0x30000, scoped, tag = 'input window, operand 8, single buffered']
    #allocation14 [shape = 's32[1]{0}', space=sflag, size = 0x4, scoped, tag = 'scoped memory for patchgan_forward.1']
    #allocation15 [shape = 'u8[1024]{0}', space=vmem, size = 0x400, scoped, tag = 'input window, operand 10, single buffered']
    #allocation16 [shape = 'u8[1024]{0}', space=vmem, size = 0x400, scoped, tag = 'input window, operand 11, single buffered']
    #allocation17 [shape = 's32[1]{0}', space=sflag, size = 0x4, scoped, tag = 'scoped memory for patchgan_forward.1']
    #allocation18 [shape = 'u8[3072]{0}', space=vmem, size = 0xc00, scoped, tag = 'input window, operand 12, single buffered']
    #allocation19 [shape = 'u8[196608]{0}', space=vmem, size = 0x30000, scoped, tag = 'input window, operand 13, single buffered']
    #allocation20 [shape = 's32[1]{0}', space=sflag, size = 0x4, scoped, tag = 'scoped memory for patchgan_forward.1']
    #allocation21 [shape = 'u8[65536]{0}', space=vmem, size = 0x10000, scoped, tag = 'input window, operand 14, single buffered']
    #allocation22 [shape = 'u8[512]{0}', space=vmem, size = 0x400, scoped, tag = 'input window, operand 15, single buffered']
    #allocation23 [shape = 's32[1]{0}', space=sflag, size = 0x4, scoped, tag = 'scoped memory for patchgan_forward.1']
    #allocation24 [shape = 'u8[512]{0}', space=vmem, size = 0x400, scoped, tag = 'input window, operand 16, single buffered']
    #allocation25 [shape = 'u8[3072]{0}', space=vmem, size = 0xc00, scoped, tag = 'input window, operand 17, single buffered']
    #allocation26 [shape = 's32[1]{0}', space=sflag, size = 0x4, scoped, tag = 'scoped memory for patchgan_forward.1']
    #allocation27 [shape = 'u8[196608]{0}', space=vmem, size = 0x30000, scoped, tag = 'input window, operand 18, single buffered']
    #allocation28 [shape = 'u8[262144]{0}', space=vmem, size = 0x40000, scoped, tag = 'input window, operand 19, single buffered']
    #allocation29 [shape = 's32[1]{0}', space=sflag, size = 0x4, scoped, tag = 'scoped memory for patchgan_forward.1']
    #allocation30 [shape = 'u8[1024]{0}', space=vmem, size = 0x400, scoped, tag = 'input window, operand 20, single buffered']
    #allocation31 [shape = 'u8[1024]{0}', space=vmem, size = 0x400, scoped, tag = 'input window, operand 21, single buffered']
    #allocation32 [shape = 's32[1]{0}', space=sflag, size = 0x4, scoped, tag = 'scoped memory for patchgan_forward.1']
    #allocation33 [shape = 'u8[196608]{0}', space=vmem, size = 0x30000, scoped, tag = 'input window, operand 23, single buffered']
    #allocation34 [shape = 'u8[65536]{0}', space=vmem, size = 0x10000, scoped, tag = 'input window, operand 24, single buffered']
    #allocation35 [shape = 's32[1]{0}', space=sflag, size = 0x4, scoped, tag = 'scoped memory for patchgan_forward.1']
    #allocation36 [shape = 'u8[512]{0}', space=vmem, size = 0x400, scoped, tag = 'input window, operand 25, single buffered']
    #allocation37 [shape = 'u8[512]{0}', space=vmem, size = 0x400, scoped, tag = 'input window, operand 26, single buffered']
    #allocation38 [shape = 's32[1]{0}', space=sflag, size = 0x4, scoped, tag = 'scoped memory for patchgan_forward.1']
    #allocation39 [shape = 'u8[262144]{0}', space=vmem, size = 0x40000, scoped, tag = 'input window, operand 29, single buffered']
    %76 = vsyncpa [#allocation3], 0
    %77 = vsyncpa [#allocation5], 0
    %78 = vsyncpa [#allocation8], 0
    %79 = vsyncpa [#allocation11], 0
    %80 = vsyncpa [#allocation14], 0
    %81 = vsyncpa [#allocation17], 0
    %82 = vsyncpa [#allocation20], 0
    %83 = vsyncpa [#allocation23], 0
    %84 = vsyncpa [#allocation26], 0
    %85 = vsyncpa [#allocation29], 0
    %86 = vsyncpa [#allocation32], 0
    %87 = vsyncpa [#allocation35], 0
    %88 = vsyncpa [#allocation38], 0
    // Predicated region
    $region2: #{patchgan_forward.1} parent=1 // pred_check
      _
    $region3: #{patchgan_forward.1} parent=1 // pred_check_branch
      %90 = sbr.rel (0) target = $region5
    $region4: #{patchgan_forward.1} parent=1 // pred_region
      _
    $region5: #{patchgan_forward.1} parent=1 // pred_fallthru
      _
    // Predicated region
    $region6: #{patchgan_forward.1} parent=1 // pred_check
      _
    $region7: #{patchgan_forward.1} parent=1 // pred_check_branch
      %92 = sbr.rel (0) target = $region9
    $region8: #{patchgan_forward.1} parent=1 // pred_region
      %s94 = ssub.s32 384, 384
      %95 = vsyncadd [#allocation3], %s94
      %s96 = sshll.u32 [#allocation2], 4
      %s97 = int_to_ptr.vmem [resolvable:$true] %s96
      %102 = dma.hbm_to_vmem [thread:$0]  %s3, 384, %s97, [#allocation3], 64, 64, 4
    $region9: #{patchgan_forward.1} parent=1 // pred_fallthru
      _
    // Predicated region
    $region10: #{patchgan_forward.1} parent=1 // pred_check
      _
    $region11: #{patchgan_forward.1} parent=1 // pred_check_branch
      %104 = sbr.rel (0) target = $region13
    $region12: #{patchgan_forward.1} parent=1 // pred_region
      %s106 = ssub.s32 6144, 6144
      %107 = vsyncadd [#allocation5], %s106
      %s108 = sshll.u32 [#allocation4], 4
      %s109 = int_to_ptr.vmem [resolvable:$true] %s108
      %114 = dma.hbm_to_vmem [thread:$0]  %s5, 6144, %s109, [#allocation5], 128, 128, 8
    $region13: #{patchgan_forward.1} parent=1 // pred_fallthru
      _
    // Predicated region
    $region14: #{patchgan_forward.1} parent=1 // pred_check
      _
    $region15: #{patchgan_forward.1} parent=1 // pred_check_branch
      %116 = sbr.rel (0) target = $region17
    $region16: #{patchgan_forward.1} parent=1 // pred_region
      %s118 = ssub.s32 32, 32
      %119 = vsyncadd [#allocation5], %s118
      %s121 = sshll.u32 [#allocation6], 4
      %s122 = int_to_ptr.vmem [resolvable:$true] %s121
      %124 = dma.hbm_to_vmem [thread:$0]  %s7, 32, %s122, [#allocation5]
    $region17: #{patchgan_forward.1} parent=1 // pred_fallthru
      _
    // Predicated region
    $region18: #{patchgan_forward.1} parent=1 // pred_check
      _
    $region19: #{patchgan_forward.1} parent=1 // pred_check_branch
      %126 = sbr.rel (0) target = $region21
    $region20: #{patchgan_forward.1} parent=1 // pred_region
      %s128 = ssub.s32 192, 192
      %129 = vsyncadd [#allocation8], %s128
      %s130 = sshll.u32 [#allocation7], 4
      %s131 = int_to_ptr.vmem [resolvable:$true] %s130
      %136 = dma.hbm_to_vmem [thread:$0]  %s9, 192, %s131, [#allocation8], 64, 64, 4
    $region21: #{patchgan_forward.1} parent=1 // pred_fallthru
      _
    // Predicated region
    $region22: #{patchgan_forward.1} parent=1 // pred_check
      _
    $region23: #{patchgan_forward.1} parent=1 // pred_check_branch
      %138 = sbr.rel (0) target = $region25
    $region24: #{patchgan_forward.1} parent=1 // pred_region
      %s140 = ssub.s32 6144, 6144
      %141 = vsyncadd [#allocation8], %s140
      %s142 = sshll.u32 [#allocation9], 4
      %s143 = int_to_ptr.vmem [resolvable:$true] %s142
      %148 = dma.hbm_to_vmem [thread:$0]  %s11, 6144, %s143, [#allocation8], 64, 64, 4
    $region25: #{patchgan_forward.1} parent=1 // pred_fallthru
      _
    // Predicated region
    $region26: #{patchgan_forward.1} parent=1 // pred_check
      _
    $region27: #{patchgan_forward.1} parent=1 // pred_check_branch
      %150 = sbr.rel (0) target = $region29
    $region28: #{patchgan_forward.1} parent=1 // pred_region
      %s152 = ssub.s32 16, 16
      %153 = vsyncadd [#allocation11], %s152
      %s155 = sshll.u32 [#allocation10], 4
      %s156 = int_to_ptr.vmem [resolvable:$true] %s155
      %158 = dma.hbm_to_vmem [thread:$0]  %s13, 16, %s156, [#allocation11]
    $region29: #{patchgan_forward.1} parent=1 // pred_fallthru
      _
    // Predicated region
    $region30: #{patchgan_forward.1} parent=1 // pred_check
      _
    $region31: #{patchgan_forward.1} parent=1 // pred_check_branch
      %160 = sbr.rel (0) target = $region33
    $region32: #{patchgan_forward.1} parent=1 // pred_region
      %s162 = ssub.s32 192, 192
      %163 = vsyncadd [#allocation11], %s162
      %s164 = sshll.u32 [#allocation12], 4
      %s165 = int_to_ptr.vmem [resolvable:$true] %s164
      %170 = dma.hbm_to_vmem [thread:$0]  %s15, 192, %s165, [#allocation11], 64, 64, 4
    $region33: #{patchgan_forward.1} parent=1 // pred_fallthru
      _
    // Predicated region
    $region34: #{patchgan_forward.1} parent=1 // pred_check
      _
    $region35: #{patchgan_forward.1} parent=1 // pred_check_branch
      %172 = sbr.rel (0) target = $region37
    $region36: #{patchgan_forward.1} parent=1 // pred_region
      %s174 = ssub.s32 6144, 6144
      %175 = vsyncadd [#allocation14], %s174
      %s176 = sshll.u32 [#allocation13], 4
      %s177 = int_to_ptr.vmem [resolvable:$true] %s176
      %182 = dma.hbm_to_vmem [thread:$0]  %s17, 6144, %s177, [#allocation14], 128, 128, 8
    $region37: #{patchgan_forward.1} parent=1 // pred_fallthru
      _
    // Predicated region
    $region38: #{patchgan_forward.1} parent=1 // pred_check
      _
    $region39: #{patchgan_forward.1} parent=1 // pred_check_branch
      %184 = sbr.rel (0) target = $region41
    $region40: #{patchgan_forward.1} parent=1 // pred_region
      _
    $region41: #{patchgan_forward.1} parent=1 // pred_fallthru
      _
    // Predicated region
    $region42: #{patchgan_forward.1} parent=1 // pred_check
      _
    $region43: #{patchgan_forward.1} parent=1 // pred_check_branch
      %186 = sbr.rel (0) target = $region45
    $region44: #{patchgan_forward.1} parent=1 // pred_region
      %s188 = ssub.s32 32, 32
      %189 = vsyncadd [#allocation14], %s188
      %s191 = sshll.u32 [#allocation15], 4
      %s192 = int_to_ptr.vmem [resolvable:$true] %s191
      %194 = dma.hbm_to_vmem [thread:$0]  %s21, 32, %s192, [#allocation14]
    $region45: #{patchgan_forward.1} parent=1 // pred_fallthru
      _
    // Predicated region
    $region46: #{patchgan_forward.1} parent=1 // pred_check
      _
    $region47: #{patchgan_forward.1} parent=1 // pred_check_branch
      %196 = sbr.rel (0) target = $region49
    $region48: #{patchgan_forward.1} parent=1 // pred_region
      %s198 = ssub.s32 32, 32
      %199 = vsyncadd [#allocation17], %s198
      %s201 = sshll.u32 [#allocation16], 4
      %s202 = int_to_ptr.vmem [resolvable:$true] %s201
      %204 = dma.hbm_to_vmem [thread:$0]  %s23, 32, %s202, [#allocation17]
    $region49: #{patchgan_forward.1} parent=1 // pred_fallthru
      _
    // Predicated region
    $region50: #{patchgan_forward.1} parent=1 // pred_check
      _
    $region51: #{patchgan_forward.1} parent=1 // pred_check_branch
      %206 = sbr.rel (0) target = $region53
    $region52: #{patchgan_forward.1} parent=1 // pred_region
      %s208 = ssub.s32 96, 96
      %209 = vsyncadd [#allocation17], %s208
      %s210 = sshll.u32 [#allocation18], 4
      %s211 = int_to_ptr.vmem [resolvable:$true] %s210
      %216 = dma.hbm_to_vmem [thread:$0]  %s25, 96, %s211, [#allocation17], 32, 32, 2
    $region53: #{patchgan_forward.1} parent=1 // pred_fallthru
      _
    // Predicated region
    $region54: #{patchgan_forward.1} parent=1 // pred_check
      _
    $region55: #{patchgan_forward.1} parent=1 // pred_check_branch
      %218 = sbr.rel (0) target = $region57
    $region56: #{patchgan_forward.1} parent=1 // pred_region
      %s220 = ssub.s32 6144, 6144
      %221 = vsyncadd [#allocation20], %s220
      %s222 = sshll.u32 [#allocation19], 4
      %s223 = int_to_ptr.vmem [resolvable:$true] %s222
      %228 = dma.hbm_to_vmem [thread:$0]  %s27, 6144, %s223, [#allocation20], 64, 64, 4
    $region57: #{patchgan_forward.1} parent=1 // pred_fallthru
      _
    // Predicated region
    $region58: #{patchgan_forward.1} parent=1 // pred_check
      _
    $region59: #{patchgan_forward.1} parent=1 // pred_check_branch
      %230 = sbr.rel (0) target = $region61
    $region60: #{patchgan_forward.1} parent=1 // pred_region
      %s232 = ssub.s32 2048, 2048
      %233 = vsyncadd [#allocation20], %s232
      %s234 = sshll.u32 [#allocation21], 4
      %s235 = int_to_ptr.vmem [resolvable:$true] %s234
      %240 = dma.hbm_to_vmem [thread:$0]  %s29, 2048, %s235, [#allocation20], 128, 128, 8
    $region61: #{patchgan_forward.1} parent=1 // pred_fallthru
      _
    // Predicated region
    $region62: #{patchgan_forward.1} parent=1 // pred_check
      _
    $region63: #{patchgan_forward.1} parent=1 // pred_check_branch
      %242 = sbr.rel (0) target = $region65
    $region64: #{patchgan_forward.1} parent=1 // pred_region
      %s244 = ssub.s32 16, 16
      %245 = vsyncadd [#allocation23], %s244
      %s247 = sshll.u32 [#allocation22], 4
      %s248 = int_to_ptr.vmem [resolvable:$true] %s247
      %250 = dma.hbm_to_vmem [thread:$0]  %s31, 16, %s248, [#allocation23]
    $region65: #{patchgan_forward.1} parent=1 // pred_fallthru
      _
    // Predicated region
    $region66: #{patchgan_forward.1} parent=1 // pred_check
      _
    $region67: #{patchgan_forward.1} parent=1 // pred_check_branch
      %252 = sbr.rel (0) target = $region69
    $region68: #{patchgan_forward.1} parent=1 // pred_region
      %s254 = ssub.s32 16, 16
      %255 = vsyncadd [#allocation23], %s254
      %s257 = sshll.u32 [#allocation24], 4
      %s258 = int_to_ptr.vmem [resolvable:$true] %s257
      %260 = dma.hbm_to_vmem [thread:$0]  %s33, 16, %s258, [#allocation23]
    $region69: #{patchgan_forward.1} parent=1 // pred_fallthru
      _
    // Predicated region
    $region70: #{patchgan_forward.1} parent=1 // pred_check
      _
    $region71: #{patchgan_forward.1} parent=1 // pred_check_branch
      %262 = sbr.rel (0) target = $region73
    $region72: #{patchgan_forward.1} parent=1 // pred_region
      %s264 = ssub.s32 96, 96
      %265 = vsyncadd [#allocation26], %s264
      %s266 = sshll.u32 [#allocation25], 4
      %s267 = int_to_ptr.vmem [resolvable:$true] %s266
      %272 = dma.hbm_to_vmem [thread:$0]  %s35, 96, %s267, [#allocation26], 32, 32, 2
    $region73: #{patchgan_forward.1} parent=1 // pred_fallthru
      _
    // Predicated region
    $region74: #{patchgan_forward.1} parent=1 // pred_check
      _
    $region75: #{patchgan_forward.1} parent=1 // pred_check_branch
      %274 = sbr.rel (0) target = $region77
    $region76: #{patchgan_forward.1} parent=1 // pred_region
      %s276 = ssub.s32 6144, 6144
      %277 = vsyncadd [#allocation26], %s276
      %s278 = sshll.u32 [#allocation27], 4
      %s279 = int_to_ptr.vmem [resolvable:$true] %s278
      %284 = dma.hbm_to_vmem [thread:$0]  %s37, 6144, %s279, [#allocation26], 128, 128, 8
    $region77: #{patchgan_forward.1} parent=1 // pred_fallthru
      _
    // Predicated region
    $region78: #{patchgan_forward.1} parent=1 // pred_check
      _
    $region79: #{patchgan_forward.1} parent=1 // pred_check_branch
      %286 = sbr.rel (0) target = $region81
    $region80: #{patchgan_forward.1} parent=1 // pred_region
      %s288 = ssub.s32 8192, 8192
      %289 = vsyncadd [#allocation29], %s288
      %s290 = sshll.u32 [#allocation28], 4
      %s291 = int_to_ptr.vmem [resolvable:$true] %s290
      %296 = dma.hbm_to_vmem [thread:$0]  %s39, 8192, %s291, [#allocation29], 256, 256, 16
    $region81: #{patchgan_forward.1} parent=1 // pred_fallthru
      _
    // Predicated region
    $region82: #{patchgan_forward.1} parent=1 // pred_check
      _
    $region83: #{patchgan_forward.1} parent=1 // pred_check_branch
      %298 = sbr.rel (0) target = $region85
    $region84: #{patchgan_forward.1} parent=1 // pred_region
      %s300 = ssub.s32 32, 32
      %301 = vsyncadd [#allocation29], %s300
      %s303 = sshll.u32 [#allocation30], 4
      %s304 = int_to_ptr.vmem [resolvable:$true] %s303
      %306 = dma.hbm_to_vmem [thread:$0]  %s41, 32, %s304, [#allocation29]
    $region85: #{patchgan_forward.1} parent=1 // pred_fallthru
      _
    // Predicated region
    $region86: #{patchgan_forward.1} parent=1 // pred_check
      _
    $region87: #{patchgan_forward.1} parent=1 // pred_check_branch
      %308 = sbr.rel (0) target = $region89
    $region88: #{patchgan_forward.1} parent=1 // pred_region
      %s310 = ssub.s32 32, 32
      %311 = vsyncadd [#allocation32], %s310
      %s313 = sshll.u32 [#allocation31], 4
      %s314 = int_to_ptr.vmem [resolvable:$true] %s313
      %316 = dma.hbm_to_vmem [thread:$0]  %s43, 32, %s314, [#allocation32]
    $region89: #{patchgan_forward.1} parent=1 // pred_fallthru
      _
    // Predicated region
    $region90: #{patchgan_forward.1} parent=1 // pred_check
      _
    $region91: #{patchgan_forward.1} parent=1 // pred_check_branch
      %318 = sbr.rel (0) target = $region93
    $region92: #{patchgan_forward.1} parent=1 // pred_region
      _
    $region93: #{patchgan_forward.1} parent=1 // pred_fallthru
      _
    // Predicated region
    $region94: #{patchgan_forward.1} parent=1 // pred_check
      _
    $region95: #{patchgan_forward.1} parent=1 // pred_check_branch
      %320 = sbr.rel (0) target = $region97
    $region96: #{patchgan_forward.1} parent=1 // pred_region
      %s322 = ssub.s32 6144, 6144
      %323 = vsyncadd [#allocation32], %s322
      %s324 = sshll.u32 [#allocation33], 4
      %s325 = int_to_ptr.vmem [resolvable:$true] %s324
      %330 = dma.hbm_to_vmem [thread:$0]  %s47, 6144, %s325, [#allocation32], 64, 64, 4
    $region97: #{patchgan_forward.1} parent=1 // pred_fallthru
      _
    // Predicated region
    $region98: #{patchgan_forward.1} parent=1 // pred_check
      _
    $region99: #{patchgan_forward.1} parent=1 // pred_check_branch
      %332 = sbr.rel (0) target = $region101
    $region100: #{patchgan_forward.1} parent=1 // pred_region
      %s334 = ssub.s32 2048, 2048
      %335 = vsyncadd [#allocation35], %s334
      %s336 = sshll.u32 [#allocation34], 4
      %s337 = int_to_ptr.vmem [resolvable:$true] %s336
      %342 = dma.hbm_to_vmem [thread:$0]  %s49, 2048, %s337, [#allocation35], 128, 128, 8
    $region101: #{patchgan_forward.1} parent=1 // pred_fallthru
      _
    // Predicated region
    $region102: #{patchgan_forward.1} parent=1 // pred_check
      _
    $region103: #{patchgan_forward.1} parent=1 // pred_check_branch
      %344 = sbr.rel (0) target = $region105
    $region104: #{patchgan_forward.1} parent=1 // pred_region
      %s346 = ssub.s32 16, 16
      %347 = vsyncadd [#allocation35], %s346
      %s349 = sshll.u32 [#allocation36], 4
      %s350 = int_to_ptr.vmem [resolvable:$true] %s349
      %352 = dma.hbm_to_vmem [thread:$0]  %s51, 16, %s350, [#allocation35]
    $region105: #{patchgan_forward.1} parent=1 // pred_fallthru
      _
    // Predicated region
    $region106: #{patchgan_forward.1} parent=1 // pred_check
      _
    $region107: #{patchgan_forward.1} parent=1 // pred_check_branch
      %354 = sbr.rel (0) target = $region109
    $region108: #{patchgan_forward.1} parent=1 // pred_region
      %s356 = ssub.s32 16, 16
      %357 = vsyncadd [#allocation38], %s356
      %s359 = sshll.u32 [#allocation37], 4
      %s360 = int_to_ptr.vmem [resolvable:$true] %s359
      %362 = dma.hbm_to_vmem [thread:$0]  %s53, 16, %s360, [#allocation38]
    $region109: #{patchgan_forward.1} parent=1 // pred_fallthru
      _
    // Predicated region
    $region110: #{patchgan_forward.1} parent=1 // pred_check
      _
    $region111: #{patchgan_forward.1} parent=1 // pred_check_branch
      %364 = sbr.rel (0) target = $region113
    $region112: #{patchgan_forward.1} parent=1 // pred_region
      _
    $region113: #{patchgan_forward.1} parent=1 // pred_fallthru
      _
    // Predicated region
    $region114: #{patchgan_forward.1} parent=1 // pred_check
      _
    $region115: #{patchgan_forward.1} parent=1 // pred_check_branch
      %366 = sbr.rel (0) target = $region117
    $region116: #{patchgan_forward.1} parent=1 // pred_region
      _
    $region117: #{patchgan_forward.1} parent=1 // pred_fallthru
      _
    // Predicated region
    $region118: #{patchgan_forward.1} parent=1 // pred_check
      _
    $region119: #{patchgan_forward.1} parent=1 // pred_check_branch
      %368 = sbr.rel (0) target = $region121
    $region120: #{patchgan_forward.1} parent=1 // pred_region
      %s370 = ssub.s32 8192, 8192
      %371 = vsyncadd [#allocation38], %s370
      %s372 = sshll.u32 [#allocation39], 4
      %s373 = int_to_ptr.vmem [resolvable:$true] %s372
      %378 = dma.hbm_to_vmem [thread:$0]  %s59, 8192, %s373, [#allocation38], 256, 256, 16
    $region121: #{patchgan_forward.1} parent=1 // pred_fallthru
      _
    // Predicated region
    $region122: #{patchgan_forward.1} parent=1 // pred_check
      _
    $region123: #{patchgan_forward.1} parent=1 // pred_check_branch
      %380 = sbr.rel (0) target = $region125
    $region124: #{patchgan_forward.1} parent=1 // pred_region
      _
    $region125: #{patchgan_forward.1} parent=1 // pred_fallthru
      _
    // Predicated region
    $region126: #{patchgan_forward.1} parent=1 // pred_check
      _
    $region127: #{patchgan_forward.1} parent=1 // pred_check_branch
      %382 = sbr.rel (0) target = $region129
    $region128: #{patchgan_forward.1} parent=1 // pred_region
      _
    $region129: #{patchgan_forward.1} parent=1 // pred_fallthru
      _
    // Predicated region
    $region130: #{patchgan_forward.1} parent=1 // pred_check
      _
    $region131: #{patchgan_forward.1} parent=1 // pred_check_branch
      %384 = sbr.rel (0) target = $region133
    $region132: #{patchgan_forward.1} parent=1 // pred_region
      _
    $region133: #{patchgan_forward.1} parent=1 // pred_fallthru
      _
    // Predicated region
    $region134: #{patchgan_forward.1} parent=1 // pred_check
      _
    $region135: #{patchgan_forward.1} parent=1 // pred_check_branch
      %386 = sbr.rel (0) target = $region137
    $region136: #{patchgan_forward.1} parent=1 // pred_region
      _
    $region137: #{patchgan_forward.1} parent=1 // pred_fallthru
      _
    // Predicated region
    $region138: #{patchgan_forward.1} parent=1 // pred_check
      _
    $region139: #{patchgan_forward.1} parent=1 // pred_check_branch
      %388 = sbr.rel (0) target = $region141
    $region140: #{patchgan_forward.1} parent=1 // pred_region
      _
    $region141: #{patchgan_forward.1} parent=1 // pred_fallthru
      _
    // Predicated region
    $region142: #{patchgan_forward.1} parent=1 // pred_check
      _
    $region143: #{patchgan_forward.1} parent=1 // pred_check_branch
      %390 = sbr.rel (0) target = $region145
    $region144: #{patchgan_forward.1} parent=1 // pred_region
      %391 = dma.done [#allocation3], 384
    $region145: #{patchgan_forward.1} parent=1 // pred_fallthru
      _
    // Predicated region
    $region146: #{patchgan_forward.1} parent=1 // pred_check
      _
    $region147: #{patchgan_forward.1} parent=1 // pred_check_branch
      %393 = sbr.rel (0) target = $region149
    $region148: #{patchgan_forward.1} parent=1 // pred_region
      %394 = dma.done [#allocation5], 6144
    $region149: #{patchgan_forward.1} parent=1 // pred_fallthru
      _
    // Predicated region
    $region150: #{patchgan_forward.1} parent=1 // pred_check
      _
    $region151: #{patchgan_forward.1} parent=1 // pred_check_branch
      %396 = sbr.rel (0) target = $region153
    $region152: #{patchgan_forward.1} parent=1 // pred_region
      %397 = dma.done [#allocation5], 32
    $region153: #{patchgan_forward.1} parent=1 // pred_fallthru
      _
    // Predicated region
    $region154: #{patchgan_forward.1} parent=1 // pred_check
      _
    $region155: #{patchgan_forward.1} parent=1 // pred_check_branch
      %399 = sbr.rel (0) target = $region157
    $region156: #{patchgan_forward.1} parent=1 // pred_region
      %400 = dma.done [#allocation8], 192
    $region157: #{patchgan_forward.1} parent=1 // pred_fallthru
      _
    // Predicated region
    $region158: #{patchgan_forward.1} parent=1 // pred_check
      _
    $region159: #{patchgan_forward.1} parent=1 // pred_check_branch
      %402 = sbr.rel (0) target = $region161
    $region160: #{patchgan_forward.1} parent=1 // pred_region
      %403 = dma.done [#allocation8], 6144
    $region161: #{patchgan_forward.1} parent=1 // pred_fallthru
      _
    // Predicated region
    $region162: #{patchgan_forward.1} parent=1 // pred_check
      _
    $region163: #{patchgan_forward.1} parent=1 // pred_check_branch
      %405 = sbr.rel (0) target = $region165
    $region164: #{patchgan_forward.1} parent=1 // pred_region
      %406 = dma.done [#allocation11], 16
    $region165: #{patchgan_forward.1} parent=1 // pred_fallthru
      _
    // Predicated region
    $region166: #{patchgan_forward.1} parent=1 // pred_check
      _
    $region167: #{patchgan_forward.1} parent=1 // pred_check_branch
      %408 = sbr.rel (0) target = $region169
    $region168: #{patchgan_forward.1} parent=1 // pred_region
      %409 = dma.done [#allocation11], 192
    $region169: #{patchgan_forward.1} parent=1 // pred_fallthru
      _
    // Predicated region
    $region170: #{patchgan_forward.1} parent=1 // pred_check
      _
    $region171: #{patchgan_forward.1} parent=1 // pred_check_branch
      %411 = sbr.rel (0) target = $region173
    $region172: #{patchgan_forward.1} parent=1 // pred_region
      %412 = dma.done [#allocation14], 6144
    $region173: #{patchgan_forward.1} parent=1 // pred_fallthru
      _
    // Predicated region
    $region174: #{patchgan_forward.1} parent=1 // pred_check
      _
    $region175: #{patchgan_forward.1} parent=1 // pred_check_branch
      %414 = sbr.rel (0) target = $region177
    $region176: #{patchgan_forward.1} parent=1 // pred_region
      %415 = dma.done [#allocation14], 32
    $region177: #{patchgan_forward.1} parent=1 // pred_fallthru
      _
    // Predicated region
    $region178: #{patchgan_forward.1} parent=1 // pred_check
      _
    $region179: #{patchgan_forward.1} parent=1 // pred_check_branch
      %417 = sbr.rel (0) target = $region181
    $region180: #{patchgan_forward.1} parent=1 // pred_region
      %418 = dma.done [#allocation17], 32
    $region181: #{patchgan_forward.1} parent=1 // pred_fallthru
      _
    // Predicated region
    $region182: #{patchgan_forward.1} parent=1 // pred_check
      _
    $region183: #{patchgan_forward.1} parent=1 // pred_check_branch
      %420 = sbr.rel (0) target = $region185
    $region184: #{patchgan_forward.1} parent=1 // pred_region
      %421 = dma.done [#allocation17], 96
    $region185: #{patchgan_forward.1} parent=1 // pred_fallthru
      _
    // Predicated region
    $region186: #{patchgan_forward.1} parent=1 // pred_check
      _
    $region187: #{patchgan_forward.1} parent=1 // pred_check_branch
      %423 = sbr.rel (0) target = $region189
    $region188: #{patchgan_forward.1} parent=1 // pred_region
      %424 = dma.done [#allocation20], 6144
    $region189: #{patchgan_forward.1} parent=1 // pred_fallthru
      _
    // Predicated region
    $region190: #{patchgan_forward.1} parent=1 // pred_check
      _
    $region191: #{patchgan_forward.1} parent=1 // pred_check_branch
      %426 = sbr.rel (0) target = $region193
    $region192: #{patchgan_forward.1} parent=1 // pred_region
      %427 = dma.done [#allocation20], 2048
    $region193: #{patchgan_forward.1} parent=1 // pred_fallthru
      _
    // Predicated region
    $region194: #{patchgan_forward.1} parent=1 // pred_check
      _
    $region195: #{patchgan_forward.1} parent=1 // pred_check_branch
      %429 = sbr.rel (0) target = $region197
    $region196: #{patchgan_forward.1} parent=1 // pred_region
      %430 = dma.done [#allocation23], 16
    $region197: #{patchgan_forward.1} parent=1 // pred_fallthru
      _
    // Predicated region
    $region198: #{patchgan_forward.1} parent=1 // pred_check
      _
    $region199: #{patchgan_forward.1} parent=1 // pred_check_branch
      %432 = sbr.rel (0) target = $region201
    $region200: #{patchgan_forward.1} parent=1 // pred_region
      %433 = dma.done [#allocation23], 16
    $region201: #{patchgan_forward.1} parent=1 // pred_fallthru
      _
    // Predicated region
    $region202: #{patchgan_forward.1} parent=1 // pred_check
      _
    $region203: #{patchgan_forward.1} parent=1 // pred_check_branch
      %435 = sbr.rel (0) target = $region205
    $region204: #{patchgan_forward.1} parent=1 // pred_region
      %436 = dma.done [#allocation26], 96
    $region205: #{patchgan_forward.1} parent=1 // pred_fallthru
      _
    // Predicated region
    $region206: #{patchgan_forward.1} parent=1 // pred_check
      _
    $region207: #{patchgan_forward.1} parent=1 // pred_check_branch
      %438 = sbr.rel (0) target = $region209
    $region208: #{patchgan_forward.1} parent=1 // pred_region
      %439 = dma.done [#allocation26], 6144
    $region209: #{patchgan_forward.1} parent=1 // pred_fallthru
      _
    // Predicated region
    $region210: #{patchgan_forward.1} parent=1 // pred_check
      _
    $region211: #{patchgan_forward.1} parent=1 // pred_check_branch
      %441 = sbr.rel (0) target = $region213
    $region212: #{patchgan_forward.1} parent=1 // pred_region
      %442 = dma.done [#allocation29], 8192
    $region213: #{patchgan_forward.1} parent=1 // pred_fallthru
      _
    // Predicated region
    $region214: #{patchgan_forward.1} parent=1 // pred_check
      _
    $region215: #{patchgan_forward.1} parent=1 // pred_check_branch
      %444 = sbr.rel (0) target = $region217
    $region216: #{patchgan_forward.1} parent=1 // pred_region
      %445 = dma.done [#allocation29], 32
    $region217: #{patchgan_forward.1} parent=1 // pred_fallthru
      _
    // Predicated region
    $region218: #{patchgan_forward.1} parent=1 // pred_check
      _
    $region219: #{patchgan_forward.1} parent=1 // pred_check_branch
      %447 = sbr.rel (0) target = $region221
    $region220: #{patchgan_forward.1} parent=1 // pred_region
      %448 = dma.done [#allocation32], 32
    $region221: #{patchgan_forward.1} parent=1 // pred_fallthru
      _
    // Predicated region
    $region222: #{patchgan_forward.1} parent=1 // pred_check
      _
    $region223: #{patchgan_forward.1} parent=1 // pred_check_branch
      %450 = sbr.rel (0) target = $region225
    $region224: #{patchgan_forward.1} parent=1 // pred_region
      %451 = dma.done [#allocation32], 6144
    $region225: #{patchgan_forward.1} parent=1 // pred_fallthru
      _
    // Predicated region
    $region226: #{patchgan_forward.1} parent=1 // pred_check
      _
    $region227: #{patchgan_forward.1} parent=1 // pred_check_branch
      %453 = sbr.rel (0) target = $region229
    $region228: #{patchgan_forward.1} parent=1 // pred_region
      %454 = dma.done [#allocation35], 2048
    $region229: #{patchgan_forward.1} parent=1 // pred_fallthru
      _
    // Predicated region
    $region230: #{patchgan_forward.1} parent=1 // pred_check
      _
    $region231: #{patchgan_forward.1} parent=1 // pred_check_branch
      %456 = sbr.rel (0) target = $region233
    $region232: #{patchgan_forward.1} parent=1 // pred_region
      %457 = dma.done [#allocation35], 16
    $region233: #{patchgan_forward.1} parent=1 // pred_fallthru
      _
    // Predicated region
    $region234: #{patchgan_forward.1} parent=1 // pred_check
      _
    $region235: #{patchgan_forward.1} parent=1 // pred_check_branch
      %459 = sbr.rel (0) target = $region237
    $region236: #{patchgan_forward.1} parent=1 // pred_region
      %460 = dma.done [#allocation38], 16
    $region237: #{patchgan_forward.1} parent=1 // pred_fallthru
      _
    // Predicated region
    $region238: #{patchgan_forward.1} parent=1 // pred_check
      _
    $region239: #{patchgan_forward.1} parent=1 // pred_check_branch
      %462 = sbr.rel (0) target = $region241
    $region240: #{patchgan_forward.1} parent=1 // pred_region
      %463 = dma.done [#allocation38], 8192
    $region241: #{patchgan_forward.1} parent=1 // pred_fallthru
      _
    %v465 = vld [vmem:[%s1] sm:$0xf]
    %v466 = vld [vmem:[%s1 + $0x4] sm:$0xf]
    %v467 = vld [vmem:[#allocation2] sm:$0xf]
    %v468 = vld [vmem:[#allocation2 + $0x4] sm:$0xf]
    %v471 = vunpack.c.l.b16 %v467
    %v472 = vunpack.c.l.b16 %v468
    %v473 = vpack.c.b16 %v472, %v471
    %v476 = vunpack.c.l.b16 %v465
    %v477 = vunpack.c.l.b16 %v466
    %v478 = vpack.c.b16 %v477, %v476
    %vm480 = vcmask 130048
    %v482 = vsel %vm480, %v473, 0
    %484 = vmatprep.subr.bf16.mxu0 0
    %485 = vmatpush1.bf16.msra.mxu0 %v478
    %486 = vmatprep.subr.bf16.mxu0 0
    %487 = vmatpush1.bf16.msra.mxu0 0
    %488 = vmatprep.subr.bf16.mxu0 0
    %489 = vmatpush1.bf16.msra.mxu0 0
    %490 = vmatprep.subr.bf16.mxu0 0
    %491 = vmatpush1.bf16.msra.mxu0 0
    %492 = vmatprep.subr.bf16.mxu0 0
    %493 = vmatpush1.bf16.msra.mxu0 0
    %494 = vmatprep.subr.bf16.mxu0 0
    %495 = vmatpush1.bf16.msra.mxu0 0
    %496 = vmatprep.subr.bf16.mxu0 0
    %497 = vmatpush1.bf16.msra.mxu0 0
    %498 = vmatprep.subr.bf16.mxu0 0
    %499 = vmatpush1.bf16.msra.mxu0 0
    %500 = vmatprep.subr.bf16.mxu0 0
    %501 = vmatpush1.bf16.msra.mxu0 0
    %502 = vmatprep.subr.bf16.mxu0 0
    %503 = vmatpush1.bf16.msra.mxu0 0
    %504 = vmatprep.subr.bf16.mxu0 0
    %505 = vmatpush1.bf16.msra.mxu0 0
    %506 = vmatprep.subr.bf16.mxu0 0
    %507 = vmatpush1.bf16.msra.mxu0 0
    %508 = vmatprep.subr.bf16.mxu0 0
    %509 = vmatpush1.bf16.msra.mxu0 0
    %510 = vmatprep.subr.bf16.mxu0 0
    %511 = vmatpush1.bf16.msra.mxu0 0
    %512 = vmatprep.subr.bf16.mxu0 0
    %513 = vmatpush1.bf16.msra.mxu0 0
    %514 = vmatprep.subr.bf16.mxu0 0
    %515 = vmatpush1.bf16.msra.mxu0 0
    %516 = vmatprep.mubr.bf16.mxu0 0
    %517 = vmatmul.mubr.bf16.gmra.mrb[0].mxu0 %v482
    %v518 = vpop.f32.mrb[0].mxu0
    %v519 = vadd.f32 0.0, %v518
    %v520 = vpop.f32.mrb[0].mxu0
    %v521 = vpop.f32.mrb[0].mxu0
    %v522 = vadd.f32 0.0, %v521
    %v523 = vpop.f32.mrb[0].mxu0
    %524 = vdwg.mxu0
    %v525 = vpack.c.bf16 %v522, %v519
    %v526 = vld [vmem:[#allocation4] sm:$0xff]
    %v527 = vld [vmem:[#allocation4 + $0x8] sm:$0xff]
    %v528 = vld [vmem:[#allocation4 + $0x10] sm:$0xff]
    %v529 = vld [vmem:[#allocation4 + $0x18] sm:$0xff]
    %v530 = vld [vmem:[#allocation4 + $0x20] sm:$0xff]
    %v531 = vld [vmem:[#allocation4 + $0x28] sm:$0xff]
    %v532 = vld [vmem:[#allocation4 + $0x30] sm:$0xff]
    %v533 = vld [vmem:[#allocation4 + $0x38] sm:$0xff]
    %v534 = vld [vmem:[#allocation4 + $0x40] sm:$0xff]
    %v535 = vld [vmem:[#allocation4 + $0x48] sm:$0xff]
    %v536 = vld [vmem:[#allocation4 + $0x50] sm:$0xff]
    %v537 = vld [vmem:[#allocation4 + $0x58] sm:$0xff]
    %v538 = vld [vmem:[#allocation4 + $0x60] sm:$0xff]
    %v539 = vld [vmem:[#allocation4 + $0x68] sm:$0xff]
    %v540 = vld [vmem:[#allocation4 + $0x70] sm:$0xff]
    %v541 = vld [vmem:[#allocation4 + $0x78] sm:$0xff]
    %s542 = scalar_lea.vmem [#allocation2], 8
    %v543 = vld [vmem:[%s542] sm:$0xf]
    %v544 = vld [vmem:[%s542 + $0x4] sm:$0xf]
    %v547 = vunpack.c.l.b16 %v543
    %v548 = vunpack.c.l.b16 %v544
    %v549 = vpack.c.b16 %v548, %v547
    %v551 = vsel %vm480, %v549, 0
    %553 = vmatprep.subr.bf16.mxu0 0
    %554 = vmatpush1.bf16.msra.mxu0 %v478
    %555 = vmatprep.subr.bf16.mxu0 0
    %556 = vmatpush1.bf16.msra.mxu0 0
    %557 = vmatprep.subr.bf16.mxu0 0
    %558 = vmatpush1.bf16.msra.mxu0 0
    %559 = vmatprep.subr.bf16.mxu0 0
    %560 = vmatpush1.bf16.msra.mxu0 0
    %561 = vmatprep.subr.bf16.mxu0 0
    %562 = vmatpush1.bf16.msra.mxu0 0
    %563 = vmatprep.subr.bf16.mxu0 0
    %564 = vmatpush1.bf16.msra.mxu0 0
    %565 = vmatprep.subr.bf16.mxu0 0
    %566 = vmatpush1.bf16.msra.mxu0 0
    %567 = vmatprep.subr.bf16.mxu0 0
    %568 = vmatpush1.bf16.msra.mxu0 0
    %569 = vmatprep.subr.bf16.mxu0 0
    %570 = vmatpush1.bf16.msra.mxu0 0
    %571 = vmatprep.subr.bf16.mxu0 0
    %572 = vmatpush1.bf16.msra.mxu0 0
    %573 = vmatprep.subr.bf16.mxu0 0
    %574 = vmatpush1.bf16.msra.mxu0 0
    %575 = vmatprep.subr.bf16.mxu0 0
    %576 = vmatpush1.bf16.msra.mxu0 0
    %577 = vmatprep.subr.bf16.mxu0 0
    %578 = vmatpush1.bf16.msra.mxu0 0
    %579 = vmatprep.subr.bf16.mxu0 0
    %580 = vmatpush1.bf16.msra.mxu0 0
    %581 = vmatprep.subr.bf16.mxu0 0
    %582 = vmatpush1.bf16.msra.mxu0 0
    %583 = vmatprep.subr.bf16.mxu0 0
    %584 = vmatpush1.bf16.msra.mxu0 0
    %585 = vmatprep.mubr.bf16.mxu0 0
    %586 = vmatmul.mubr.bf16.gmra.mrb[0].mxu0 %v551
    %v587 = vpop.f32.mrb[0].mxu0
    %v588 = vadd.f32 0.0, %v587
    %v589 = vpop.f32.mrb[0].mxu0
    %v590 = vpop.f32.mrb[0].mxu0
    %v591 = vadd.f32 0.0, %v590
    %v592 = vpop.f32.mrb[0].mxu0
    %593 = vdwg.mxu0
    %v594 = vpack.c.bf16 %v591, %v588
    %s595 = scalar_lea.vmem [#allocation4], 128
    %v596 = vld [vmem:[%s595] sm:$0xff]
    %v597 = vld [vmem:[%s595 + $0x8] sm:$0xff]
    %v598 = vld [vmem:[%s595 + $0x10] sm:$0xff]
    %v599 = vld [vmem:[%s595 + $0x18] sm:$0xff]
    %v600 = vld [vmem:[%s595 + $0x20] sm:$0xff]
    %v601 = vld [vmem:[%s595 + $0x28] sm:$0xff]
    %v602 = vld [vmem:[%s595 + $0x30] sm:$0xff]
    %v603 = vld [vmem:[%s595 + $0x38] sm:$0xff]
    %v604 = vld [vmem:[%s595 + $0x40] sm:$0xff]
    %v605 = vld [vmem:[%s595 + $0x48] sm:$0xff]
    %v606 = vld [vmem:[%s595 + $0x50] sm:$0xff]
    %v607 = vld [vmem:[%s595 + $0x58] sm:$0xff]
    %v608 = vld [vmem:[%s595 + $0x60] sm:$0xff]
    %v609 = vld [vmem:[%s595 + $0x68] sm:$0xff]
    %v610 = vld [vmem:[%s595 + $0x70] sm:$0xff]
    %v611 = vld [vmem:[%s595 + $0x78] sm:$0xff]
    %v628 = vunpack.c.l.b16 %v596
    %v629 = vunpack.c.h.b16 %v596
    %v630 = vunpack.c.l.b16 %v597
    %v631 = vunpack.c.h.b16 %v597
    %v632 = vunpack.c.l.b16 %v598
    %v633 = vunpack.c.h.b16 %v598
    %v634 = vunpack.c.l.b16 %v599
    %v635 = vunpack.c.h.b16 %v599
    %v636 = vunpack.c.l.b16 %v600
    %v637 = vunpack.c.h.b16 %v600
    %v638 = vunpack.c.l.b16 %v601
    %v639 = vunpack.c.h.b16 %v601
    %v640 = vunpack.c.l.b16 %v602
    %v641 = vunpack.c.h.b16 %v602
    %v642 = vunpack.c.l.b16 %v603
    %v643 = vunpack.c.h.b16 %v603
    %v644 = vunpack.c.l.b16 %v604
    %v645 = vunpack.c.h.b16 %v604
    %v646 = vunpack.c.l.b16 %v605
    %v647 = vunpack.c.h.b16 %v605
    %v648 = vunpack.c.l.b16 %v606
    %v649 = vunpack.c.h.b16 %v606
    %v650 = vunpack.c.l.b16 %v607
    %v651 = vunpack.c.h.b16 %v607
    %v652 = vunpack.c.l.b16 %v608
    %v653 = vunpack.c.h.b16 %v608
    %v654 = vunpack.c.l.b16 %v609
    %v655 = vunpack.c.h.b16 %v609
    %v656 = vunpack.c.l.b16 %v610
    %v657 = vunpack.c.h.b16 %v610
    %v658 = vunpack.c.l.b16 %v611
    %v659 = vunpack.c.h.b16 %v611
    %v660 = vpack.c.b16 %v630, %v628
    %v661 = vpack.c.b16 %v631, %v629
    %v662 = vpack.c.b16 %v634, %v632
    %v663 = vpack.c.b16 %v635, %v633
    %v664 = vpack.c.b16 %v638, %v636
    %v665 = vpack.c.b16 %v639, %v637
    %v666 = vpack.c.b16 %v642, %v640
    %v667 = vpack.c.b16 %v643, %v641
    %v668 = vpack.c.b16 %v646, %v644
    %v669 = vpack.c.b16 %v647, %v645
    %v670 = vpack.c.b16 %v650, %v648
    %v671 = vpack.c.b16 %v651, %v649
    %v672 = vpack.c.b16 %v654, %v652
    %v673 = vpack.c.b16 %v655, %v653
    %v674 = vpack.c.b16 %v658, %v656
    %v675 = vpack.c.b16 %v659, %v657
    %692 = vmatprep.subr.bf16.mxu0 %v661
    %693 = vmatpush1.bf16.msra.mxu0 %v660
    %694 = vmatprep.subr.bf16.mxu0 %v663
    %695 = vmatpush1.bf16.msra.mxu0 %v662
    %696 = vmatprep.subr.bf16.mxu0 %v665
    %697 = vmatpush1.bf16.msra.mxu0 %v664
    %698 = vmatprep.subr.bf16.mxu0 %v667
    %699 = vmatpush1.bf16.msra.mxu0 %v666
    %700 = vmatprep.subr.bf16.mxu0 %v669
    %701 = vmatpush1.bf16.msra.mxu0 %v668
    %702 = vmatprep.subr.bf16.mxu0 %v671
    %703 = vmatpush1.bf16.msra.mxu0 %v670
    %704 = vmatprep.subr.bf16.mxu0 %v673
    %705 = vmatpush1.bf16.msra.mxu0 %v672
    %706 = vmatprep.subr.bf16.mxu0 %v675
    %707 = vmatpush1.bf16.msra.mxu0 %v674
    %708 = vmatprep.subr.bf16.mxu0 0
    %709 = vmatpush1.bf16.msra.mxu0 0
    %710 = vmatprep.subr.bf16.mxu0 0
    %711 = vmatpush1.bf16.msra.mxu0 0
    %712 = vmatprep.subr.bf16.mxu0 0
    %713 = vmatpush1.bf16.msra.mxu0 0
    %714 = vmatprep.subr.bf16.mxu0 0
    %715 = vmatpush1.bf16.msra.mxu0 0
    %716 = vmatprep.subr.bf16.mxu0 0
    %717 = vmatpush1.bf16.msra.mxu0 0
    %718 = vmatprep.subr.bf16.mxu0 0
    %719 = vmatpush1.bf16.msra.mxu0 0
    %720 = vmatprep.subr.bf16.mxu0 0
    %721 = vmatpush1.bf16.msra.mxu0 0
    %722 = vmatprep.subr.bf16.mxu0 0
    %723 = vmatpush1.bf16.msra.mxu0 0
    %724 = vmatprep.mubr.bf16.mxu0 0
    %725 = vmatmul.mubr.bf16.gmra.mrb[0].mxu0 %v594
    %v726 = vpop.f32.mrb[0].mxu0
    %v727 = vadd.f32 0.0, %v726
    %v728 = vpop.f32.mrb[0].mxu0
    %v729 = vadd.f32 0.0, %v728
    %v730 = vpop.f32.mrb[0].mxu0
    %v731 = vadd.f32 0.0, %v730
    %v732 = vpop.f32.mrb[0].mxu0
    %v733 = vadd.f32 0.0, %v732
    %734 = vdwg.mxu0
    %v751 = vunpack.c.l.b16 %v526
    %v752 = vunpack.c.h.b16 %v526
    %v753 = vunpack.c.l.b16 %v527
    %v754 = vunpack.c.h.b16 %v527
    %v755 = vunpack.c.l.b16 %v528
    %v756 = vunpack.c.h.b16 %v528
    %v757 = vunpack.c.l.b16 %v529
    %v758 = vunpack.c.h.b16 %v529
    %v759 = vunpack.c.l.b16 %v530
    %v760 = vunpack.c.h.b16 %v530
    %v761 = vunpack.c.l.b16 %v531
    %v762 = vunpack.c.h.b16 %v531
    %v763 = vunpack.c.l.b16 %v532
    %v764 = vunpack.c.h.b16 %v532
    %v765 = vunpack.c.l.b16 %v533
    %v766 = vunpack.c.h.b16 %v533
    %v767 = vunpack.c.l.b16 %v534
    %v768 = vunpack.c.h.b16 %v534
    %v769 = vunpack.c.l.b16 %v535
    %v770 = vunpack.c.h.b16 %v535
    %v771 = vunpack.c.l.b16 %v536
    %v772 = vunpack.c.h.b16 %v536
    %v773 = vunpack.c.l.b16 %v537
    %v774 = vunpack.c.h.b16 %v537
    %v775 = vunpack.c.l.b16 %v538
    %v776 = vunpack.c.h.b16 %v538
    %v777 = vunpack.c.l.b16 %v539
    %v778 = vunpack.c.h.b16 %v539
    %v779 = vunpack.c.l.b16 %v540
    %v780 = vunpack.c.h.b16 %v540
    %v781 = vunpack.c.l.b16 %v541
    %v782 = vunpack.c.h.b16 %v541
    %v783 = vpack.c.b16 %v753, %v751
    %v784 = vpack.c.b16 %v754, %v752
    %v785 = vpack.c.b16 %v757, %v755
    %v786 = vpack.c.b16 %v758, %v756
    %v787 = vpack.c.b16 %v761, %v759
    %v788 = vpack.c.b16 %v762, %v760
    %v789 = vpack.c.b16 %v765, %v763
    %v790 = vpack.c.b16 %v766, %v764
    %v791 = vpack.c.b16 %v769, %v767
    %v792 = vpack.c.b16 %v770, %v768
    %v793 = vpack.c.b16 %v773, %v771
    %v794 = vpack.c.b16 %v774, %v772
    %v795 = vpack.c.b16 %v777, %v775
    %v796 = vpack.c.b16 %v778, %v776
    %v797 = vpack.c.b16 %v781, %v779
    %v798 = vpack.c.b16 %v782, %v780
    %815 = vmatprep.subr.bf16.mxu0 %v784
    %816 = vmatpush1.bf16.msra.mxu0 %v783
    %817 = vmatprep.subr.bf16.mxu0 %v786
    %818 = vmatpush1.bf16.msra.mxu0 %v785
    %819 = vmatprep.subr.bf16.mxu0 %v788
    %820 = vmatpush1.bf16.msra.mxu0 %v787
    %821 = vmatprep.subr.bf16.mxu0 %v790
    %822 = vmatpush1.bf16.msra.mxu0 %v789
    %823 = vmatprep.subr.bf16.mxu0 %v792
    %824 = vmatpush1.bf16.msra.mxu0 %v791
    %825 = vmatprep.subr.bf16.mxu0 %v794
    %826 = vmatpush1.bf16.msra.mxu0 %v793
    %827 = vmatprep.subr.bf16.mxu0 %v796
    %828 = vmatpush1.bf16.msra.mxu0 %v795
    %829 = vmatprep.subr.bf16.mxu0 %v798
    %830 = vmatpush1.bf16.msra.mxu0 %v797
    %831 = vmatprep.subr.bf16.mxu0 0
    %832 = vmatpush1.bf16.msra.mxu0 0
    %833 = vmatprep.subr.bf16.mxu0 0
    %834 = vmatpush1.bf16.msra.mxu0 0
    %835 = vmatprep.subr.bf16.mxu0 0
    %836 = vmatpush1.bf16.msra.mxu0 0
    %837 = vmatprep.subr.bf16.mxu0 0
    %838 = vmatpush1.bf16.msra.mxu0 0
    %839 = vmatprep.subr.bf16.mxu0 0
    %840 = vmatpush1.bf16.msra.mxu0 0
    %841 = vmatprep.subr.bf16.mxu0 0
    %842 = vmatpush1.bf16.msra.mxu0 0
    %843 = vmatprep.subr.bf16.mxu0 0
    %844 = vmatpush1.bf16.msra.mxu0 0
    %845 = vmatprep.subr.bf16.mxu0 0
    %846 = vmatpush1.bf16.msra.mxu0 0
    %847 = vmatprep.mubr.bf16.mxu0 0
    %848 = vmatmul.mubr.bf16.gmra.mrb[0].mxu0 %v525
    %v849 = vpop.f32.mrb[0].mxu0
    %v850 = vadd.f32 %v727, %v849
    %v851 = vpop.f32.mrb[0].mxu0
    %v852 = vadd.f32 %v729, %v851
    %v853 = vpop.f32.mrb[0].mxu0
    %v854 = vadd.f32 %v731, %v853
    %v855 = vpop.f32.mrb[0].mxu0
    %v856 = vadd.f32 %v733, %v855
    %857 = vdwg.mxu0
    %s858 = scalar_lea.vmem [#allocation2], 16
    %v859 = vld [vmem:[%s858] sm:$0xf]
    %v860 = vld [vmem:[%s858 + $0x4] sm:$0xf]
    %v863 = vunpack.c.l.b16 %v859
    %v864 = vunpack.c.l.b16 %v860
    %v865 = vpack.c.b16 %v864, %v863
    %v867 = vsel %vm480, %v865, 0
    %869 = vmatprep.subr.bf16.mxu0 0
    %870 = vmatpush1.bf16.msra.mxu0 %v478
    %871 = vmatprep.subr.bf16.mxu0 0
    %872 = vmatpush1.bf16.msra.mxu0 0
    %873 = vmatprep.subr.bf16.mxu0 0
    %874 = vmatpush1.bf16.msra.mxu0 0
    %875 = vmatprep.subr.bf16.mxu0 0
    %876 = vmatpush1.bf16.msra.mxu0 0
    %877 = vmatprep.subr.bf16.mxu0 0
    %878 = vmatpush1.bf16.msra.mxu0 0
    %879 = vmatprep.subr.bf16.mxu0 0
    %880 = vmatpush1.bf16.msra.mxu0 0
    %881 = vmatprep.subr.bf16.mxu0 0
    %882 = vmatpush1.bf16.msra.mxu0 0
    %883 = vmatprep.subr.bf16.mxu0 0
    %884 = vmatpush1.bf16.msra.mxu0 0
    %885 = vmatprep.subr.bf16.mxu0 0
    %886 = vmatpush1.bf16.msra.mxu0 0
    %887 = vmatprep.subr.bf16.mxu0 0
    %888 = vmatpush1.bf16.msra.mxu0 0
    %889 = vmatprep.subr.bf16.mxu0 0
    %890 = vmatpush1.bf16.msra.mxu0 0
    %891 = vmatprep.subr.bf16.mxu0 0
    %892 = vmatpush1.bf16.msra.mxu0 0
    %893 = vmatprep.subr.bf16.mxu0 0
    %894 = vmatpush1.bf16.msra.mxu0 0
    %895 = vmatprep.subr.bf16.mxu0 0
    %896 = vmatpush1.bf16.msra.mxu0 0
    %897 = vmatprep.subr.bf16.mxu0 0
    %898 = vmatpush1.bf16.msra.mxu0 0
    %899 = vmatprep.subr.bf16.mxu0 0
    %900 = vmatpush1.bf16.msra.mxu0 0
    %901 = vmatprep.mubr.bf16.mxu0 0
    %902 = vmatmul.mubr.bf16.gmra.mrb[0].mxu0 %v867
    %v903 = vpop.f32.mrb[0].mxu0
    %v904 = vadd.f32 0.0, %v903
    %v905 = vpop.f32.mrb[0].mxu0
    %v906 = vpop.f32.mrb[0].mxu0
    %v907 = vadd.f32 0.0, %v906
    %v908 = vpop.f32.mrb[0].mxu0
    %909 = vdwg.mxu0
    %v910 = vpack.c.bf16 %v907, %v904
    %s911 = scalar_lea.vmem [#allocation4], 256
    %v912 = vld [vmem:[%s911] sm:$0xff]
    %v913 = vld [vmem:[%s911 + $0x8] sm:$0xff]
    %v914 = vld [vmem:[%s911 + $0x10] sm:$0xff]
    %v915 = vld [vmem:[%s911 + $0x18] sm:$0xff]
    %v916 = vld [vmem:[%s911 + $0x20] sm:$0xff]
    %v917 = vld [vmem:[%s911 + $0x28] sm:$0xff]
    %v918 = vld [vmem:[%s911 + $0x30] sm:$0xff]
    %v919 = vld [vmem:[%s911 + $0x38] sm:$0xff]
    %v920 = vld [vmem:[%s911 + $0x40] sm:$0xff]
    %v921 = vld [vmem:[%s911 + $0x48] sm:$0xff]
    %v922 = vld [vmem:[%s911 + $0x50] sm:$0xff]
    %v923 = vld [vmem:[%s911 + $0x58] sm:$0xff]
    %v924 = vld [vmem:[%s911 + $0x60] sm:$0xff]
    %v925 = vld [vmem:[%s911 + $0x68] sm:$0xff]
    %v926 = vld [vmem:[%s911 + $0x70] sm:$0xff]
    %v927 = vld [vmem:[%s911 + $0x78] sm:$0xff]
    %v944 = vunpack.c.l.b16 %v912
    %v945 = vunpack.c.h.b16 %v912
    %v946 = vunpack.c.l.b16 %v913
    %v947 = vunpack.c.h.b16 %v913
    %v948 = vunpack.c.l.b16 %v914
    %v949 = vunpack.c.h.b16 %v914
    %v950 = vunpack.c.l.b16 %v915
    %v951 = vunpack.c.h.b16 %v915
    %v952 = vunpack.c.l.b16 %v916
    %v953 = vunpack.c.h.b16 %v916
    %v954 = vunpack.c.l.b16 %v917
    %v955 = vunpack.c.h.b16 %v917
    %v956 = vunpack.c.l.b16 %v918
    %v957 = vunpack.c.h.b16 %v918
    %v958 = vunpack.c.l.b16 %v919
    %v959 = vunpack.c.h.b16 %v919
    %v960 = vunpack.c.l.b16 %v920
    %v961 = vunpack.c.h.b16 %v920
    %v962 = vunpack.c.l.b16 %v921
    %v963 = vunpack.c.h.b16 %v921
    %v964 = vunpack.c.l.b16 %v922
    %v965 = vunpack.c.h.b16 %v922
    %v966 = vunpack.c.l.b16 %v923
    %v967 = vunpack.c.h.b16 %v923
    %v968 = vunpack.c.l.b16 %v924
    %v969 = vunpack.c.h.b16 %v924
    %v970 = vunpack.c.l.b16 %v925
    %v971 = vunpack.c.h.b16 %v925
    %v972 = vunpack.c.l.b16 %v926
    %v973 = vunpack.c.h.b16 %v926
    %v974 = vunpack.c.l.b16 %v927
    %v975 = vunpack.c.h.b16 %v927
    %v976 = vpack.c.b16 %v946, %v944
    %v977 = vpack.c.b16 %v947, %v945
    %v978 = vpack.c.b16 %v950, %v948
    %v979 = vpack.c.b16 %v951, %v949
    %v980 = vpack.c.b16 %v954, %v952
    %v981 = vpack.c.b16 %v955, %v953
    %v982 = vpack.c.b16 %v958, %v956
    %v983 = vpack.c.b16 %v959, %v957
    %v984 = vpack.c.b16 %v962, %v960
    %v985 = vpack.c.b16 %v963, %v961
    %v986 = vpack.c.b16 %v966, %v964
    %v987 = vpack.c.b16 %v967, %v965
    %v988 = vpack.c.b16 %v970, %v968
    %v989 = vpack.c.b16 %v971, %v969
    %v990 = vpack.c.b16 %v974, %v972
    %v991 = vpack.c.b16 %v975, %v973
    %1008 = vmatprep.subr.bf16.mxu0 %v977
    %1009 = vmatpush1.bf16.msra.mxu0 %v976
    %1010 = vmatprep.subr.bf16.mxu0 %v979
    %1011 = vmatpush1.bf16.msra.mxu0 %v978
    %1012 = vmatprep.subr.bf16.mxu0 %v981
    %1013 = vmatpush1.bf16.msra.mxu0 %v980
    %1014 = vmatprep.subr.bf16.mxu0 %v983
    %1015 = vmatpush1.bf16.msra.mxu0 %v982
    %1016 = vmatprep.subr.bf16.mxu0 %v985
    %1017 = vmatpush1.bf16.msra.mxu0 %v984
    %1018 = vmatprep.subr.bf16.mxu0 %v987
    %1019 = vmatpush1.bf16.msra.mxu0 %v986
    %1020 = vmatprep.subr.bf16.mxu0 %v989
    %1021 = vmatpush1.bf16.msra.mxu0 %v988
    %1022 = vmatprep.subr.bf16.mxu0 %v991
    %1023 = vmatpush1.bf16.msra.mxu0 %v990
    %1024 = vmatprep.subr.bf16.mxu0 0
    %1025 = vmatpush1.bf16.msra.mxu0 0
    %1026 = vmatprep.subr.bf16.mxu0 0
    %1027 = vmatpush1.bf16.msra.mxu0 0
    %1028 = vmatprep.subr.bf16.mxu0 0
    %1029 = vmatpush1.bf16.msra.mxu0 0
    %1030 = vmatprep.subr.bf16.mxu0 0
    %1031 = vmatpush1.bf16.msra.mxu0 0
    %1032 = vmatprep.subr.bf16.mxu0 0
    %1033 = vmatpush1.bf16.msra.mxu0 0
    %1034 = vmatprep.subr.bf16.mxu0 0
    %1035 = vmatpush1.bf16.msra.mxu0 0
    %1036 = vmatprep.subr.bf16.mxu0 0
    %1037 = vmatpush1.bf16.msra.mxu0 0
    %1038 = vmatprep.subr.bf16.mxu0 0
    %1039 = vmatpush1.bf16.msra.mxu0 0
    %1040 = vmatprep.mubr.bf16.mxu0 0
    %1041 = vmatmul.mubr.bf16.gmra.mrb[0].mxu0 %v910
    %v1042 = vpop.f32.mrb[0].mxu0
    %v1043 = vadd.f32 0.0, %v1042
    %v1044 = vpop.f32.mrb[0].mxu0
    %v1045 = vadd.f32 0.0, %v1044
    %v1046 = vpop.f32.mrb[0].mxu0
    %v1047 = vadd.f32 0.0, %v1046
    %v1048 = vpop.f32.mrb[0].mxu0
    %v1049 = vadd.f32 0.0, %v1048
    %1050 = vdwg.mxu0
    %v1051 = vadd.f32 %v850, %v1043
    %v1052 = vadd.f32 %v852, %v1045
    %v1053 = vadd.f32 %v854, %v1047
    %v1054 = vadd.f32 %v856, %v1049
    %v1055 = vld [vmem:[#allocation6] sm:$0x3]
    %v1057 = vlaneseq
    %v1058 = vshrl.u32 %v1057, 7
    %v1059 = vsub.s32 0, %v1058
    %v1060 = vrot.slane %v1055, %v1059
    %v1061 = vlaneseq
    %v1062 = vshrl.u32 %v1061, 7
    %v1063 = vsub.s32 1, %v1062
    %v1064 = vrot.slane %v1055, %v1063
    %v1067 = vadd.f32 %v1051, %v1060
    %v1068 = vadd.f32 %v1052, %v1064
    %v1069 = vadd.f32 %v1053, %v1060
    %v1070 = vadd.f32 %v1054, %v1064
    %vm1071 = vcmp.ge.f32.partialorder %v1067, 0.0
    %vm1072 = vcmp.ge.f32.partialorder %v1068, 0.0
    %vm1073 = vcmp.ge.f32.partialorder %v1069, 0.0
    %vm1074 = vcmp.ge.f32.partialorder %v1070, 0.0
    %v1075 = vmul.f32 %v1067, 0.2
    %v1076 = vmul.f32 %v1068, 0.2
    %v1077 = vmul.f32 %v1069, 0.2
    %v1078 = vmul.f32 %v1070, 0.2
    %v1079 = vsel %vm1071, %v1067, %v1075
    %v1080 = vsel %vm1072, %v1068, %v1076
    %v1081 = vsel %vm1073, %v1069, %v1077
    %v1082 = vsel %vm1074, %v1070, %v1078
    %v1083 = vpack.c.bf16 %v1081, %v1079
    %v1084 = vpack.c.bf16 %v1082, %v1080
    %v1085 = vld [vmem:[#allocation7] sm:$0xf]
    %v1087 = vsel %vm480, %v1085, 0
    %1089 = vmatprep.subr.bf16.mxu0 %v1084
    %1090 = vmatpush1.bf16.msra.mxu0 %v1083
    %1091 = vmatprep.subr.bf16.mxu0 0
    %1092 = vmatpush1.bf16.msra.mxu0 0
    %1093 = vmatprep.subr.bf16.mxu0 0
    %1094 = vmatpush1.bf16.msra.mxu0 0
    %1095 = vmatprep.subr.bf16.mxu0 0
    %1096 = vmatpush1.bf16.msra.mxu0 0
    %1097 = vmatprep.subr.bf16.mxu0 0
    %1098 = vmatpush1.bf16.msra.mxu0 0
    %1099 = vmatprep.subr.bf16.mxu0 0
    %1100 = vmatpush1.bf16.msra.mxu0 0
    %1101 = vmatprep.subr.bf16.mxu0 0
    %1102 = vmatpush1.bf16.msra.mxu0 0
    %1103 = vmatprep.subr.bf16.mxu0 0
    %1104 = vmatpush1.bf16.msra.mxu0 0
    %1105 = vmatprep.subr.bf16.mxu0 0
    %1106 = vmatpush1.bf16.msra.mxu0 0
    %1107 = vmatprep.subr.bf16.mxu0 0
    %1108 = vmatpush1.bf16.msra.mxu0 0
    %1109 = vmatprep.subr.bf16.mxu0 0
    %1110 = vmatpush1.bf16.msra.mxu0 0
    %1111 = vmatprep.subr.bf16.mxu0 0
    %1112 = vmatpush1.bf16.msra.mxu0 0
    %1113 = vmatprep.subr.bf16.mxu0 0
    %1114 = vmatpush1.bf16.msra.mxu0 0
    %1115 = vmatprep.subr.bf16.mxu0 0
    %1116 = vmatpush1.bf16.msra.mxu0 0
    %1117 = vmatprep.subr.bf16.mxu0 0
    %1118 = vmatpush1.bf16.msra.mxu0 0
    %1119 = vmatprep.subr.bf16.mxu0 0
    %1120 = vmatpush1.bf16.msra.mxu0 0
    %1121 = vmatprep.mubr.bf16.mxu0 0
    %1122 = vmatmul.mubr.bf16.gmra.mrb[0].mxu0 %v1087
    %v1123 = vpop.f32.mrb[0].mxu0
    %v1124 = vadd.f32 0.0, %v1123
    %v1125 = vpop.f32.mrb[0].mxu0
    %v1126 = vadd.f32 0.0, %v1125
    %v1127 = vpop.f32.mrb[0].mxu0
    %v1128 = vpop.f32.mrb[0].mxu0
    %1129 = vdwg.mxu0
    %v1130 = vpack.c.bf16 %v1124, %v1124
    %v1131 = vpack.c.bf16 %v1126, %v1126
    %v1132 = vld [vmem:[#allocation9] sm:$0xf]
    %v1133 = vld [vmem:[#allocation9 + $0x4] sm:$0xf]
    %v1134 = vld [vmem:[#allocation9 + $0x8] sm:$0xf]
    %v1135 = vld [vmem:[#allocation9 + $0xc] sm:$0xf]
    %v1136 = vld [vmem:[#allocation9 + $0x10] sm:$0xf]
    %v1137 = vld [vmem:[#allocation9 + $0x14] sm:$0xf]
    %v1138 = vld [vmem:[#allocation9 + $0x18] sm:$0xf]
    %v1139 = vld [vmem:[#allocation9 + $0x1c] sm:$0xf]
    %v1140 = vld [vmem:[#allocation9 + $0x20] sm:$0xf]
    %v1141 = vld [vmem:[#allocation9 + $0x24] sm:$0xf]
    %v1142 = vld [vmem:[#allocation9 + $0x28] sm:$0xf]
    %v1143 = vld [vmem:[#allocation9 + $0x2c] sm:$0xf]
    %v1144 = vld [vmem:[#allocation9 + $0x30] sm:$0xf]
    %v1145 = vld [vmem:[#allocation9 + $0x34] sm:$0xf]
    %v1146 = vld [vmem:[#allocation9 + $0x38] sm:$0xf]
    %v1147 = vld [vmem:[#allocation9 + $0x3c] sm:$0xf]
    %v1148 = vld [vmem:[#allocation9 + $0x40] sm:$0xf]
    %v1149 = vld [vmem:[#allocation9 + $0x44] sm:$0xf]
    %v1150 = vld [vmem:[#allocation9 + $0x48] sm:$0xf]
    %v1151 = vld [vmem:[#allocation9 + $0x4c] sm:$0xf]
    %v1152 = vld [vmem:[#allocation9 + $0x50] sm:$0xf]
    %v1153 = vld [vmem:[#allocation9 + $0x54] sm:$0xf]
    %v1154 = vld [vmem:[#allocation9 + $0x58] sm:$0xf]
    %v1155 = vld [vmem:[#allocation9 + $0x5c] sm:$0xf]
    %v1156 = vld [vmem:[#allocation9 + $0x60] sm:$0xf]
    %v1157 = vld [vmem:[#allocation9 + $0x64] sm:$0xf]
    %v1158 = vld [vmem:[#allocation9 + $0x68] sm:$0xf]
    %v1159 = vld [vmem:[#allocation9 + $0x6c] sm:$0xf]
    %v1160 = vld [vmem:[#allocation9 + $0x70] sm:$0xf]
    %v1161 = vld [vmem:[#allocation9 + $0x74] sm:$0xf]
    %v1162 = vld [vmem:[#allocation9 + $0x78] sm:$0xf]
    %v1163 = vld [vmem:[#allocation9 + $0x7c] sm:$0xf]
    %s1164 = scalar_lea.vmem [#allocation7], 4
    %v1165 = vld [vmem:[%s1164] sm:$0xf]
    %v1167 = vsel %vm480, %v1165, 0
    %1169 = vmatprep.subr.bf16.mxu0 %v1084
    %1170 = vmatpush1.bf16.msra.mxu0 %v1083
    %1171 = vmatprep.subr.bf16.mxu0 0
    %1172 = vmatpush1.bf16.msra.mxu0 0
    %1173 = vmatprep.subr.bf16.mxu0 0
    %1174 = vmatpush1.bf16.msra.mxu0 0
    %1175 = vmatprep.subr.bf16.mxu0 0
    %1176 = vmatpush1.bf16.msra.mxu0 0
    %1177 = vmatprep.subr.bf16.mxu0 0
    %1178 = vmatpush1.bf16.msra.mxu0 0
    %1179 = vmatprep.subr.bf16.mxu0 0
    %1180 = vmatpush1.bf16.msra.mxu0 0
    %1181 = vmatprep.subr.bf16.mxu0 0
    %1182 = vmatpush1.bf16.msra.mxu0 0
    %1183 = vmatprep.subr.bf16.mxu0 0
    %1184 = vmatpush1.bf16.msra.mxu0 0
    %1185 = vmatprep.subr.bf16.mxu0 0
    %1186 = vmatpush1.bf16.msra.mxu0 0
    %1187 = vmatprep.subr.bf16.mxu0 0
    %1188 = vmatpush1.bf16.msra.mxu0 0
    %1189 = vmatprep.subr.bf16.mxu0 0
    %1190 = vmatpush1.bf16.msra.mxu0 0
    %1191 = vmatprep.subr.bf16.mxu0 0
    %1192 = vmatpush1.bf16.msra.mxu0 0
    %1193 = vmatprep.subr.bf16.mxu0 0
    %1194 = vmatpush1.bf16.msra.mxu0 0
    %1195 = vmatprep.subr.bf16.mxu0 0
    %1196 = vmatpush1.bf16.msra.mxu0 0
    %1197 = vmatprep.subr.bf16.mxu0 0
    %1198 = vmatpush1.bf16.msra.mxu0 0
    %1199 = vmatprep.subr.bf16.mxu0 0
    %1200 = vmatpush1.bf16.msra.mxu0 0
    %1201 = vmatprep.mubr.bf16.mxu0 0
    %1202 = vmatmul.mubr.bf16.gmra.mrb[0].mxu0 %v1167
    %v1203 = vpop.f32.mrb[0].mxu0
    %v1204 = vadd.f32 0.0, %v1203
    %v1205 = vpop.f32.mrb[0].mxu0
    %v1206 = vadd.f32 0.0, %v1205
    %v1207 = vpop.f32.mrb[0].mxu0
    %v1208 = vpop.f32.mrb[0].mxu0
    %1209 = vdwg.mxu0
    %v1210 = vpack.c.bf16 %v1204, %v1204
    %v1211 = vpack.c.bf16 %v1206, %v1206
    %s1212 = scalar_lea.vmem [#allocation9], 128
    %v1213 = vld [vmem:[%s1212] sm:$0xf]
    %v1214 = vld [vmem:[%s1212 + $0x4] sm:$0xf]
    %v1215 = vld [vmem:[%s1212 + $0x8] sm:$0xf]
    %v1216 = vld [vmem:[%s1212 + $0xc] sm:$0xf]
    %v1217 = vld [vmem:[%s1212 + $0x10] sm:$0xf]
    %v1218 = vld [vmem:[%s1212 + $0x14] sm:$0xf]
    %v1219 = vld [vmem:[%s1212 + $0x18] sm:$0xf]
    %v1220 = vld [vmem:[%s1212 + $0x1c] sm:$0xf]
    %v1221 = vld [vmem:[%s1212 + $0x20] sm:$0xf]
    %v1222 = vld [vmem:[%s1212 + $0x24] sm:$0xf]
    %v1223 = vld [vmem:[%s1212 + $0x28] sm:$0xf]
    %v1224 = vld [vmem:[%s1212 + $0x2c] sm:$0xf]
    %v1225 = vld [vmem:[%s1212 + $0x30] sm:$0xf]
    %v1226 = vld [vmem:[%s1212 + $0x34] sm:$0xf]
    %v1227 = vld [vmem:[%s1212 + $0x38] sm:$0xf]
    %v1228 = vld [vmem:[%s1212 + $0x3c] sm:$0xf]
    %v1229 = vld [vmem:[%s1212 + $0x40] sm:$0xf]
    %v1230 = vld [vmem:[%s1212 + $0x44] sm:$0xf]
    %v1231 = vld [vmem:[%s1212 + $0x48] sm:$0xf]
    %v1232 = vld [vmem:[%s1212 + $0x4c] sm:$0xf]
    %v1233 = vld [vmem:[%s1212 + $0x50] sm:$0xf]
    %v1234 = vld [vmem:[%s1212 + $0x54] sm:$0xf]
    %v1235 = vld [vmem:[%s1212 + $0x58] sm:$0xf]
    %v1236 = vld [vmem:[%s1212 + $0x5c] sm:$0xf]
    %v1237 = vld [vmem:[%s1212 + $0x60] sm:$0xf]
    %v1238 = vld [vmem:[%s1212 + $0x64] sm:$0xf]
    %v1239 = vld [vmem:[%s1212 + $0x68] sm:$0xf]
    %v1240 = vld [vmem:[%s1212 + $0x6c] sm:$0xf]
    %v1241 = vld [vmem:[%s1212 + $0x70] sm:$0xf]
    %v1242 = vld [vmem:[%s1212 + $0x74] sm:$0xf]
    %v1243 = vld [vmem:[%s1212 + $0x78] sm:$0xf]
    %v1244 = vld [vmem:[%s1212 + $0x7c] sm:$0xf]
    %v1277 = vunpack.c.l.b16 %v1213
    %v1278 = vunpack.c.l.b16 %v1214
    %v1279 = vunpack.c.l.b16 %v1215
    %v1280 = vunpack.c.l.b16 %v1216
    %v1281 = vunpack.c.l.b16 %v1217
    %v1282 = vunpack.c.l.b16 %v1218
    %v1283 = vunpack.c.l.b16 %v1219
    %v1284 = vunpack.c.l.b16 %v1220
    %v1285 = vunpack.c.l.b16 %v1221
    %v1286 = vunpack.c.l.b16 %v1222
    %v1287 = vunpack.c.l.b16 %v1223
    %v1288 = vunpack.c.l.b16 %v1224
    %v1289 = vunpack.c.l.b16 %v1225
    %v1290 = vunpack.c.l.b16 %v1226
    %v1291 = vunpack.c.l.b16 %v1227
    %v1292 = vunpack.c.l.b16 %v1228
    %v1293 = vunpack.c.l.b16 %v1229
    %v1294 = vunpack.c.l.b16 %v1230
    %v1295 = vunpack.c.l.b16 %v1231
    %v1296 = vunpack.c.l.b16 %v1232
    %v1297 = vunpack.c.l.b16 %v1233
    %v1298 = vunpack.c.l.b16 %v1234
    %v1299 = vunpack.c.l.b16 %v1235
    %v1300 = vunpack.c.l.b16 %v1236
    %v1301 = vunpack.c.l.b16 %v1237
    %v1302 = vunpack.c.l.b16 %v1238
    %v1303 = vunpack.c.l.b16 %v1239
    %v1304 = vunpack.c.l.b16 %v1240
    %v1305 = vunpack.c.l.b16 %v1241
    %v1306 = vunpack.c.l.b16 %v1242
    %v1307 = vunpack.c.l.b16 %v1243
    %v1308 = vunpack.c.l.b16 %v1244
    %v1309 = vpack.c.b16 %v1278, %v1277
    %v1310 = vpack.c.b16 %v1280, %v1279
    %v1311 = vpack.c.b16 %v1282, %v1281
    %v1312 = vpack.c.b16 %v1284, %v1283
    %v1313 = vpack.c.b16 %v1286, %v1285
    %v1314 = vpack.c.b16 %v1288, %v1287
    %v1315 = vpack.c.b16 %v1290, %v1289
    %v1316 = vpack.c.b16 %v1292, %v1291
    %v1317 = vpack.c.b16 %v1294, %v1293
    %v1318 = vpack.c.b16 %v1296, %v1295
    %v1319 = vpack.c.b16 %v1298, %v1297
    %v1320 = vpack.c.b16 %v1300, %v1299
    %v1321 = vpack.c.b16 %v1302, %v1301
    %v1322 = vpack.c.b16 %v1304, %v1303
    %v1323 = vpack.c.b16 %v1306, %v1305
    %v1324 = vpack.c.b16 %v1308, %v1307
    %1341 = vmatprep.subr.bf16.mxu0 0
    %1342 = vmatpush1.bf16.msra.mxu0 %v1309
    %1343 = vmatprep.subr.bf16.mxu0 0
    %1344 = vmatpush1.bf16.msra.mxu0 %v1310
    %1345 = vmatprep.subr.bf16.mxu0 0
    %1346 = vmatpush1.bf16.msra.mxu0 %v1311
    %1347 = vmatprep.subr.bf16.mxu0 0
    %1348 = vmatpush1.bf16.msra.mxu0 %v1312
    %1349 = vmatprep.subr.bf16.mxu0 0
    %1350 = vmatpush1.bf16.msra.mxu0 %v1313
    %1351 = vmatprep.subr.bf16.mxu0 0
    %1352 = vmatpush1.bf16.msra.mxu0 %v1314
    %1353 = vmatprep.subr.bf16.mxu0 0
    %1354 = vmatpush1.bf16.msra.mxu0 %v1315
    %1355 = vmatprep.subr.bf16.mxu0 0
    %1356 = vmatpush1.bf16.msra.mxu0 %v1316
    %1357 = vmatprep.subr.bf16.mxu0 0
    %1358 = vmatpush1.bf16.msra.mxu0 %v1317
    %1359 = vmatprep.subr.bf16.mxu0 0
    %1360 = vmatpush1.bf16.msra.mxu0 %v1318
    %1361 = vmatprep.subr.bf16.mxu0 0
    %1362 = vmatpush1.bf16.msra.mxu0 %v1319
    %1363 = vmatprep.subr.bf16.mxu0 0
    %1364 = vmatpush1.bf16.msra.mxu0 %v1320
    %1365 = vmatprep.subr.bf16.mxu0 0
    %1366 = vmatpush1.bf16.msra.mxu0 %v1321
    %1367 = vmatprep.subr.bf16.mxu0 0
    %1368 = vmatpush1.bf16.msra.mxu0 %v1322
    %1369 = vmatprep.subr.bf16.mxu0 0
    %1370 = vmatpush1.bf16.msra.mxu0 %v1323
    %1371 = vmatprep.subr.bf16.mxu0 0
    %1372 = vmatpush1.bf16.msra.mxu0 %v1324
    %1373 = vmatprep.mubr.bf16.mxu0 %v1211
    %1374 = vmatmul.mubr.bf16.gmra.mrb[0].mxu0 %v1210
    %v1375 = vpop.f32.mrb[0].mxu0
    %v1376 = vadd.f32 0.0, %v1375
    %v1377 = vpop.f32.mrb[0].mxu0
    %v1378 = vpop.f32.mrb[0].mxu0
    %v1379 = vpop.f32.mrb[0].mxu0
    %1380 = vdwg.mxu0
    %v1413 = vunpack.c.l.b16 %v1132
    %v1414 = vunpack.c.l.b16 %v1133
    %v1415 = vunpack.c.l.b16 %v1134
    %v1416 = vunpack.c.l.b16 %v1135
    %v1417 = vunpack.c.l.b16 %v1136
    %v1418 = vunpack.c.l.b16 %v1137
    %v1419 = vunpack.c.l.b16 %v1138
    %v1420 = vunpack.c.l.b16 %v1139
    %v1421 = vunpack.c.l.b16 %v1140
    %v1422 = vunpack.c.l.b16 %v1141
    %v1423 = vunpack.c.l.b16 %v1142
    %v1424 = vunpack.c.l.b16 %v1143
    %v1425 = vunpack.c.l.b16 %v1144
    %v1426 = vunpack.c.l.b16 %v1145
    %v1427 = vunpack.c.l.b16 %v1146
    %v1428 = vunpack.c.l.b16 %v1147
    %v1429 = vunpack.c.l.b16 %v1148
    %v1430 = vunpack.c.l.b16 %v1149
    %v1431 = vunpack.c.l.b16 %v1150
    %v1432 = vunpack.c.l.b16 %v1151
    %v1433 = vunpack.c.l.b16 %v1152
    %v1434 = vunpack.c.l.b16 %v1153
    %v1435 = vunpack.c.l.b16 %v1154
    %v1436 = vunpack.c.l.b16 %v1155
    %v1437 = vunpack.c.l.b16 %v1156
    %v1438 = vunpack.c.l.b16 %v1157
    %v1439 = vunpack.c.l.b16 %v1158
    %v1440 = vunpack.c.l.b16 %v1159
    %v1441 = vunpack.c.l.b16 %v1160
    %v1442 = vunpack.c.l.b16 %v1161
    %v1443 = vunpack.c.l.b16 %v1162
    %v1444 = vunpack.c.l.b16 %v1163
    %v1445 = vpack.c.b16 %v1414, %v1413
    %v1446 = vpack.c.b16 %v1416, %v1415
    %v1447 = vpack.c.b16 %v1418, %v1417
    %v1448 = vpack.c.b16 %v1420, %v1419
    %v1449 = vpack.c.b16 %v1422, %v1421
    %v1450 = vpack.c.b16 %v1424, %v1423
    %v1451 = vpack.c.b16 %v1426, %v1425
    %v1452 = vpack.c.b16 %v1428, %v1427
    %v1453 = vpack.c.b16 %v1430, %v1429
    %v1454 = vpack.c.b16 %v1432, %v1431
    %v1455 = vpack.c.b16 %v1434, %v1433
    %v1456 = vpack.c.b16 %v1436, %v1435
    %v1457 = vpack.c.b16 %v1438, %v1437
    %v1458 = vpack.c.b16 %v1440, %v1439
    %v1459 = vpack.c.b16 %v1442, %v1441
    %v1460 = vpack.c.b16 %v1444, %v1443
    %1477 = vmatprep.subr.bf16.mxu0 0
    %1478 = vmatpush1.bf16.msra.mxu0 %v1445
    %1479 = vmatprep.subr.bf16.mxu0 0
    %1480 = vmatpush1.bf16.msra.mxu0 %v1446
    %1481 = vmatprep.subr.bf16.mxu0 0
    %1482 = vmatpush1.bf16.msra.mxu0 %v1447
    %1483 = vmatprep.subr.bf16.mxu0 0
    %1484 = vmatpush1.bf16.msra.mxu0 %v1448
    %1485 = vmatprep.subr.bf16.mxu0 0
    %1486 = vmatpush1.bf16.msra.mxu0 %v1449
    %1487 = vmatprep.subr.bf16.mxu0 0
    %1488 = vmatpush1.bf16.msra.mxu0 %v1450
    %1489 = vmatprep.subr.bf16.mxu0 0
    %1490 = vmatpush1.bf16.msra.mxu0 %v1451
    %1491 = vmatprep.subr.bf16.mxu0 0
    %1492 = vmatpush1.bf16.msra.mxu0 %v1452
    %1493 = vmatprep.subr.bf16.mxu0 0
    %1494 = vmatpush1.bf16.msra.mxu0 %v1453
    %1495 = vmatprep.subr.bf16.mxu0 0
    %1496 = vmatpush1.bf16.msra.mxu0 %v1454
    %1497 = vmatprep.subr.bf16.mxu0 0
    %1498 = vmatpush1.bf16.msra.mxu0 %v1455
    %1499 = vmatprep.subr.bf16.mxu0 0
    %1500 = vmatpush1.bf16.msra.mxu0 %v1456
    %1501 = vmatprep.subr.bf16.mxu0 0
    %1502 = vmatpush1.bf16.msra.mxu0 %v1457
    %1503 = vmatprep.subr.bf16.mxu0 0
    %1504 = vmatpush1.bf16.msra.mxu0 %v1458
    %1505 = vmatprep.subr.bf16.mxu0 0
    %1506 = vmatpush1.bf16.msra.mxu0 %v1459
    %1507 = vmatprep.subr.bf16.mxu0 0
    %1508 = vmatpush1.bf16.msra.mxu0 %v1460
    %1509 = vmatprep.mubr.bf16.mxu0 %v1131
    %1510 = vmatmul.mubr.bf16.gmra.mrb[0].mxu0 %v1130
    %v1511 = vpop.f32.mrb[0].mxu0
    %v1512 = vadd.f32 %v1376, %v1511
    %v1513 = vpop.f32.mrb[0].mxu0
    %v1514 = vpop.f32.mrb[0].mxu0
    %v1515 = vpop.f32.mrb[0].mxu0
    %1516 = vdwg.mxu0
    %s1517 = scalar_lea.vmem [#allocation7], 8
    %v1518 = vld [vmem:[%s1517] sm:$0xf]
    %v1520 = vsel %vm480, %v1518, 0
    %1522 = vmatprep.subr.bf16.mxu0 %v1084
    %1523 = vmatpush1.bf16.msra.mxu0 %v1083
    %1524 = vmatprep.subr.bf16.mxu0 0
    %1525 = vmatpush1.bf16.msra.mxu0 0
    %1526 = vmatprep.subr.bf16.mxu0 0
    %1527 = vmatpush1.bf16.msra.mxu0 0
    %1528 = vmatprep.subr.bf16.mxu0 0
    %1529 = vmatpush1.bf16.msra.mxu0 0
    %1530 = vmatprep.subr.bf16.mxu0 0
    %1531 = vmatpush1.bf16.msra.mxu0 0
    %1532 = vmatprep.subr.bf16.mxu0 0
    %1533 = vmatpush1.bf16.msra.mxu0 0
    %1534 = vmatprep.subr.bf16.mxu0 0
    %1535 = vmatpush1.bf16.msra.mxu0 0
    %1536 = vmatprep.subr.bf16.mxu0 0
    %1537 = vmatpush1.bf16.msra.mxu0 0
    %1538 = vmatprep.subr.bf16.mxu0 0
    %1539 = vmatpush1.bf16.msra.mxu0 0
    %1540 = vmatprep.subr.bf16.mxu0 0
    %1541 = vmatpush1.bf16.msra.mxu0 0
    %1542 = vmatprep.subr.bf16.mxu0 0
    %1543 = vmatpush1.bf16.msra.mxu0 0
    %1544 = vmatprep.subr.bf16.mxu0 0
    %1545 = vmatpush1.bf16.msra.mxu0 0
    %1546 = vmatprep.subr.bf16.mxu0 0
    %1547 = vmatpush1.bf16.msra.mxu0 0
    %1548 = vmatprep.subr.bf16.mxu0 0
    %1549 = vmatpush1.bf16.msra.mxu0 0
    %1550 = vmatprep.subr.bf16.mxu0 0
    %1551 = vmatpush1.bf16.msra.mxu0 0
    %1552 = vmatprep.subr.bf16.mxu0 0
    %1553 = vmatpush1.bf16.msra.mxu0 0
    %1554 = vmatprep.mubr.bf16.mxu0 0
    %1555 = vmatmul.mubr.bf16.gmra.mrb[0].mxu0 %v1520
    %v1556 = vpop.f32.mrb[0].mxu0
    %v1557 = vadd.f32 0.0, %v1556
    %v1558 = vpop.f32.mrb[0].mxu0
    %v1559 = vadd.f32 0.0, %v1558
    %v1560 = vpop.f32.mrb[0].mxu0
    %v1561 = vpop.f32.mrb[0].mxu0
    %1562 = vdwg.mxu0
    %v1563 = vpack.c.bf16 %v1557, %v1557
    %v1564 = vpack.c.bf16 %v1559, %v1559
    %s1565 = scalar_lea.vmem [#allocation9], 256
    %v1566 = vld [vmem:[%s1565] sm:$0xf]
    %v1567 = vld [vmem:[%s1565 + $0x4] sm:$0xf]
    %v1568 = vld [vmem:[%s1565 + $0x8] sm:$0xf]
    %v1569 = vld [vmem:[%s1565 + $0xc] sm:$0xf]
    %v1570 = vld [vmem:[%s1565 + $0x10] sm:$0xf]
    %v1571 = vld [vmem:[%s1565 + $0x14] sm:$0xf]
    %v1572 = vld [vmem:[%s1565 + $0x18] sm:$0xf]
    %v1573 = vld [vmem:[%s1565 + $0x1c] sm:$0xf]
    %v1574 = vld [vmem:[%s1565 + $0x20] sm:$0xf]
    %v1575 = vld [vmem:[%s1565 + $0x24] sm:$0xf]
    %v1576 = vld [vmem:[%s1565 + $0x28] sm:$0xf]
    %v1577 = vld [vmem:[%s1565 + $0x2c] sm:$0xf]
    %v1578 = vld [vmem:[%s1565 + $0x30] sm:$0xf]
    %v1579 = vld [vmem:[%s1565 + $0x34] sm:$0xf]
    %v1580 = vld [vmem:[%s1565 + $0x38] sm:$0xf]
    %v1581 = vld [vmem:[%s1565 + $0x3c] sm:$0xf]
    %v1582 = vld [vmem:[%s1565 + $0x40] sm:$0xf]
    %v1583 = vld [vmem:[%s1565 + $0x44] sm:$0xf]
    %v1584 = vld [vmem:[%s1565 + $0x48] sm:$0xf]
    %v1585 = vld [vmem:[%s1565 + $0x4c] sm:$0xf]
    %v1586 = vld [vmem:[%s1565 + $0x50] sm:$0xf]
    %v1587 = vld [vmem:[%s1565 + $0x54] sm:$0xf]
    %v1588 = vld [vmem:[%s1565 + $0x58] sm:$0xf]
    %v1589 = vld [vmem:[%s1565 + $0x5c] sm:$0xf]
    %v1590 = vld [vmem:[%s1565 + $0x60] sm:$0xf]
    %v1591 = vld [vmem:[%s1565 + $0x64] sm:$0xf]
    %v1592 = vld [vmem:[%s1565 + $0x68] sm:$0xf]
    %v1593 = vld [vmem:[%s1565 + $0x6c] sm:$0xf]
    %v1594 = vld [vmem:[%s1565 + $0x70] sm:$0xf]
    %v1595 = vld [vmem:[%s1565 + $0x74] sm:$0xf]
    %v1596 = vld [vmem:[%s1565 + $0x78] sm:$0xf]
    %v1597 = vld [vmem:[%s1565 + $0x7c] sm:$0xf]
    %v1630 = vunpack.c.l.b16 %v1566
    %v1631 = vunpack.c.l.b16 %v1567
    %v1632 = vunpack.c.l.b16 %v1568
    %v1633 = vunpack.c.l.b16 %v1569
    %v1634 = vunpack.c.l.b16 %v1570
    %v1635 = vunpack.c.l.b16 %v1571
    %v1636 = vunpack.c.l.b16 %v1572
    %v1637 = vunpack.c.l.b16 %v1573
    %v1638 = vunpack.c.l.b16 %v1574
    %v1639 = vunpack.c.l.b16 %v1575
    %v1640 = vunpack.c.l.b16 %v1576
    %v1641 = vunpack.c.l.b16 %v1577
    %v1642 = vunpack.c.l.b16 %v1578
    %v1643 = vunpack.c.l.b16 %v1579
    %v1644 = vunpack.c.l.b16 %v1580
    %v1645 = vunpack.c.l.b16 %v1581
    %v1646 = vunpack.c.l.b16 %v1582
    %v1647 = vunpack.c.l.b16 %v1583
    %v1648 = vunpack.c.l.b16 %v1584
    %v1649 = vunpack.c.l.b16 %v1585
    %v1650 = vunpack.c.l.b16 %v1586
    %v1651 = vunpack.c.l.b16 %v1587
    %v1652 = vunpack.c.l.b16 %v1588
    %v1653 = vunpack.c.l.b16 %v1589
    %v1654 = vunpack.c.l.b16 %v1590
    %v1655 = vunpack.c.l.b16 %v1591
    %v1656 = vunpack.c.l.b16 %v1592
    %v1657 = vunpack.c.l.b16 %v1593
    %v1658 = vunpack.c.l.b16 %v1594
    %v1659 = vunpack.c.l.b16 %v1595
    %v1660 = vunpack.c.l.b16 %v1596
    %v1661 = vunpack.c.l.b16 %v1597
    %v1662 = vpack.c.b16 %v1631, %v1630
    %v1663 = vpack.c.b16 %v1633, %v1632
    %v1664 = vpack.c.b16 %v1635, %v1634
    %v1665 = vpack.c.b16 %v1637, %v1636
    %v1666 = vpack.c.b16 %v1639, %v1638
    %v1667 = vpack.c.b16 %v1641, %v1640
    %v1668 = vpack.c.b16 %v1643, %v1642
    %v1669 = vpack.c.b16 %v1645, %v1644
    %v1670 = vpack.c.b16 %v1647, %v1646
    %v1671 = vpack.c.b16 %v1649, %v1648
    %v1672 = vpack.c.b16 %v1651, %v1650
    %v1673 = vpack.c.b16 %v1653, %v1652
    %v1674 = vpack.c.b16 %v1655, %v1654
    %v1675 = vpack.c.b16 %v1657, %v1656
    %v1676 = vpack.c.b16 %v1659, %v1658
    %v1677 = vpack.c.b16 %v1661, %v1660
    %1694 = vmatprep.subr.bf16.mxu0 0
    %1695 = vmatpush1.bf16.msra.mxu0 %v1662
    %1696 = vmatprep.subr.bf16.mxu0 0
    %1697 = vmatpush1.bf16.msra.mxu0 %v1663
    %1698 = vmatprep.subr.bf16.mxu0 0
    %1699 = vmatpush1.bf16.msra.mxu0 %v1664
    %1700 = vmatprep.subr.bf16.mxu0 0
    %1701 = vmatpush1.bf16.msra.mxu0 %v1665
    %1702 = vmatprep.subr.bf16.mxu0 0
    %1703 = vmatpush1.bf16.msra.mxu0 %v1666
    %1704 = vmatprep.subr.bf16.mxu0 0
    %1705 = vmatpush1.bf16.msra.mxu0 %v1667
    %1706 = vmatprep.subr.bf16.mxu0 0
    %1707 = vmatpush1.bf16.msra.mxu0 %v1668
    %1708 = vmatprep.subr.bf16.mxu0 0
    %1709 = vmatpush1.bf16.msra.mxu0 %v1669
    %1710 = vmatprep.subr.bf16.mxu0 0
    %1711 = vmatpush1.bf16.msra.mxu0 %v1670
    %1712 = vmatprep.subr.bf16.mxu0 0
    %1713 = vmatpush1.bf16.msra.mxu0 %v1671
    %1714 = vmatprep.subr.bf16.mxu0 0
    %1715 = vmatpush1.bf16.msra.mxu0 %v1672
    %1716 = vmatprep.subr.bf16.mxu0 0
    %1717 = vmatpush1.bf16.msra.mxu0 %v1673
    %1718 = vmatprep.subr.bf16.mxu0 0
    %1719 = vmatpush1.bf16.msra.mxu0 %v1674
    %1720 = vmatprep.subr.bf16.mxu0 0
    %1721 = vmatpush1.bf16.msra.mxu0 %v1675
    %1722 = vmatprep.subr.bf16.mxu0 0
    %1723 = vmatpush1.bf16.msra.mxu0 %v1676
    %1724 = vmatprep.subr.bf16.mxu0 0
    %1725 = vmatpush1.bf16.msra.mxu0 %v1677
    %1726 = vmatprep.mubr.bf16.mxu0 %v1564
    %1727 = vmatmul.mubr.bf16.gmra.mrb[0].mxu0 %v1563
    %v1728 = vpop.f32.mrb[0].mxu0
    %v1729 = vadd.f32 0.0, %v1728
    %v1730 = vpop.f32.mrb[0].mxu0
    %v1731 = vpop.f32.mrb[0].mxu0
    %v1732 = vpop.f32.mrb[0].mxu0
    %1733 = vdwg.mxu0
    %v1734 = vadd.f32 %v1512, %v1729
    %v1735 = vld [vmem:[#allocation10] sm:$0x1]
    %v1737 = vlaneseq
    %v1738 = vshrl.u32 %v1737, 7
    %v1739 = vsub.s32 0, %v1738
    %v1740 = vrot.slane %v1735, %v1739
    %v1742 = vadd.f32 %v1734, %v1740
    %vm1743 = vcmp.ge.f32.partialorder %v1742, 0.0
    %v1744 = vmul.f32 %v1742, 0.2
    %v1745 = vsel %vm1743, %v1742, %v1744
    %v1746 = vpack.c.bf16 %v1745, %v1745
    %v1747 = vld [vmem:[#allocation12] sm:$0xf]
    %vm1748 = vcmask 64512
    %v1750 = vsel %vm1748, %v1747, 0
    %vm1752 = vcmask 1043456
    %v1754 = vsel %vm1752, %v1746, 0
    %1756 = vmatprep.subr.bf16.mxu0 0
    %1757 = vmatpush1.bf16.msra.mxu0 %v1754
    %1758 = vmatprep.subr.bf16.mxu0 0
    %1759 = vmatpush1.bf16.msra.mxu0 0
    %1760 = vmatprep.subr.bf16.mxu0 0
    %1761 = vmatpush1.bf16.msra.mxu0 0
    %1762 = vmatprep.subr.bf16.mxu0 0
    %1763 = vmatpush1.bf16.msra.mxu0 0
    %1764 = vmatprep.subr.bf16.mxu0 0
    %1765 = vmatpush1.bf16.msra.mxu0 0
    %1766 = vmatprep.subr.bf16.mxu0 0
    %1767 = vmatpush1.bf16.msra.mxu0 0
    %1768 = vmatprep.subr.bf16.mxu0 0
    %1769 = vmatpush1.bf16.msra.mxu0 0
    %1770 = vmatprep.subr.bf16.mxu0 0
    %1771 = vmatpush1.bf16.msra.mxu0 0
    %1772 = vmatprep.subr.bf16.mxu0 0
    %1773 = vmatpush1.bf16.msra.mxu0 0
    %1774 = vmatprep.subr.bf16.mxu0 0
    %1775 = vmatpush1.bf16.msra.mxu0 0
    %1776 = vmatprep.subr.bf16.mxu0 0
    %1777 = vmatpush1.bf16.msra.mxu0 0
    %1778 = vmatprep.subr.bf16.mxu0 0
    %1779 = vmatpush1.bf16.msra.mxu0 0
    %1780 = vmatprep.subr.bf16.mxu0 0
    %1781 = vmatpush1.bf16.msra.mxu0 0
    %1782 = vmatprep.subr.bf16.mxu0 0
    %1783 = vmatpush1.bf16.msra.mxu0 0
    %1784 = vmatprep.subr.bf16.mxu0 0
    %1785 = vmatpush1.bf16.msra.mxu0 0
    %1786 = vmatprep.subr.bf16.mxu0 0
    %1787 = vmatpush1.bf16.msra.mxu0 0
    %1788 = vmatprep.mubr.bf16.mxu0 0
    %1789 = vmatmul.mubr.bf16.gmra.mrb[0].mxu0 %v1750
    %v1790 = vpop.f32.mrb[0].mxu0
    %v1791 = vadd.f32 0.0, %v1790
    %v1792 = vpop.f32.mrb[0].mxu0
    %v1793 = vpop.f32.mrb[0].mxu0
    %v1794 = vpop.f32.mrb[0].mxu0
    %1795 = vdwg.mxu0
    %v1796 = vpack.c.bf16 %v1791, %v1791
    %v1797 = vld [vmem:[#allocation13] sm:$0xff]
    %v1798 = vld [vmem:[#allocation13 + $0x8] sm:$0xff]
    %v1799 = vld [vmem:[#allocation13 + $0x10] sm:$0xff]
    %v1800 = vld [vmem:[#allocation13 + $0x18] sm:$0xff]
    %v1801 = vld [vmem:[#allocation13 + $0x20] sm:$0xff]
    %v1802 = vld [vmem:[#allocation13 + $0x28] sm:$0xff]
    %v1803 = vld [vmem:[#allocation13 + $0x30] sm:$0xff]
    %v1804 = vld [vmem:[#allocation13 + $0x38] sm:$0xff]
    %v1805 = vld [vmem:[#allocation13 + $0x40] sm:$0xff]
    %v1806 = vld [vmem:[#allocation13 + $0x48] sm:$0xff]
    %v1807 = vld [vmem:[#allocation13 + $0x50] sm:$0xff]
    %v1808 = vld [vmem:[#allocation13 + $0x58] sm:$0xff]
    %v1809 = vld [vmem:[#allocation13 + $0x60] sm:$0xff]
    %v1810 = vld [vmem:[#allocation13 + $0x68] sm:$0xff]
    %v1811 = vld [vmem:[#allocation13 + $0x70] sm:$0xff]
    %v1812 = vld [vmem:[#allocation13 + $0x78] sm:$0xff]
    %s1813 = scalar_lea.vmem [#allocation12], 4
    %v1814 = vld [vmem:[%s1813] sm:$0xf]
    %v1816 = vsel %vm1748, %v1814, 0
    %1818 = vmatprep.subr.bf16.mxu0 0
    %1819 = vmatpush1.bf16.msra.mxu0 %v1754
    %1820 = vmatprep.subr.bf16.mxu0 0
    %1821 = vmatpush1.bf16.msra.mxu0 0
    %1822 = vmatprep.subr.bf16.mxu0 0
    %1823 = vmatpush1.bf16.msra.mxu0 0
    %1824 = vmatprep.subr.bf16.mxu0 0
    %1825 = vmatpush1.bf16.msra.mxu0 0
    %1826 = vmatprep.subr.bf16.mxu0 0
    %1827 = vmatpush1.bf16.msra.mxu0 0
    %1828 = vmatprep.subr.bf16.mxu0 0
    %1829 = vmatpush1.bf16.msra.mxu0 0
    %1830 = vmatprep.subr.bf16.mxu0 0
    %1831 = vmatpush1.bf16.msra.mxu0 0
    %1832 = vmatprep.subr.bf16.mxu0 0
    %1833 = vmatpush1.bf16.msra.mxu0 0
    %1834 = vmatprep.subr.bf16.mxu0 0
    %1835 = vmatpush1.bf16.msra.mxu0 0
    %1836 = vmatprep.subr.bf16.mxu0 0
    %1837 = vmatpush1.bf16.msra.mxu0 0
    %1838 = vmatprep.subr.bf16.mxu0 0
    %1839 = vmatpush1.bf16.msra.mxu0 0
    %1840 = vmatprep.subr.bf16.mxu0 0
    %1841 = vmatpush1.bf16.msra.mxu0 0
    %1842 = vmatprep.subr.bf16.mxu0 0
    %1843 = vmatpush1.bf16.msra.mxu0 0
    %1844 = vmatprep.subr.bf16.mxu0 0
    %1845 = vmatpush1.bf16.msra.mxu0 0
    %1846 = vmatprep.subr.bf16.mxu0 0
    %1847 = vmatpush1.bf16.msra.mxu0 0
    %1848 = vmatprep.subr.bf16.mxu0 0
    %1849 = vmatpush1.bf16.msra.mxu0 0
    %1850 = vmatprep.mubr.bf16.mxu0 0
    %1851 = vmatmul.mubr.bf16.gmra.mrb[0].mxu0 %v1816
    %v1852 = vpop.f32.mrb[0].mxu0
    %v1853 = vadd.f32 0.0, %v1852
    %v1854 = vpop.f32.mrb[0].mxu0
    %v1855 = vpop.f32.mrb[0].mxu0
    %v1856 = vpop.f32.mrb[0].mxu0
    %1857 = vdwg.mxu0
    %v1858 = vpack.c.bf16 %v1853, %v1853
    %s1859 = scalar_lea.vmem [#allocation13], 128
    %v1860 = vld [vmem:[%s1859] sm:$0xff]
    %v1861 = vld [vmem:[%s1859 + $0x8] sm:$0xff]
    %v1862 = vld [vmem:[%s1859 + $0x10] sm:$0xff]
    %v1863 = vld [vmem:[%s1859 + $0x18] sm:$0xff]
    %v1864 = vld [vmem:[%s1859 + $0x20] sm:$0xff]
    %v1865 = vld [vmem:[%s1859 + $0x28] sm:$0xff]
    %v1866 = vld [vmem:[%s1859 + $0x30] sm:$0xff]
    %v1867 = vld [vmem:[%s1859 + $0x38] sm:$0xff]
    %v1868 = vld [vmem:[%s1859 + $0x40] sm:$0xff]
    %v1869 = vld [vmem:[%s1859 + $0x48] sm:$0xff]
    %v1870 = vld [vmem:[%s1859 + $0x50] sm:$0xff]
    %v1871 = vld [vmem:[%s1859 + $0x58] sm:$0xff]
    %v1872 = vld [vmem:[%s1859 + $0x60] sm:$0xff]
    %v1873 = vld [vmem:[%s1859 + $0x68] sm:$0xff]
    %v1874 = vld [vmem:[%s1859 + $0x70] sm:$0xff]
    %v1875 = vld [vmem:[%s1859 + $0x78] sm:$0xff]
    %v1892 = vunpack.c.l.b16 %v1860
    %v1893 = vunpack.c.h.b16 %v1860
    %v1894 = vunpack.c.l.b16 %v1861
    %v1895 = vunpack.c.h.b16 %v1861
    %v1896 = vunpack.c.l.b16 %v1862
    %v1897 = vunpack.c.h.b16 %v1862
    %v1898 = vunpack.c.l.b16 %v1863
    %v1899 = vunpack.c.h.b16 %v1863
    %v1900 = vunpack.c.l.b16 %v1864
    %v1901 = vunpack.c.h.b16 %v1864
    %v1902 = vunpack.c.l.b16 %v1865
    %v1903 = vunpack.c.h.b16 %v1865
    %v1904 = vunpack.c.l.b16 %v1866
    %v1905 = vunpack.c.h.b16 %v1866
    %v1906 = vunpack.c.l.b16 %v1867
    %v1907 = vunpack.c.h.b16 %v1867
    %v1908 = vunpack.c.l.b16 %v1868
    %v1909 = vunpack.c.h.b16 %v1868
    %v1910 = vunpack.c.l.b16 %v1869
    %v1911 = vunpack.c.h.b16 %v1869
    %v1912 = vunpack.c.l.b16 %v1870
    %v1913 = vunpack.c.h.b16 %v1870
    %v1914 = vunpack.c.l.b16 %v1871
    %v1915 = vunpack.c.h.b16 %v1871
    %v1916 = vunpack.c.l.b16 %v1872
    %v1917 = vunpack.c.h.b16 %v1872
    %v1918 = vunpack.c.l.b16 %v1873
    %v1919 = vunpack.c.h.b16 %v1873
    %v1920 = vunpack.c.l.b16 %v1874
    %v1921 = vunpack.c.h.b16 %v1874
    %v1922 = vunpack.c.l.b16 %v1875
    %v1923 = vunpack.c.h.b16 %v1875
    %v1924 = vpack.c.b16 %v1894, %v1892
    %v1925 = vpack.c.b16 %v1895, %v1893
    %v1926 = vpack.c.b16 %v1898, %v1896
    %v1927 = vpack.c.b16 %v1899, %v1897
    %v1928 = vpack.c.b16 %v1902, %v1900
    %v1929 = vpack.c.b16 %v1903, %v1901
    %v1930 = vpack.c.b16 %v1906, %v1904
    %v1931 = vpack.c.b16 %v1907, %v1905
    %v1932 = vpack.c.b16 %v1910, %v1908
    %v1933 = vpack.c.b16 %v1911, %v1909
    %v1934 = vpack.c.b16 %v1914, %v1912
    %v1935 = vpack.c.b16 %v1915, %v1913
    %v1936 = vpack.c.b16 %v1918, %v1916
    %v1937 = vpack.c.b16 %v1919, %v1917
    %v1938 = vpack.c.b16 %v1922, %v1920
    %v1939 = vpack.c.b16 %v1923, %v1921
    %1956 = vmatprep.subr.bf16.mxu0 %v1925
    %1957 = vmatpush1.bf16.msra.mxu0 %v1924
    %1958 = vmatprep.subr.bf16.mxu0 %v1927
    %1959 = vmatpush1.bf16.msra.mxu0 %v1926
    %1960 = vmatprep.subr.bf16.mxu0 %v1929
    %1961 = vmatpush1.bf16.msra.mxu0 %v1928
    %1962 = vmatprep.subr.bf16.mxu0 %v1931
    %1963 = vmatpush1.bf16.msra.mxu0 %v1930
    %1964 = vmatprep.subr.bf16.mxu0 %v1933
    %1965 = vmatpush1.bf16.msra.mxu0 %v1932
    %1966 = vmatprep.subr.bf16.mxu0 %v1935
    %1967 = vmatpush1.bf16.msra.mxu0 %v1934
    %1968 = vmatprep.subr.bf16.mxu0 %v1937
    %1969 = vmatpush1.bf16.msra.mxu0 %v1936
    %1970 = vmatprep.subr.bf16.mxu0 %v1939
    %1971 = vmatpush1.bf16.msra.mxu0 %v1938
    %1972 = vmatprep.subr.bf16.mxu0 0
    %1973 = vmatpush1.bf16.msra.mxu0 0
    %1974 = vmatprep.subr.bf16.mxu0 0
    %1975 = vmatpush1.bf16.msra.mxu0 0
    %1976 = vmatprep.subr.bf16.mxu0 0
    %1977 = vmatpush1.bf16.msra.mxu0 0
    %1978 = vmatprep.subr.bf16.mxu0 0
    %1979 = vmatpush1.bf16.msra.mxu0 0
    %1980 = vmatprep.subr.bf16.mxu0 0
    %1981 = vmatpush1.bf16.msra.mxu0 0
    %1982 = vmatprep.subr.bf16.mxu0 0
    %1983 = vmatpush1.bf16.msra.mxu0 0
    %1984 = vmatprep.subr.bf16.mxu0 0
    %1985 = vmatpush1.bf16.msra.mxu0 0
    %1986 = vmatprep.subr.bf16.mxu0 0
    %1987 = vmatpush1.bf16.msra.mxu0 0
    %1988 = vmatprep.mubr.bf16.mxu0 0
    %1989 = vmatmul.mubr.bf16.gmra.mrb[0].mxu0 %v1858
    %v1990 = vpop.f32.mrb[0].mxu0
    %v1991 = vadd.f32 0.0, %v1990
    %v1992 = vpop.f32.mrb[0].mxu0
    %v1993 = vadd.f32 0.0, %v1992
    %v1994 = vpop.f32.mrb[0].mxu0
    %v1995 = vpop.f32.mrb[0].mxu0
    %1996 = vdwg.mxu0
    %v2013 = vunpack.c.l.b16 %v1797
    %v2014 = vunpack.c.h.b16 %v1797
    %v2015 = vunpack.c.l.b16 %v1798
    %v2016 = vunpack.c.h.b16 %v1798
    %v2017 = vunpack.c.l.b16 %v1799
    %v2018 = vunpack.c.h.b16 %v1799
    %v2019 = vunpack.c.l.b16 %v1800
    %v2020 = vunpack.c.h.b16 %v1800
    %v2021 = vunpack.c.l.b16 %v1801
    %v2022 = vunpack.c.h.b16 %v1801
    %v2023 = vunpack.c.l.b16 %v1802
    %v2024 = vunpack.c.h.b16 %v1802
    %v2025 = vunpack.c.l.b16 %v1803
    %v2026 = vunpack.c.h.b16 %v1803
    %v2027 = vunpack.c.l.b16 %v1804
    %v2028 = vunpack.c.h.b16 %v1804
    %v2029 = vunpack.c.l.b16 %v1805
    %v2030 = vunpack.c.h.b16 %v1805
    %v2031 = vunpack.c.l.b16 %v1806
    %v2032 = vunpack.c.h.b16 %v1806
    %v2033 = vunpack.c.l.b16 %v1807
    %v2034 = vunpack.c.h.b16 %v1807
    %v2035 = vunpack.c.l.b16 %v1808
    %v2036 = vunpack.c.h.b16 %v1808
    %v2037 = vunpack.c.l.b16 %v1809
    %v2038 = vunpack.c.h.b16 %v1809
    %v2039 = vunpack.c.l.b16 %v1810
    %v2040 = vunpack.c.h.b16 %v1810
    %v2041 = vunpack.c.l.b16 %v1811
    %v2042 = vunpack.c.h.b16 %v1811
    %v2043 = vunpack.c.l.b16 %v1812
    %v2044 = vunpack.c.h.b16 %v1812
    %v2045 = vpack.c.b16 %v2015, %v2013
    %v2046 = vpack.c.b16 %v2016, %v2014
    %v2047 = vpack.c.b16 %v2019, %v2017
    %v2048 = vpack.c.b16 %v2020, %v2018
    %v2049 = vpack.c.b16 %v2023, %v2021
    %v2050 = vpack.c.b16 %v2024, %v2022
    %v2051 = vpack.c.b16 %v2027, %v2025
    %v2052 = vpack.c.b16 %v2028, %v2026
    %v2053 = vpack.c.b16 %v2031, %v2029
    %v2054 = vpack.c.b16 %v2032, %v2030
    %v2055 = vpack.c.b16 %v2035, %v2033
    %v2056 = vpack.c.b16 %v2036, %v2034
    %v2057 = vpack.c.b16 %v2039, %v2037
    %v2058 = vpack.c.b16 %v2040, %v2038
    %v2059 = vpack.c.b16 %v2043, %v2041
    %v2060 = vpack.c.b16 %v2044, %v2042
    %2077 = vmatprep.subr.bf16.mxu0 %v2046
    %2078 = vmatpush1.bf16.msra.mxu0 %v2045
    %2079 = vmatprep.subr.bf16.mxu0 %v2048
    %2080 = vmatpush1.bf16.msra.mxu0 %v2047
    %2081 = vmatprep.subr.bf16.mxu0 %v2050
    %2082 = vmatpush1.bf16.msra.mxu0 %v2049
    %2083 = vmatprep.subr.bf16.mxu0 %v2052
    %2084 = vmatpush1.bf16.msra.mxu0 %v2051
    %2085 = vmatprep.subr.bf16.mxu0 %v2054
    %2086 = vmatpush1.bf16.msra.mxu0 %v2053
    %2087 = vmatprep.subr.bf16.mxu0 %v2056
    %2088 = vmatpush1.bf16.msra.mxu0 %v2055
    %2089 = vmatprep.subr.bf16.mxu0 %v2058
    %2090 = vmatpush1.bf16.msra.mxu0 %v2057
    %2091 = vmatprep.subr.bf16.mxu0 %v2060
    %2092 = vmatpush1.bf16.msra.mxu0 %v2059
    %2093 = vmatprep.subr.bf16.mxu0 0
    %2094 = vmatpush1.bf16.msra.mxu0 0
    %2095 = vmatprep.subr.bf16.mxu0 0
    %2096 = vmatpush1.bf16.msra.mxu0 0
    %2097 = vmatprep.subr.bf16.mxu0 0
    %2098 = vmatpush1.bf16.msra.mxu0 0
    %2099 = vmatprep.subr.bf16.mxu0 0
    %2100 = vmatpush1.bf16.msra.mxu0 0
    %2101 = vmatprep.subr.bf16.mxu0 0
    %2102 = vmatpush1.bf16.msra.mxu0 0
    %2103 = vmatprep.subr.bf16.mxu0 0
    %2104 = vmatpush1.bf16.msra.mxu0 0
    %2105 = vmatprep.subr.bf16.mxu0 0
    %2106 = vmatpush1.bf16.msra.mxu0 0
    %2107 = vmatprep.subr.bf16.mxu0 0
    %2108 = vmatpush1.bf16.msra.mxu0 0
    %2109 = vmatprep.mubr.bf16.mxu0 0
    %2110 = vmatmul.mubr.bf16.gmra.mrb[0].mxu0 %v1796
    %v2111 = vpop.f32.mrb[0].mxu0
    %v2112 = vadd.f32 %v1991, %v2111
    %v2113 = vpop.f32.mrb[0].mxu0
    %v2114 = vadd.f32 %v1993, %v2113
    %v2115 = vpop.f32.mrb[0].mxu0
    %v2116 = vpop.f32.mrb[0].mxu0
    %2117 = vdwg.mxu0
    %s2118 = scalar_lea.vmem [#allocation12], 8
    %v2119 = vld [vmem:[%s2118] sm:$0xf]
    %v2121 = vsel %vm1748, %v2119, 0
    %2123 = vmatprep.subr.bf16.mxu0 0
    %2124 = vmatpush1.bf16.msra.mxu0 %v1754
    %2125 = vmatprep.subr.bf16.mxu0 0
    %2126 = vmatpush1.bf16.msra.mxu0 0
    %2127 = vmatprep.subr.bf16.mxu0 0
    %2128 = vmatpush1.bf16.msra.mxu0 0
    %2129 = vmatprep.subr.bf16.mxu0 0
    %2130 = vmatpush1.bf16.msra.mxu0 0
    %2131 = vmatprep.subr.bf16.mxu0 0
    %2132 = vmatpush1.bf16.msra.mxu0 0
    %2133 = vmatprep.subr.bf16.mxu0 0
    %2134 = vmatpush1.bf16.msra.mxu0 0
    %2135 = vmatprep.subr.bf16.mxu0 0
    %2136 = vmatpush1.bf16.msra.mxu0 0
    %2137 = vmatprep.subr.bf16.mxu0 0
    %2138 = vmatpush1.bf16.msra.mxu0 0
    %2139 = vmatprep.subr.bf16.mxu0 0
    %2140 = vmatpush1.bf16.msra.mxu0 0
    %2141 = vmatprep.subr.bf16.mxu0 0
    %2142 = vmatpush1.bf16.msra.mxu0 0
    %2143 = vmatprep.subr.bf16.mxu0 0
    %2144 = vmatpush1.bf16.msra.mxu0 0
    %2145 = vmatprep.subr.bf16.mxu0 0
    %2146 = vmatpush1.bf16.msra.mxu0 0
    %2147 = vmatprep.subr.bf16.mxu0 0
    %2148 = vmatpush1.bf16.msra.mxu0 0
    %2149 = vmatprep.subr.bf16.mxu0 0
    %2150 = vmatpush1.bf16.msra.mxu0 0
    %2151 = vmatprep.subr.bf16.mxu0 0
    %2152 = vmatpush1.bf16.msra.mxu0 0
    %2153 = vmatprep.subr.bf16.mxu0 0
    %2154 = vmatpush1.bf16.msra.mxu0 0
    %2155 = vmatprep.mubr.bf16.mxu0 0
    %2156 = vmatmul.mubr.bf16.gmra.mrb[0].mxu0 %v2121
    %v2157 = vpop.f32.mrb[0].mxu0
    %v2158 = vadd.f32 0.0, %v2157
    %v2159 = vpop.f32.mrb[0].mxu0
    %v2160 = vpop.f32.mrb[0].mxu0
    %v2161 = vpop.f32.mrb[0].mxu0
    %2162 = vdwg.mxu0
    %v2163 = vpack.c.bf16 %v2158, %v2158
    %s2164 = scalar_lea.vmem [#allocation13], 256
    %v2165 = vld [vmem:[%s2164] sm:$0xff]
    %v2166 = vld [vmem:[%s2164 + $0x8] sm:$0xff]
    %v2167 = vld [vmem:[%s2164 + $0x10] sm:$0xff]
    %v2168 = vld [vmem:[%s2164 + $0x18] sm:$0xff]
    %v2169 = vld [vmem:[%s2164 + $0x20] sm:$0xff]
    %v2170 = vld [vmem:[%s2164 + $0x28] sm:$0xff]
    %v2171 = vld [vmem:[%s2164 + $0x30] sm:$0xff]
    %v2172 = vld [vmem:[%s2164 + $0x38] sm:$0xff]
    %v2173 = vld [vmem:[%s2164 + $0x40] sm:$0xff]
    %v2174 = vld [vmem:[%s2164 + $0x48] sm:$0xff]
    %v2175 = vld [vmem:[%s2164 + $0x50] sm:$0xff]
    %v2176 = vld [vmem:[%s2164 + $0x58] sm:$0xff]
    %v2177 = vld [vmem:[%s2164 + $0x60] sm:$0xff]
    %v2178 = vld [vmem:[%s2164 + $0x68] sm:$0xff]
    %v2179 = vld [vmem:[%s2164 + $0x70] sm:$0xff]
    %v2180 = vld [vmem:[%s2164 + $0x78] sm:$0xff]
    %v2197 = vunpack.c.l.b16 %v2165
    %v2198 = vunpack.c.h.b16 %v2165
    %v2199 = vunpack.c.l.b16 %v2166
    %v2200 = vunpack.c.h.b16 %v2166
    %v2201 = vunpack.c.l.b16 %v2167
    %v2202 = vunpack.c.h.b16 %v2167
    %v2203 = vunpack.c.l.b16 %v2168
    %v2204 = vunpack.c.h.b16 %v2168
    %v2205 = vunpack.c.l.b16 %v2169
    %v2206 = vunpack.c.h.b16 %v2169
    %v2207 = vunpack.c.l.b16 %v2170
    %v2208 = vunpack.c.h.b16 %v2170
    %v2209 = vunpack.c.l.b16 %v2171
    %v2210 = vunpack.c.h.b16 %v2171
    %v2211 = vunpack.c.l.b16 %v2172
    %v2212 = vunpack.c.h.b16 %v2172
    %v2213 = vunpack.c.l.b16 %v2173
    %v2214 = vunpack.c.h.b16 %v2173
    %v2215 = vunpack.c.l.b16 %v2174
    %v2216 = vunpack.c.h.b16 %v2174
    %v2217 = vunpack.c.l.b16 %v2175
    %v2218 = vunpack.c.h.b16 %v2175
    %v2219 = vunpack.c.l.b16 %v2176
    %v2220 = vunpack.c.h.b16 %v2176
    %v2221 = vunpack.c.l.b16 %v2177
    %v2222 = vunpack.c.h.b16 %v2177
    %v2223 = vunpack.c.l.b16 %v2178
    %v2224 = vunpack.c.h.b16 %v2178
    %v2225 = vunpack.c.l.b16 %v2179
    %v2226 = vunpack.c.h.b16 %v2179
    %v2227 = vunpack.c.l.b16 %v2180
    %v2228 = vunpack.c.h.b16 %v2180
    %v2229 = vpack.c.b16 %v2199, %v2197
    %v2230 = vpack.c.b16 %v2200, %v2198
    %v2231 = vpack.c.b16 %v2203, %v2201
    %v2232 = vpack.c.b16 %v2204, %v2202
    %v2233 = vpack.c.b16 %v2207, %v2205
    %v2234 = vpack.c.b16 %v2208, %v2206
    %v2235 = vpack.c.b16 %v2211, %v2209
    %v2236 = vpack.c.b16 %v2212, %v2210
    %v2237 = vpack.c.b16 %v2215, %v2213
    %v2238 = vpack.c.b16 %v2216, %v2214
    %v2239 = vpack.c.b16 %v2219, %v2217
    %v2240 = vpack.c.b16 %v2220, %v2218
    %v2241 = vpack.c.b16 %v2223, %v2221
    %v2242 = vpack.c.b16 %v2224, %v2222
    %v2243 = vpack.c.b16 %v2227, %v2225
    %v2244 = vpack.c.b16 %v2228, %v2226
    %2261 = vmatprep.subr.bf16.mxu0 %v2230
    %2262 = vmatpush1.bf16.msra.mxu0 %v2229
    %2263 = vmatprep.subr.bf16.mxu0 %v2232
    %2264 = vmatpush1.bf16.msra.mxu0 %v2231
    %2265 = vmatprep.subr.bf16.mxu0 %v2234
    %2266 = vmatpush1.bf16.msra.mxu0 %v2233
    %2267 = vmatprep.subr.bf16.mxu0 %v2236
    %2268 = vmatpush1.bf16.msra.mxu0 %v2235
    %2269 = vmatprep.subr.bf16.mxu0 %v2238
    %2270 = vmatpush1.bf16.msra.mxu0 %v2237
    %2271 = vmatprep.subr.bf16.mxu0 %v2240
    %2272 = vmatpush1.bf16.msra.mxu0 %v2239
    %2273 = vmatprep.subr.bf16.mxu0 %v2242
    %2274 = vmatpush1.bf16.msra.mxu0 %v2241
    %2275 = vmatprep.subr.bf16.mxu0 %v2244
    %2276 = vmatpush1.bf16.msra.mxu0 %v2243
    %2277 = vmatprep.subr.bf16.mxu0 0
    %2278 = vmatpush1.bf16.msra.mxu0 0
    %2279 = vmatprep.subr.bf16.mxu0 0
    %2280 = vmatpush1.bf16.msra.mxu0 0
    %2281 = vmatprep.subr.bf16.mxu0 0
    %2282 = vmatpush1.bf16.msra.mxu0 0
    %2283 = vmatprep.subr.bf16.mxu0 0
    %2284 = vmatpush1.bf16.msra.mxu0 0
    %2285 = vmatprep.subr.bf16.mxu0 0
    %2286 = vmatpush1.bf16.msra.mxu0 0
    %2287 = vmatprep.subr.bf16.mxu0 0
    %2288 = vmatpush1.bf16.msra.mxu0 0
    %2289 = vmatprep.subr.bf16.mxu0 0
    %2290 = vmatpush1.bf16.msra.mxu0 0
    %2291 = vmatprep.subr.bf16.mxu0 0
    %2292 = vmatpush1.bf16.msra.mxu0 0
    %2293 = vmatprep.mubr.bf16.mxu0 0
    %2294 = vmatmul.mubr.bf16.gmra.mrb[0].mxu0 %v2163
    %v2295 = vpop.f32.mrb[0].mxu0
    %v2296 = vadd.f32 0.0, %v2295
    %v2297 = vpop.f32.mrb[0].mxu0
    %v2298 = vadd.f32 0.0, %v2297
    %v2299 = vpop.f32.mrb[0].mxu0
    %v2300 = vpop.f32.mrb[0].mxu0
    %2301 = vdwg.mxu0
    %v2302 = vadd.f32 %v2112, %v2296
    %v2303 = vadd.f32 %v2114, %v2298
    %v2304 = vrot.slane %v2302, 4
    %v2305 = vadd.f32 %v2302, %v2304
    %v2306 = vrot.slane %v2305, 2
    %v2307 = vadd.f32 %v2305, %v2306
    %v2308 = vrot.slane %v2307, 1
    %v2309 = vadd.f32 %v2307, %v2308
    %v2310 = vrot.slane %v2303, 4
    %v2311 = vadd.f32 %v2303, %v2310
    %v2312 = vrot.slane %v2311, 2
    %v2313 = vadd.f32 %v2311, %v2312
    %v2314 = vrot.slane %v2313, 1
    %v2315 = vadd.f32 %v2313, %v2314
    %v2316 = vld [vmem:[%s19] sm:$0xff]
    %v2317 = vld [vmem:[%s19 + $0x8] sm:$0xff]
    %v2318 = vld [vmem:[%s19 + $0x10] sm:$0xff]
    %v2319 = vld [vmem:[%s19 + $0x18] sm:$0xff]
    %v2320 = vld [vmem:[%s19 + $0x20] sm:$0xff]
    %v2321 = vld [vmem:[%s19 + $0x28] sm:$0xff]
    %v2322 = vld [vmem:[%s19 + $0x30] sm:$0xff]
    %v2323 = vld [vmem:[%s19 + $0x38] sm:$0xff]
    %v2324 = vld [vmem:[%s19 + $0x40] sm:$0xff]
    %v2325 = vld [vmem:[%s19 + $0x48] sm:$0xff]
    %v2326 = vld [vmem:[%s19 + $0x50] sm:$0xff]
    %v2327 = vld [vmem:[%s19 + $0x58] sm:$0xff]
    %v2328 = vld [vmem:[%s19 + $0x60] sm:$0xff]
    %v2329 = vld [vmem:[%s19 + $0x68] sm:$0xff]
    %v2330 = vld [vmem:[%s19 + $0x70] sm:$0xff]
    %v2331 = vld [vmem:[%s19 + $0x78] sm:$0xff]
    %v2332 = vld [vmem:[%s19 + $0x80] sm:$0xff]
    %v2333 = vld [vmem:[%s19 + $0x88] sm:$0xff]
    %v2334 = vld [vmem:[%s19 + $0x90] sm:$0xff]
    %v2335 = vld [vmem:[%s19 + $0x98] sm:$0xff]
    %v2336 = vld [vmem:[%s19 + $0xa0] sm:$0xff]
    %v2337 = vld [vmem:[%s19 + $0xa8] sm:$0xff]
    %v2338 = vld [vmem:[%s19 + $0xb0] sm:$0xff]
    %v2339 = vld [vmem:[%s19 + $0xb8] sm:$0xff]
    %v2340 = vld [vmem:[%s19 + $0xc0] sm:$0xff]
    %v2341 = vld [vmem:[%s19 + $0xc8] sm:$0xff]
    %v2342 = vld [vmem:[%s19 + $0xd0] sm:$0xff]
    %v2343 = vld [vmem:[%s19 + $0xd8] sm:$0xff]
    %v2344 = vld [vmem:[%s19 + $0xe0] sm:$0xff]
    %v2345 = vld [vmem:[%s19 + $0xe8] sm:$0xff]
    %v2346 = vld [vmem:[%s19 + $0xf0] sm:$0xff]
    %v2347 = vld [vmem:[%s19 + $0xf8] sm:$0xff]
    %v2348 = vld [vmem:[%s19 + $0x100] sm:$0xff]
    %v2349 = vld [vmem:[%s19 + $0x108] sm:$0xff]
    %v2350 = vld [vmem:[%s19 + $0x110] sm:$0xff]
    %v2351 = vld [vmem:[%s19 + $0x118] sm:$0xff]
    %v2352 = vld [vmem:[%s19 + $0x120] sm:$0xff]
    %v2353 = vld [vmem:[%s19 + $0x128] sm:$0xff]
    %v2354 = vld [vmem:[%s19 + $0x130] sm:$0xff]
    %v2355 = vld [vmem:[%s19 + $0x138] sm:$0xff]
    %v2356 = vld [vmem:[%s19 + $0x140] sm:$0xff]
    %v2357 = vld [vmem:[%s19 + $0x148] sm:$0xff]
    %v2358 = vld [vmem:[%s19 + $0x150] sm:$0xff]
    %v2359 = vld [vmem:[%s19 + $0x158] sm:$0xff]
    %v2360 = vld [vmem:[%s19 + $0x160] sm:$0xff]
    %v2361 = vld [vmem:[%s19 + $0x168] sm:$0xff]
    %v2362 = vld [vmem:[%s19 + $0x170] sm:$0xff]
    %v2363 = vld [vmem:[%s19 + $0x178] sm:$0xff]
    %v2364 = vld [vmem:[%s19 + $0x180] sm:$0xff]
    %v2365 = vld [vmem:[%s19 + $0x188] sm:$0xff]
    %v2366 = vld [vmem:[%s19 + $0x190] sm:$0xff]
    %v2367 = vld [vmem:[%s19 + $0x198] sm:$0xff]
    %v2368 = vld [vmem:[%s19 + $0x1a0] sm:$0xff]
    %v2369 = vld [vmem:[%s19 + $0x1a8] sm:$0xff]
    %v2370 = vld [vmem:[%s19 + $0x1b0] sm:$0xff]
    %v2371 = vld [vmem:[%s19 + $0x1b8] sm:$0xff]
    %v2372 = vld [vmem:[%s19 + $0x1c0] sm:$0xff]
    %v2373 = vld [vmem:[%s19 + $0x1c8] sm:$0xff]
    %v2374 = vld [vmem:[%s19 + $0x1d0] sm:$0xff]
    %v2375 = vld [vmem:[%s19 + $0x1d8] sm:$0xff]
    %v2376 = vld [vmem:[%s19 + $0x1e0] sm:$0xff]
    %v2377 = vld [vmem:[%s19 + $0x1e8] sm:$0xff]
    %v2378 = vld [vmem:[%s19 + $0x1f0] sm:$0xff]
    %v2379 = vld [vmem:[%s19 + $0x1f8] sm:$0xff]
    %2380 = vmatprep.subr.mxu0 %v2317
    %2381 = vmatpush1.msra.mxu0 %v2316
    %2382 = vmatprep.subr.mxu0 %v2319
    %2383 = vmatpush1.msra.mxu0 %v2318
    %2384 = vmatprep.subr.mxu0 %v2321
    %2385 = vmatpush1.msra.mxu0 %v2320
    %2386 = vmatprep.subr.mxu0 %v2323
    %2387 = vmatpush1.msra.mxu0 %v2322
    %2388 = vmatprep.subr.mxu0 %v2325
    %2389 = vmatpush1.msra.mxu0 %v2324
    %2390 = vmatprep.subr.mxu0 %v2327
    %2391 = vmatpush1.msra.mxu0 %v2326
    %2392 = vmatprep.subr.mxu0 %v2329
    %2393 = vmatpush1.msra.mxu0 %v2328
    %2394 = vmatprep.subr.mxu0 %v2331
    %2395 = vmatpush1.msra.mxu0 %v2330
    %2396 = vmatprep.subr.mxu0 %v2333
    %2397 = vmatpush1.msra.mxu0 %v2332
    %2398 = vmatprep.subr.mxu0 %v2335
    %2399 = vmatpush1.msra.mxu0 %v2334
    %2400 = vmatprep.subr.mxu0 %v2337
    %2401 = vmatpush1.msra.mxu0 %v2336
    %2402 = vmatprep.subr.mxu0 %v2339
    %2403 = vmatpush1.msra.mxu0 %v2338
    %2404 = vmatprep.subr.mxu0 %v2341
    %2405 = vmatpush1.msra.mxu0 %v2340
    %2406 = vmatprep.subr.mxu0 %v2343
    %2407 = vmatpush1.msra.mxu0 %v2342
    %2408 = vmatprep.subr.mxu0 %v2345
    %2409 = vmatpush1.msra.mxu0 %v2344
    %2410 = vmatprep.subr.mxu0 %v2347
    %2411 = vmatpush1.msra.mxu0 %v2346
    %2412 = vmatprep.subr.mxu0 %v2349
    %2413 = vmatpush1.msra.mxu0 %v2348
    %2414 = vmatprep.subr.mxu0 %v2351
    %2415 = vmatpush1.msra.mxu0 %v2350
    %2416 = vmatprep.subr.mxu0 %v2353
    %2417 = vmatpush1.msra.mxu0 %v2352
    %2418 = vmatprep.subr.mxu0 %v2355
    %2419 = vmatpush1.msra.mxu0 %v2354
    %2420 = vmatprep.subr.mxu0 %v2357
    %2421 = vmatpush1.msra.mxu0 %v2356
    %2422 = vmatprep.subr.mxu0 %v2359
    %2423 = vmatpush1.msra.mxu0 %v2358
    %2424 = vmatprep.subr.mxu0 %v2361
    %2425 = vmatpush1.msra.mxu0 %v2360
    %2426 = vmatprep.subr.mxu0 %v2363
    %2427 = vmatpush1.msra.mxu0 %v2362
    %2428 = vmatprep.subr.mxu0 %v2365
    %2429 = vmatpush1.msra.mxu0 %v2364
    %2430 = vmatprep.subr.mxu0 %v2367
    %2431 = vmatpush1.msra.mxu0 %v2366
    %2432 = vmatprep.subr.mxu0 %v2369
    %2433 = vmatpush1.msra.mxu0 %v2368
    %2434 = vmatprep.subr.mxu0 %v2371
    %2435 = vmatpush1.msra.mxu0 %v2370
    %2436 = vmatprep.subr.mxu0 %v2373
    %2437 = vmatpush1.msra.mxu0 %v2372
    %2438 = vmatprep.subr.mxu0 %v2375
    %2439 = vmatpush1.msra.mxu0 %v2374
    %2440 = vmatprep.subr.mxu0 %v2377
    %2441 = vmatpush1.msra.mxu0 %v2376
    %2442 = vmatprep.subr.mxu0 %v2379
    %2443 = vmatpush1.msra.mxu0 %v2378
    %2444 = vmatprep.mubr.f32.mxu0 %v2315
    %2445 = vmatmul.mubr.f32.gmra.mrb[0].mxu0 %v2309
    %v2446 = vpop.f32.mrb[0].mxu0
    %v2447 = vadd.f32 0.0, %v2446
    %v2448 = vpop.f32.mrb[0].mxu0
    %v2449 = vadd.f32 0.0, %v2448
    %2450 = vdwg.mxu0
    %v2451 = vmul.f32 %v2447, 0.0078125
    %v2452 = vmul.f32 %v2449, 0.0078125
    %v2453 = vlaneseq
    %v2454 = vshrl.u32 %v2453, 7
    %v2455 = vsub.s32 0, %v2454
    %v2456 = vrot.slane %v2451, %v2455
    %v2457 = vlaneseq
    %v2458 = vshrl.u32 %v2457, 7
    %v2459 = vsub.s32 0, %v2458
    %v2460 = vrot.slane %v2452, %v2459
    %v2461 = vsub.f32 %v2302, %v2456
    %v2462 = vsub.f32 %v2303, %v2460
    %v2463 = vmul.f32 %v2461, %v2461
    %v2464 = vmul.f32 %v2462, %v2462
    %v2465 = vrot.slane %v2463, 4
    %v2466 = vadd.f32 %v2463, %v2465
    %v2467 = vrot.slane %v2466, 2
    %v2468 = vadd.f32 %v2466, %v2467
    %v2469 = vrot.slane %v2468, 1
    %v2470 = vadd.f32 %v2468, %v2469
    %v2471 = vrot.slane %v2464, 4
    %v2472 = vadd.f32 %v2464, %v2471
    %v2473 = vrot.slane %v2472, 2
    %v2474 = vadd.f32 %v2472, %v2473
    %v2475 = vrot.slane %v2474, 1
    %v2476 = vadd.f32 %v2474, %v2475
    %2477 = vmatprep.subr.mxu0 %v2317
    %2478 = vmatpush1.msra.mxu0 %v2316
    %2479 = vmatprep.subr.mxu0 %v2319
    %2480 = vmatpush1.msra.mxu0 %v2318
    %2481 = vmatprep.subr.mxu0 %v2321
    %2482 = vmatpush1.msra.mxu0 %v2320
    %2483 = vmatprep.subr.mxu0 %v2323
    %2484 = vmatpush1.msra.mxu0 %v2322
    %2485 = vmatprep.subr.mxu0 %v2325
    %2486 = vmatpush1.msra.mxu0 %v2324
    %2487 = vmatprep.subr.mxu0 %v2327
    %2488 = vmatpush1.msra.mxu0 %v2326
    %2489 = vmatprep.subr.mxu0 %v2329
    %2490 = vmatpush1.msra.mxu0 %v2328
    %2491 = vmatprep.subr.mxu0 %v2331
    %2492 = vmatpush1.msra.mxu0 %v2330
    %2493 = vmatprep.subr.mxu0 %v2333
    %2494 = vmatpush1.msra.mxu0 %v2332
    %2495 = vmatprep.subr.mxu0 %v2335
    %2496 = vmatpush1.msra.mxu0 %v2334
    %2497 = vmatprep.subr.mxu0 %v2337
    %2498 = vmatpush1.msra.mxu0 %v2336
    %2499 = vmatprep.subr.mxu0 %v2339
    %2500 = vmatpush1.msra.mxu0 %v2338
    %2501 = vmatprep.subr.mxu0 %v2341
    %2502 = vmatpush1.msra.mxu0 %v2340
    %2503 = vmatprep.subr.mxu0 %v2343
    %2504 = vmatpush1.msra.mxu0 %v2342
    %2505 = vmatprep.subr.mxu0 %v2345
    %2506 = vmatpush1.msra.mxu0 %v2344
    %2507 = vmatprep.subr.mxu0 %v2347
    %2508 = vmatpush1.msra.mxu0 %v2346
    %2509 = vmatprep.subr.mxu0 %v2349
    %2510 = vmatpush1.msra.mxu0 %v2348
    %2511 = vmatprep.subr.mxu0 %v2351
    %2512 = vmatpush1.msra.mxu0 %v2350
    %2513 = vmatprep.subr.mxu0 %v2353
    %2514 = vmatpush1.msra.mxu0 %v2352
    %2515 = vmatprep.subr.mxu0 %v2355
    %2516 = vmatpush1.msra.mxu0 %v2354
    %2517 = vmatprep.subr.mxu0 %v2357
    %2518 = vmatpush1.msra.mxu0 %v2356
    %2519 = vmatprep.subr.mxu0 %v2359
    %2520 = vmatpush1.msra.mxu0 %v2358
    %2521 = vmatprep.subr.mxu0 %v2361
    %2522 = vmatpush1.msra.mxu0 %v2360
    %2523 = vmatprep.subr.mxu0 %v2363
    %2524 = vmatpush1.msra.mxu0 %v2362
    %2525 = vmatprep.subr.mxu0 %v2365
    %2526 = vmatpush1.msra.mxu0 %v2364
    %2527 = vmatprep.subr.mxu0 %v2367
    %2528 = vmatpush1.msra.mxu0 %v2366
    %2529 = vmatprep.subr.mxu0 %v2369
    %2530 = vmatpush1.msra.mxu0 %v2368
    %2531 = vmatprep.subr.mxu0 %v2371
    %2532 = vmatpush1.msra.mxu0 %v2370
    %2533 = vmatprep.subr.mxu0 %v2373
    %2534 = vmatpush1.msra.mxu0 %v2372
    %2535 = vmatprep.subr.mxu0 %v2375
    %2536 = vmatpush1.msra.mxu0 %v2374
    %2537 = vmatprep.subr.mxu0 %v2377
    %2538 = vmatpush1.msra.mxu0 %v2376
    %2539 = vmatprep.subr.mxu0 %v2379
    %2540 = vmatpush1.msra.mxu0 %v2378
    %2541 = vmatprep.mubr.f32.mxu0 %v2476
    %2542 = vmatmul.mubr.f32.gmra.mrb[0].mxu0 %v2470
    %v2543 = vpop.f32.mrb[0].mxu0
    %v2544 = vadd.f32 0.0, %v2543
    %v2545 = vpop.f32.mrb[0].mxu0
    %v2546 = vadd.f32 0.0, %v2545
    %2547 = vdwg.mxu0
    %v2548 = vmul.f32 %v2544, 0.0078125
    %v2549 = vmul.f32 %v2546, 0.0078125
    %v2550 = vld [vmem:[#allocation15] sm:$0x3]
    %v2551 = vadd.f32 %v2548, 1e-05
    %v2552 = vadd.f32 %v2549, 1e-05
    %v2553 = vrsqrt.pop %v2551
    %v2554 = vrsqrt.pop %v2552
    %v2557 = vcombine.low %v2553, %v2554
    %v2559 = vunpack.c.l.s4 1966171168
    %v2560 = vunpack.c.0.s8 %v2559
    %v2561 = vlaneseq
    %v2562 = vshrl.u32 %v2561, 7
    %v2563 = vsub.s32 %v2560, %v2562
    %v2564 = vrot.slane %v2557, %v2563
    %v2566 = vunpack.c.l.s4 1966171168
    %v2567 = vunpack.c.0.s8 %v2566
    %v2568 = vlaneseq
    %v2569 = vshrl.u32 %v2568, 7
    %v2570 = vsub.s32 %v2567, %v2569
    %v2571 = vrot.slane %v2564, %v2570
    %v2573 = vmul.f32 %v2550, %v2571
    %v2575 = vlaneseq
    %v2576 = vshrl.u32 %v2575, 7
    %v2577 = vsub.s32 0, %v2576
    %v2578 = vrot.slane %v2573, %v2577
    %v2579 = vlaneseq
    %v2580 = vshrl.u32 %v2579, 7
    %v2581 = vsub.s32 1, %v2580
    %v2582 = vrot.slane %v2573, %v2581
    %v2585 = vmul.f32 %v2461, %v2578
    %v2586 = vmul.f32 %v2462, %v2582
    %v2587 = vld [vmem:[#allocation16] sm:$0x3]
    %v2589 = vlaneseq
    %v2590 = vshrl.u32 %v2589, 7
    %v2591 = vsub.s32 0, %v2590
    %v2592 = vrot.slane %v2587, %v2591
    %v2593 = vlaneseq
    %v2594 = vshrl.u32 %v2593, 7
    %v2595 = vsub.s32 1, %v2594
    %v2596 = vrot.slane %v2587, %v2595
    %v2599 = vadd.f32 %v2585, %v2592
    %v2600 = vadd.f32 %v2586, %v2596
    %vm2601 = vcmp.ge.f32.partialorder %v2599, 0.0
    %vm2602 = vcmp.ge.f32.partialorder %v2600, 0.0
    %v2603 = vmul.f32 %v2599, 0.2
    %v2604 = vmul.f32 %v2600, 0.2
    %v2605 = vsel %vm2601, %v2599, %v2603
    %v2606 = vsel %vm2602, %v2600, %v2604
    %v2607 = vpack.c.bf16 %v2605, %v2605
    %v2608 = vpack.c.bf16 %v2606, %v2606
    %v2609 = vld [vmem:[#allocation18] sm:$0x3]
    %v2611 = vsel %vm1748, %v2609, 0
    %v2614 = vsel %vm1752, %v2607, 0
    %v2617 = vsel %vm1752, %v2608, 0
    %2619 = vmatprep.subr.bf16.mxu0 %v2617
    %2620 = vmatpush1.bf16.msra.mxu0 %v2614
    %2621 = vmatprep.subr.bf16.mxu0 0
    %2622 = vmatpush1.bf16.msra.mxu0 0
    %2623 = vmatprep.subr.bf16.mxu0 0
    %2624 = vmatpush1.bf16.msra.mxu0 0
    %2625 = vmatprep.subr.bf16.mxu0 0
    %2626 = vmatpush1.bf16.msra.mxu0 0
    %2627 = vmatprep.subr.bf16.mxu0 0
    %2628 = vmatpush1.bf16.msra.mxu0 0
    %2629 = vmatprep.subr.bf16.mxu0 0
    %2630 = vmatpush1.bf16.msra.mxu0 0
    %2631 = vmatprep.subr.bf16.mxu0 0
    %2632 = vmatpush1.bf16.msra.mxu0 0
    %2633 = vmatprep.subr.bf16.mxu0 0
    %2634 = vmatpush1.bf16.msra.mxu0 0
    %2635 = vmatprep.subr.bf16.mxu0 0
    %2636 = vmatpush1.bf16.msra.mxu0 0
    %2637 = vmatprep.subr.bf16.mxu0 0
    %2638 = vmatpush1.bf16.msra.mxu0 0
    %2639 = vmatprep.subr.bf16.mxu0 0
    %2640 = vmatpush1.bf16.msra.mxu0 0
    %2641 = vmatprep.subr.bf16.mxu0 0
    %2642 = vmatpush1.bf16.msra.mxu0 0
    %2643 = vmatprep.subr.bf16.mxu0 0
    %2644 = vmatpush1.bf16.msra.mxu0 0
    %2645 = vmatprep.subr.bf16.mxu0 0
    %2646 = vmatpush1.bf16.msra.mxu0 0
    %2647 = vmatprep.subr.bf16.mxu0 0
    %2648 = vmatpush1.bf16.msra.mxu0 0
    %2649 = vmatprep.subr.bf16.mxu0 0
    %2650 = vmatpush1.bf16.msra.mxu0 0
    %2651 = vmatprep.mubr.bf16.mxu0 0
    %2652 = vmatmul.mubr.bf16.gmra.mrb[0].mxu0 %v2611
    %v2653 = vpop.f32.mrb[0].mxu0
    %v2654 = vadd.f32 0.0, %v2653
    %v2655 = vpop.f32.mrb[0].mxu0
    %v2656 = vadd.f32 0.0, %v2655
    %v2657 = vpop.f32.mrb[0].mxu0
    %v2658 = vpop.f32.mrb[0].mxu0
    %2659 = vdwg.mxu0
    %v2660 = vpack.c.bf16 %v2654, %v2654
    %v2661 = vpack.c.bf16 %v2656, %v2656
    %v2662 = vld [vmem:[#allocation19] sm:$0xf]
    %v2663 = vld [vmem:[#allocation19 + $0x4] sm:$0xf]
    %v2664 = vld [vmem:[#allocation19 + $0x8] sm:$0xf]
    %v2665 = vld [vmem:[#allocation19 + $0xc] sm:$0xf]
    %v2666 = vld [vmem:[#allocation19 + $0x10] sm:$0xf]
    %v2667 = vld [vmem:[#allocation19 + $0x14] sm:$0xf]
    %v2668 = vld [vmem:[#allocation19 + $0x18] sm:$0xf]
    %v2669 = vld [vmem:[#allocation19 + $0x1c] sm:$0xf]
    %v2670 = vld [vmem:[#allocation19 + $0x20] sm:$0xf]
    %v2671 = vld [vmem:[#allocation19 + $0x24] sm:$0xf]
    %v2672 = vld [vmem:[#allocation19 + $0x28] sm:$0xf]
    %v2673 = vld [vmem:[#allocation19 + $0x2c] sm:$0xf]
    %v2674 = vld [vmem:[#allocation19 + $0x30] sm:$0xf]
    %v2675 = vld [vmem:[#allocation19 + $0x34] sm:$0xf]
    %v2676 = vld [vmem:[#allocation19 + $0x38] sm:$0xf]
    %v2677 = vld [vmem:[#allocation19 + $0x3c] sm:$0xf]
    %v2678 = vld [vmem:[#allocation19 + $0x40] sm:$0xf]
    %v2679 = vld [vmem:[#allocation19 + $0x44] sm:$0xf]
    %v2680 = vld [vmem:[#allocation19 + $0x48] sm:$0xf]
    %v2681 = vld [vmem:[#allocation19 + $0x4c] sm:$0xf]
    %v2682 = vld [vmem:[#allocation19 + $0x50] sm:$0xf]
    %v2683 = vld [vmem:[#allocation19 + $0x54] sm:$0xf]
    %v2684 = vld [vmem:[#allocation19 + $0x58] sm:$0xf]
    %v2685 = vld [vmem:[#allocation19 + $0x5c] sm:$0xf]
    %v2686 = vld [vmem:[#allocation19 + $0x60] sm:$0xf]
    %v2687 = vld [vmem:[#allocation19 + $0x64] sm:$0xf]
    %v2688 = vld [vmem:[#allocation19 + $0x68] sm:$0xf]
    %v2689 = vld [vmem:[#allocation19 + $0x6c] sm:$0xf]
    %v2690 = vld [vmem:[#allocation19 + $0x70] sm:$0xf]
    %v2691 = vld [vmem:[#allocation19 + $0x74] sm:$0xf]
    %v2692 = vld [vmem:[#allocation19 + $0x78] sm:$0xf]
    %v2693 = vld [vmem:[#allocation19 + $0x7c] sm:$0xf]
    %s2694 = scalar_lea.vmem [#allocation18], 2
    %v2695 = vld [vmem:[%s2694] sm:$0x3]
    %v2697 = vsel %vm1748, %v2695, 0
    %2699 = vmatprep.subr.bf16.mxu0 %v2617
    %2700 = vmatpush1.bf16.msra.mxu0 %v2614
    %2701 = vmatprep.subr.bf16.mxu0 0
    %2702 = vmatpush1.bf16.msra.mxu0 0
    %2703 = vmatprep.subr.bf16.mxu0 0
    %2704 = vmatpush1.bf16.msra.mxu0 0
    %2705 = vmatprep.subr.bf16.mxu0 0
    %2706 = vmatpush1.bf16.msra.mxu0 0
    %2707 = vmatprep.subr.bf16.mxu0 0
    %2708 = vmatpush1.bf16.msra.mxu0 0
    %2709 = vmatprep.subr.bf16.mxu0 0
    %2710 = vmatpush1.bf16.msra.mxu0 0
    %2711 = vmatprep.subr.bf16.mxu0 0
    %2712 = vmatpush1.bf16.msra.mxu0 0
    %2713 = vmatprep.subr.bf16.mxu0 0
    %2714 = vmatpush1.bf16.msra.mxu0 0
    %2715 = vmatprep.subr.bf16.mxu0 0
    %2716 = vmatpush1.bf16.msra.mxu0 0
    %2717 = vmatprep.subr.bf16.mxu0 0
    %2718 = vmatpush1.bf16.msra.mxu0 0
    %2719 = vmatprep.subr.bf16.mxu0 0
    %2720 = vmatpush1.bf16.msra.mxu0 0
    %2721 = vmatprep.subr.bf16.mxu0 0
    %2722 = vmatpush1.bf16.msra.mxu0 0
    %2723 = vmatprep.subr.bf16.mxu0 0
    %2724 = vmatpush1.bf16.msra.mxu0 0
    %2725 = vmatprep.subr.bf16.mxu0 0
    %2726 = vmatpush1.bf16.msra.mxu0 0
    %2727 = vmatprep.subr.bf16.mxu0 0
    %2728 = vmatpush1.bf16.msra.mxu0 0
    %2729 = vmatprep.subr.bf16.mxu0 0
    %2730 = vmatpush1.bf16.msra.mxu0 0
    %2731 = vmatprep.mubr.bf16.mxu0 0
    %2732 = vmatmul.mubr.bf16.gmra.mrb[0].mxu0 %v2697
    %v2733 = vpop.f32.mrb[0].mxu0
    %v2734 = vadd.f32 0.0, %v2733
    %v2735 = vpop.f32.mrb[0].mxu0
    %v2736 = vadd.f32 0.0, %v2735
    %v2737 = vpop.f32.mrb[0].mxu0
    %v2738 = vpop.f32.mrb[0].mxu0
    %2739 = vdwg.mxu0
    %v2740 = vpack.c.bf16 %v2734, %v2734
    %v2741 = vpack.c.bf16 %v2736, %v2736
    %s2742 = scalar_lea.vmem [#allocation19], 128
    %v2743 = vld [vmem:[%s2742] sm:$0xf]
    %v2744 = vld [vmem:[%s2742 + $0x4] sm:$0xf]
    %v2745 = vld [vmem:[%s2742 + $0x8] sm:$0xf]
    %v2746 = vld [vmem:[%s2742 + $0xc] sm:$0xf]
    %v2747 = vld [vmem:[%s2742 + $0x10] sm:$0xf]
    %v2748 = vld [vmem:[%s2742 + $0x14] sm:$0xf]
    %v2749 = vld [vmem:[%s2742 + $0x18] sm:$0xf]
    %v2750 = vld [vmem:[%s2742 + $0x1c] sm:$0xf]
    %v2751 = vld [vmem:[%s2742 + $0x20] sm:$0xf]
    %v2752 = vld [vmem:[%s2742 + $0x24] sm:$0xf]
    %v2753 = vld [vmem:[%s2742 + $0x28] sm:$0xf]
    %v2754 = vld [vmem:[%s2742 + $0x2c] sm:$0xf]
    %v2755 = vld [vmem:[%s2742 + $0x30] sm:$0xf]
    %v2756 = vld [vmem:[%s2742 + $0x34] sm:$0xf]
    %v2757 = vld [vmem:[%s2742 + $0x38] sm:$0xf]
    %v2758 = vld [vmem:[%s2742 + $0x3c] sm:$0xf]
    %v2759 = vld [vmem:[%s2742 + $0x40] sm:$0xf]
    %v2760 = vld [vmem:[%s2742 + $0x44] sm:$0xf]
    %v2761 = vld [vmem:[%s2742 + $0x48] sm:$0xf]
    %v2762 = vld [vmem:[%s2742 + $0x4c] sm:$0xf]
    %v2763 = vld [vmem:[%s2742 + $0x50] sm:$0xf]
    %v2764 = vld [vmem:[%s2742 + $0x54] sm:$0xf]
    %v2765 = vld [vmem:[%s2742 + $0x58] sm:$0xf]
    %v2766 = vld [vmem:[%s2742 + $0x5c] sm:$0xf]
    %v2767 = vld [vmem:[%s2742 + $0x60] sm:$0xf]
    %v2768 = vld [vmem:[%s2742 + $0x64] sm:$0xf]
    %v2769 = vld [vmem:[%s2742 + $0x68] sm:$0xf]
    %v2770 = vld [vmem:[%s2742 + $0x6c] sm:$0xf]
    %v2771 = vld [vmem:[%s2742 + $0x70] sm:$0xf]
    %v2772 = vld [vmem:[%s2742 + $0x74] sm:$0xf]
    %v2773 = vld [vmem:[%s2742 + $0x78] sm:$0xf]
    %v2774 = vld [vmem:[%s2742 + $0x7c] sm:$0xf]
    %v2807 = vunpack.c.l.b16 %v2743
    %v2808 = vunpack.c.l.b16 %v2744
    %v2809 = vunpack.c.l.b16 %v2745
    %v2810 = vunpack.c.l.b16 %v2746
    %v2811 = vunpack.c.l.b16 %v2747
    %v2812 = vunpack.c.l.b16 %v2748
    %v2813 = vunpack.c.l.b16 %v2749
    %v2814 = vunpack.c.l.b16 %v2750
    %v2815 = vunpack.c.l.b16 %v2751
    %v2816 = vunpack.c.l.b16 %v2752
    %v2817 = vunpack.c.l.b16 %v2753
    %v2818 = vunpack.c.l.b16 %v2754
    %v2819 = vunpack.c.l.b16 %v2755
    %v2820 = vunpack.c.l.b16 %v2756
    %v2821 = vunpack.c.l.b16 %v2757
    %v2822 = vunpack.c.l.b16 %v2758
    %v2823 = vunpack.c.l.b16 %v2759
    %v2824 = vunpack.c.l.b16 %v2760
    %v2825 = vunpack.c.l.b16 %v2761
    %v2826 = vunpack.c.l.b16 %v2762
    %v2827 = vunpack.c.l.b16 %v2763
    %v2828 = vunpack.c.l.b16 %v2764
    %v2829 = vunpack.c.l.b16 %v2765
    %v2830 = vunpack.c.l.b16 %v2766
    %v2831 = vunpack.c.l.b16 %v2767
    %v2832 = vunpack.c.l.b16 %v2768
    %v2833 = vunpack.c.l.b16 %v2769
    %v2834 = vunpack.c.l.b16 %v2770
    %v2835 = vunpack.c.l.b16 %v2771
    %v2836 = vunpack.c.l.b16 %v2772
    %v2837 = vunpack.c.l.b16 %v2773
    %v2838 = vunpack.c.l.b16 %v2774
    %v2839 = vpack.c.b16 %v2808, %v2807
    %v2840 = vpack.c.b16 %v2810, %v2809
    %v2841 = vpack.c.b16 %v2812, %v2811
    %v2842 = vpack.c.b16 %v2814, %v2813
    %v2843 = vpack.c.b16 %v2816, %v2815
    %v2844 = vpack.c.b16 %v2818, %v2817
    %v2845 = vpack.c.b16 %v2820, %v2819
    %v2846 = vpack.c.b16 %v2822, %v2821
    %v2847 = vpack.c.b16 %v2824, %v2823
    %v2848 = vpack.c.b16 %v2826, %v2825
    %v2849 = vpack.c.b16 %v2828, %v2827
    %v2850 = vpack.c.b16 %v2830, %v2829
    %v2851 = vpack.c.b16 %v2832, %v2831
    %v2852 = vpack.c.b16 %v2834, %v2833
    %v2853 = vpack.c.b16 %v2836, %v2835
    %v2854 = vpack.c.b16 %v2838, %v2837
    %2871 = vmatprep.subr.bf16.mxu0 0
    %2872 = vmatpush1.bf16.msra.mxu0 %v2839
    %2873 = vmatprep.subr.bf16.mxu0 0
    %2874 = vmatpush1.bf16.msra.mxu0 %v2840
    %2875 = vmatprep.subr.bf16.mxu0 0
    %2876 = vmatpush1.bf16.msra.mxu0 %v2841
    %2877 = vmatprep.subr.bf16.mxu0 0
    %2878 = vmatpush1.bf16.msra.mxu0 %v2842
    %2879 = vmatprep.subr.bf16.mxu0 0
    %2880 = vmatpush1.bf16.msra.mxu0 %v2843
    %2881 = vmatprep.subr.bf16.mxu0 0
    %2882 = vmatpush1.bf16.msra.mxu0 %v2844
    %2883 = vmatprep.subr.bf16.mxu0 0
    %2884 = vmatpush1.bf16.msra.mxu0 %v2845
    %2885 = vmatprep.subr.bf16.mxu0 0
    %2886 = vmatpush1.bf16.msra.mxu0 %v2846
    %2887 = vmatprep.subr.bf16.mxu0 0
    %2888 = vmatpush1.bf16.msra.mxu0 %v2847
    %2889 = vmatprep.subr.bf16.mxu0 0
    %2890 = vmatpush1.bf16.msra.mxu0 %v2848
    %2891 = vmatprep.subr.bf16.mxu0 0
    %2892 = vmatpush1.bf16.msra.mxu0 %v2849
    %2893 = vmatprep.subr.bf16.mxu0 0
    %2894 = vmatpush1.bf16.msra.mxu0 %v2850
    %2895 = vmatprep.subr.bf16.mxu0 0
    %2896 = vmatpush1.bf16.msra.mxu0 %v2851
    %2897 = vmatprep.subr.bf16.mxu0 0
    %2898 = vmatpush1.bf16.msra.mxu0 %v2852
    %2899 = vmatprep.subr.bf16.mxu0 0
    %2900 = vmatpush1.bf16.msra.mxu0 %v2853
    %2901 = vmatprep.subr.bf16.mxu0 0
    %2902 = vmatpush1.bf16.msra.mxu0 %v2854
    %2903 = vmatprep.mubr.bf16.mxu0 %v2741
    %2904 = vmatmul.mubr.bf16.gmra.mrb[0].mxu0 %v2740
    %v2905 = vpop.f32.mrb[0].mxu0
    %v2906 = vadd.f32 0.0, %v2905
    %v2907 = vpop.f32.mrb[0].mxu0
    %v2908 = vpop.f32.mrb[0].mxu0
    %v2909 = vpop.f32.mrb[0].mxu0
    %2910 = vdwg.mxu0
    %v2943 = vunpack.c.l.b16 %v2662
    %v2944 = vunpack.c.l.b16 %v2663
    %v2945 = vunpack.c.l.b16 %v2664
    %v2946 = vunpack.c.l.b16 %v2665
    %v2947 = vunpack.c.l.b16 %v2666
    %v2948 = vunpack.c.l.b16 %v2667
    %v2949 = vunpack.c.l.b16 %v2668
    %v2950 = vunpack.c.l.b16 %v2669
    %v2951 = vunpack.c.l.b16 %v2670
    %v2952 = vunpack.c.l.b16 %v2671
    %v2953 = vunpack.c.l.b16 %v2672
    %v2954 = vunpack.c.l.b16 %v2673
    %v2955 = vunpack.c.l.b16 %v2674
    %v2956 = vunpack.c.l.b16 %v2675
    %v2957 = vunpack.c.l.b16 %v2676
    %v2958 = vunpack.c.l.b16 %v2677
    %v2959 = vunpack.c.l.b16 %v2678
    %v2960 = vunpack.c.l.b16 %v2679
    %v2961 = vunpack.c.l.b16 %v2680
    %v2962 = vunpack.c.l.b16 %v2681
    %v2963 = vunpack.c.l.b16 %v2682
    %v2964 = vunpack.c.l.b16 %v2683
    %v2965 = vunpack.c.l.b16 %v2684
    %v2966 = vunpack.c.l.b16 %v2685
    %v2967 = vunpack.c.l.b16 %v2686
    %v2968 = vunpack.c.l.b16 %v2687
    %v2969 = vunpack.c.l.b16 %v2688
    %v2970 = vunpack.c.l.b16 %v2689
    %v2971 = vunpack.c.l.b16 %v2690
    %v2972 = vunpack.c.l.b16 %v2691
    %v2973 = vunpack.c.l.b16 %v2692
    %v2974 = vunpack.c.l.b16 %v2693
    %v2975 = vpack.c.b16 %v2944, %v2943
    %v2976 = vpack.c.b16 %v2946, %v2945
    %v2977 = vpack.c.b16 %v2948, %v2947
    %v2978 = vpack.c.b16 %v2950, %v2949
    %v2979 = vpack.c.b16 %v2952, %v2951
    %v2980 = vpack.c.b16 %v2954, %v2953
    %v2981 = vpack.c.b16 %v2956, %v2955
    %v2982 = vpack.c.b16 %v2958, %v2957
    %v2983 = vpack.c.b16 %v2960, %v2959
    %v2984 = vpack.c.b16 %v2962, %v2961
    %v2985 = vpack.c.b16 %v2964, %v2963
    %v2986 = vpack.c.b16 %v2966, %v2965
    %v2987 = vpack.c.b16 %v2968, %v2967
    %v2988 = vpack.c.b16 %v2970, %v2969
    %v2989 = vpack.c.b16 %v2972, %v2971
    %v2990 = vpack.c.b16 %v2974, %v2973
    %3007 = vmatprep.subr.bf16.mxu0 0
    %3008 = vmatpush1.bf16.msra.mxu0 %v2975
    %3009 = vmatprep.subr.bf16.mxu0 0
    %3010 = vmatpush1.bf16.msra.mxu0 %v2976
    %3011 = vmatprep.subr.bf16.mxu0 0
    %3012 = vmatpush1.bf16.msra.mxu0 %v2977
    %3013 = vmatprep.subr.bf16.mxu0 0
    %3014 = vmatpush1.bf16.msra.mxu0 %v2978
    %3015 = vmatprep.subr.bf16.mxu0 0
    %3016 = vmatpush1.bf16.msra.mxu0 %v2979
    %3017 = vmatprep.subr.bf16.mxu0 0
    %3018 = vmatpush1.bf16.msra.mxu0 %v2980
    %3019 = vmatprep.subr.bf16.mxu0 0
    %3020 = vmatpush1.bf16.msra.mxu0 %v2981
    %3021 = vmatprep.subr.bf16.mxu0 0
    %3022 = vmatpush1.bf16.msra.mxu0 %v2982
    %3023 = vmatprep.subr.bf16.mxu0 0
    %3024 = vmatpush1.bf16.msra.mxu0 %v2983
    %3025 = vmatprep.subr.bf16.mxu0 0
    %3026 = vmatpush1.bf16.msra.mxu0 %v2984
    %3027 = vmatprep.subr.bf16.mxu0 0
    %3028 = vmatpush1.bf16.msra.mxu0 %v2985
    %3029 = vmatprep.subr.bf16.mxu0 0
    %3030 = vmatpush1.bf16.msra.mxu0 %v2986
    %3031 = vmatprep.subr.bf16.mxu0 0
    %3032 = vmatpush1.bf16.msra.mxu0 %v2987
    %3033 = vmatprep.subr.bf16.mxu0 0
    %3034 = vmatpush1.bf16.msra.mxu0 %v2988
    %3035 = vmatprep.subr.bf16.mxu0 0
    %3036 = vmatpush1.bf16.msra.mxu0 %v2989
    %3037 = vmatprep.subr.bf16.mxu0 0
    %3038 = vmatpush1.bf16.msra.mxu0 %v2990
    %3039 = vmatprep.mubr.bf16.mxu0 %v2661
    %3040 = vmatmul.mubr.bf16.gmra.mrb[0].mxu0 %v2660
    %v3041 = vpop.f32.mrb[0].mxu0
    %v3042 = vadd.f32 %v2906, %v3041
    %v3043 = vpop.f32.mrb[0].mxu0
    %v3044 = vpop.f32.mrb[0].mxu0
    %v3045 = vpop.f32.mrb[0].mxu0
    %3046 = vdwg.mxu0
    %s3047 = scalar_lea.vmem [#allocation18], 4
    %v3048 = vld [vmem:[%s3047] sm:$0x3]
    %v3050 = vsel %vm1748, %v3048, 0
    %3052 = vmatprep.subr.bf16.mxu0 %v2617
    %3053 = vmatpush1.bf16.msra.mxu0 %v2614
    %3054 = vmatprep.subr.bf16.mxu0 0
    %3055 = vmatpush1.bf16.msra.mxu0 0
    %3056 = vmatprep.subr.bf16.mxu0 0
    %3057 = vmatpush1.bf16.msra.mxu0 0
    %3058 = vmatprep.subr.bf16.mxu0 0
    %3059 = vmatpush1.bf16.msra.mxu0 0
    %3060 = vmatprep.subr.bf16.mxu0 0
    %3061 = vmatpush1.bf16.msra.mxu0 0
    %3062 = vmatprep.subr.bf16.mxu0 0
    %3063 = vmatpush1.bf16.msra.mxu0 0
    %3064 = vmatprep.subr.bf16.mxu0 0
    %3065 = vmatpush1.bf16.msra.mxu0 0
    %3066 = vmatprep.subr.bf16.mxu0 0
    %3067 = vmatpush1.bf16.msra.mxu0 0
    %3068 = vmatprep.subr.bf16.mxu0 0
    %3069 = vmatpush1.bf16.msra.mxu0 0
    %3070 = vmatprep.subr.bf16.mxu0 0
    %3071 = vmatpush1.bf16.msra.mxu0 0
    %3072 = vmatprep.subr.bf16.mxu0 0
    %3073 = vmatpush1.bf16.msra.mxu0 0
    %3074 = vmatprep.subr.bf16.mxu0 0
    %3075 = vmatpush1.bf16.msra.mxu0 0
    %3076 = vmatprep.subr.bf16.mxu0 0
    %3077 = vmatpush1.bf16.msra.mxu0 0
    %3078 = vmatprep.subr.bf16.mxu0 0
    %3079 = vmatpush1.bf16.msra.mxu0 0
    %3080 = vmatprep.subr.bf16.mxu0 0
    %3081 = vmatpush1.bf16.msra.mxu0 0
    %3082 = vmatprep.subr.bf16.mxu0 0
    %3083 = vmatpush1.bf16.msra.mxu0 0
    %3084 = vmatprep.mubr.bf16.mxu0 0
    %3085 = vmatmul.mubr.bf16.gmra.mrb[0].mxu0 %v3050
    %v3086 = vpop.f32.mrb[0].mxu0
    %v3087 = vadd.f32 0.0, %v3086
    %v3088 = vpop.f32.mrb[0].mxu0
    %v3089 = vadd.f32 0.0, %v3088
    %v3090 = vpop.f32.mrb[0].mxu0
    %v3091 = vpop.f32.mrb[0].mxu0
    %3092 = vdwg.mxu0
    %v3093 = vpack.c.bf16 %v3087, %v3087
    %v3094 = vpack.c.bf16 %v3089, %v3089
    %s3095 = scalar_lea.vmem [#allocation19], 256
    %v3096 = vld [vmem:[%s3095] sm:$0xf]
    %v3097 = vld [vmem:[%s3095 + $0x4] sm:$0xf]
    %v3098 = vld [vmem:[%s3095 + $0x8] sm:$0xf]
    %v3099 = vld [vmem:[%s3095 + $0xc] sm:$0xf]
    %v3100 = vld [vmem:[%s3095 + $0x10] sm:$0xf]
    %v3101 = vld [vmem:[%s3095 + $0x14] sm:$0xf]
    %v3102 = vld [vmem:[%s3095 + $0x18] sm:$0xf]
    %v3103 = vld [vmem:[%s3095 + $0x1c] sm:$0xf]
    %v3104 = vld [vmem:[%s3095 + $0x20] sm:$0xf]
    %v3105 = vld [vmem:[%s3095 + $0x24] sm:$0xf]
    %v3106 = vld [vmem:[%s3095 + $0x28] sm:$0xf]
    %v3107 = vld [vmem:[%s3095 + $0x2c] sm:$0xf]
    %v3108 = vld [vmem:[%s3095 + $0x30] sm:$0xf]
    %v3109 = vld [vmem:[%s3095 + $0x34] sm:$0xf]
    %v3110 = vld [vmem:[%s3095 + $0x38] sm:$0xf]
    %v3111 = vld [vmem:[%s3095 + $0x3c] sm:$0xf]
    %v3112 = vld [vmem:[%s3095 + $0x40] sm:$0xf]
    %v3113 = vld [vmem:[%s3095 + $0x44] sm:$0xf]
    %v3114 = vld [vmem:[%s3095 + $0x48] sm:$0xf]
    %v3115 = vld [vmem:[%s3095 + $0x4c] sm:$0xf]
    %v3116 = vld [vmem:[%s3095 + $0x50] sm:$0xf]
    %v3117 = vld [vmem:[%s3095 + $0x54] sm:$0xf]
    %v3118 = vld [vmem:[%s3095 + $0x58] sm:$0xf]
    %v3119 = vld [vmem:[%s3095 + $0x5c] sm:$0xf]
    %v3120 = vld [vmem:[%s3095 + $0x60] sm:$0xf]
    %v3121 = vld [vmem:[%s3095 + $0x64] sm:$0xf]
    %v3122 = vld [vmem:[%s3095 + $0x68] sm:$0xf]
    %v3123 = vld [vmem:[%s3095 + $0x6c] sm:$0xf]
    %v3124 = vld [vmem:[%s3095 + $0x70] sm:$0xf]
    %v3125 = vld [vmem:[%s3095 + $0x74] sm:$0xf]
    %v3126 = vld [vmem:[%s3095 + $0x78] sm:$0xf]
    %v3127 = vld [vmem:[%s3095 + $0x7c] sm:$0xf]
    %v3160 = vunpack.c.l.b16 %v3096
    %v3161 = vunpack.c.l.b16 %v3097
    %v3162 = vunpack.c.l.b16 %v3098
    %v3163 = vunpack.c.l.b16 %v3099
    %v3164 = vunpack.c.l.b16 %v3100
    %v3165 = vunpack.c.l.b16 %v3101
    %v3166 = vunpack.c.l.b16 %v3102
    %v3167 = vunpack.c.l.b16 %v3103
    %v3168 = vunpack.c.l.b16 %v3104
    %v3169 = vunpack.c.l.b16 %v3105
    %v3170 = vunpack.c.l.b16 %v3106
    %v3171 = vunpack.c.l.b16 %v3107
    %v3172 = vunpack.c.l.b16 %v3108
    %v3173 = vunpack.c.l.b16 %v3109
    %v3174 = vunpack.c.l.b16 %v3110
    %v3175 = vunpack.c.l.b16 %v3111
    %v3176 = vunpack.c.l.b16 %v3112
    %v3177 = vunpack.c.l.b16 %v3113
    %v3178 = vunpack.c.l.b16 %v3114
    %v3179 = vunpack.c.l.b16 %v3115
    %v3180 = vunpack.c.l.b16 %v3116
    %v3181 = vunpack.c.l.b16 %v3117
    %v3182 = vunpack.c.l.b16 %v3118
    %v3183 = vunpack.c.l.b16 %v3119
    %v3184 = vunpack.c.l.b16 %v3120
    %v3185 = vunpack.c.l.b16 %v3121
    %v3186 = vunpack.c.l.b16 %v3122
    %v3187 = vunpack.c.l.b16 %v3123
    %v3188 = vunpack.c.l.b16 %v3124
    %v3189 = vunpack.c.l.b16 %v3125
    %v3190 = vunpack.c.l.b16 %v3126
    %v3191 = vunpack.c.l.b16 %v3127
    %v3192 = vpack.c.b16 %v3161, %v3160
    %v3193 = vpack.c.b16 %v3163, %v3162
    %v3194 = vpack.c.b16 %v3165, %v3164
    %v3195 = vpack.c.b16 %v3167, %v3166
    %v3196 = vpack.c.b16 %v3169, %v3168
    %v3197 = vpack.c.b16 %v3171, %v3170
    %v3198 = vpack.c.b16 %v3173, %v3172
    %v3199 = vpack.c.b16 %v3175, %v3174
    %v3200 = vpack.c.b16 %v3177, %v3176
    %v3201 = vpack.c.b16 %v3179, %v3178
    %v3202 = vpack.c.b16 %v3181, %v3180
    %v3203 = vpack.c.b16 %v3183, %v3182
    %v3204 = vpack.c.b16 %v3185, %v3184
    %v3205 = vpack.c.b16 %v3187, %v3186
    %v3206 = vpack.c.b16 %v3189, %v3188
    %v3207 = vpack.c.b16 %v3191, %v3190
    %3224 = vmatprep.subr.bf16.mxu0 0
    %3225 = vmatpush1.bf16.msra.mxu0 %v3192
    %3226 = vmatprep.subr.bf16.mxu0 0
    %3227 = vmatpush1.bf16.msra.mxu0 %v3193
    %3228 = vmatprep.subr.bf16.mxu0 0
    %3229 = vmatpush1.bf16.msra.mxu0 %v3194
    %3230 = vmatprep.subr.bf16.mxu0 0
    %3231 = vmatpush1.bf16.msra.mxu0 %v3195
    %3232 = vmatprep.subr.bf16.mxu0 0
    %3233 = vmatpush1.bf16.msra.mxu0 %v3196
    %3234 = vmatprep.subr.bf16.mxu0 0
    %3235 = vmatpush1.bf16.msra.mxu0 %v3197
    %3236 = vmatprep.subr.bf16.mxu0 0
    %3237 = vmatpush1.bf16.msra.mxu0 %v3198
    %3238 = vmatprep.subr.bf16.mxu0 0
    %3239 = vmatpush1.bf16.msra.mxu0 %v3199
    %3240 = vmatprep.subr.bf16.mxu0 0
    %3241 = vmatpush1.bf16.msra.mxu0 %v3200
    %3242 = vmatprep.subr.bf16.mxu0 0
    %3243 = vmatpush1.bf16.msra.mxu0 %v3201
    %3244 = vmatprep.subr.bf16.mxu0 0
    %3245 = vmatpush1.bf16.msra.mxu0 %v3202
    %3246 = vmatprep.subr.bf16.mxu0 0
    %3247 = vmatpush1.bf16.msra.mxu0 %v3203
    %3248 = vmatprep.subr.bf16.mxu0 0
    %3249 = vmatpush1.bf16.msra.mxu0 %v3204
    %3250 = vmatprep.subr.bf16.mxu0 0
    %3251 = vmatpush1.bf16.msra.mxu0 %v3205
    %3252 = vmatprep.subr.bf16.mxu0 0
    %3253 = vmatpush1.bf16.msra.mxu0 %v3206
    %3254 = vmatprep.subr.bf16.mxu0 0
    %3255 = vmatpush1.bf16.msra.mxu0 %v3207
    %3256 = vmatprep.mubr.bf16.mxu0 %v3094
    %3257 = vmatmul.mubr.bf16.gmra.mrb[0].mxu0 %v3093
    %v3258 = vpop.f32.mrb[0].mxu0
    %v3259 = vadd.f32 0.0, %v3258
    %v3260 = vpop.f32.mrb[0].mxu0
    %v3261 = vpop.f32.mrb[0].mxu0
    %v3262 = vpop.f32.mrb[0].mxu0
    %3263 = vdwg.mxu0
    %v3264 = vadd.f32 %v3042, %v3259
    %v3265 = vsel %vm1752, %v3264, 0.0
    %v3266 = vrot.slane %v3265, 4
    %v3267 = vadd.f32 %v3265, %v3266
    %v3268 = vrot.slane %v3267, 2
    %v3269 = vadd.f32 %v3267, %v3268
    %v3270 = vrot.slane %v3269, 1
    %v3271 = vadd.f32 %v3269, %v3270
    %v3272 = vld [vmem:[#allocation21] sm:$0xff]
    %v3273 = vld [vmem:[#allocation21 + $0x8] sm:$0xff]
    %v3274 = vld [vmem:[#allocation21 + $0x10] sm:$0xff]
    %v3275 = vld [vmem:[#allocation21 + $0x18] sm:$0xff]
    %v3276 = vld [vmem:[#allocation21 + $0x20] sm:$0xff]
    %v3277 = vld [vmem:[#allocation21 + $0x28] sm:$0xff]
    %v3278 = vld [vmem:[#allocation21 + $0x30] sm:$0xff]
    %v3279 = vld [vmem:[#allocation21 + $0x38] sm:$0xff]
    %v3280 = vld [vmem:[#allocation21 + $0x40] sm:$0xff]
    %v3281 = vld [vmem:[#allocation21 + $0x48] sm:$0xff]
    %v3282 = vld [vmem:[#allocation21 + $0x50] sm:$0xff]
    %v3283 = vld [vmem:[#allocation21 + $0x58] sm:$0xff]
    %v3284 = vld [vmem:[#allocation21 + $0x60] sm:$0xff]
    %v3285 = vld [vmem:[#allocation21 + $0x68] sm:$0xff]
    %v3286 = vld [vmem:[#allocation21 + $0x70] sm:$0xff]
    %v3287 = vld [vmem:[#allocation21 + $0x78] sm:$0xff]
    %3288 = vmatprep.subr.mxu0 0.0
    %3289 = vmatpush1.msra.mxu0 %v3272
    %3290 = vmatprep.subr.mxu0 0.0
    %3291 = vmatpush1.msra.mxu0 %v3273
    %3292 = vmatprep.subr.mxu0 0.0
    %3293 = vmatpush1.msra.mxu0 %v3274
    %3294 = vmatprep.subr.mxu0 0.0
    %3295 = vmatpush1.msra.mxu0 %v3275
    %3296 = vmatprep.subr.mxu0 0.0
    %3297 = vmatpush1.msra.mxu0 %v3276
    %3298 = vmatprep.subr.mxu0 0.0
    %3299 = vmatpush1.msra.mxu0 %v3277
    %3300 = vmatprep.subr.mxu0 0.0
    %3301 = vmatpush1.msra.mxu0 %v3278
    %3302 = vmatprep.subr.mxu0 0.0
    %3303 = vmatpush1.msra.mxu0 %v3279
    %3304 = vmatprep.subr.mxu0 0.0
    %3305 = vmatpush1.msra.mxu0 %v3280
    %3306 = vmatprep.subr.mxu0 0.0
    %3307 = vmatpush1.msra.mxu0 %v3281
    %3308 = vmatprep.subr.mxu0 0.0
    %3309 = vmatpush1.msra.mxu0 %v3282
    %3310 = vmatprep.subr.mxu0 0.0
    %3311 = vmatpush1.msra.mxu0 %v3283
    %3312 = vmatprep.subr.mxu0 0.0
    %3313 = vmatpush1.msra.mxu0 %v3284
    %3314 = vmatprep.subr.mxu0 0.0
    %3315 = vmatpush1.msra.mxu0 %v3285
    %3316 = vmatprep.subr.mxu0 0.0
    %3317 = vmatpush1.msra.mxu0 %v3286
    %3318 = vmatprep.subr.mxu0 0.0
    %3319 = vmatpush1.msra.mxu0 %v3287
    %3320 = vmatprep.subr.mxu0 0.0
    %3321 = vmatpush1.msra.mxu0 0.0
    %3322 = vmatprep.subr.mxu0 0.0
    %3323 = vmatpush1.msra.mxu0 0.0
    %3324 = vmatprep.subr.mxu0 0.0
    %3325 = vmatpush1.msra.mxu0 0.0
    %3326 = vmatprep.subr.mxu0 0.0
    %3327 = vmatpush1.msra.mxu0 0.0
    %3328 = vmatprep.subr.mxu0 0.0
    %3329 = vmatpush1.msra.mxu0 0.0
    %3330 = vmatprep.subr.mxu0 0.0
    %3331 = vmatpush1.msra.mxu0 0.0
    %3332 = vmatprep.subr.mxu0 0.0
    %3333 = vmatpush1.msra.mxu0 0.0
    %3334 = vmatprep.subr.mxu0 0.0
    %3335 = vmatpush1.msra.mxu0 0.0
    %3336 = vmatprep.subr.mxu0 0.0
    %3337 = vmatpush1.msra.mxu0 0.0
    %3338 = vmatprep.subr.mxu0 0.0
    %3339 = vmatpush1.msra.mxu0 0.0
    %3340 = vmatprep.subr.mxu0 0.0
    %3341 = vmatpush1.msra.mxu0 0.0
    %3342 = vmatprep.subr.mxu0 0.0
    %3343 = vmatpush1.msra.mxu0 0.0
    %3344 = vmatprep.subr.mxu0 0.0
    %3345 = vmatpush1.msra.mxu0 0.0
    %3346 = vmatprep.subr.mxu0 0.0
    %3347 = vmatpush1.msra.mxu0 0.0
    %3348 = vmatprep.subr.mxu0 0.0
    %3349 = vmatpush1.msra.mxu0 0.0
    %3350 = vmatprep.subr.mxu0 0.0
    %3351 = vmatpush1.msra.mxu0 0.0
    %3352 = vmatprep.mubr.f32.mxu0 0.0
    %3353 = vmatmul.mubr.f32.gmra.mrb[0].mxu0 %v3271
    %v3354 = vpop.f32.mrb[0].mxu0
    %v3355 = vadd.f32 0.0, %v3354
    %v3356 = vpop.f32.mrb[0].mxu0
    %3357 = vdwg.mxu0
    %v3358 = vmul.f32 %v3355, 0.03125
    %v3359 = vlaneseq
    %v3360 = vshrl.u32 %v3359, 7
    %v3361 = vsub.s32 0, %v3360
    %v3362 = vrot.slane %v3358, %v3361
    %v3363 = vsub.f32 %v3264, %v3362
    %v3364 = vmul.f32 %v3363, %v3363
    %v3365 = vsel %vm1752, %v3364, 0.0
    %v3366 = vrot.slane %v3365, 4
    %v3367 = vadd.f32 %v3365, %v3366
    %v3368 = vrot.slane %v3367, 2
    %v3369 = vadd.f32 %v3367, %v3368
    %v3370 = vrot.slane %v3369, 1
    %v3371 = vadd.f32 %v3369, %v3370
    %3372 = vmatprep.subr.mxu0 0.0
    %3373 = vmatpush1.msra.mxu0 %v3272
    %3374 = vmatprep.subr.mxu0 0.0
    %3375 = vmatpush1.msra.mxu0 %v3273
    %3376 = vmatprep.subr.mxu0 0.0
    %3377 = vmatpush1.msra.mxu0 %v3274
    %3378 = vmatprep.subr.mxu0 0.0
    %3379 = vmatpush1.msra.mxu0 %v3275
    %3380 = vmatprep.subr.mxu0 0.0
    %3381 = vmatpush1.msra.mxu0 %v3276
    %3382 = vmatprep.subr.mxu0 0.0
    %3383 = vmatpush1.msra.mxu0 %v3277
    %3384 = vmatprep.subr.mxu0 0.0
    %3385 = vmatpush1.msra.mxu0 %v3278
    %3386 = vmatprep.subr.mxu0 0.0
    %3387 = vmatpush1.msra.mxu0 %v3279
    %3388 = vmatprep.subr.mxu0 0.0
    %3389 = vmatpush1.msra.mxu0 %v3280
    %3390 = vmatprep.subr.mxu0 0.0
    %3391 = vmatpush1.msra.mxu0 %v3281
    %3392 = vmatprep.subr.mxu0 0.0
    %3393 = vmatpush1.msra.mxu0 %v3282
    %3394 = vmatprep.subr.mxu0 0.0
    %3395 = vmatpush1.msra.mxu0 %v3283
    %3396 = vmatprep.subr.mxu0 0.0
    %3397 = vmatpush1.msra.mxu0 %v3284
    %3398 = vmatprep.subr.mxu0 0.0
    %3399 = vmatpush1.msra.mxu0 %v3285
    %3400 = vmatprep.subr.mxu0 0.0
    %3401 = vmatpush1.msra.mxu0 %v3286
    %3402 = vmatprep.subr.mxu0 0.0
    %3403 = vmatpush1.msra.mxu0 %v3287
    %3404 = vmatprep.subr.mxu0 0.0
    %3405 = vmatpush1.msra.mxu0 0.0
    %3406 = vmatprep.subr.mxu0 0.0
    %3407 = vmatpush1.msra.mxu0 0.0
    %3408 = vmatprep.subr.mxu0 0.0
    %3409 = vmatpush1.msra.mxu0 0.0
    %3410 = vmatprep.subr.mxu0 0.0
    %3411 = vmatpush1.msra.mxu0 0.0
    %3412 = vmatprep.subr.mxu0 0.0
    %3413 = vmatpush1.msra.mxu0 0.0
    %3414 = vmatprep.subr.mxu0 0.0
    %3415 = vmatpush1.msra.mxu0 0.0
    %3416 = vmatprep.subr.mxu0 0.0
    %3417 = vmatpush1.msra.mxu0 0.0
    %3418 = vmatprep.subr.mxu0 0.0
    %3419 = vmatpush1.msra.mxu0 0.0
    %3420 = vmatprep.subr.mxu0 0.0
    %3421 = vmatpush1.msra.mxu0 0.0
    %3422 = vmatprep.subr.mxu0 0.0
    %3423 = vmatpush1.msra.mxu0 0.0
    %3424 = vmatprep.subr.mxu0 0.0
    %3425 = vmatpush1.msra.mxu0 0.0
    %3426 = vmatprep.subr.mxu0 0.0
    %3427 = vmatpush1.msra.mxu0 0.0
    %3428 = vmatprep.subr.mxu0 0.0
    %3429 = vmatpush1.msra.mxu0 0.0
    %3430 = vmatprep.subr.mxu0 0.0
    %3431 = vmatpush1.msra.mxu0 0.0
    %3432 = vmatprep.subr.mxu0 0.0
    %3433 = vmatpush1.msra.mxu0 0.0
    %3434 = vmatprep.subr.mxu0 0.0
    %3435 = vmatpush1.msra.mxu0 0.0
    %3436 = vmatprep.mubr.f32.mxu0 0.0
    %3437 = vmatmul.mubr.f32.gmra.mrb[0].mxu0 %v3371
    %v3438 = vpop.f32.mrb[0].mxu0
    %v3439 = vadd.f32 0.0, %v3438
    %v3440 = vpop.f32.mrb[0].mxu0
    %3441 = vdwg.mxu0
    %v3442 = vmul.f32 %v3439, 0.03125
    %v3443 = vld [vmem:[#allocation22] sm:$0x1]
    %v3444 = vadd.f32 %v3442, 1e-05
    %v3445 = vrsqrt.pop %v3444
    %v3446 = vmul.f32 %v3443, %v3445
    %v3448 = vlaneseq
    %v3449 = vshrl.u32 %v3448, 7
    %v3450 = vsub.s32 0, %v3449
    %v3451 = vrot.slane %v3446, %v3450
    %v3453 = vmul.f32 %v3363, %v3451
    %v3454 = vld [vmem:[#allocation24] sm:$0x1]
    %v3456 = vlaneseq
    %v3457 = vshrl.u32 %v3456, 7
    %v3458 = vsub.s32 0, %v3457
    %v3459 = vrot.slane %v3454, %v3458
    %v3461 = vadd.f32 %v3453, %v3459
    %vm3462 = vcmp.ge.f32.partialorder %v3461, 0.0
    %v3463 = vmul.f32 %v3461, 0.2
    %v3464 = vsel %vm3462, %v3461, %v3463
    %v3465 = vpack.c.bf16 %v3464, %v3464
    %v3466 = vld [vmem:[#allocation25] sm:$0x3]
    %vm3467 = vcmask 31744
    %v3469 = vsel %vm3467, %v3466, 0
    %vm3471 = vcmask 1041408
    %v3473 = vsel %vm3471, %v3465, 0
    %3475 = vmatprep.subr.bf16.mxu0 0
    %3476 = vmatpush1.bf16.msra.mxu0 %v3473
    %3477 = vmatprep.subr.bf16.mxu0 0
    %3478 = vmatpush1.bf16.msra.mxu0 0
    %3479 = vmatprep.subr.bf16.mxu0 0
    %3480 = vmatpush1.bf16.msra.mxu0 0
    %3481 = vmatprep.subr.bf16.mxu0 0
    %3482 = vmatpush1.bf16.msra.mxu0 0
    %3483 = vmatprep.subr.bf16.mxu0 0
    %3484 = vmatpush1.bf16.msra.mxu0 0
    %3485 = vmatprep.subr.bf16.mxu0 0
    %3486 = vmatpush1.bf16.msra.mxu0 0
    %3487 = vmatprep.subr.bf16.mxu0 0
    %3488 = vmatpush1.bf16.msra.mxu0 0
    %3489 = vmatprep.subr.bf16.mxu0 0
    %3490 = vmatpush1.bf16.msra.mxu0 0
    %3491 = vmatprep.subr.bf16.mxu0 0
    %3492 = vmatpush1.bf16.msra.mxu0 0
    %3493 = vmatprep.subr.bf16.mxu0 0
    %3494 = vmatpush1.bf16.msra.mxu0 0
    %3495 = vmatprep.subr.bf16.mxu0 0
    %3496 = vmatpush1.bf16.msra.mxu0 0
    %3497 = vmatprep.subr.bf16.mxu0 0
    %3498 = vmatpush1.bf16.msra.mxu0 0
    %3499 = vmatprep.subr.bf16.mxu0 0
    %3500 = vmatpush1.bf16.msra.mxu0 0
    %3501 = vmatprep.subr.bf16.mxu0 0
    %3502 = vmatpush1.bf16.msra.mxu0 0
    %3503 = vmatprep.subr.bf16.mxu0 0
    %3504 = vmatpush1.bf16.msra.mxu0 0
    %3505 = vmatprep.subr.bf16.mxu0 0
    %3506 = vmatpush1.bf16.msra.mxu0 0
    %3507 = vmatprep.mubr.bf16.mxu0 0
    %3508 = vmatmul.mubr.bf16.gmra.mrb[0].mxu0 %v3469
    %v3509 = vpop.f32.mrb[0].mxu0
    %v3510 = vadd.f32 0.0, %v3509
    %v3511 = vpop.f32.mrb[0].mxu0
    %v3512 = vpop.f32.mrb[0].mxu0
    %v3513 = vpop.f32.mrb[0].mxu0
    %3514 = vdwg.mxu0
    %v3515 = vpack.c.bf16 %v3510, %v3510
    %v3516 = vld [vmem:[#allocation27] sm:$0xff]
    %v3517 = vld [vmem:[#allocation27 + $0x8] sm:$0xff]
    %v3518 = vld [vmem:[#allocation27 + $0x10] sm:$0xff]
    %v3519 = vld [vmem:[#allocation27 + $0x18] sm:$0xff]
    %v3520 = vld [vmem:[#allocation27 + $0x20] sm:$0xff]
    %v3521 = vld [vmem:[#allocation27 + $0x28] sm:$0xff]
    %v3522 = vld [vmem:[#allocation27 + $0x30] sm:$0xff]
    %v3523 = vld [vmem:[#allocation27 + $0x38] sm:$0xff]
    %v3524 = vld [vmem:[#allocation27 + $0x40] sm:$0xff]
    %v3525 = vld [vmem:[#allocation27 + $0x48] sm:$0xff]
    %v3526 = vld [vmem:[#allocation27 + $0x50] sm:$0xff]
    %v3527 = vld [vmem:[#allocation27 + $0x58] sm:$0xff]
    %v3528 = vld [vmem:[#allocation27 + $0x60] sm:$0xff]
    %v3529 = vld [vmem:[#allocation27 + $0x68] sm:$0xff]
    %v3530 = vld [vmem:[#allocation27 + $0x70] sm:$0xff]
    %v3531 = vld [vmem:[#allocation27 + $0x78] sm:$0xff]
    %s3532 = scalar_lea.vmem [#allocation25], 2
    %v3533 = vld [vmem:[%s3532] sm:$0x3]
    %v3535 = vsel %vm3467, %v3533, 0
    %3537 = vmatprep.subr.bf16.mxu0 0
    %3538 = vmatpush1.bf16.msra.mxu0 %v3473
    %3539 = vmatprep.subr.bf16.mxu0 0
    %3540 = vmatpush1.bf16.msra.mxu0 0
    %3541 = vmatprep.subr.bf16.mxu0 0
    %3542 = vmatpush1.bf16.msra.mxu0 0
    %3543 = vmatprep.subr.bf16.mxu0 0
    %3544 = vmatpush1.bf16.msra.mxu0 0
    %3545 = vmatprep.subr.bf16.mxu0 0
    %3546 = vmatpush1.bf16.msra.mxu0 0
    %3547 = vmatprep.subr.bf16.mxu0 0
    %3548 = vmatpush1.bf16.msra.mxu0 0
    %3549 = vmatprep.subr.bf16.mxu0 0
    %3550 = vmatpush1.bf16.msra.mxu0 0
    %3551 = vmatprep.subr.bf16.mxu0 0
    %3552 = vmatpush1.bf16.msra.mxu0 0
    %3553 = vmatprep.subr.bf16.mxu0 0
    %3554 = vmatpush1.bf16.msra.mxu0 0
    %3555 = vmatprep.subr.bf16.mxu0 0
    %3556 = vmatpush1.bf16.msra.mxu0 0
    %3557 = vmatprep.subr.bf16.mxu0 0
    %3558 = vmatpush1.bf16.msra.mxu0 0
    %3559 = vmatprep.subr.bf16.mxu0 0
    %3560 = vmatpush1.bf16.msra.mxu0 0
    %3561 = vmatprep.subr.bf16.mxu0 0
    %3562 = vmatpush1.bf16.msra.mxu0 0
    %3563 = vmatprep.subr.bf16.mxu0 0
    %3564 = vmatpush1.bf16.msra.mxu0 0
    %3565 = vmatprep.subr.bf16.mxu0 0
    %3566 = vmatpush1.bf16.msra.mxu0 0
    %3567 = vmatprep.subr.bf16.mxu0 0
    %3568 = vmatpush1.bf16.msra.mxu0 0
    %3569 = vmatprep.mubr.bf16.mxu0 0
    %3570 = vmatmul.mubr.bf16.gmra.mrb[0].mxu0 %v3535
    %v3571 = vpop.f32.mrb[0].mxu0
    %v3572 = vadd.f32 0.0, %v3571
    %v3573 = vpop.f32.mrb[0].mxu0
    %v3574 = vpop.f32.mrb[0].mxu0
    %v3575 = vpop.f32.mrb[0].mxu0
    %3576 = vdwg.mxu0
    %v3577 = vpack.c.bf16 %v3572, %v3572
    %s3578 = scalar_lea.vmem [#allocation27], 128
    %v3579 = vld [vmem:[%s3578] sm:$0xff]
    %v3580 = vld [vmem:[%s3578 + $0x8] sm:$0xff]
    %v3581 = vld [vmem:[%s3578 + $0x10] sm:$0xff]
    %v3582 = vld [vmem:[%s3578 + $0x18] sm:$0xff]
    %v3583 = vld [vmem:[%s3578 + $0x20] sm:$0xff]
    %v3584 = vld [vmem:[%s3578 + $0x28] sm:$0xff]
    %v3585 = vld [vmem:[%s3578 + $0x30] sm:$0xff]
    %v3586 = vld [vmem:[%s3578 + $0x38] sm:$0xff]
    %v3587 = vld [vmem:[%s3578 + $0x40] sm:$0xff]
    %v3588 = vld [vmem:[%s3578 + $0x48] sm:$0xff]
    %v3589 = vld [vmem:[%s3578 + $0x50] sm:$0xff]
    %v3590 = vld [vmem:[%s3578 + $0x58] sm:$0xff]
    %v3591 = vld [vmem:[%s3578 + $0x60] sm:$0xff]
    %v3592 = vld [vmem:[%s3578 + $0x68] sm:$0xff]
    %v3593 = vld [vmem:[%s3578 + $0x70] sm:$0xff]
    %v3594 = vld [vmem:[%s3578 + $0x78] sm:$0xff]
    %v3611 = vunpack.c.l.b16 %v3579
    %v3612 = vunpack.c.h.b16 %v3579
    %v3613 = vunpack.c.l.b16 %v3580
    %v3614 = vunpack.c.h.b16 %v3580
    %v3615 = vunpack.c.l.b16 %v3581
    %v3616 = vunpack.c.h.b16 %v3581
    %v3617 = vunpack.c.l.b16 %v3582
    %v3618 = vunpack.c.h.b16 %v3582
    %v3619 = vunpack.c.l.b16 %v3583
    %v3620 = vunpack.c.h.b16 %v3583
    %v3621 = vunpack.c.l.b16 %v3584
    %v3622 = vunpack.c.h.b16 %v3584
    %v3623 = vunpack.c.l.b16 %v3585
    %v3624 = vunpack.c.h.b16 %v3585
    %v3625 = vunpack.c.l.b16 %v3586
    %v3626 = vunpack.c.h.b16 %v3586
    %v3627 = vunpack.c.l.b16 %v3587
    %v3628 = vunpack.c.h.b16 %v3587
    %v3629 = vunpack.c.l.b16 %v3588
    %v3630 = vunpack.c.h.b16 %v3588
    %v3631 = vunpack.c.l.b16 %v3589
    %v3632 = vunpack.c.h.b16 %v3589
    %v3633 = vunpack.c.l.b16 %v3590
    %v3634 = vunpack.c.h.b16 %v3590
    %v3635 = vunpack.c.l.b16 %v3591
    %v3636 = vunpack.c.h.b16 %v3591
    %v3637 = vunpack.c.l.b16 %v3592
    %v3638 = vunpack.c.h.b16 %v3592
    %v3639 = vunpack.c.l.b16 %v3593
    %v3640 = vunpack.c.h.b16 %v3593
    %v3641 = vunpack.c.l.b16 %v3594
    %v3642 = vunpack.c.h.b16 %v3594
    %v3643 = vpack.c.b16 %v3613, %v3611
    %v3644 = vpack.c.b16 %v3614, %v3612
    %v3645 = vpack.c.b16 %v3617, %v3615
    %v3646 = vpack.c.b16 %v3618, %v3616
    %v3647 = vpack.c.b16 %v3621, %v3619
    %v3648 = vpack.c.b16 %v3622, %v3620
    %v3649 = vpack.c.b16 %v3625, %v3623
    %v3650 = vpack.c.b16 %v3626, %v3624
    %v3651 = vpack.c.b16 %v3629, %v3627
    %v3652 = vpack.c.b16 %v3630, %v3628
    %v3653 = vpack.c.b16 %v3633, %v3631
    %v3654 = vpack.c.b16 %v3634, %v3632
    %v3655 = vpack.c.b16 %v3637, %v3635
    %v3656 = vpack.c.b16 %v3638, %v3636
    %v3657 = vpack.c.b16 %v3641, %v3639
    %v3658 = vpack.c.b16 %v3642, %v3640
    %3675 = vmatprep.subr.bf16.mxu0 %v3644
    %3676 = vmatpush1.bf16.msra.mxu0 %v3643
    %3677 = vmatprep.subr.bf16.mxu0 %v3646
    %3678 = vmatpush1.bf16.msra.mxu0 %v3645
    %3679 = vmatprep.subr.bf16.mxu0 %v3648
    %3680 = vmatpush1.bf16.msra.mxu0 %v3647
    %3681 = vmatprep.subr.bf16.mxu0 %v3650
    %3682 = vmatpush1.bf16.msra.mxu0 %v3649
    %3683 = vmatprep.subr.bf16.mxu0 %v3652
    %3684 = vmatpush1.bf16.msra.mxu0 %v3651
    %3685 = vmatprep.subr.bf16.mxu0 %v3654
    %3686 = vmatpush1.bf16.msra.mxu0 %v3653
    %3687 = vmatprep.subr.bf16.mxu0 %v3656
    %3688 = vmatpush1.bf16.msra.mxu0 %v3655
    %3689 = vmatprep.subr.bf16.mxu0 %v3658
    %3690 = vmatpush1.bf16.msra.mxu0 %v3657
    %3691 = vmatprep.subr.bf16.mxu0 0
    %3692 = vmatpush1.bf16.msra.mxu0 0
    %3693 = vmatprep.subr.bf16.mxu0 0
    %3694 = vmatpush1.bf16.msra.mxu0 0
    %3695 = vmatprep.subr.bf16.mxu0 0
    %3696 = vmatpush1.bf16.msra.mxu0 0
    %3697 = vmatprep.subr.bf16.mxu0 0
    %3698 = vmatpush1.bf16.msra.mxu0 0
    %3699 = vmatprep.subr.bf16.mxu0 0
    %3700 = vmatpush1.bf16.msra.mxu0 0
    %3701 = vmatprep.subr.bf16.mxu0 0
    %3702 = vmatpush1.bf16.msra.mxu0 0
    %3703 = vmatprep.subr.bf16.mxu0 0
    %3704 = vmatpush1.bf16.msra.mxu0 0
    %3705 = vmatprep.subr.bf16.mxu0 0
    %3706 = vmatpush1.bf16.msra.mxu0 0
    %3707 = vmatprep.mubr.bf16.mxu0 0
    %3708 = vmatmul.mubr.bf16.gmra.mrb[0].mxu0 %v3577
    %v3709 = vpop.f32.mrb[0].mxu0
    %v3710 = vadd.f32 0.0, %v3709
    %v3711 = vpop.f32.mrb[0].mxu0
    %v3712 = vadd.f32 0.0, %v3711
    %v3713 = vpop.f32.mrb[0].mxu0
    %v3714 = vpop.f32.mrb[0].mxu0
    %3715 = vdwg.mxu0
    %v3732 = vunpack.c.l.b16 %v3516
    %v3733 = vunpack.c.h.b16 %v3516
    %v3734 = vunpack.c.l.b16 %v3517
    %v3735 = vunpack.c.h.b16 %v3517
    %v3736 = vunpack.c.l.b16 %v3518
    %v3737 = vunpack.c.h.b16 %v3518
    %v3738 = vunpack.c.l.b16 %v3519
    %v3739 = vunpack.c.h.b16 %v3519
    %v3740 = vunpack.c.l.b16 %v3520
    %v3741 = vunpack.c.h.b16 %v3520
    %v3742 = vunpack.c.l.b16 %v3521
    %v3743 = vunpack.c.h.b16 %v3521
    %v3744 = vunpack.c.l.b16 %v3522
    %v3745 = vunpack.c.h.b16 %v3522
    %v3746 = vunpack.c.l.b16 %v3523
    %v3747 = vunpack.c.h.b16 %v3523
    %v3748 = vunpack.c.l.b16 %v3524
    %v3749 = vunpack.c.h.b16 %v3524
    %v3750 = vunpack.c.l.b16 %v3525
    %v3751 = vunpack.c.h.b16 %v3525
    %v3752 = vunpack.c.l.b16 %v3526
    %v3753 = vunpack.c.h.b16 %v3526
    %v3754 = vunpack.c.l.b16 %v3527
    %v3755 = vunpack.c.h.b16 %v3527
    %v3756 = vunpack.c.l.b16 %v3528
    %v3757 = vunpack.c.h.b16 %v3528
    %v3758 = vunpack.c.l.b16 %v3529
    %v3759 = vunpack.c.h.b16 %v3529
    %v3760 = vunpack.c.l.b16 %v3530
    %v3761 = vunpack.c.h.b16 %v3530
    %v3762 = vunpack.c.l.b16 %v3531
    %v3763 = vunpack.c.h.b16 %v3531
    %v3764 = vpack.c.b16 %v3734, %v3732
    %v3765 = vpack.c.b16 %v3735, %v3733
    %v3766 = vpack.c.b16 %v3738, %v3736
    %v3767 = vpack.c.b16 %v3739, %v3737
    %v3768 = vpack.c.b16 %v3742, %v3740
    %v3769 = vpack.c.b16 %v3743, %v3741
    %v3770 = vpack.c.b16 %v3746, %v3744
    %v3771 = vpack.c.b16 %v3747, %v3745
    %v3772 = vpack.c.b16 %v3750, %v3748
    %v3773 = vpack.c.b16 %v3751, %v3749
    %v3774 = vpack.c.b16 %v3754, %v3752
    %v3775 = vpack.c.b16 %v3755, %v3753
    %v3776 = vpack.c.b16 %v3758, %v3756
    %v3777 = vpack.c.b16 %v3759, %v3757
    %v3778 = vpack.c.b16 %v3762, %v3760
    %v3779 = vpack.c.b16 %v3763, %v3761
    %3796 = vmatprep.subr.bf16.mxu0 %v3765
    %3797 = vmatpush1.bf16.msra.mxu0 %v3764
    %3798 = vmatprep.subr.bf16.mxu0 %v3767
    %3799 = vmatpush1.bf16.msra.mxu0 %v3766
    %3800 = vmatprep.subr.bf16.mxu0 %v3769
    %3801 = vmatpush1.bf16.msra.mxu0 %v3768
    %3802 = vmatprep.subr.bf16.mxu0 %v3771
    %3803 = vmatpush1.bf16.msra.mxu0 %v3770
    %3804 = vmatprep.subr.bf16.mxu0 %v3773
    %3805 = vmatpush1.bf16.msra.mxu0 %v3772
    %3806 = vmatprep.subr.bf16.mxu0 %v3775
    %3807 = vmatpush1.bf16.msra.mxu0 %v3774
    %3808 = vmatprep.subr.bf16.mxu0 %v3777
    %3809 = vmatpush1.bf16.msra.mxu0 %v3776
    %3810 = vmatprep.subr.bf16.mxu0 %v3779
    %3811 = vmatpush1.bf16.msra.mxu0 %v3778
    %3812 = vmatprep.subr.bf16.mxu0 0
    %3813 = vmatpush1.bf16.msra.mxu0 0
    %3814 = vmatprep.subr.bf16.mxu0 0
    %3815 = vmatpush1.bf16.msra.mxu0 0
    %3816 = vmatprep.subr.bf16.mxu0 0
    %3817 = vmatpush1.bf16.msra.mxu0 0
    %3818 = vmatprep.subr.bf16.mxu0 0
    %3819 = vmatpush1.bf16.msra.mxu0 0
    %3820 = vmatprep.subr.bf16.mxu0 0
    %3821 = vmatpush1.bf16.msra.mxu0 0
    %3822 = vmatprep.subr.bf16.mxu0 0
    %3823 = vmatpush1.bf16.msra.mxu0 0
    %3824 = vmatprep.subr.bf16.mxu0 0
    %3825 = vmatpush1.bf16.msra.mxu0 0
    %3826 = vmatprep.subr.bf16.mxu0 0
    %3827 = vmatpush1.bf16.msra.mxu0 0
    %3828 = vmatprep.mubr.bf16.mxu0 0
    %3829 = vmatmul.mubr.bf16.gmra.mrb[0].mxu0 %v3515
    %v3830 = vpop.f32.mrb[0].mxu0
    %v3831 = vadd.f32 %v3710, %v3830
    %v3832 = vpop.f32.mrb[0].mxu0
    %v3833 = vadd.f32 %v3712, %v3832
    %v3834 = vpop.f32.mrb[0].mxu0
    %v3835 = vpop.f32.mrb[0].mxu0
    %3836 = vdwg.mxu0
    %s3837 = scalar_lea.vmem [#allocation25], 4
    %v3838 = vld [vmem:[%s3837] sm:$0x3]
    %v3840 = vsel %vm3467, %v3838, 0
    %3842 = vmatprep.subr.bf16.mxu0 0
    %3843 = vmatpush1.bf16.msra.mxu0 %v3473
    %3844 = vmatprep.subr.bf16.mxu0 0
    %3845 = vmatpush1.bf16.msra.mxu0 0
    %3846 = vmatprep.subr.bf16.mxu0 0
    %3847 = vmatpush1.bf16.msra.mxu0 0
    %3848 = vmatprep.subr.bf16.mxu0 0
    %3849 = vmatpush1.bf16.msra.mxu0 0
    %3850 = vmatprep.subr.bf16.mxu0 0
    %3851 = vmatpush1.bf16.msra.mxu0 0
    %3852 = vmatprep.subr.bf16.mxu0 0
    %3853 = vmatpush1.bf16.msra.mxu0 0
    %3854 = vmatprep.subr.bf16.mxu0 0
    %3855 = vmatpush1.bf16.msra.mxu0 0
    %3856 = vmatprep.subr.bf16.mxu0 0
    %3857 = vmatpush1.bf16.msra.mxu0 0
    %3858 = vmatprep.subr.bf16.mxu0 0
    %3859 = vmatpush1.bf16.msra.mxu0 0
    %3860 = vmatprep.subr.bf16.mxu0 0
    %3861 = vmatpush1.bf16.msra.mxu0 0
    %3862 = vmatprep.subr.bf16.mxu0 0
    %3863 = vmatpush1.bf16.msra.mxu0 0
    %3864 = vmatprep.subr.bf16.mxu0 0
    %3865 = vmatpush1.bf16.msra.mxu0 0
    %3866 = vmatprep.subr.bf16.mxu0 0
    %3867 = vmatpush1.bf16.msra.mxu0 0
    %3868 = vmatprep.subr.bf16.mxu0 0
    %3869 = vmatpush1.bf16.msra.mxu0 0
    %3870 = vmatprep.subr.bf16.mxu0 0
    %3871 = vmatpush1.bf16.msra.mxu0 0
    %3872 = vmatprep.subr.bf16.mxu0 0
    %3873 = vmatpush1.bf16.msra.mxu0 0
    %3874 = vmatprep.mubr.bf16.mxu0 0
    %3875 = vmatmul.mubr.bf16.gmra.mrb[0].mxu0 %v3840
    %v3876 = vpop.f32.mrb[0].mxu0
    %v3877 = vadd.f32 0.0, %v3876
    %v3878 = vpop.f32.mrb[0].mxu0
    %v3879 = vpop.f32.mrb[0].mxu0
    %v3880 = vpop.f32.mrb[0].mxu0
    %3881 = vdwg.mxu0
    %v3882 = vpack.c.bf16 %v3877, %v3877
    %s3883 = scalar_lea.vmem [#allocation27], 256
    %v3884 = vld [vmem:[%s3883] sm:$0xff]
    %v3885 = vld [vmem:[%s3883 + $0x8] sm:$0xff]
    %v3886 = vld [vmem:[%s3883 + $0x10] sm:$0xff]
    %v3887 = vld [vmem:[%s3883 + $0x18] sm:$0xff]
    %v3888 = vld [vmem:[%s3883 + $0x20] sm:$0xff]
    %v3889 = vld [vmem:[%s3883 + $0x28] sm:$0xff]
    %v3890 = vld [vmem:[%s3883 + $0x30] sm:$0xff]
    %v3891 = vld [vmem:[%s3883 + $0x38] sm:$0xff]
    %v3892 = vld [vmem:[%s3883 + $0x40] sm:$0xff]
    %v3893 = vld [vmem:[%s3883 + $0x48] sm:$0xff]
    %v3894 = vld [vmem:[%s3883 + $0x50] sm:$0xff]
    %v3895 = vld [vmem:[%s3883 + $0x58] sm:$0xff]
    %v3896 = vld [vmem:[%s3883 + $0x60] sm:$0xff]
    %v3897 = vld [vmem:[%s3883 + $0x68] sm:$0xff]
    %v3898 = vld [vmem:[%s3883 + $0x70] sm:$0xff]
    %v3899 = vld [vmem:[%s3883 + $0x78] sm:$0xff]
    %v3916 = vunpack.c.l.b16 %v3884
    %v3917 = vunpack.c.h.b16 %v3884
    %v3918 = vunpack.c.l.b16 %v3885
    %v3919 = vunpack.c.h.b16 %v3885
    %v3920 = vunpack.c.l.b16 %v3886
    %v3921 = vunpack.c.h.b16 %v3886
    %v3922 = vunpack.c.l.b16 %v3887
    %v3923 = vunpack.c.h.b16 %v3887
    %v3924 = vunpack.c.l.b16 %v3888
    %v3925 = vunpack.c.h.b16 %v3888
    %v3926 = vunpack.c.l.b16 %v3889
    %v3927 = vunpack.c.h.b16 %v3889
    %v3928 = vunpack.c.l.b16 %v3890
    %v3929 = vunpack.c.h.b16 %v3890
    %v3930 = vunpack.c.l.b16 %v3891
    %v3931 = vunpack.c.h.b16 %v3891
    %v3932 = vunpack.c.l.b16 %v3892
    %v3933 = vunpack.c.h.b16 %v3892
    %v3934 = vunpack.c.l.b16 %v3893
    %v3935 = vunpack.c.h.b16 %v3893
    %v3936 = vunpack.c.l.b16 %v3894
    %v3937 = vunpack.c.h.b16 %v3894
    %v3938 = vunpack.c.l.b16 %v3895
    %v3939 = vunpack.c.h.b16 %v3895
    %v3940 = vunpack.c.l.b16 %v3896
    %v3941 = vunpack.c.h.b16 %v3896
    %v3942 = vunpack.c.l.b16 %v3897
    %v3943 = vunpack.c.h.b16 %v3897
    %v3944 = vunpack.c.l.b16 %v3898
    %v3945 = vunpack.c.h.b16 %v3898
    %v3946 = vunpack.c.l.b16 %v3899
    %v3947 = vunpack.c.h.b16 %v3899
    %v3948 = vpack.c.b16 %v3918, %v3916
    %v3949 = vpack.c.b16 %v3919, %v3917
    %v3950 = vpack.c.b16 %v3922, %v3920
    %v3951 = vpack.c.b16 %v3923, %v3921
    %v3952 = vpack.c.b16 %v3926, %v3924
    %v3953 = vpack.c.b16 %v3927, %v3925
    %v3954 = vpack.c.b16 %v3930, %v3928
    %v3955 = vpack.c.b16 %v3931, %v3929
    %v3956 = vpack.c.b16 %v3934, %v3932
    %v3957 = vpack.c.b16 %v3935, %v3933
    %v3958 = vpack.c.b16 %v3938, %v3936
    %v3959 = vpack.c.b16 %v3939, %v3937
    %v3960 = vpack.c.b16 %v3942, %v3940
    %v3961 = vpack.c.b16 %v3943, %v3941
    %v3962 = vpack.c.b16 %v3946, %v3944
    %v3963 = vpack.c.b16 %v3947, %v3945
    %3980 = vmatprep.subr.bf16.mxu0 %v3949
    %3981 = vmatpush1.bf16.msra.mxu0 %v3948
    %3982 = vmatprep.subr.bf16.mxu0 %v3951
    %3983 = vmatpush1.bf16.msra.mxu0 %v3950
    %3984 = vmatprep.subr.bf16.mxu0 %v3953
    %3985 = vmatpush1.bf16.msra.mxu0 %v3952
    %3986 = vmatprep.subr.bf16.mxu0 %v3955
    %3987 = vmatpush1.bf16.msra.mxu0 %v3954
    %3988 = vmatprep.subr.bf16.mxu0 %v3957
    %3989 = vmatpush1.bf16.msra.mxu0 %v3956
    %3990 = vmatprep.subr.bf16.mxu0 %v3959
    %3991 = vmatpush1.bf16.msra.mxu0 %v3958
    %3992 = vmatprep.subr.bf16.mxu0 %v3961
    %3993 = vmatpush1.bf16.msra.mxu0 %v3960
    %3994 = vmatprep.subr.bf16.mxu0 %v3963
    %3995 = vmatpush1.bf16.msra.mxu0 %v3962
    %3996 = vmatprep.subr.bf16.mxu0 0
    %3997 = vmatpush1.bf16.msra.mxu0 0
    %3998 = vmatprep.subr.bf16.mxu0 0
    %3999 = vmatpush1.bf16.msra.mxu0 0
    %4000 = vmatprep.subr.bf16.mxu0 0
    %4001 = vmatpush1.bf16.msra.mxu0 0
    %4002 = vmatprep.subr.bf16.mxu0 0
    %4003 = vmatpush1.bf16.msra.mxu0 0
    %4004 = vmatprep.subr.bf16.mxu0 0
    %4005 = vmatpush1.bf16.msra.mxu0 0
    %4006 = vmatprep.subr.bf16.mxu0 0
    %4007 = vmatpush1.bf16.msra.mxu0 0
    %4008 = vmatprep.subr.bf16.mxu0 0
    %4009 = vmatpush1.bf16.msra.mxu0 0
    %4010 = vmatprep.subr.bf16.mxu0 0
    %4011 = vmatpush1.bf16.msra.mxu0 0
    %4012 = vmatprep.mubr.bf16.mxu0 0
    %4013 = vmatmul.mubr.bf16.gmra.mrb[0].mxu0 %v3882
    %v4014 = vpop.f32.mrb[0].mxu0
    %v4015 = vadd.f32 0.0, %v4014
    %v4016 = vpop.f32.mrb[0].mxu0
    %v4017 = vadd.f32 0.0, %v4016
    %v4018 = vpop.f32.mrb[0].mxu0
    %v4019 = vpop.f32.mrb[0].mxu0
    %4020 = vdwg.mxu0
    %v4021 = vadd.f32 %v3831, %v4015
    %v4022 = vadd.f32 %v3833, %v4017
    %v4023 = vsel %vm1752, %v4021, 0.0
    %v4024 = vrot.slane %v4023, 4
    %v4025 = vadd.f32 %v4023, %v4024
    %v4026 = vrot.slane %v4025, 2
    %v4027 = vadd.f32 %v4025, %v4026
    %v4028 = vrot.slane %v4027, 1
    %v4029 = vadd.f32 %v4027, %v4028
    %v4030 = vsel %vm1752, %v4022, 0.0
    %v4031 = vrot.slane %v4030, 4
    %v4032 = vadd.f32 %v4030, %v4031
    %v4033 = vrot.slane %v4032, 2
    %v4034 = vadd.f32 %v4032, %v4033
    %v4035 = vrot.slane %v4034, 1
    %v4036 = vadd.f32 %v4034, %v4035
    %v4037 = vld [vmem:[#allocation28] sm:$0xff]
    %v4038 = vld [vmem:[#allocation28 + $0x8] sm:$0xff]
    %v4039 = vld [vmem:[#allocation28 + $0x10] sm:$0xff]
    %v4040 = vld [vmem:[#allocation28 + $0x18] sm:$0xff]
    %v4041 = vld [vmem:[#allocation28 + $0x20] sm:$0xff]
    %v4042 = vld [vmem:[#allocation28 + $0x28] sm:$0xff]
    %v4043 = vld [vmem:[#allocation28 + $0x30] sm:$0xff]
    %v4044 = vld [vmem:[#allocation28 + $0x38] sm:$0xff]
    %v4045 = vld [vmem:[#allocation28 + $0x40] sm:$0xff]
    %v4046 = vld [vmem:[#allocation28 + $0x48] sm:$0xff]
    %v4047 = vld [vmem:[#allocation28 + $0x50] sm:$0xff]
    %v4048 = vld [vmem:[#allocation28 + $0x58] sm:$0xff]
    %v4049 = vld [vmem:[#allocation28 + $0x60] sm:$0xff]
    %v4050 = vld [vmem:[#allocation28 + $0x68] sm:$0xff]
    %v4051 = vld [vmem:[#allocation28 + $0x70] sm:$0xff]
    %v4052 = vld [vmem:[#allocation28 + $0x78] sm:$0xff]
    %v4053 = vld [vmem:[#allocation28 + $0x80] sm:$0xff]
    %v4054 = vld [vmem:[#allocation28 + $0x88] sm:$0xff]
    %v4055 = vld [vmem:[#allocation28 + $0x90] sm:$0xff]
    %v4056 = vld [vmem:[#allocation28 + $0x98] sm:$0xff]
    %v4057 = vld [vmem:[#allocation28 + $0xa0] sm:$0xff]
    %v4058 = vld [vmem:[#allocation28 + $0xa8] sm:$0xff]
    %v4059 = vld [vmem:[#allocation28 + $0xb0] sm:$0xff]
    %v4060 = vld [vmem:[#allocation28 + $0xb8] sm:$0xff]
    %v4061 = vld [vmem:[#allocation28 + $0xc0] sm:$0xff]
    %v4062 = vld [vmem:[#allocation28 + $0xc8] sm:$0xff]
    %v4063 = vld [vmem:[#allocation28 + $0xd0] sm:$0xff]
    %v4064 = vld [vmem:[#allocation28 + $0xd8] sm:$0xff]
    %v4065 = vld [vmem:[#allocation28 + $0xe0] sm:$0xff]
    %v4066 = vld [vmem:[#allocation28 + $0xe8] sm:$0xff]
    %v4067 = vld [vmem:[#allocation28 + $0xf0] sm:$0xff]
    %v4068 = vld [vmem:[#allocation28 + $0xf8] sm:$0xff]
    %v4069 = vld [vmem:[#allocation28 + $0x100] sm:$0xff]
    %v4070 = vld [vmem:[#allocation28 + $0x108] sm:$0xff]
    %v4071 = vld [vmem:[#allocation28 + $0x110] sm:$0xff]
    %v4072 = vld [vmem:[#allocation28 + $0x118] sm:$0xff]
    %v4073 = vld [vmem:[#allocation28 + $0x120] sm:$0xff]
    %v4074 = vld [vmem:[#allocation28 + $0x128] sm:$0xff]
    %v4075 = vld [vmem:[#allocation28 + $0x130] sm:$0xff]
    %v4076 = vld [vmem:[#allocation28 + $0x138] sm:$0xff]
    %v4077 = vld [vmem:[#allocation28 + $0x140] sm:$0xff]
    %v4078 = vld [vmem:[#allocation28 + $0x148] sm:$0xff]
    %v4079 = vld [vmem:[#allocation28 + $0x150] sm:$0xff]
    %v4080 = vld [vmem:[#allocation28 + $0x158] sm:$0xff]
    %v4081 = vld [vmem:[#allocation28 + $0x160] sm:$0xff]
    %v4082 = vld [vmem:[#allocation28 + $0x168] sm:$0xff]
    %v4083 = vld [vmem:[#allocation28 + $0x170] sm:$0xff]
    %v4084 = vld [vmem:[#allocation28 + $0x178] sm:$0xff]
    %v4085 = vld [vmem:[#allocation28 + $0x180] sm:$0xff]
    %v4086 = vld [vmem:[#allocation28 + $0x188] sm:$0xff]
    %v4087 = vld [vmem:[#allocation28 + $0x190] sm:$0xff]
    %v4088 = vld [vmem:[#allocation28 + $0x198] sm:$0xff]
    %v4089 = vld [vmem:[#allocation28 + $0x1a0] sm:$0xff]
    %v4090 = vld [vmem:[#allocation28 + $0x1a8] sm:$0xff]
    %v4091 = vld [vmem:[#allocation28 + $0x1b0] sm:$0xff]
    %v4092 = vld [vmem:[#allocation28 + $0x1b8] sm:$0xff]
    %v4093 = vld [vmem:[#allocation28 + $0x1c0] sm:$0xff]
    %v4094 = vld [vmem:[#allocation28 + $0x1c8] sm:$0xff]
    %v4095 = vld [vmem:[#allocation28 + $0x1d0] sm:$0xff]
    %v4096 = vld [vmem:[#allocation28 + $0x1d8] sm:$0xff]
    %v4097 = vld [vmem:[#allocation28 + $0x1e0] sm:$0xff]
    %v4098 = vld [vmem:[#allocation28 + $0x1e8] sm:$0xff]
    %v4099 = vld [vmem:[#allocation28 + $0x1f0] sm:$0xff]
    %v4100 = vld [vmem:[#allocation28 + $0x1f8] sm:$0xff]
    %4101 = vmatprep.subr.mxu0 %v4038
    %4102 = vmatpush1.msra.mxu0 %v4037
    %4103 = vmatprep.subr.mxu0 %v4040
    %4104 = vmatpush1.msra.mxu0 %v4039
    %4105 = vmatprep.subr.mxu0 %v4042
    %4106 = vmatpush1.msra.mxu0 %v4041
    %4107 = vmatprep.subr.mxu0 %v4044
    %4108 = vmatpush1.msra.mxu0 %v4043
    %4109 = vmatprep.subr.mxu0 %v4046
    %4110 = vmatpush1.msra.mxu0 %v4045
    %4111 = vmatprep.subr.mxu0 %v4048
    %4112 = vmatpush1.msra.mxu0 %v4047
    %4113 = vmatprep.subr.mxu0 %v4050
    %4114 = vmatpush1.msra.mxu0 %v4049
    %4115 = vmatprep.subr.mxu0 %v4052
    %4116 = vmatpush1.msra.mxu0 %v4051
    %4117 = vmatprep.subr.mxu0 %v4054
    %4118 = vmatpush1.msra.mxu0 %v4053
    %4119 = vmatprep.subr.mxu0 %v4056
    %4120 = vmatpush1.msra.mxu0 %v4055
    %4121 = vmatprep.subr.mxu0 %v4058
    %4122 = vmatpush1.msra.mxu0 %v4057
    %4123 = vmatprep.subr.mxu0 %v4060
    %4124 = vmatpush1.msra.mxu0 %v4059
    %4125 = vmatprep.subr.mxu0 %v4062
    %4126 = vmatpush1.msra.mxu0 %v4061
    %4127 = vmatprep.subr.mxu0 %v4064
    %4128 = vmatpush1.msra.mxu0 %v4063
    %4129 = vmatprep.subr.mxu0 %v4066
    %4130 = vmatpush1.msra.mxu0 %v4065
    %4131 = vmatprep.subr.mxu0 %v4068
    %4132 = vmatpush1.msra.mxu0 %v4067
    %4133 = vmatprep.subr.mxu0 %v4070
    %4134 = vmatpush1.msra.mxu0 %v4069
    %4135 = vmatprep.subr.mxu0 %v4072
    %4136 = vmatpush1.msra.mxu0 %v4071
    %4137 = vmatprep.subr.mxu0 %v4074
    %4138 = vmatpush1.msra.mxu0 %v4073
    %4139 = vmatprep.subr.mxu0 %v4076
    %4140 = vmatpush1.msra.mxu0 %v4075
    %4141 = vmatprep.subr.mxu0 %v4078
    %4142 = vmatpush1.msra.mxu0 %v4077
    %4143 = vmatprep.subr.mxu0 %v4080
    %4144 = vmatpush1.msra.mxu0 %v4079
    %4145 = vmatprep.subr.mxu0 %v4082
    %4146 = vmatpush1.msra.mxu0 %v4081
    %4147 = vmatprep.subr.mxu0 %v4084
    %4148 = vmatpush1.msra.mxu0 %v4083
    %4149 = vmatprep.subr.mxu0 %v4086
    %4150 = vmatpush1.msra.mxu0 %v4085
    %4151 = vmatprep.subr.mxu0 %v4088
    %4152 = vmatpush1.msra.mxu0 %v4087
    %4153 = vmatprep.subr.mxu0 %v4090
    %4154 = vmatpush1.msra.mxu0 %v4089
    %4155 = vmatprep.subr.mxu0 %v4092
    %4156 = vmatpush1.msra.mxu0 %v4091
    %4157 = vmatprep.subr.mxu0 %v4094
    %4158 = vmatpush1.msra.mxu0 %v4093
    %4159 = vmatprep.subr.mxu0 %v4096
    %4160 = vmatpush1.msra.mxu0 %v4095
    %4161 = vmatprep.subr.mxu0 %v4098
    %4162 = vmatpush1.msra.mxu0 %v4097
    %4163 = vmatprep.subr.mxu0 %v4100
    %4164 = vmatpush1.msra.mxu0 %v4099
    %4165 = vmatprep.mubr.f32.mxu0 %v4036
    %4166 = vmatmul.mubr.f32.gmra.mrb[0].mxu0 %v4029
    %v4167 = vpop.f32.mrb[0].mxu0
    %v4168 = vadd.f32 0.0, %v4167
    %v4169 = vpop.f32.mrb[0].mxu0
    %v4170 = vadd.f32 0.0, %v4169
    %4171 = vdwg.mxu0
    %v4172 = vmul.f32 %v4168, 0.03125
    %v4173 = vmul.f32 %v4170, 0.03125
    %v4174 = vlaneseq
    %v4175 = vshrl.u32 %v4174, 7
    %v4176 = vsub.s32 0, %v4175
    %v4177 = vrot.slane %v4172, %v4176
    %v4178 = vlaneseq
    %v4179 = vshrl.u32 %v4178, 7
    %v4180 = vsub.s32 0, %v4179
    %v4181 = vrot.slane %v4173, %v4180
    %v4182 = vsub.f32 %v4021, %v4177
    %v4183 = vsub.f32 %v4022, %v4181
    %v4184 = vmul.f32 %v4182, %v4182
    %v4185 = vmul.f32 %v4183, %v4183
    %v4186 = vsel %vm1752, %v4184, 0.0
    %v4187 = vrot.slane %v4186, 4
    %v4188 = vadd.f32 %v4186, %v4187
    %v4189 = vrot.slane %v4188, 2
    %v4190 = vadd.f32 %v4188, %v4189
    %v4191 = vrot.slane %v4190, 1
    %v4192 = vadd.f32 %v4190, %v4191
    %v4193 = vsel %vm1752, %v4185, 0.0
    %v4194 = vrot.slane %v4193, 4
    %v4195 = vadd.f32 %v4193, %v4194
    %v4196 = vrot.slane %v4195, 2
    %v4197 = vadd.f32 %v4195, %v4196
    %v4198 = vrot.slane %v4197, 1
    %v4199 = vadd.f32 %v4197, %v4198
    %4200 = vmatprep.subr.mxu0 %v4038
    %4201 = vmatpush1.msra.mxu0 %v4037
    %4202 = vmatprep.subr.mxu0 %v4040
    %4203 = vmatpush1.msra.mxu0 %v4039
    %4204 = vmatprep.subr.mxu0 %v4042
    %4205 = vmatpush1.msra.mxu0 %v4041
    %4206 = vmatprep.subr.mxu0 %v4044
    %4207 = vmatpush1.msra.mxu0 %v4043
    %4208 = vmatprep.subr.mxu0 %v4046
    %4209 = vmatpush1.msra.mxu0 %v4045
    %4210 = vmatprep.subr.mxu0 %v4048
    %4211 = vmatpush1.msra.mxu0 %v4047
    %4212 = vmatprep.subr.mxu0 %v4050
    %4213 = vmatpush1.msra.mxu0 %v4049
    %4214 = vmatprep.subr.mxu0 %v4052
    %4215 = vmatpush1.msra.mxu0 %v4051
    %4216 = vmatprep.subr.mxu0 %v4054
    %4217 = vmatpush1.msra.mxu0 %v4053
    %4218 = vmatprep.subr.mxu0 %v4056
    %4219 = vmatpush1.msra.mxu0 %v4055
    %4220 = vmatprep.subr.mxu0 %v4058
    %4221 = vmatpush1.msra.mxu0 %v4057
    %4222 = vmatprep.subr.mxu0 %v4060
    %4223 = vmatpush1.msra.mxu0 %v4059
    %4224 = vmatprep.subr.mxu0 %v4062
    %4225 = vmatpush1.msra.mxu0 %v4061
    %4226 = vmatprep.subr.mxu0 %v4064
    %4227 = vmatpush1.msra.mxu0 %v4063
    %4228 = vmatprep.subr.mxu0 %v4066
    %4229 = vmatpush1.msra.mxu0 %v4065
    %4230 = vmatprep.subr.mxu0 %v4068
    %4231 = vmatpush1.msra.mxu0 %v4067
    %4232 = vmatprep.subr.mxu0 %v4070
    %4233 = vmatpush1.msra.mxu0 %v4069
    %4234 = vmatprep.subr.mxu0 %v4072
    %4235 = vmatpush1.msra.mxu0 %v4071
    %4236 = vmatprep.subr.mxu0 %v4074
    %4237 = vmatpush1.msra.mxu0 %v4073
    %4238 = vmatprep.subr.mxu0 %v4076
    %4239 = vmatpush1.msra.mxu0 %v4075
    %4240 = vmatprep.subr.mxu0 %v4078
    %4241 = vmatpush1.msra.mxu0 %v4077
    %4242 = vmatprep.subr.mxu0 %v4080
    %4243 = vmatpush1.msra.mxu0 %v4079
    %4244 = vmatprep.subr.mxu0 %v4082
    %4245 = vmatpush1.msra.mxu0 %v4081
    %4246 = vmatprep.subr.mxu0 %v4084
    %4247 = vmatpush1.msra.mxu0 %v4083
    %4248 = vmatprep.subr.mxu0 %v4086
    %4249 = vmatpush1.msra.mxu0 %v4085
    %4250 = vmatprep.subr.mxu0 %v4088
    %4251 = vmatpush1.msra.mxu0 %v4087
    %4252 = vmatprep.subr.mxu0 %v4090
    %4253 = vmatpush1.msra.mxu0 %v4089
    %4254 = vmatprep.subr.mxu0 %v4092
    %4255 = vmatpush1.msra.mxu0 %v4091
    %4256 = vmatprep.subr.mxu0 %v4094
    %4257 = vmatpush1.msra.mxu0 %v4093
    %4258 = vmatprep.subr.mxu0 %v4096
    %4259 = vmatpush1.msra.mxu0 %v4095
    %4260 = vmatprep.subr.mxu0 %v4098
    %4261 = vmatpush1.msra.mxu0 %v4097
    %4262 = vmatprep.subr.mxu0 %v4100
    %4263 = vmatpush1.msra.mxu0 %v4099
    %4264 = vmatprep.mubr.f32.mxu0 %v4199
    %4265 = vmatmul.mubr.f32.gmra.mrb[0].mxu0 %v4192
    %v4266 = vpop.f32.mrb[0].mxu0
    %v4267 = vadd.f32 0.0, %v4266
    %v4268 = vpop.f32.mrb[0].mxu0
    %v4269 = vadd.f32 0.0, %v4268
    %4270 = vdwg.mxu0
    %v4271 = vmul.f32 %v4267, 0.03125
    %v4272 = vmul.f32 %v4269, 0.03125
    %v4273 = vld [vmem:[#allocation30] sm:$0x3]
    %v4274 = vadd.f32 %v4271, 1e-05
    %v4275 = vadd.f32 %v4272, 1e-05
    %v4276 = vrsqrt.pop %v4274
    %v4277 = vrsqrt.pop %v4275
    %v4280 = vcombine.low %v4276, %v4277
    %v4282 = vunpack.c.l.s4 1966171168
    %v4283 = vunpack.c.0.s8 %v4282
    %v4284 = vlaneseq
    %v4285 = vshrl.u32 %v4284, 7
    %v4286 = vsub.s32 %v4283, %v4285
    %v4287 = vrot.slane %v4280, %v4286
    %v4289 = vunpack.c.l.s4 1966171168
    %v4290 = vunpack.c.0.s8 %v4289
    %v4291 = vlaneseq
    %v4292 = vshrl.u32 %v4291, 7
    %v4293 = vsub.s32 %v4290, %v4292
    %v4294 = vrot.slane %v4287, %v4293
    %v4296 = vmul.f32 %v4273, %v4294
    %v4298 = vlaneseq
    %v4299 = vshrl.u32 %v4298, 7
    %v4300 = vsub.s32 0, %v4299
    %v4301 = vrot.slane %v4296, %v4300
    %v4302 = vlaneseq
    %v4303 = vshrl.u32 %v4302, 7
    %v4304 = vsub.s32 1, %v4303
    %v4305 = vrot.slane %v4296, %v4304
    %v4308 = vmul.f32 %v4182, %v4301
    %v4309 = vmul.f32 %v4183, %v4305
    %v4310 = vld [vmem:[#allocation31] sm:$0x3]
    %v4312 = vlaneseq
    %v4313 = vshrl.u32 %v4312, 7
    %v4314 = vsub.s32 0, %v4313
    %v4315 = vrot.slane %v4310, %v4314
    %v4316 = vlaneseq
    %v4317 = vshrl.u32 %v4316, 7
    %v4318 = vsub.s32 1, %v4317
    %v4319 = vrot.slane %v4310, %v4318
    %v4322 = vadd.f32 %v4308, %v4315
    %v4323 = vadd.f32 %v4309, %v4319
    %vm4324 = vcmp.ge.f32.partialorder %v4322, 0.0
    %vm4325 = vcmp.ge.f32.partialorder %v4323, 0.0
    %v4326 = vmul.f32 %v4322, 0.2
    %v4327 = vmul.f32 %v4323, 0.2
    %v4328 = vsel %vm4324, %v4322, %v4326
    %v4329 = vsel %vm4325, %v4323, %v4327
    %v4330 = vpack.c.bf16 %v4328, %v4328
    %v4331 = vpack.c.bf16 %v4329, %v4329
    %v4332 = vld [vmem:[%s45] sm:$0x1]
    %v4334 = vsel %vm3467, %v4332, 0
    %v4337 = vsel %vm3471, %v4330, 0
    %v4340 = vsel %vm3471, %v4331, 0
    %4342 = vmatprep.subr.bf16.mxu0 %v4340
    %4343 = vmatpush1.bf16.msra.mxu0 %v4337
    %4344 = vmatprep.subr.bf16.mxu0 0
    %4345 = vmatpush1.bf16.msra.mxu0 0
    %4346 = vmatprep.subr.bf16.mxu0 0
    %4347 = vmatpush1.bf16.msra.mxu0 0
    %4348 = vmatprep.subr.bf16.mxu0 0
    %4349 = vmatpush1.bf16.msra.mxu0 0
    %4350 = vmatprep.subr.bf16.mxu0 0
    %4351 = vmatpush1.bf16.msra.mxu0 0
    %4352 = vmatprep.subr.bf16.mxu0 0
    %4353 = vmatpush1.bf16.msra.mxu0 0
    %4354 = vmatprep.subr.bf16.mxu0 0
    %4355 = vmatpush1.bf16.msra.mxu0 0
    %4356 = vmatprep.subr.bf16.mxu0 0
    %4357 = vmatpush1.bf16.msra.mxu0 0
    %4358 = vmatprep.subr.bf16.mxu0 0
    %4359 = vmatpush1.bf16.msra.mxu0 0
    %4360 = vmatprep.subr.bf16.mxu0 0
    %4361 = vmatpush1.bf16.msra.mxu0 0
    %4362 = vmatprep.subr.bf16.mxu0 0
    %4363 = vmatpush1.bf16.msra.mxu0 0
    %4364 = vmatprep.subr.bf16.mxu0 0
    %4365 = vmatpush1.bf16.msra.mxu0 0
    %4366 = vmatprep.subr.bf16.mxu0 0
    %4367 = vmatpush1.bf16.msra.mxu0 0
    %4368 = vmatprep.subr.bf16.mxu0 0
    %4369 = vmatpush1.bf16.msra.mxu0 0
    %4370 = vmatprep.subr.bf16.mxu0 0
    %4371 = vmatpush1.bf16.msra.mxu0 0
    %4372 = vmatprep.subr.bf16.mxu0 0
    %4373 = vmatpush1.bf16.msra.mxu0 0
    %4374 = vmatprep.mubr.bf16.mxu0 0
    %4375 = vmatmul.mubr.bf16.gmra.mrb[0].mxu0 %v4334
    %v4376 = vpop.f32.mrb[0].mxu0
    %v4377 = vadd.f32 0.0, %v4376
    %v4378 = vpop.f32.mrb[0].mxu0
    %v4379 = vadd.f32 0.0, %v4378
    %v4380 = vpop.f32.mrb[0].mxu0
    %v4381 = vpop.f32.mrb[0].mxu0
    %4382 = vdwg.mxu0
    %v4383 = vpack.c.bf16 %v4377, %v4377
    %v4384 = vpack.c.bf16 %v4379, %v4379
    %v4385 = vld [vmem:[#allocation33] sm:$0xf]
    %v4386 = vld [vmem:[#allocation33 + $0x4] sm:$0xf]
    %v4387 = vld [vmem:[#allocation33 + $0x8] sm:$0xf]
    %v4388 = vld [vmem:[#allocation33 + $0xc] sm:$0xf]
    %v4389 = vld [vmem:[#allocation33 + $0x10] sm:$0xf]
    %v4390 = vld [vmem:[#allocation33 + $0x14] sm:$0xf]
    %v4391 = vld [vmem:[#allocation33 + $0x18] sm:$0xf]
    %v4392 = vld [vmem:[#allocation33 + $0x1c] sm:$0xf]
    %v4393 = vld [vmem:[#allocation33 + $0x20] sm:$0xf]
    %v4394 = vld [vmem:[#allocation33 + $0x24] sm:$0xf]
    %v4395 = vld [vmem:[#allocation33 + $0x28] sm:$0xf]
    %v4396 = vld [vmem:[#allocation33 + $0x2c] sm:$0xf]
    %v4397 = vld [vmem:[#allocation33 + $0x30] sm:$0xf]
    %v4398 = vld [vmem:[#allocation33 + $0x34] sm:$0xf]
    %v4399 = vld [vmem:[#allocation33 + $0x38] sm:$0xf]
    %v4400 = vld [vmem:[#allocation33 + $0x3c] sm:$0xf]
    %v4401 = vld [vmem:[#allocation33 + $0x40] sm:$0xf]
    %v4402 = vld [vmem:[#allocation33 + $0x44] sm:$0xf]
    %v4403 = vld [vmem:[#allocation33 + $0x48] sm:$0xf]
    %v4404 = vld [vmem:[#allocation33 + $0x4c] sm:$0xf]
    %v4405 = vld [vmem:[#allocation33 + $0x50] sm:$0xf]
    %v4406 = vld [vmem:[#allocation33 + $0x54] sm:$0xf]
    %v4407 = vld [vmem:[#allocation33 + $0x58] sm:$0xf]
    %v4408 = vld [vmem:[#allocation33 + $0x5c] sm:$0xf]
    %v4409 = vld [vmem:[#allocation33 + $0x60] sm:$0xf]
    %v4410 = vld [vmem:[#allocation33 + $0x64] sm:$0xf]
    %v4411 = vld [vmem:[#allocation33 + $0x68] sm:$0xf]
    %v4412 = vld [vmem:[#allocation33 + $0x6c] sm:$0xf]
    %v4413 = vld [vmem:[#allocation33 + $0x70] sm:$0xf]
    %v4414 = vld [vmem:[#allocation33 + $0x74] sm:$0xf]
    %v4415 = vld [vmem:[#allocation33 + $0x78] sm:$0xf]
    %v4416 = vld [vmem:[#allocation33 + $0x7c] sm:$0xf]
    %s4417 = scalar_lea.vmem %s45, 1
    %v4418 = vld [vmem:[%s4417] sm:$0x1]
    %v4420 = vsel %vm3467, %v4418, 0
    %4422 = vmatprep.subr.bf16.mxu0 %v4340
    %4423 = vmatpush1.bf16.msra.mxu0 %v4337
    %4424 = vmatprep.subr.bf16.mxu0 0
    %4425 = vmatpush1.bf16.msra.mxu0 0
    %4426 = vmatprep.subr.bf16.mxu0 0
    %4427 = vmatpush1.bf16.msra.mxu0 0
    %4428 = vmatprep.subr.bf16.mxu0 0
    %4429 = vmatpush1.bf16.msra.mxu0 0
    %4430 = vmatprep.subr.bf16.mxu0 0
    %4431 = vmatpush1.bf16.msra.mxu0 0
    %4432 = vmatprep.subr.bf16.mxu0 0
    %4433 = vmatpush1.bf16.msra.mxu0 0
    %4434 = vmatprep.subr.bf16.mxu0 0
    %4435 = vmatpush1.bf16.msra.mxu0 0
    %4436 = vmatprep.subr.bf16.mxu0 0
    %4437 = vmatpush1.bf16.msra.mxu0 0
    %4438 = vmatprep.subr.bf16.mxu0 0
    %4439 = vmatpush1.bf16.msra.mxu0 0
    %4440 = vmatprep.subr.bf16.mxu0 0
    %4441 = vmatpush1.bf16.msra.mxu0 0
    %4442 = vmatprep.subr.bf16.mxu0 0
    %4443 = vmatpush1.bf16.msra.mxu0 0
    %4444 = vmatprep.subr.bf16.mxu0 0
    %4445 = vmatpush1.bf16.msra.mxu0 0
    %4446 = vmatprep.subr.bf16.mxu0 0
    %4447 = vmatpush1.bf16.msra.mxu0 0
    %4448 = vmatprep.subr.bf16.mxu0 0
    %4449 = vmatpush1.bf16.msra.mxu0 0
    %4450 = vmatprep.subr.bf16.mxu0 0
    %4451 = vmatpush1.bf16.msra.mxu0 0
    %4452 = vmatprep.subr.bf16.mxu0 0
    %4453 = vmatpush1.bf16.msra.mxu0 0
    %4454 = vmatprep.mubr.bf16.mxu0 0
    %4455 = vmatmul.mubr.bf16.gmra.mrb[0].mxu0 %v4420
    %v4456 = vpop.f32.mrb[0].mxu0
    %v4457 = vadd.f32 0.0, %v4456
    %v4458 = vpop.f32.mrb[0].mxu0
    %v4459 = vadd.f32 0.0, %v4458
    %v4460 = vpop.f32.mrb[0].mxu0
    %v4461 = vpop.f32.mrb[0].mxu0
    %4462 = vdwg.mxu0
    %v4463 = vpack.c.bf16 %v4457, %v4457
    %v4464 = vpack.c.bf16 %v4459, %v4459
    %s4465 = scalar_lea.vmem [#allocation33], 128
    %v4466 = vld [vmem:[%s4465] sm:$0xf]
    %v4467 = vld [vmem:[%s4465 + $0x4] sm:$0xf]
    %v4468 = vld [vmem:[%s4465 + $0x8] sm:$0xf]
    %v4469 = vld [vmem:[%s4465 + $0xc] sm:$0xf]
    %v4470 = vld [vmem:[%s4465 + $0x10] sm:$0xf]
    %v4471 = vld [vmem:[%s4465 + $0x14] sm:$0xf]
    %v4472 = vld [vmem:[%s4465 + $0x18] sm:$0xf]
    %v4473 = vld [vmem:[%s4465 + $0x1c] sm:$0xf]
    %v4474 = vld [vmem:[%s4465 + $0x20] sm:$0xf]
    %v4475 = vld [vmem:[%s4465 + $0x24] sm:$0xf]
    %v4476 = vld [vmem:[%s4465 + $0x28] sm:$0xf]
    %v4477 = vld [vmem:[%s4465 + $0x2c] sm:$0xf]
    %v4478 = vld [vmem:[%s4465 + $0x30] sm:$0xf]
    %v4479 = vld [vmem:[%s4465 + $0x34] sm:$0xf]
    %v4480 = vld [vmem:[%s4465 + $0x38] sm:$0xf]
    %v4481 = vld [vmem:[%s4465 + $0x3c] sm:$0xf]
    %v4482 = vld [vmem:[%s4465 + $0x40] sm:$0xf]
    %v4483 = vld [vmem:[%s4465 + $0x44] sm:$0xf]
    %v4484 = vld [vmem:[%s4465 + $0x48] sm:$0xf]
    %v4485 = vld [vmem:[%s4465 + $0x4c] sm:$0xf]
    %v4486 = vld [vmem:[%s4465 + $0x50] sm:$0xf]
    %v4487 = vld [vmem:[%s4465 + $0x54] sm:$0xf]
    %v4488 = vld [vmem:[%s4465 + $0x58] sm:$0xf]
    %v4489 = vld [vmem:[%s4465 + $0x5c] sm:$0xf]
    %v4490 = vld [vmem:[%s4465 + $0x60] sm:$0xf]
    %v4491 = vld [vmem:[%s4465 + $0x64] sm:$0xf]
    %v4492 = vld [vmem:[%s4465 + $0x68] sm:$0xf]
    %v4493 = vld [vmem:[%s4465 + $0x6c] sm:$0xf]
    %v4494 = vld [vmem:[%s4465 + $0x70] sm:$0xf]
    %v4495 = vld [vmem:[%s4465 + $0x74] sm:$0xf]
    %v4496 = vld [vmem:[%s4465 + $0x78] sm:$0xf]
    %v4497 = vld [vmem:[%s4465 + $0x7c] sm:$0xf]
    %v4530 = vunpack.c.l.b16 %v4466
    %v4531 = vunpack.c.l.b16 %v4467
    %v4532 = vunpack.c.l.b16 %v4468
    %v4533 = vunpack.c.l.b16 %v4469
    %v4534 = vunpack.c.l.b16 %v4470
    %v4535 = vunpack.c.l.b16 %v4471
    %v4536 = vunpack.c.l.b16 %v4472
    %v4537 = vunpack.c.l.b16 %v4473
    %v4538 = vunpack.c.l.b16 %v4474
    %v4539 = vunpack.c.l.b16 %v4475
    %v4540 = vunpack.c.l.b16 %v4476
    %v4541 = vunpack.c.l.b16 %v4477
    %v4542 = vunpack.c.l.b16 %v4478
    %v4543 = vunpack.c.l.b16 %v4479
    %v4544 = vunpack.c.l.b16 %v4480
    %v4545 = vunpack.c.l.b16 %v4481
    %v4546 = vunpack.c.l.b16 %v4482
    %v4547 = vunpack.c.l.b16 %v4483
    %v4548 = vunpack.c.l.b16 %v4484
    %v4549 = vunpack.c.l.b16 %v4485
    %v4550 = vunpack.c.l.b16 %v4486
    %v4551 = vunpack.c.l.b16 %v4487
    %v4552 = vunpack.c.l.b16 %v4488
    %v4553 = vunpack.c.l.b16 %v4489
    %v4554 = vunpack.c.l.b16 %v4490
    %v4555 = vunpack.c.l.b16 %v4491
    %v4556 = vunpack.c.l.b16 %v4492
    %v4557 = vunpack.c.l.b16 %v4493
    %v4558 = vunpack.c.l.b16 %v4494
    %v4559 = vunpack.c.l.b16 %v4495
    %v4560 = vunpack.c.l.b16 %v4496
    %v4561 = vunpack.c.l.b16 %v4497
    %v4562 = vpack.c.b16 %v4531, %v4530
    %v4563 = vpack.c.b16 %v4533, %v4532
    %v4564 = vpack.c.b16 %v4535, %v4534
    %v4565 = vpack.c.b16 %v4537, %v4536
    %v4566 = vpack.c.b16 %v4539, %v4538
    %v4567 = vpack.c.b16 %v4541, %v4540
    %v4568 = vpack.c.b16 %v4543, %v4542
    %v4569 = vpack.c.b16 %v4545, %v4544
    %v4570 = vpack.c.b16 %v4547, %v4546
    %v4571 = vpack.c.b16 %v4549, %v4548
    %v4572 = vpack.c.b16 %v4551, %v4550
    %v4573 = vpack.c.b16 %v4553, %v4552
    %v4574 = vpack.c.b16 %v4555, %v4554
    %v4575 = vpack.c.b16 %v4557, %v4556
    %v4576 = vpack.c.b16 %v4559, %v4558
    %v4577 = vpack.c.b16 %v4561, %v4560
    %4594 = vmatprep.subr.bf16.mxu0 0
    %4595 = vmatpush1.bf16.msra.mxu0 %v4562
    %4596 = vmatprep.subr.bf16.mxu0 0
    %4597 = vmatpush1.bf16.msra.mxu0 %v4563
    %4598 = vmatprep.subr.bf16.mxu0 0
    %4599 = vmatpush1.bf16.msra.mxu0 %v4564
    %4600 = vmatprep.subr.bf16.mxu0 0
    %4601 = vmatpush1.bf16.msra.mxu0 %v4565
    %4602 = vmatprep.subr.bf16.mxu0 0
    %4603 = vmatpush1.bf16.msra.mxu0 %v4566
    %4604 = vmatprep.subr.bf16.mxu0 0
    %4605 = vmatpush1.bf16.msra.mxu0 %v4567
    %4606 = vmatprep.subr.bf16.mxu0 0
    %4607 = vmatpush1.bf16.msra.mxu0 %v4568
    %4608 = vmatprep.subr.bf16.mxu0 0
    %4609 = vmatpush1.bf16.msra.mxu0 %v4569
    %4610 = vmatprep.subr.bf16.mxu0 0
    %4611 = vmatpush1.bf16.msra.mxu0 %v4570
    %4612 = vmatprep.subr.bf16.mxu0 0
    %4613 = vmatpush1.bf16.msra.mxu0 %v4571
    %4614 = vmatprep.subr.bf16.mxu0 0
    %4615 = vmatpush1.bf16.msra.mxu0 %v4572
    %4616 = vmatprep.subr.bf16.mxu0 0
    %4617 = vmatpush1.bf16.msra.mxu0 %v4573
    %4618 = vmatprep.subr.bf16.mxu0 0
    %4619 = vmatpush1.bf16.msra.mxu0 %v4574
    %4620 = vmatprep.subr.bf16.mxu0 0
    %4621 = vmatpush1.bf16.msra.mxu0 %v4575
    %4622 = vmatprep.subr.bf16.mxu0 0
    %4623 = vmatpush1.bf16.msra.mxu0 %v4576
    %4624 = vmatprep.subr.bf16.mxu0 0
    %4625 = vmatpush1.bf16.msra.mxu0 %v4577
    %4626 = vmatprep.mubr.bf16.mxu0 %v4464
    %4627 = vmatmul.mubr.bf16.gmra.mrb[0].mxu0 %v4463
    %v4628 = vpop.f32.mrb[0].mxu0
    %v4629 = vadd.f32 0.0, %v4628
    %v4630 = vpop.f32.mrb[0].mxu0
    %v4631 = vpop.f32.mrb[0].mxu0
    %v4632 = vpop.f32.mrb[0].mxu0
    %4633 = vdwg.mxu0
    %v4666 = vunpack.c.l.b16 %v4385
    %v4667 = vunpack.c.l.b16 %v4386
    %v4668 = vunpack.c.l.b16 %v4387
    %v4669 = vunpack.c.l.b16 %v4388
    %v4670 = vunpack.c.l.b16 %v4389
    %v4671 = vunpack.c.l.b16 %v4390
    %v4672 = vunpack.c.l.b16 %v4391
    %v4673 = vunpack.c.l.b16 %v4392
    %v4674 = vunpack.c.l.b16 %v4393
    %v4675 = vunpack.c.l.b16 %v4394
    %v4676 = vunpack.c.l.b16 %v4395
    %v4677 = vunpack.c.l.b16 %v4396
    %v4678 = vunpack.c.l.b16 %v4397
    %v4679 = vunpack.c.l.b16 %v4398
    %v4680 = vunpack.c.l.b16 %v4399
    %v4681 = vunpack.c.l.b16 %v4400
    %v4682 = vunpack.c.l.b16 %v4401
    %v4683 = vunpack.c.l.b16 %v4402
    %v4684 = vunpack.c.l.b16 %v4403
    %v4685 = vunpack.c.l.b16 %v4404
    %v4686 = vunpack.c.l.b16 %v4405
    %v4687 = vunpack.c.l.b16 %v4406
    %v4688 = vunpack.c.l.b16 %v4407
    %v4689 = vunpack.c.l.b16 %v4408
    %v4690 = vunpack.c.l.b16 %v4409
    %v4691 = vunpack.c.l.b16 %v4410
    %v4692 = vunpack.c.l.b16 %v4411
    %v4693 = vunpack.c.l.b16 %v4412
    %v4694 = vunpack.c.l.b16 %v4413
    %v4695 = vunpack.c.l.b16 %v4414
    %v4696 = vunpack.c.l.b16 %v4415
    %v4697 = vunpack.c.l.b16 %v4416
    %v4698 = vpack.c.b16 %v4667, %v4666
    %v4699 = vpack.c.b16 %v4669, %v4668
    %v4700 = vpack.c.b16 %v4671, %v4670
    %v4701 = vpack.c.b16 %v4673, %v4672
    %v4702 = vpack.c.b16 %v4675, %v4674
    %v4703 = vpack.c.b16 %v4677, %v4676
    %v4704 = vpack.c.b16 %v4679, %v4678
    %v4705 = vpack.c.b16 %v4681, %v4680
    %v4706 = vpack.c.b16 %v4683, %v4682
    %v4707 = vpack.c.b16 %v4685, %v4684
    %v4708 = vpack.c.b16 %v4687, %v4686
    %v4709 = vpack.c.b16 %v4689, %v4688
    %v4710 = vpack.c.b16 %v4691, %v4690
    %v4711 = vpack.c.b16 %v4693, %v4692
    %v4712 = vpack.c.b16 %v4695, %v4694
    %v4713 = vpack.c.b16 %v4697, %v4696
    %4730 = vmatprep.subr.bf16.mxu0 0
    %4731 = vmatpush1.bf16.msra.mxu0 %v4698
    %4732 = vmatprep.subr.bf16.mxu0 0
    %4733 = vmatpush1.bf16.msra.mxu0 %v4699
    %4734 = vmatprep.subr.bf16.mxu0 0
    %4735 = vmatpush1.bf16.msra.mxu0 %v4700
    %4736 = vmatprep.subr.bf16.mxu0 0
    %4737 = vmatpush1.bf16.msra.mxu0 %v4701
    %4738 = vmatprep.subr.bf16.mxu0 0
    %4739 = vmatpush1.bf16.msra.mxu0 %v4702
    %4740 = vmatprep.subr.bf16.mxu0 0
    %4741 = vmatpush1.bf16.msra.mxu0 %v4703
    %4742 = vmatprep.subr.bf16.mxu0 0
    %4743 = vmatpush1.bf16.msra.mxu0 %v4704
    %4744 = vmatprep.subr.bf16.mxu0 0
    %4745 = vmatpush1.bf16.msra.mxu0 %v4705
    %4746 = vmatprep.subr.bf16.mxu0 0
    %4747 = vmatpush1.bf16.msra.mxu0 %v4706
    %4748 = vmatprep.subr.bf16.mxu0 0
    %4749 = vmatpush1.bf16.msra.mxu0 %v4707
    %4750 = vmatprep.subr.bf16.mxu0 0
    %4751 = vmatpush1.bf16.msra.mxu0 %v4708
    %4752 = vmatprep.subr.bf16.mxu0 0
    %4753 = vmatpush1.bf16.msra.mxu0 %v4709
    %4754 = vmatprep.subr.bf16.mxu0 0
    %4755 = vmatpush1.bf16.msra.mxu0 %v4710
    %4756 = vmatprep.subr.bf16.mxu0 0
    %4757 = vmatpush1.bf16.msra.mxu0 %v4711
    %4758 = vmatprep.subr.bf16.mxu0 0
    %4759 = vmatpush1.bf16.msra.mxu0 %v4712
    %4760 = vmatprep.subr.bf16.mxu0 0
    %4761 = vmatpush1.bf16.msra.mxu0 %v4713
    %4762 = vmatprep.mubr.bf16.mxu0 %v4384
    %4763 = vmatmul.mubr.bf16.gmra.mrb[0].mxu0 %v4383
    %v4764 = vpop.f32.mrb[0].mxu0
    %v4765 = vadd.f32 %v4629, %v4764
    %v4766 = vpop.f32.mrb[0].mxu0
    %v4767 = vpop.f32.mrb[0].mxu0
    %v4768 = vpop.f32.mrb[0].mxu0
    %4769 = vdwg.mxu0
    %s4770 = scalar_lea.vmem %s45, 2
    %v4771 = vld [vmem:[%s4770] sm:$0x1]
    %v4773 = vsel %vm3467, %v4771, 0
    %4775 = vmatprep.subr.bf16.mxu0 %v4340
    %4776 = vmatpush1.bf16.msra.mxu0 %v4337
    %4777 = vmatprep.subr.bf16.mxu0 0
    %4778 = vmatpush1.bf16.msra.mxu0 0
    %4779 = vmatprep.subr.bf16.mxu0 0
    %4780 = vmatpush1.bf16.msra.mxu0 0
    %4781 = vmatprep.subr.bf16.mxu0 0
    %4782 = vmatpush1.bf16.msra.mxu0 0
    %4783 = vmatprep.subr.bf16.mxu0 0
    %4784 = vmatpush1.bf16.msra.mxu0 0
    %4785 = vmatprep.subr.bf16.mxu0 0
    %4786 = vmatpush1.bf16.msra.mxu0 0
    %4787 = vmatprep.subr.bf16.mxu0 0
    %4788 = vmatpush1.bf16.msra.mxu0 0
    %4789 = vmatprep.subr.bf16.mxu0 0
    %4790 = vmatpush1.bf16.msra.mxu0 0
    %4791 = vmatprep.subr.bf16.mxu0 0
    %4792 = vmatpush1.bf16.msra.mxu0 0
    %4793 = vmatprep.subr.bf16.mxu0 0
    %4794 = vmatpush1.bf16.msra.mxu0 0
    %4795 = vmatprep.subr.bf16.mxu0 0
    %4796 = vmatpush1.bf16.msra.mxu0 0
    %4797 = vmatprep.subr.bf16.mxu0 0
    %4798 = vmatpush1.bf16.msra.mxu0 0
    %4799 = vmatprep.subr.bf16.mxu0 0
    %4800 = vmatpush1.bf16.msra.mxu0 0
    %4801 = vmatprep.subr.bf16.mxu0 0
    %4802 = vmatpush1.bf16.msra.mxu0 0
    %4803 = vmatprep.subr.bf16.mxu0 0
    %4804 = vmatpush1.bf16.msra.mxu0 0
    %4805 = vmatprep.subr.bf16.mxu0 0
    %4806 = vmatpush1.bf16.msra.mxu0 0
    %4807 = vmatprep.mubr.bf16.mxu0 0
    %4808 = vmatmul.mubr.bf16.gmra.mrb[0].mxu0 %v4773
    %v4809 = vpop.f32.mrb[0].mxu0
    %v4810 = vadd.f32 0.0, %v4809
    %v4811 = vpop.f32.mrb[0].mxu0
    %v4812 = vadd.f32 0.0, %v4811
    %v4813 = vpop.f32.mrb[0].mxu0
    %v4814 = vpop.f32.mrb[0].mxu0
    %4815 = vdwg.mxu0
    %v4816 = vpack.c.bf16 %v4810, %v4810
    %v4817 = vpack.c.bf16 %v4812, %v4812
    %s4818 = scalar_lea.vmem [#allocation33], 256
    %v4819 = vld [vmem:[%s4818] sm:$0xf]
    %v4820 = vld [vmem:[%s4818 + $0x4] sm:$0xf]
    %v4821 = vld [vmem:[%s4818 + $0x8] sm:$0xf]
    %v4822 = vld [vmem:[%s4818 + $0xc] sm:$0xf]
    %v4823 = vld [vmem:[%s4818 + $0x10] sm:$0xf]
    %v4824 = vld [vmem:[%s4818 + $0x14] sm:$0xf]
    %v4825 = vld [vmem:[%s4818 + $0x18] sm:$0xf]
    %v4826 = vld [vmem:[%s4818 + $0x1c] sm:$0xf]
    %v4827 = vld [vmem:[%s4818 + $0x20] sm:$0xf]
    %v4828 = vld [vmem:[%s4818 + $0x24] sm:$0xf]
    %v4829 = vld [vmem:[%s4818 + $0x28] sm:$0xf]
    %v4830 = vld [vmem:[%s4818 + $0x2c] sm:$0xf]
    %v4831 = vld [vmem:[%s4818 + $0x30] sm:$0xf]
    %v4832 = vld [vmem:[%s4818 + $0x34] sm:$0xf]
    %v4833 = vld [vmem:[%s4818 + $0x38] sm:$0xf]
    %v4834 = vld [vmem:[%s4818 + $0x3c] sm:$0xf]
    %v4835 = vld [vmem:[%s4818 + $0x40] sm:$0xf]
    %v4836 = vld [vmem:[%s4818 + $0x44] sm:$0xf]
    %v4837 = vld [vmem:[%s4818 + $0x48] sm:$0xf]
    %v4838 = vld [vmem:[%s4818 + $0x4c] sm:$0xf]
    %v4839 = vld [vmem:[%s4818 + $0x50] sm:$0xf]
    %v4840 = vld [vmem:[%s4818 + $0x54] sm:$0xf]
    %v4841 = vld [vmem:[%s4818 + $0x58] sm:$0xf]
    %v4842 = vld [vmem:[%s4818 + $0x5c] sm:$0xf]
    %v4843 = vld [vmem:[%s4818 + $0x60] sm:$0xf]
    %v4844 = vld [vmem:[%s4818 + $0x64] sm:$0xf]
    %v4845 = vld [vmem:[%s4818 + $0x68] sm:$0xf]
    %v4846 = vld [vmem:[%s4818 + $0x6c] sm:$0xf]
    %v4847 = vld [vmem:[%s4818 + $0x70] sm:$0xf]
    %v4848 = vld [vmem:[%s4818 + $0x74] sm:$0xf]
    %v4849 = vld [vmem:[%s4818 + $0x78] sm:$0xf]
    %v4850 = vld [vmem:[%s4818 + $0x7c] sm:$0xf]
    %v4883 = vunpack.c.l.b16 %v4819
    %v4884 = vunpack.c.l.b16 %v4820
    %v4885 = vunpack.c.l.b16 %v4821
    %v4886 = vunpack.c.l.b16 %v4822
    %v4887 = vunpack.c.l.b16 %v4823
    %v4888 = vunpack.c.l.b16 %v4824
    %v4889 = vunpack.c.l.b16 %v4825
    %v4890 = vunpack.c.l.b16 %v4826
    %v4891 = vunpack.c.l.b16 %v4827
    %v4892 = vunpack.c.l.b16 %v4828
    %v4893 = vunpack.c.l.b16 %v4829
    %v4894 = vunpack.c.l.b16 %v4830
    %v4895 = vunpack.c.l.b16 %v4831
    %v4896 = vunpack.c.l.b16 %v4832
    %v4897 = vunpack.c.l.b16 %v4833
    %v4898 = vunpack.c.l.b16 %v4834
    %v4899 = vunpack.c.l.b16 %v4835
    %v4900 = vunpack.c.l.b16 %v4836
    %v4901 = vunpack.c.l.b16 %v4837
    %v4902 = vunpack.c.l.b16 %v4838
    %v4903 = vunpack.c.l.b16 %v4839
    %v4904 = vunpack.c.l.b16 %v4840
    %v4905 = vunpack.c.l.b16 %v4841
    %v4906 = vunpack.c.l.b16 %v4842
    %v4907 = vunpack.c.l.b16 %v4843
    %v4908 = vunpack.c.l.b16 %v4844
    %v4909 = vunpack.c.l.b16 %v4845
    %v4910 = vunpack.c.l.b16 %v4846
    %v4911 = vunpack.c.l.b16 %v4847
    %v4912 = vunpack.c.l.b16 %v4848
    %v4913 = vunpack.c.l.b16 %v4849
    %v4914 = vunpack.c.l.b16 %v4850
    %v4915 = vpack.c.b16 %v4884, %v4883
    %v4916 = vpack.c.b16 %v4886, %v4885
    %v4917 = vpack.c.b16 %v4888, %v4887
    %v4918 = vpack.c.b16 %v4890, %v4889
    %v4919 = vpack.c.b16 %v4892, %v4891
    %v4920 = vpack.c.b16 %v4894, %v4893
    %v4921 = vpack.c.b16 %v4896, %v4895
    %v4922 = vpack.c.b16 %v4898, %v4897
    %v4923 = vpack.c.b16 %v4900, %v4899
    %v4924 = vpack.c.b16 %v4902, %v4901
    %v4925 = vpack.c.b16 %v4904, %v4903
    %v4926 = vpack.c.b16 %v4906, %v4905
    %v4927 = vpack.c.b16 %v4908, %v4907
    %v4928 = vpack.c.b16 %v4910, %v4909
    %v4929 = vpack.c.b16 %v4912, %v4911
    %v4930 = vpack.c.b16 %v4914, %v4913
    %4947 = vmatprep.subr.bf16.mxu0 0
    %4948 = vmatpush1.bf16.msra.mxu0 %v4915
    %4949 = vmatprep.subr.bf16.mxu0 0
    %4950 = vmatpush1.bf16.msra.mxu0 %v4916
    %4951 = vmatprep.subr.bf16.mxu0 0
    %4952 = vmatpush1.bf16.msra.mxu0 %v4917
    %4953 = vmatprep.subr.bf16.mxu0 0
    %4954 = vmatpush1.bf16.msra.mxu0 %v4918
    %4955 = vmatprep.subr.bf16.mxu0 0
    %4956 = vmatpush1.bf16.msra.mxu0 %v4919
    %4957 = vmatprep.subr.bf16.mxu0 0
    %4958 = vmatpush1.bf16.msra.mxu0 %v4920
    %4959 = vmatprep.subr.bf16.mxu0 0
    %4960 = vmatpush1.bf16.msra.mxu0 %v4921
    %4961 = vmatprep.subr.bf16.mxu0 0
    %4962 = vmatpush1.bf16.msra.mxu0 %v4922
    %4963 = vmatprep.subr.bf16.mxu0 0
    %4964 = vmatpush1.bf16.msra.mxu0 %v4923
    %4965 = vmatprep.subr.bf16.mxu0 0
    %4966 = vmatpush1.bf16.msra.mxu0 %v4924
    %4967 = vmatprep.subr.bf16.mxu0 0
    %4968 = vmatpush1.bf16.msra.mxu0 %v4925
    %4969 = vmatprep.subr.bf16.mxu0 0
    %4970 = vmatpush1.bf16.msra.mxu0 %v4926
    %4971 = vmatprep.subr.bf16.mxu0 0
    %4972 = vmatpush1.bf16.msra.mxu0 %v4927
    %4973 = vmatprep.subr.bf16.mxu0 0
    %4974 = vmatpush1.bf16.msra.mxu0 %v4928
    %4975 = vmatprep.subr.bf16.mxu0 0
    %4976 = vmatpush1.bf16.msra.mxu0 %v4929
    %4977 = vmatprep.subr.bf16.mxu0 0
    %4978 = vmatpush1.bf16.msra.mxu0 %v4930
    %4979 = vmatprep.mubr.bf16.mxu0 %v4817
    %4980 = vmatmul.mubr.bf16.gmra.mrb[0].mxu0 %v4816
    %v4981 = vpop.f32.mrb[0].mxu0
    %v4982 = vadd.f32 0.0, %v4981
    %v4983 = vpop.f32.mrb[0].mxu0
    %v4984 = vpop.f32.mrb[0].mxu0
    %v4985 = vpop.f32.mrb[0].mxu0
    %4986 = vdwg.mxu0
    %v4987 = vadd.f32 %v4765, %v4982
    %v4988 = vsel %vm3471, %v4987, 0.0
    %v4989 = vrot.slane %v4988, 4
    %v4990 = vadd.f32 %v4988, %v4989
    %v4991 = vrot.slane %v4990, 2
    %v4992 = vadd.f32 %v4990, %v4991
    %v4993 = vrot.slane %v4992, 1
    %v4994 = vadd.f32 %v4992, %v4993
    %v4995 = vld [vmem:[#allocation34] sm:$0xff]
    %v4996 = vld [vmem:[#allocation34 + $0x8] sm:$0xff]
    %v4997 = vld [vmem:[#allocation34 + $0x10] sm:$0xff]
    %v4998 = vld [vmem:[#allocation34 + $0x18] sm:$0xff]
    %v4999 = vld [vmem:[#allocation34 + $0x20] sm:$0xff]
    %v5000 = vld [vmem:[#allocation34 + $0x28] sm:$0xff]
    %v5001 = vld [vmem:[#allocation34 + $0x30] sm:$0xff]
    %v5002 = vld [vmem:[#allocation34 + $0x38] sm:$0xff]
    %v5003 = vld [vmem:[#allocation34 + $0x40] sm:$0xff]
    %v5004 = vld [vmem:[#allocation34 + $0x48] sm:$0xff]
    %v5005 = vld [vmem:[#allocation34 + $0x50] sm:$0xff]
    %v5006 = vld [vmem:[#allocation34 + $0x58] sm:$0xff]
    %v5007 = vld [vmem:[#allocation34 + $0x60] sm:$0xff]
    %v5008 = vld [vmem:[#allocation34 + $0x68] sm:$0xff]
    %v5009 = vld [vmem:[#allocation34 + $0x70] sm:$0xff]
    %v5010 = vld [vmem:[#allocation34 + $0x78] sm:$0xff]
    %5011 = vmatprep.subr.mxu0 0.0
    %5012 = vmatpush1.msra.mxu0 %v4995
    %5013 = vmatprep.subr.mxu0 0.0
    %5014 = vmatpush1.msra.mxu0 %v4996
    %5015 = vmatprep.subr.mxu0 0.0
    %5016 = vmatpush1.msra.mxu0 %v4997
    %5017 = vmatprep.subr.mxu0 0.0
    %5018 = vmatpush1.msra.mxu0 %v4998
    %5019 = vmatprep.subr.mxu0 0.0
    %5020 = vmatpush1.msra.mxu0 %v4999
    %5021 = vmatprep.subr.mxu0 0.0
    %5022 = vmatpush1.msra.mxu0 %v5000
    %5023 = vmatprep.subr.mxu0 0.0
    %5024 = vmatpush1.msra.mxu0 %v5001
    %5025 = vmatprep.subr.mxu0 0.0
    %5026 = vmatpush1.msra.mxu0 %v5002
    %5027 = vmatprep.subr.mxu0 0.0
    %5028 = vmatpush1.msra.mxu0 %v5003
    %5029 = vmatprep.subr.mxu0 0.0
    %5030 = vmatpush1.msra.mxu0 %v5004
    %5031 = vmatprep.subr.mxu0 0.0
    %5032 = vmatpush1.msra.mxu0 %v5005
    %5033 = vmatprep.subr.mxu0 0.0
    %5034 = vmatpush1.msra.mxu0 %v5006
    %5035 = vmatprep.subr.mxu0 0.0
    %5036 = vmatpush1.msra.mxu0 %v5007
    %5037 = vmatprep.subr.mxu0 0.0
    %5038 = vmatpush1.msra.mxu0 %v5008
    %5039 = vmatprep.subr.mxu0 0.0
    %5040 = vmatpush1.msra.mxu0 %v5009
    %5041 = vmatprep.subr.mxu0 0.0
    %5042 = vmatpush1.msra.mxu0 %v5010
    %5043 = vmatprep.subr.mxu0 0.0
    %5044 = vmatpush1.msra.mxu0 0.0
    %5045 = vmatprep.subr.mxu0 0.0
    %5046 = vmatpush1.msra.mxu0 0.0
    %5047 = vmatprep.subr.mxu0 0.0
    %5048 = vmatpush1.msra.mxu0 0.0
    %5049 = vmatprep.subr.mxu0 0.0
    %5050 = vmatpush1.msra.mxu0 0.0
    %5051 = vmatprep.subr.mxu0 0.0
    %5052 = vmatpush1.msra.mxu0 0.0
    %5053 = vmatprep.subr.mxu0 0.0
    %5054 = vmatpush1.msra.mxu0 0.0
    %5055 = vmatprep.subr.mxu0 0.0
    %5056 = vmatpush1.msra.mxu0 0.0
    %5057 = vmatprep.subr.mxu0 0.0
    %5058 = vmatpush1.msra.mxu0 0.0
    %5059 = vmatprep.subr.mxu0 0.0
    %5060 = vmatpush1.msra.mxu0 0.0
    %5061 = vmatprep.subr.mxu0 0.0
    %5062 = vmatpush1.msra.mxu0 0.0
    %5063 = vmatprep.subr.mxu0 0.0
    %5064 = vmatpush1.msra.mxu0 0.0
    %5065 = vmatprep.subr.mxu0 0.0
    %5066 = vmatpush1.msra.mxu0 0.0
    %5067 = vmatprep.subr.mxu0 0.0
    %5068 = vmatpush1.msra.mxu0 0.0
    %5069 = vmatprep.subr.mxu0 0.0
    %5070 = vmatpush1.msra.mxu0 0.0
    %5071 = vmatprep.subr.mxu0 0.0
    %5072 = vmatpush1.msra.mxu0 0.0
    %5073 = vmatprep.subr.mxu0 0.0
    %5074 = vmatpush1.msra.mxu0 0.0
    %5075 = vmatprep.mubr.f32.mxu0 0.0
    %5076 = vmatmul.mubr.f32.gmra.mrb[0].mxu0 %v4994
    %v5077 = vpop.f32.mrb[0].mxu0
    %v5078 = vadd.f32 0.0, %v5077
    %v5079 = vpop.f32.mrb[0].mxu0
    %5080 = vdwg.mxu0
    %v5081 = vmul.f32 %v5078, 0.125
    %v5082 = vlaneseq
    %v5083 = vshrl.u32 %v5082, 7
    %v5084 = vsub.s32 0, %v5083
    %v5085 = vrot.slane %v5081, %v5084
    %v5086 = vsub.f32 %v4987, %v5085
    %v5087 = vmul.f32 %v5086, %v5086
    %v5088 = vsel %vm3471, %v5087, 0.0
    %v5089 = vrot.slane %v5088, 4
    %v5090 = vadd.f32 %v5088, %v5089
    %v5091 = vrot.slane %v5090, 2
    %v5092 = vadd.f32 %v5090, %v5091
    %v5093 = vrot.slane %v5092, 1
    %v5094 = vadd.f32 %v5092, %v5093
    %5095 = vmatprep.subr.mxu0 0.0
    %5096 = vmatpush1.msra.mxu0 %v4995
    %5097 = vmatprep.subr.mxu0 0.0
    %5098 = vmatpush1.msra.mxu0 %v4996
    %5099 = vmatprep.subr.mxu0 0.0
    %5100 = vmatpush1.msra.mxu0 %v4997
    %5101 = vmatprep.subr.mxu0 0.0
    %5102 = vmatpush1.msra.mxu0 %v4998
    %5103 = vmatprep.subr.mxu0 0.0
    %5104 = vmatpush1.msra.mxu0 %v4999
    %5105 = vmatprep.subr.mxu0 0.0
    %5106 = vmatpush1.msra.mxu0 %v5000
    %5107 = vmatprep.subr.mxu0 0.0
    %5108 = vmatpush1.msra.mxu0 %v5001
    %5109 = vmatprep.subr.mxu0 0.0
    %5110 = vmatpush1.msra.mxu0 %v5002
    %5111 = vmatprep.subr.mxu0 0.0
    %5112 = vmatpush1.msra.mxu0 %v5003
    %5113 = vmatprep.subr.mxu0 0.0
    %5114 = vmatpush1.msra.mxu0 %v5004
    %5115 = vmatprep.subr.mxu0 0.0
    %5116 = vmatpush1.msra.mxu0 %v5005
    %5117 = vmatprep.subr.mxu0 0.0
    %5118 = vmatpush1.msra.mxu0 %v5006
    %5119 = vmatprep.subr.mxu0 0.0
    %5120 = vmatpush1.msra.mxu0 %v5007
    %5121 = vmatprep.subr.mxu0 0.0
    %5122 = vmatpush1.msra.mxu0 %v5008
    %5123 = vmatprep.subr.mxu0 0.0
    %5124 = vmatpush1.msra.mxu0 %v5009
    %5125 = vmatprep.subr.mxu0 0.0
    %5126 = vmatpush1.msra.mxu0 %v5010
    %5127 = vmatprep.subr.mxu0 0.0
    %5128 = vmatpush1.msra.mxu0 0.0
    %5129 = vmatprep.subr.mxu0 0.0
    %5130 = vmatpush1.msra.mxu0 0.0
    %5131 = vmatprep.subr.mxu0 0.0
    %5132 = vmatpush1.msra.mxu0 0.0
    %5133 = vmatprep.subr.mxu0 0.0
    %5134 = vmatpush1.msra.mxu0 0.0
    %5135 = vmatprep.subr.mxu0 0.0
    %5136 = vmatpush1.msra.mxu0 0.0
    %5137 = vmatprep.subr.mxu0 0.0
    %5138 = vmatpush1.msra.mxu0 0.0
    %5139 = vmatprep.subr.mxu0 0.0
    %5140 = vmatpush1.msra.mxu0 0.0
    %5141 = vmatprep.subr.mxu0 0.0
    %5142 = vmatpush1.msra.mxu0 0.0
    %5143 = vmatprep.subr.mxu0 0.0
    %5144 = vmatpush1.msra.mxu0 0.0
    %5145 = vmatprep.subr.mxu0 0.0
    %5146 = vmatpush1.msra.mxu0 0.0
    %5147 = vmatprep.subr.mxu0 0.0
    %5148 = vmatpush1.msra.mxu0 0.0
    %5149 = vmatprep.subr.mxu0 0.0
    %5150 = vmatpush1.msra.mxu0 0.0
    %5151 = vmatprep.subr.mxu0 0.0
    %5152 = vmatpush1.msra.mxu0 0.0
    %5153 = vmatprep.subr.mxu0 0.0
    %5154 = vmatpush1.msra.mxu0 0.0
    %5155 = vmatprep.subr.mxu0 0.0
    %5156 = vmatpush1.msra.mxu0 0.0
    %5157 = vmatprep.subr.mxu0 0.0
    %5158 = vmatpush1.msra.mxu0 0.0
    %5159 = vmatprep.mubr.f32.mxu0 0.0
    %5160 = vmatmul.mubr.f32.gmra.mrb[0].mxu0 %v5094
    %v5161 = vpop.f32.mrb[0].mxu0
    %v5162 = vadd.f32 0.0, %v5161
    %v5163 = vpop.f32.mrb[0].mxu0
    %5164 = vdwg.mxu0
    %v5165 = vmul.f32 %v5162, 0.125
    %v5166 = vld [vmem:[#allocation36] sm:$0x1]
    %v5167 = vadd.f32 %v5165, 1e-05
    %v5168 = vrsqrt.pop %v5167
    %v5169 = vmul.f32 %v5166, %v5168
    %v5171 = vlaneseq
    %v5172 = vshrl.u32 %v5171, 7
    %v5173 = vsub.s32 0, %v5172
    %v5174 = vrot.slane %v5169, %v5173
    %v5176 = vmul.f32 %v5086, %v5174
    %v5177 = vld [vmem:[#allocation37] sm:$0x1]
    %v5179 = vlaneseq
    %v5180 = vshrl.u32 %v5179, 7
    %v5181 = vsub.s32 0, %v5180
    %v5182 = vrot.slane %v5177, %v5181
    %v5184 = vadd.f32 %v5176, %v5182
    %vm5185 = vcmp.ge.f32.partialorder %v5184, 0.0
    %v5186 = vmul.f32 %v5184, 0.2
    %v5187 = vsel %vm5185, %v5184, %v5186
    %v5188 = vpack.c.bf16 %v5187, %v5187
    %v5189 = vld [vmem:[%s55] sm:$0x1]
    %vm5190 = vcmask 15360
    %v5192 = vsel %vm5190, %v5189, 0
    %vm5194 = vcmask 1040384
    %v5196 = vsel %vm5194, %v5188, 0
    %5198 = vmatprep.subr.bf16.mxu0 0
    %5199 = vmatpush1.bf16.msra.mxu0 %v5196
    %5200 = vmatprep.subr.bf16.mxu0 0
    %5201 = vmatpush1.bf16.msra.mxu0 0
    %5202 = vmatprep.subr.bf16.mxu0 0
    %5203 = vmatpush1.bf16.msra.mxu0 0
    %5204 = vmatprep.subr.bf16.mxu0 0
    %5205 = vmatpush1.bf16.msra.mxu0 0
    %5206 = vmatprep.subr.bf16.mxu0 0
    %5207 = vmatpush1.bf16.msra.mxu0 0
    %5208 = vmatprep.subr.bf16.mxu0 0
    %5209 = vmatpush1.bf16.msra.mxu0 0
    %5210 = vmatprep.subr.bf16.mxu0 0
    %5211 = vmatpush1.bf16.msra.mxu0 0
    %5212 = vmatprep.subr.bf16.mxu0 0
    %5213 = vmatpush1.bf16.msra.mxu0 0
    %5214 = vmatprep.subr.bf16.mxu0 0
    %5215 = vmatpush1.bf16.msra.mxu0 0
    %5216 = vmatprep.subr.bf16.mxu0 0
    %5217 = vmatpush1.bf16.msra.mxu0 0
    %5218 = vmatprep.subr.bf16.mxu0 0
    %5219 = vmatpush1.bf16.msra.mxu0 0
    %5220 = vmatprep.subr.bf16.mxu0 0
    %5221 = vmatpush1.bf16.msra.mxu0 0
    %5222 = vmatprep.subr.bf16.mxu0 0
    %5223 = vmatpush1.bf16.msra.mxu0 0
    %5224 = vmatprep.subr.bf16.mxu0 0
    %5225 = vmatpush1.bf16.msra.mxu0 0
    %5226 = vmatprep.subr.bf16.mxu0 0
    %5227 = vmatpush1.bf16.msra.mxu0 0
    %5228 = vmatprep.subr.bf16.mxu0 0
    %5229 = vmatpush1.bf16.msra.mxu0 0
    %5230 = vmatprep.mubr.bf16.mxu0 0
    %5231 = vmatmul.mubr.bf16.gmra.mrb[0].mxu0 %v5192
    %v5232 = vpop.f32.mrb[0].mxu0
    %v5233 = vadd.f32 0.0, %v5232
    %v5234 = vpop.f32.mrb[0].mxu0
    %v5235 = vpop.f32.mrb[0].mxu0
    %v5236 = vpop.f32.mrb[0].mxu0
    %5237 = vdwg.mxu0
    %v5238 = vpack.c.bf16 %v5233, %v5233
    %v5239 = vld [vmem:[%s57] sm:$0xff]
    %v5240 = vld [vmem:[%s57 + $0x8] sm:$0xff]
    %v5241 = vld [vmem:[%s57 + $0x10] sm:$0xff]
    %v5242 = vld [vmem:[%s57 + $0x18] sm:$0xff]
    %v5243 = vld [vmem:[%s57 + $0x20] sm:$0xff]
    %v5244 = vld [vmem:[%s57 + $0x28] sm:$0xff]
    %v5245 = vld [vmem:[%s57 + $0x30] sm:$0xff]
    %v5246 = vld [vmem:[%s57 + $0x38] sm:$0xff]
    %v5247 = vld [vmem:[%s57 + $0x40] sm:$0xff]
    %v5248 = vld [vmem:[%s57 + $0x48] sm:$0xff]
    %v5249 = vld [vmem:[%s57 + $0x50] sm:$0xff]
    %v5250 = vld [vmem:[%s57 + $0x58] sm:$0xff]
    %v5251 = vld [vmem:[%s57 + $0x60] sm:$0xff]
    %v5252 = vld [vmem:[%s57 + $0x68] sm:$0xff]
    %v5253 = vld [vmem:[%s57 + $0x70] sm:$0xff]
    %v5254 = vld [vmem:[%s57 + $0x78] sm:$0xff]
    %s5255 = scalar_lea.vmem %s55, 1
    %v5256 = vld [vmem:[%s5255] sm:$0x1]
    %v5258 = vsel %vm5190, %v5256, 0
    %5260 = vmatprep.subr.bf16.mxu0 0
    %5261 = vmatpush1.bf16.msra.mxu0 %v5196
    %5262 = vmatprep.subr.bf16.mxu0 0
    %5263 = vmatpush1.bf16.msra.mxu0 0
    %5264 = vmatprep.subr.bf16.mxu0 0
    %5265 = vmatpush1.bf16.msra.mxu0 0
    %5266 = vmatprep.subr.bf16.mxu0 0
    %5267 = vmatpush1.bf16.msra.mxu0 0
    %5268 = vmatprep.subr.bf16.mxu0 0
    %5269 = vmatpush1.bf16.msra.mxu0 0
    %5270 = vmatprep.subr.bf16.mxu0 0
    %5271 = vmatpush1.bf16.msra.mxu0 0
    %5272 = vmatprep.subr.bf16.mxu0 0
    %5273 = vmatpush1.bf16.msra.mxu0 0
    %5274 = vmatprep.subr.bf16.mxu0 0
    %5275 = vmatpush1.bf16.msra.mxu0 0
    %5276 = vmatprep.subr.bf16.mxu0 0
    %5277 = vmatpush1.bf16.msra.mxu0 0
    %5278 = vmatprep.subr.bf16.mxu0 0
    %5279 = vmatpush1.bf16.msra.mxu0 0
    %5280 = vmatprep.subr.bf16.mxu0 0
    %5281 = vmatpush1.bf16.msra.mxu0 0
    %5282 = vmatprep.subr.bf16.mxu0 0
    %5283 = vmatpush1.bf16.msra.mxu0 0
    %5284 = vmatprep.subr.bf16.mxu0 0
    %5285 = vmatpush1.bf16.msra.mxu0 0
    %5286 = vmatprep.subr.bf16.mxu0 0
    %5287 = vmatpush1.bf16.msra.mxu0 0
    %5288 = vmatprep.subr.bf16.mxu0 0
    %5289 = vmatpush1.bf16.msra.mxu0 0
    %5290 = vmatprep.subr.bf16.mxu0 0
    %5291 = vmatpush1.bf16.msra.mxu0 0
    %5292 = vmatprep.mubr.bf16.mxu0 0
    %5293 = vmatmul.mubr.bf16.gmra.mrb[0].mxu0 %v5258
    %v5294 = vpop.f32.mrb[0].mxu0
    %v5295 = vadd.f32 0.0, %v5294
    %v5296 = vpop.f32.mrb[0].mxu0
    %v5297 = vpop.f32.mrb[0].mxu0
    %v5298 = vpop.f32.mrb[0].mxu0
    %5299 = vdwg.mxu0
    %v5300 = vpack.c.bf16 %v5295, %v5295
    %s5301 = scalar_lea.vmem %s57, 128
    %v5302 = vld [vmem:[%s5301] sm:$0xff]
    %v5303 = vld [vmem:[%s5301 + $0x8] sm:$0xff]
    %v5304 = vld [vmem:[%s5301 + $0x10] sm:$0xff]
    %v5305 = vld [vmem:[%s5301 + $0x18] sm:$0xff]
    %v5306 = vld [vmem:[%s5301 + $0x20] sm:$0xff]
    %v5307 = vld [vmem:[%s5301 + $0x28] sm:$0xff]
    %v5308 = vld [vmem:[%s5301 + $0x30] sm:$0xff]
    %v5309 = vld [vmem:[%s5301 + $0x38] sm:$0xff]
    %v5310 = vld [vmem:[%s5301 + $0x40] sm:$0xff]
    %v5311 = vld [vmem:[%s5301 + $0x48] sm:$0xff]
    %v5312 = vld [vmem:[%s5301 + $0x50] sm:$0xff]
    %v5313 = vld [vmem:[%s5301 + $0x58] sm:$0xff]
    %v5314 = vld [vmem:[%s5301 + $0x60] sm:$0xff]
    %v5315 = vld [vmem:[%s5301 + $0x68] sm:$0xff]
    %v5316 = vld [vmem:[%s5301 + $0x70] sm:$0xff]
    %v5317 = vld [vmem:[%s5301 + $0x78] sm:$0xff]
    %v5334 = vunpack.c.l.b16 %v5302
    %v5335 = vunpack.c.h.b16 %v5302
    %v5336 = vunpack.c.l.b16 %v5303
    %v5337 = vunpack.c.h.b16 %v5303
    %v5338 = vunpack.c.l.b16 %v5304
    %v5339 = vunpack.c.h.b16 %v5304
    %v5340 = vunpack.c.l.b16 %v5305
    %v5341 = vunpack.c.h.b16 %v5305
    %v5342 = vunpack.c.l.b16 %v5306
    %v5343 = vunpack.c.h.b16 %v5306
    %v5344 = vunpack.c.l.b16 %v5307
    %v5345 = vunpack.c.h.b16 %v5307
    %v5346 = vunpack.c.l.b16 %v5308
    %v5347 = vunpack.c.h.b16 %v5308
    %v5348 = vunpack.c.l.b16 %v5309
    %v5349 = vunpack.c.h.b16 %v5309
    %v5350 = vunpack.c.l.b16 %v5310
    %v5351 = vunpack.c.h.b16 %v5310
    %v5352 = vunpack.c.l.b16 %v5311
    %v5353 = vunpack.c.h.b16 %v5311
    %v5354 = vunpack.c.l.b16 %v5312
    %v5355 = vunpack.c.h.b16 %v5312
    %v5356 = vunpack.c.l.b16 %v5313
    %v5357 = vunpack.c.h.b16 %v5313
    %v5358 = vunpack.c.l.b16 %v5314
    %v5359 = vunpack.c.h.b16 %v5314
    %v5360 = vunpack.c.l.b16 %v5315
    %v5361 = vunpack.c.h.b16 %v5315
    %v5362 = vunpack.c.l.b16 %v5316
    %v5363 = vunpack.c.h.b16 %v5316
    %v5364 = vunpack.c.l.b16 %v5317
    %v5365 = vunpack.c.h.b16 %v5317
    %v5366 = vpack.c.b16 %v5336, %v5334
    %v5367 = vpack.c.b16 %v5337, %v5335
    %v5368 = vpack.c.b16 %v5340, %v5338
    %v5369 = vpack.c.b16 %v5341, %v5339
    %v5370 = vpack.c.b16 %v5344, %v5342
    %v5371 = vpack.c.b16 %v5345, %v5343
    %v5372 = vpack.c.b16 %v5348, %v5346
    %v5373 = vpack.c.b16 %v5349, %v5347
    %v5374 = vpack.c.b16 %v5352, %v5350
    %v5375 = vpack.c.b16 %v5353, %v5351
    %v5376 = vpack.c.b16 %v5356, %v5354
    %v5377 = vpack.c.b16 %v5357, %v5355
    %v5378 = vpack.c.b16 %v5360, %v5358
    %v5379 = vpack.c.b16 %v5361, %v5359
    %v5380 = vpack.c.b16 %v5364, %v5362
    %v5381 = vpack.c.b16 %v5365, %v5363
    %5398 = vmatprep.subr.bf16.mxu0 %v5367
    %5399 = vmatpush1.bf16.msra.mxu0 %v5366
    %5400 = vmatprep.subr.bf16.mxu0 %v5369
    %5401 = vmatpush1.bf16.msra.mxu0 %v5368
    %5402 = vmatprep.subr.bf16.mxu0 %v5371
    %5403 = vmatpush1.bf16.msra.mxu0 %v5370
    %5404 = vmatprep.subr.bf16.mxu0 %v5373
    %5405 = vmatpush1.bf16.msra.mxu0 %v5372
    %5406 = vmatprep.subr.bf16.mxu0 %v5375
    %5407 = vmatpush1.bf16.msra.mxu0 %v5374
    %5408 = vmatprep.subr.bf16.mxu0 %v5377
    %5409 = vmatpush1.bf16.msra.mxu0 %v5376
    %5410 = vmatprep.subr.bf16.mxu0 %v5379
    %5411 = vmatpush1.bf16.msra.mxu0 %v5378
    %5412 = vmatprep.subr.bf16.mxu0 %v5381
    %5413 = vmatpush1.bf16.msra.mxu0 %v5380
    %5414 = vmatprep.subr.bf16.mxu0 0
    %5415 = vmatpush1.bf16.msra.mxu0 0
    %5416 = vmatprep.subr.bf16.mxu0 0
    %5417 = vmatpush1.bf16.msra.mxu0 0
    %5418 = vmatprep.subr.bf16.mxu0 0
    %5419 = vmatpush1.bf16.msra.mxu0 0
    %5420 = vmatprep.subr.bf16.mxu0 0
    %5421 = vmatpush1.bf16.msra.mxu0 0
    %5422 = vmatprep.subr.bf16.mxu0 0
    %5423 = vmatpush1.bf16.msra.mxu0 0
    %5424 = vmatprep.subr.bf16.mxu0 0
    %5425 = vmatpush1.bf16.msra.mxu0 0
    %5426 = vmatprep.subr.bf16.mxu0 0
    %5427 = vmatpush1.bf16.msra.mxu0 0
    %5428 = vmatprep.subr.bf16.mxu0 0
    %5429 = vmatpush1.bf16.msra.mxu0 0
    %5430 = vmatprep.mubr.bf16.mxu0 0
    %5431 = vmatmul.mubr.bf16.gmra.mrb[0].mxu0 %v5300
    %v5432 = vpop.f32.mrb[0].mxu0
    %v5433 = vadd.f32 0.0, %v5432
    %v5434 = vpop.f32.mrb[0].mxu0
    %v5435 = vadd.f32 0.0, %v5434
    %v5436 = vpop.f32.mrb[0].mxu0
    %v5437 = vpop.f32.mrb[0].mxu0
    %5438 = vdwg.mxu0
    %v5455 = vunpack.c.l.b16 %v5239
    %v5456 = vunpack.c.h.b16 %v5239
    %v5457 = vunpack.c.l.b16 %v5240
    %v5458 = vunpack.c.h.b16 %v5240
    %v5459 = vunpack.c.l.b16 %v5241
    %v5460 = vunpack.c.h.b16 %v5241
    %v5461 = vunpack.c.l.b16 %v5242
    %v5462 = vunpack.c.h.b16 %v5242
    %v5463 = vunpack.c.l.b16 %v5243
    %v5464 = vunpack.c.h.b16 %v5243
    %v5465 = vunpack.c.l.b16 %v5244
    %v5466 = vunpack.c.h.b16 %v5244
    %v5467 = vunpack.c.l.b16 %v5245
    %v5468 = vunpack.c.h.b16 %v5245
    %v5469 = vunpack.c.l.b16 %v5246
    %v5470 = vunpack.c.h.b16 %v5246
    %v5471 = vunpack.c.l.b16 %v5247
    %v5472 = vunpack.c.h.b16 %v5247
    %v5473 = vunpack.c.l.b16 %v5248
    %v5474 = vunpack.c.h.b16 %v5248
    %v5475 = vunpack.c.l.b16 %v5249
    %v5476 = vunpack.c.h.b16 %v5249
    %v5477 = vunpack.c.l.b16 %v5250
    %v5478 = vunpack.c.h.b16 %v5250
    %v5479 = vunpack.c.l.b16 %v5251
    %v5480 = vunpack.c.h.b16 %v5251
    %v5481 = vunpack.c.l.b16 %v5252
    %v5482 = vunpack.c.h.b16 %v5252
    %v5483 = vunpack.c.l.b16 %v5253
    %v5484 = vunpack.c.h.b16 %v5253
    %v5485 = vunpack.c.l.b16 %v5254
    %v5486 = vunpack.c.h.b16 %v5254
    %v5487 = vpack.c.b16 %v5457, %v5455
    %v5488 = vpack.c.b16 %v5458, %v5456
    %v5489 = vpack.c.b16 %v5461, %v5459
    %v5490 = vpack.c.b16 %v5462, %v5460
    %v5491 = vpack.c.b16 %v5465, %v5463
    %v5492 = vpack.c.b16 %v5466, %v5464
    %v5493 = vpack.c.b16 %v5469, %v5467
    %v5494 = vpack.c.b16 %v5470, %v5468
    %v5495 = vpack.c.b16 %v5473, %v5471
    %v5496 = vpack.c.b16 %v5474, %v5472
    %v5497 = vpack.c.b16 %v5477, %v5475
    %v5498 = vpack.c.b16 %v5478, %v5476
    %v5499 = vpack.c.b16 %v5481, %v5479
    %v5500 = vpack.c.b16 %v5482, %v5480
    %v5501 = vpack.c.b16 %v5485, %v5483
    %v5502 = vpack.c.b16 %v5486, %v5484
    %5519 = vmatprep.subr.bf16.mxu0 %v5488
    %5520 = vmatpush1.bf16.msra.mxu0 %v5487
    %5521 = vmatprep.subr.bf16.mxu0 %v5490
    %5522 = vmatpush1.bf16.msra.mxu0 %v5489
    %5523 = vmatprep.subr.bf16.mxu0 %v5492
    %5524 = vmatpush1.bf16.msra.mxu0 %v5491
    %5525 = vmatprep.subr.bf16.mxu0 %v5494
    %5526 = vmatpush1.bf16.msra.mxu0 %v5493
    %5527 = vmatprep.subr.bf16.mxu0 %v5496
    %5528 = vmatpush1.bf16.msra.mxu0 %v5495
    %5529 = vmatprep.subr.bf16.mxu0 %v5498
    %5530 = vmatpush1.bf16.msra.mxu0 %v5497
    %5531 = vmatprep.subr.bf16.mxu0 %v5500
    %5532 = vmatpush1.bf16.msra.mxu0 %v5499
    %5533 = vmatprep.subr.bf16.mxu0 %v5502
    %5534 = vmatpush1.bf16.msra.mxu0 %v5501
    %5535 = vmatprep.subr.bf16.mxu0 0
    %5536 = vmatpush1.bf16.msra.mxu0 0
    %5537 = vmatprep.subr.bf16.mxu0 0
    %5538 = vmatpush1.bf16.msra.mxu0 0
    %5539 = vmatprep.subr.bf16.mxu0 0
    %5540 = vmatpush1.bf16.msra.mxu0 0
    %5541 = vmatprep.subr.bf16.mxu0 0
    %5542 = vmatpush1.bf16.msra.mxu0 0
    %5543 = vmatprep.subr.bf16.mxu0 0
    %5544 = vmatpush1.bf16.msra.mxu0 0
    %5545 = vmatprep.subr.bf16.mxu0 0
    %5546 = vmatpush1.bf16.msra.mxu0 0
    %5547 = vmatprep.subr.bf16.mxu0 0
    %5548 = vmatpush1.bf16.msra.mxu0 0
    %5549 = vmatprep.subr.bf16.mxu0 0
    %5550 = vmatpush1.bf16.msra.mxu0 0
    %5551 = vmatprep.mubr.bf16.mxu0 0
    %5552 = vmatmul.mubr.bf16.gmra.mrb[0].mxu0 %v5238
    %v5553 = vpop.f32.mrb[0].mxu0
    %v5554 = vadd.f32 %v5433, %v5553
    %v5555 = vpop.f32.mrb[0].mxu0
    %v5556 = vadd.f32 %v5435, %v5555
    %v5557 = vpop.f32.mrb[0].mxu0
    %v5558 = vpop.f32.mrb[0].mxu0
    %5559 = vdwg.mxu0
    %s5560 = scalar_lea.vmem %s55, 2
    %v5561 = vld [vmem:[%s5560] sm:$0x1]
    %v5563 = vsel %vm5190, %v5561, 0
    %5565 = vmatprep.subr.bf16.mxu0 0
    %5566 = vmatpush1.bf16.msra.mxu0 %v5196
    %5567 = vmatprep.subr.bf16.mxu0 0
    %5568 = vmatpush1.bf16.msra.mxu0 0
    %5569 = vmatprep.subr.bf16.mxu0 0
    %5570 = vmatpush1.bf16.msra.mxu0 0
    %5571 = vmatprep.subr.bf16.mxu0 0
    %5572 = vmatpush1.bf16.msra.mxu0 0
    %5573 = vmatprep.subr.bf16.mxu0 0
    %5574 = vmatpush1.bf16.msra.mxu0 0
    %5575 = vmatprep.subr.bf16.mxu0 0
    %5576 = vmatpush1.bf16.msra.mxu0 0
    %5577 = vmatprep.subr.bf16.mxu0 0
    %5578 = vmatpush1.bf16.msra.mxu0 0
    %5579 = vmatprep.subr.bf16.mxu0 0
    %5580 = vmatpush1.bf16.msra.mxu0 0
    %5581 = vmatprep.subr.bf16.mxu0 0
    %5582 = vmatpush1.bf16.msra.mxu0 0
    %5583 = vmatprep.subr.bf16.mxu0 0
    %5584 = vmatpush1.bf16.msra.mxu0 0
    %5585 = vmatprep.subr.bf16.mxu0 0
    %5586 = vmatpush1.bf16.msra.mxu0 0
    %5587 = vmatprep.subr.bf16.mxu0 0
    %5588 = vmatpush1.bf16.msra.mxu0 0
    %5589 = vmatprep.subr.bf16.mxu0 0
    %5590 = vmatpush1.bf16.msra.mxu0 0
    %5591 = vmatprep.subr.bf16.mxu0 0
    %5592 = vmatpush1.bf16.msra.mxu0 0
    %5593 = vmatprep.subr.bf16.mxu0 0
    %5594 = vmatpush1.bf16.msra.mxu0 0
    %5595 = vmatprep.subr.bf16.mxu0 0
    %5596 = vmatpush1.bf16.msra.mxu0 0
    %5597 = vmatprep.mubr.bf16.mxu0 0
    %5598 = vmatmul.mubr.bf16.gmra.mrb[0].mxu0 %v5563
    %v5599 = vpop.f32.mrb[0].mxu0
    %v5600 = vadd.f32 0.0, %v5599
    %v5601 = vpop.f32.mrb[0].mxu0
    %v5602 = vpop.f32.mrb[0].mxu0
    %v5603 = vpop.f32.mrb[0].mxu0
    %5604 = vdwg.mxu0
    %v5605 = vpack.c.bf16 %v5600, %v5600
    %s5606 = scalar_lea.vmem %s57, 256
    %v5607 = vld [vmem:[%s5606] sm:$0xff]
    %v5608 = vld [vmem:[%s5606 + $0x8] sm:$0xff]
    %v5609 = vld [vmem:[%s5606 + $0x10] sm:$0xff]
    %v5610 = vld [vmem:[%s5606 + $0x18] sm:$0xff]
    %v5611 = vld [vmem:[%s5606 + $0x20] sm:$0xff]
    %v5612 = vld [vmem:[%s5606 + $0x28] sm:$0xff]
    %v5613 = vld [vmem:[%s5606 + $0x30] sm:$0xff]
    %v5614 = vld [vmem:[%s5606 + $0x38] sm:$0xff]
    %v5615 = vld [vmem:[%s5606 + $0x40] sm:$0xff]
    %v5616 = vld [vmem:[%s5606 + $0x48] sm:$0xff]
    %v5617 = vld [vmem:[%s5606 + $0x50] sm:$0xff]
    %v5618 = vld [vmem:[%s5606 + $0x58] sm:$0xff]
    %v5619 = vld [vmem:[%s5606 + $0x60] sm:$0xff]
    %v5620 = vld [vmem:[%s5606 + $0x68] sm:$0xff]
    %v5621 = vld [vmem:[%s5606 + $0x70] sm:$0xff]
    %v5622 = vld [vmem:[%s5606 + $0x78] sm:$0xff]
    %v5639 = vunpack.c.l.b16 %v5607
    %v5640 = vunpack.c.h.b16 %v5607
    %v5641 = vunpack.c.l.b16 %v5608
    %v5642 = vunpack.c.h.b16 %v5608
    %v5643 = vunpack.c.l.b16 %v5609
    %v5644 = vunpack.c.h.b16 %v5609
    %v5645 = vunpack.c.l.b16 %v5610
    %v5646 = vunpack.c.h.b16 %v5610
    %v5647 = vunpack.c.l.b16 %v5611
    %v5648 = vunpack.c.h.b16 %v5611
    %v5649 = vunpack.c.l.b16 %v5612
    %v5650 = vunpack.c.h.b16 %v5612
    %v5651 = vunpack.c.l.b16 %v5613
    %v5652 = vunpack.c.h.b16 %v5613
    %v5653 = vunpack.c.l.b16 %v5614
    %v5654 = vunpack.c.h.b16 %v5614
    %v5655 = vunpack.c.l.b16 %v5615
    %v5656 = vunpack.c.h.b16 %v5615
    %v5657 = vunpack.c.l.b16 %v5616
    %v5658 = vunpack.c.h.b16 %v5616
    %v5659 = vunpack.c.l.b16 %v5617
    %v5660 = vunpack.c.h.b16 %v5617
    %v5661 = vunpack.c.l.b16 %v5618
    %v5662 = vunpack.c.h.b16 %v5618
    %v5663 = vunpack.c.l.b16 %v5619
    %v5664 = vunpack.c.h.b16 %v5619
    %v5665 = vunpack.c.l.b16 %v5620
    %v5666 = vunpack.c.h.b16 %v5620
    %v5667 = vunpack.c.l.b16 %v5621
    %v5668 = vunpack.c.h.b16 %v5621
    %v5669 = vunpack.c.l.b16 %v5622
    %v5670 = vunpack.c.h.b16 %v5622
    %v5671 = vpack.c.b16 %v5641, %v5639
    %v5672 = vpack.c.b16 %v5642, %v5640
    %v5673 = vpack.c.b16 %v5645, %v5643
    %v5674 = vpack.c.b16 %v5646, %v5644
    %v5675 = vpack.c.b16 %v5649, %v5647
    %v5676 = vpack.c.b16 %v5650, %v5648
    %v5677 = vpack.c.b16 %v5653, %v5651
    %v5678 = vpack.c.b16 %v5654, %v5652
    %v5679 = vpack.c.b16 %v5657, %v5655
    %v5680 = vpack.c.b16 %v5658, %v5656
    %v5681 = vpack.c.b16 %v5661, %v5659
    %v5682 = vpack.c.b16 %v5662, %v5660
    %v5683 = vpack.c.b16 %v5665, %v5663
    %v5684 = vpack.c.b16 %v5666, %v5664
    %v5685 = vpack.c.b16 %v5669, %v5667
    %v5686 = vpack.c.b16 %v5670, %v5668
    %5703 = vmatprep.subr.bf16.mxu0 %v5672
    %5704 = vmatpush1.bf16.msra.mxu0 %v5671
    %5705 = vmatprep.subr.bf16.mxu0 %v5674
    %5706 = vmatpush1.bf16.msra.mxu0 %v5673
    %5707 = vmatprep.subr.bf16.mxu0 %v5676
    %5708 = vmatpush1.bf16.msra.mxu0 %v5675
    %5709 = vmatprep.subr.bf16.mxu0 %v5678
    %5710 = vmatpush1.bf16.msra.mxu0 %v5677
    %5711 = vmatprep.subr.bf16.mxu0 %v5680
    %5712 = vmatpush1.bf16.msra.mxu0 %v5679
    %5713 = vmatprep.subr.bf16.mxu0 %v5682
    %5714 = vmatpush1.bf16.msra.mxu0 %v5681
    %5715 = vmatprep.subr.bf16.mxu0 %v5684
    %5716 = vmatpush1.bf16.msra.mxu0 %v5683
    %5717 = vmatprep.subr.bf16.mxu0 %v5686
    %5718 = vmatpush1.bf16.msra.mxu0 %v5685
    %5719 = vmatprep.subr.bf16.mxu0 0
    %5720 = vmatpush1.bf16.msra.mxu0 0
    %5721 = vmatprep.subr.bf16.mxu0 0
    %5722 = vmatpush1.bf16.msra.mxu0 0
    %5723 = vmatprep.subr.bf16.mxu0 0
    %5724 = vmatpush1.bf16.msra.mxu0 0
    %5725 = vmatprep.subr.bf16.mxu0 0
    %5726 = vmatpush1.bf16.msra.mxu0 0
    %5727 = vmatprep.subr.bf16.mxu0 0
    %5728 = vmatpush1.bf16.msra.mxu0 0
    %5729 = vmatprep.subr.bf16.mxu0 0
    %5730 = vmatpush1.bf16.msra.mxu0 0
    %5731 = vmatprep.subr.bf16.mxu0 0
    %5732 = vmatpush1.bf16.msra.mxu0 0
    %5733 = vmatprep.subr.bf16.mxu0 0
    %5734 = vmatpush1.bf16.msra.mxu0 0
    %5735 = vmatprep.mubr.bf16.mxu0 0
    %5736 = vmatmul.mubr.bf16.gmra.mrb[0].mxu0 %v5605
    %v5737 = vpop.f32.mrb[0].mxu0
    %v5738 = vadd.f32 0.0, %v5737
    %v5739 = vpop.f32.mrb[0].mxu0
    %v5740 = vadd.f32 0.0, %v5739
    %v5741 = vpop.f32.mrb[0].mxu0
    %v5742 = vpop.f32.mrb[0].mxu0
    %5743 = vdwg.mxu0
    %v5744 = vadd.f32 %v5554, %v5738
    %v5745 = vadd.f32 %v5556, %v5740
    %v5746 = vsel %vm3471, %v5744, 0.0
    %v5747 = vrot.slane %v5746, 4
    %v5748 = vadd.f32 %v5746, %v5747
    %v5749 = vrot.slane %v5748, 2
    %v5750 = vadd.f32 %v5748, %v5749
    %v5751 = vrot.slane %v5750, 1
    %v5752 = vadd.f32 %v5750, %v5751
    %v5753 = vsel %vm3471, %v5745, 0.0
    %v5754 = vrot.slane %v5753, 4
    %v5755 = vadd.f32 %v5753, %v5754
    %v5756 = vrot.slane %v5755, 2
    %v5757 = vadd.f32 %v5755, %v5756
    %v5758 = vrot.slane %v5757, 1
    %v5759 = vadd.f32 %v5757, %v5758
    %v5760 = vld [vmem:[#allocation39] sm:$0xff]
    %v5761 = vld [vmem:[#allocation39 + $0x8] sm:$0xff]
    %v5762 = vld [vmem:[#allocation39 + $0x10] sm:$0xff]
    %v5763 = vld [vmem:[#allocation39 + $0x18] sm:$0xff]
    %v5764 = vld [vmem:[#allocation39 + $0x20] sm:$0xff]
    %v5765 = vld [vmem:[#allocation39 + $0x28] sm:$0xff]
    %v5766 = vld [vmem:[#allocation39 + $0x30] sm:$0xff]
    %v5767 = vld [vmem:[#allocation39 + $0x38] sm:$0xff]
    %v5768 = vld [vmem:[#allocation39 + $0x40] sm:$0xff]
    %v5769 = vld [vmem:[#allocation39 + $0x48] sm:$0xff]
    %v5770 = vld [vmem:[#allocation39 + $0x50] sm:$0xff]
    %v5771 = vld [vmem:[#allocation39 + $0x58] sm:$0xff]
    %v5772 = vld [vmem:[#allocation39 + $0x60] sm:$0xff]
    %v5773 = vld [vmem:[#allocation39 + $0x68] sm:$0xff]
    %v5774 = vld [vmem:[#allocation39 + $0x70] sm:$0xff]
    %v5775 = vld [vmem:[#allocation39 + $0x78] sm:$0xff]
    %v5776 = vld [vmem:[#allocation39 + $0x80] sm:$0xff]
    %v5777 = vld [vmem:[#allocation39 + $0x88] sm:$0xff]
    %v5778 = vld [vmem:[#allocation39 + $0x90] sm:$0xff]
    %v5779 = vld [vmem:[#allocation39 + $0x98] sm:$0xff]
    %v5780 = vld [vmem:[#allocation39 + $0xa0] sm:$0xff]
    %v5781 = vld [vmem:[#allocation39 + $0xa8] sm:$0xff]
    %v5782 = vld [vmem:[#allocation39 + $0xb0] sm:$0xff]
    %v5783 = vld [vmem:[#allocation39 + $0xb8] sm:$0xff]
    %v5784 = vld [vmem:[#allocation39 + $0xc0] sm:$0xff]
    %v5785 = vld [vmem:[#allocation39 + $0xc8] sm:$0xff]
    %v5786 = vld [vmem:[#allocation39 + $0xd0] sm:$0xff]
    %v5787 = vld [vmem:[#allocation39 + $0xd8] sm:$0xff]
    %v5788 = vld [vmem:[#allocation39 + $0xe0] sm:$0xff]
    %v5789 = vld [vmem:[#allocation39 + $0xe8] sm:$0xff]
    %v5790 = vld [vmem:[#allocation39 + $0xf0] sm:$0xff]
    %v5791 = vld [vmem:[#allocation39 + $0xf8] sm:$0xff]
    %v5792 = vld [vmem:[#allocation39 + $0x100] sm:$0xff]
    %v5793 = vld [vmem:[#allocation39 + $0x108] sm:$0xff]
    %v5794 = vld [vmem:[#allocation39 + $0x110] sm:$0xff]
    %v5795 = vld [vmem:[#allocation39 + $0x118] sm:$0xff]
    %v5796 = vld [vmem:[#allocation39 + $0x120] sm:$0xff]
    %v5797 = vld [vmem:[#allocation39 + $0x128] sm:$0xff]
    %v5798 = vld [vmem:[#allocation39 + $0x130] sm:$0xff]
    %v5799 = vld [vmem:[#allocation39 + $0x138] sm:$0xff]
    %v5800 = vld [vmem:[#allocation39 + $0x140] sm:$0xff]
    %v5801 = vld [vmem:[#allocation39 + $0x148] sm:$0xff]
    %v5802 = vld [vmem:[#allocation39 + $0x150] sm:$0xff]
    %v5803 = vld [vmem:[#allocation39 + $0x158] sm:$0xff]
    %v5804 = vld [vmem:[#allocation39 + $0x160] sm:$0xff]
    %v5805 = vld [vmem:[#allocation39 + $0x168] sm:$0xff]
    %v5806 = vld [vmem:[#allocation39 + $0x170] sm:$0xff]
    %v5807 = vld [vmem:[#allocation39 + $0x178] sm:$0xff]
    %v5808 = vld [vmem:[#allocation39 + $0x180] sm:$0xff]
    %v5809 = vld [vmem:[#allocation39 + $0x188] sm:$0xff]
    %v5810 = vld [vmem:[#allocation39 + $0x190] sm:$0xff]
    %v5811 = vld [vmem:[#allocation39 + $0x198] sm:$0xff]
    %v5812 = vld [vmem:[#allocation39 + $0x1a0] sm:$0xff]
    %v5813 = vld [vmem:[#allocation39 + $0x1a8] sm:$0xff]
    %v5814 = vld [vmem:[#allocation39 + $0x1b0] sm:$0xff]
    %v5815 = vld [vmem:[#allocation39 + $0x1b8] sm:$0xff]
    %v5816 = vld [vmem:[#allocation39 + $0x1c0] sm:$0xff]
    %v5817 = vld [vmem:[#allocation39 + $0x1c8] sm:$0xff]
    %v5818 = vld [vmem:[#allocation39 + $0x1d0] sm:$0xff]
    %v5819 = vld [vmem:[#allocation39 + $0x1d8] sm:$0xff]
    %v5820 = vld [vmem:[#allocation39 + $0x1e0] sm:$0xff]
    %v5821 = vld [vmem:[#allocation39 + $0x1e8] sm:$0xff]
    %v5822 = vld [vmem:[#allocation39 + $0x1f0] sm:$0xff]
    %v5823 = vld [vmem:[#allocation39 + $0x1f8] sm:$0xff]
    %5824 = vmatprep.subr.mxu0 %v5761
    %5825 = vmatpush1.msra.mxu0 %v5760
    %5826 = vmatprep.subr.mxu0 %v5763
    %5827 = vmatpush1.msra.mxu0 %v5762
    %5828 = vmatprep.subr.mxu0 %v5765
    %5829 = vmatpush1.msra.mxu0 %v5764
    %5830 = vmatprep.subr.mxu0 %v5767
    %5831 = vmatpush1.msra.mxu0 %v5766
    %5832 = vmatprep.subr.mxu0 %v5769
    %5833 = vmatpush1.msra.mxu0 %v5768
    %5834 = vmatprep.subr.mxu0 %v5771
    %5835 = vmatpush1.msra.mxu0 %v5770
    %5836 = vmatprep.subr.mxu0 %v5773
    %5837 = vmatpush1.msra.mxu0 %v5772
    %5838 = vmatprep.subr.mxu0 %v5775
    %5839 = vmatpush1.msra.mxu0 %v5774
    %5840 = vmatprep.subr.mxu0 %v5777
    %5841 = vmatpush1.msra.mxu0 %v5776
    %5842 = vmatprep.subr.mxu0 %v5779
    %5843 = vmatpush1.msra.mxu0 %v5778
    %5844 = vmatprep.subr.mxu0 %v5781
    %5845 = vmatpush1.msra.mxu0 %v5780
    %5846 = vmatprep.subr.mxu0 %v5783
    %5847 = vmatpush1.msra.mxu0 %v5782
    %5848 = vmatprep.subr.mxu0 %v5785
    %5849 = vmatpush1.msra.mxu0 %v5784
    %5850 = vmatprep.subr.mxu0 %v5787
    %5851 = vmatpush1.msra.mxu0 %v5786
    %5852 = vmatprep.subr.mxu0 %v5789
    %5853 = vmatpush1.msra.mxu0 %v5788
    %5854 = vmatprep.subr.mxu0 %v5791
    %5855 = vmatpush1.msra.mxu0 %v5790
    %5856 = vmatprep.subr.mxu0 %v5793
    %5857 = vmatpush1.msra.mxu0 %v5792
    %5858 = vmatprep.subr.mxu0 %v5795
    %5859 = vmatpush1.msra.mxu0 %v5794
    %5860 = vmatprep.subr.mxu0 %v5797
    %5861 = vmatpush1.msra.mxu0 %v5796
    %5862 = vmatprep.subr.mxu0 %v5799
    %5863 = vmatpush1.msra.mxu0 %v5798
    %5864 = vmatprep.subr.mxu0 %v5801
    %5865 = vmatpush1.msra.mxu0 %v5800
    %5866 = vmatprep.subr.mxu0 %v5803
    %5867 = vmatpush1.msra.mxu0 %v5802
    %5868 = vmatprep.subr.mxu0 %v5805
    %5869 = vmatpush1.msra.mxu0 %v5804
    %5870 = vmatprep.subr.mxu0 %v5807
    %5871 = vmatpush1.msra.mxu0 %v5806
    %5872 = vmatprep.subr.mxu0 %v5809
    %5873 = vmatpush1.msra.mxu0 %v5808
    %5874 = vmatprep.subr.mxu0 %v5811
    %5875 = vmatpush1.msra.mxu0 %v5810
    %5876 = vmatprep.subr.mxu0 %v5813
    %5877 = vmatpush1.msra.mxu0 %v5812
    %5878 = vmatprep.subr.mxu0 %v5815
    %5879 = vmatpush1.msra.mxu0 %v5814
    %5880 = vmatprep.subr.mxu0 %v5817
    %5881 = vmatpush1.msra.mxu0 %v5816
    %5882 = vmatprep.subr.mxu0 %v5819
    %5883 = vmatpush1.msra.mxu0 %v5818
    %5884 = vmatprep.subr.mxu0 %v5821
    %5885 = vmatpush1.msra.mxu0 %v5820
    %5886 = vmatprep.subr.mxu0 %v5823
    %5887 = vmatpush1.msra.mxu0 %v5822
    %5888 = vmatprep.mubr.f32.mxu0 %v5759
    %5889 = vmatmul.mubr.f32.gmra.mrb[0].mxu0 %v5752
    %v5890 = vpop.f32.mrb[0].mxu0
    %v5891 = vadd.f32 0.0, %v5890
    %v5892 = vpop.f32.mrb[0].mxu0
    %v5893 = vadd.f32 0.0, %v5892
    %5894 = vdwg.mxu0
    %v5895 = vmul.f32 %v5891, 0.125
    %v5896 = vmul.f32 %v5893, 0.125
    %v5897 = vlaneseq
    %v5898 = vshrl.u32 %v5897, 7
    %v5899 = vsub.s32 0, %v5898
    %v5900 = vrot.slane %v5895, %v5899
    %v5901 = vlaneseq
    %v5902 = vshrl.u32 %v5901, 7
    %v5903 = vsub.s32 0, %v5902
    %v5904 = vrot.slane %v5896, %v5903
    %v5905 = vsub.f32 %v5744, %v5900
    %v5906 = vsub.f32 %v5745, %v5904
    %v5907 = vmul.f32 %v5905, %v5905
    %v5908 = vmul.f32 %v5906, %v5906
    %v5909 = vsel %vm3471, %v5907, 0.0
    %v5910 = vrot.slane %v5909, 4
    %v5911 = vadd.f32 %v5909, %v5910
    %v5912 = vrot.slane %v5911, 2
    %v5913 = vadd.f32 %v5911, %v5912
    %v5914 = vrot.slane %v5913, 1
    %v5915 = vadd.f32 %v5913, %v5914
    %v5916 = vsel %vm3471, %v5908, 0.0
    %v5917 = vrot.slane %v5916, 4
    %v5918 = vadd.f32 %v5916, %v5917
    %v5919 = vrot.slane %v5918, 2
    %v5920 = vadd.f32 %v5918, %v5919
    %v5921 = vrot.slane %v5920, 1
    %v5922 = vadd.f32 %v5920, %v5921
    %5923 = vmatprep.subr.mxu0 %v5761
    %5924 = vmatpush1.msra.mxu0 %v5760
    %5925 = vmatprep.subr.mxu0 %v5763
    %5926 = vmatpush1.msra.mxu0 %v5762
    %5927 = vmatprep.subr.mxu0 %v5765
    %5928 = vmatpush1.msra.mxu0 %v5764
    %5929 = vmatprep.subr.mxu0 %v5767
    %5930 = vmatpush1.msra.mxu0 %v5766
    %5931 = vmatprep.subr.mxu0 %v5769
    %5932 = vmatpush1.msra.mxu0 %v5768
    %5933 = vmatprep.subr.mxu0 %v5771
    %5934 = vmatpush1.msra.mxu0 %v5770
    %5935 = vmatprep.subr.mxu0 %v5773
    %5936 = vmatpush1.msra.mxu0 %v5772
    %5937 = vmatprep.subr.mxu0 %v5775
    %5938 = vmatpush1.msra.mxu0 %v5774
    %5939 = vmatprep.subr.mxu0 %v5777
    %5940 = vmatpush1.msra.mxu0 %v5776
    %5941 = vmatprep.subr.mxu0 %v5779
    %5942 = vmatpush1.msra.mxu0 %v5778
    %5943 = vmatprep.subr.mxu0 %v5781
    %5944 = vmatpush1.msra.mxu0 %v5780
    %5945 = vmatprep.subr.mxu0 %v5783
    %5946 = vmatpush1.msra.mxu0 %v5782
    %5947 = vmatprep.subr.mxu0 %v5785
    %5948 = vmatpush1.msra.mxu0 %v5784
    %5949 = vmatprep.subr.mxu0 %v5787
    %5950 = vmatpush1.msra.mxu0 %v5786
    %5951 = vmatprep.subr.mxu0 %v5789
    %5952 = vmatpush1.msra.mxu0 %v5788
    %5953 = vmatprep.subr.mxu0 %v5791
    %5954 = vmatpush1.msra.mxu0 %v5790
    %5955 = vmatprep.subr.mxu0 %v5793
    %5956 = vmatpush1.msra.mxu0 %v5792
    %5957 = vmatprep.subr.mxu0 %v5795
    %5958 = vmatpush1.msra.mxu0 %v5794
    %5959 = vmatprep.subr.mxu0 %v5797
    %5960 = vmatpush1.msra.mxu0 %v5796
    %5961 = vmatprep.subr.mxu0 %v5799
    %5962 = vmatpush1.msra.mxu0 %v5798
    %5963 = vmatprep.subr.mxu0 %v5801
    %5964 = vmatpush1.msra.mxu0 %v5800
    %5965 = vmatprep.subr.mxu0 %v5803
    %5966 = vmatpush1.msra.mxu0 %v5802
    %5967 = vmatprep.subr.mxu0 %v5805
    %5968 = vmatpush1.msra.mxu0 %v5804
    %5969 = vmatprep.subr.mxu0 %v5807
    %5970 = vmatpush1.msra.mxu0 %v5806
    %5971 = vmatprep.subr.mxu0 %v5809
    %5972 = vmatpush1.msra.mxu0 %v5808
    %5973 = vmatprep.subr.mxu0 %v5811
    %5974 = vmatpush1.msra.mxu0 %v5810
    %5975 = vmatprep.subr.mxu0 %v5813
    %5976 = vmatpush1.msra.mxu0 %v5812
    %5977 = vmatprep.subr.mxu0 %v5815
    %5978 = vmatpush1.msra.mxu0 %v5814
    %5979 = vmatprep.subr.mxu0 %v5817
    %5980 = vmatpush1.msra.mxu0 %v5816
    %5981 = vmatprep.subr.mxu0 %v5819
    %5982 = vmatpush1.msra.mxu0 %v5818
    %5983 = vmatprep.subr.mxu0 %v5821
    %5984 = vmatpush1.msra.mxu0 %v5820
    %5985 = vmatprep.subr.mxu0 %v5823
    %5986 = vmatpush1.msra.mxu0 %v5822
    %5987 = vmatprep.mubr.f32.mxu0 %v5922
    %5988 = vmatmul.mubr.f32.gmra.mrb[0].mxu0 %v5915
    %v5989 = vpop.f32.mrb[0].mxu0
    %v5990 = vadd.f32 0.0, %v5989
    %v5991 = vpop.f32.mrb[0].mxu0
    %v5992 = vadd.f32 0.0, %v5991
    %5993 = vdwg.mxu0
    %v5994 = vmul.f32 %v5990, 0.125
    %v5995 = vmul.f32 %v5992, 0.125
    %v5996 = vld [vmem:[%s61] sm:$0x3]
    %v5997 = vadd.f32 %v5994, 1e-05
    %v5998 = vadd.f32 %v5995, 1e-05
    %v5999 = vrsqrt.pop %v5997
    %v6000 = vrsqrt.pop %v5998
    %v6003 = vcombine.low %v5999, %v6000
    %v6005 = vunpack.c.l.s4 1966171168
    %v6006 = vunpack.c.0.s8 %v6005
    %v6007 = vlaneseq
    %v6008 = vshrl.u32 %v6007, 7
    %v6009 = vsub.s32 %v6006, %v6008
    %v6010 = vrot.slane %v6003, %v6009
    %v6012 = vunpack.c.l.s4 1966171168
    %v6013 = vunpack.c.0.s8 %v6012
    %v6014 = vlaneseq
    %v6015 = vshrl.u32 %v6014, 7
    %v6016 = vsub.s32 %v6013, %v6015
    %v6017 = vrot.slane %v6010, %v6016
    %v6019 = vmul.f32 %v5996, %v6017
    %v6021 = vlaneseq
    %v6022 = vshrl.u32 %v6021, 7
    %v6023 = vsub.s32 0, %v6022
    %v6024 = vrot.slane %v6019, %v6023
    %v6025 = vlaneseq
    %v6026 = vshrl.u32 %v6025, 7
    %v6027 = vsub.s32 1, %v6026
    %v6028 = vrot.slane %v6019, %v6027
    %v6031 = vmul.f32 %v5905, %v6024
    %v6032 = vmul.f32 %v5906, %v6028
    %v6033 = vld [vmem:[%s63] sm:$0x3]
    %v6035 = vlaneseq
    %v6036 = vshrl.u32 %v6035, 7
    %v6037 = vsub.s32 0, %v6036
    %v6038 = vrot.slane %v6033, %v6037
    %v6039 = vlaneseq
    %v6040 = vshrl.u32 %v6039, 7
    %v6041 = vsub.s32 1, %v6040
    %v6042 = vrot.slane %v6033, %v6041
    %v6045 = vadd.f32 %v6031, %v6038
    %v6046 = vadd.f32 %v6032, %v6042
    %vm6047 = vcmp.ge.f32.partialorder %v6045, 0.0
    %vm6048 = vcmp.ge.f32.partialorder %v6046, 0.0
    %v6049 = vmul.f32 %v6045, 0.2
    %v6050 = vmul.f32 %v6046, 0.2
    %v6051 = vsel %vm6047, %v6045, %v6049
    %v6052 = vsel %vm6048, %v6046, %v6050
    %v6053 = vpack.c.bf16 %v6051, %v6051
    %v6054 = vpack.c.bf16 %v6052, %v6052
    %v6055 = vld [vmem:[%s65] sm:$0x1]
    %v6057 = vsel %vm5190, %v6055, 0
    %v6060 = vsel %vm5194, %v6053, 0
    %v6063 = vsel %vm5194, %v6054, 0
    %6065 = vmatprep.subr.bf16.mxu0 %v6063
    %6066 = vmatpush1.bf16.msra.mxu0 %v6060
    %6067 = vmatprep.subr.bf16.mxu0 0
    %6068 = vmatpush1.bf16.msra.mxu0 0
    %6069 = vmatprep.subr.bf16.mxu0 0
    %6070 = vmatpush1.bf16.msra.mxu0 0
    %6071 = vmatprep.subr.bf16.mxu0 0
    %6072 = vmatpush1.bf16.msra.mxu0 0
    %6073 = vmatprep.subr.bf16.mxu0 0
    %6074 = vmatpush1.bf16.msra.mxu0 0
    %6075 = vmatprep.subr.bf16.mxu0 0
    %6076 = vmatpush1.bf16.msra.mxu0 0
    %6077 = vmatprep.subr.bf16.mxu0 0
    %6078 = vmatpush1.bf16.msra.mxu0 0
    %6079 = vmatprep.subr.bf16.mxu0 0
    %6080 = vmatpush1.bf16.msra.mxu0 0
    %6081 = vmatprep.subr.bf16.mxu0 0
    %6082 = vmatpush1.bf16.msra.mxu0 0
    %6083 = vmatprep.subr.bf16.mxu0 0
    %6084 = vmatpush1.bf16.msra.mxu0 0
    %6085 = vmatprep.subr.bf16.mxu0 0
    %6086 = vmatpush1.bf16.msra.mxu0 0
    %6087 = vmatprep.subr.bf16.mxu0 0
    %6088 = vmatpush1.bf16.msra.mxu0 0
    %6089 = vmatprep.subr.bf16.mxu0 0
    %6090 = vmatpush1.bf16.msra.mxu0 0
    %6091 = vmatprep.subr.bf16.mxu0 0
    %6092 = vmatpush1.bf16.msra.mxu0 0
    %6093 = vmatprep.subr.bf16.mxu0 0
    %6094 = vmatpush1.bf16.msra.mxu0 0
    %6095 = vmatprep.subr.bf16.mxu0 0
    %6096 = vmatpush1.bf16.msra.mxu0 0
    %6097 = vmatprep.mubr.bf16.mxu0 0
    %6098 = vmatmul.mubr.bf16.gmra.mrb[0].mxu0 %v6057
    %v6099 = vpop.f32.mrb[0].mxu0
    %v6100 = vadd.f32 0.0, %v6099
    %v6101 = vpop.f32.mrb[0].mxu0
    %v6102 = vadd.f32 0.0, %v6101
    %v6103 = vpop.f32.mrb[0].mxu0
    %v6104 = vpop.f32.mrb[0].mxu0
    %6105 = vdwg.mxu0
    %v6106 = vpack.c.bf16 %v6100, %v6100
    %v6107 = vpack.c.bf16 %v6102, %v6102
    %v6108 = vld [vmem:[%s67] sm:$0xf]
    %v6109 = vld [vmem:[%s67 + $0x4] sm:$0xf]
    %v6110 = vld [vmem:[%s67 + $0x8] sm:$0xf]
    %v6111 = vld [vmem:[%s67 + $0xc] sm:$0xf]
    %v6112 = vld [vmem:[%s67 + $0x10] sm:$0xf]
    %v6113 = vld [vmem:[%s67 + $0x14] sm:$0xf]
    %v6114 = vld [vmem:[%s67 + $0x18] sm:$0xf]
    %v6115 = vld [vmem:[%s67 + $0x1c] sm:$0xf]
    %v6116 = vld [vmem:[%s67 + $0x20] sm:$0xf]
    %v6117 = vld [vmem:[%s67 + $0x24] sm:$0xf]
    %v6118 = vld [vmem:[%s67 + $0x28] sm:$0xf]
    %v6119 = vld [vmem:[%s67 + $0x2c] sm:$0xf]
    %v6120 = vld [vmem:[%s67 + $0x30] sm:$0xf]
    %v6121 = vld [vmem:[%s67 + $0x34] sm:$0xf]
    %v6122 = vld [vmem:[%s67 + $0x38] sm:$0xf]
    %v6123 = vld [vmem:[%s67 + $0x3c] sm:$0xf]
    %v6124 = vld [vmem:[%s67 + $0x40] sm:$0xf]
    %v6125 = vld [vmem:[%s67 + $0x44] sm:$0xf]
    %v6126 = vld [vmem:[%s67 + $0x48] sm:$0xf]
    %v6127 = vld [vmem:[%s67 + $0x4c] sm:$0xf]
    %v6128 = vld [vmem:[%s67 + $0x50] sm:$0xf]
    %v6129 = vld [vmem:[%s67 + $0x54] sm:$0xf]
    %v6130 = vld [vmem:[%s67 + $0x58] sm:$0xf]
    %v6131 = vld [vmem:[%s67 + $0x5c] sm:$0xf]
    %v6132 = vld [vmem:[%s67 + $0x60] sm:$0xf]
    %v6133 = vld [vmem:[%s67 + $0x64] sm:$0xf]
    %v6134 = vld [vmem:[%s67 + $0x68] sm:$0xf]
    %v6135 = vld [vmem:[%s67 + $0x6c] sm:$0xf]
    %v6136 = vld [vmem:[%s67 + $0x70] sm:$0xf]
    %v6137 = vld [vmem:[%s67 + $0x74] sm:$0xf]
    %v6138 = vld [vmem:[%s67 + $0x78] sm:$0xf]
    %v6139 = vld [vmem:[%s67 + $0x7c] sm:$0xf]
    %s6140 = scalar_lea.vmem %s65, 1
    %v6141 = vld [vmem:[%s6140] sm:$0x1]
    %v6143 = vsel %vm5190, %v6141, 0
    %6145 = vmatprep.subr.bf16.mxu0 %v6063
    %6146 = vmatpush1.bf16.msra.mxu0 %v6060
    %6147 = vmatprep.subr.bf16.mxu0 0
    %6148 = vmatpush1.bf16.msra.mxu0 0
    %6149 = vmatprep.subr.bf16.mxu0 0
    %6150 = vmatpush1.bf16.msra.mxu0 0
    %6151 = vmatprep.subr.bf16.mxu0 0
    %6152 = vmatpush1.bf16.msra.mxu0 0
    %6153 = vmatprep.subr.bf16.mxu0 0
    %6154 = vmatpush1.bf16.msra.mxu0 0
    %6155 = vmatprep.subr.bf16.mxu0 0
    %6156 = vmatpush1.bf16.msra.mxu0 0
    %6157 = vmatprep.subr.bf16.mxu0 0
    %6158 = vmatpush1.bf16.msra.mxu0 0
    %6159 = vmatprep.subr.bf16.mxu0 0
    %6160 = vmatpush1.bf16.msra.mxu0 0
    %6161 = vmatprep.subr.bf16.mxu0 0
    %6162 = vmatpush1.bf16.msra.mxu0 0
    %6163 = vmatprep.subr.bf16.mxu0 0
    %6164 = vmatpush1.bf16.msra.mxu0 0
    %6165 = vmatprep.subr.bf16.mxu0 0
    %6166 = vmatpush1.bf16.msra.mxu0 0
    %6167 = vmatprep.subr.bf16.mxu0 0
    %6168 = vmatpush1.bf16.msra.mxu0 0
    %6169 = vmatprep.subr.bf16.mxu0 0
    %6170 = vmatpush1.bf16.msra.mxu0 0
    %6171 = vmatprep.subr.bf16.mxu0 0
    %6172 = vmatpush1.bf16.msra.mxu0 0
    %6173 = vmatprep.subr.bf16.mxu0 0
    %6174 = vmatpush1.bf16.msra.mxu0 0
    %6175 = vmatprep.subr.bf16.mxu0 0
    %6176 = vmatpush1.bf16.msra.mxu0 0
    %6177 = vmatprep.mubr.bf16.mxu0 0
    %6178 = vmatmul.mubr.bf16.gmra.mrb[0].mxu0 %v6143
    %v6179 = vpop.f32.mrb[0].mxu0
    %v6180 = vadd.f32 0.0, %v6179
    %v6181 = vpop.f32.mrb[0].mxu0
    %v6182 = vadd.f32 0.0, %v6181
    %v6183 = vpop.f32.mrb[0].mxu0
    %v6184 = vpop.f32.mrb[0].mxu0
    %6185 = vdwg.mxu0
    %v6186 = vpack.c.bf16 %v6180, %v6180
    %v6187 = vpack.c.bf16 %v6182, %v6182
    %s6188 = scalar_lea.vmem %s67, 128
    %v6189 = vld [vmem:[%s6188] sm:$0xf]
    %v6190 = vld [vmem:[%s6188 + $0x4] sm:$0xf]
    %v6191 = vld [vmem:[%s6188 + $0x8] sm:$0xf]
    %v6192 = vld [vmem:[%s6188 + $0xc] sm:$0xf]
    %v6193 = vld [vmem:[%s6188 + $0x10] sm:$0xf]
    %v6194 = vld [vmem:[%s6188 + $0x14] sm:$0xf]
    %v6195 = vld [vmem:[%s6188 + $0x18] sm:$0xf]
    %v6196 = vld [vmem:[%s6188 + $0x1c] sm:$0xf]
    %v6197 = vld [vmem:[%s6188 + $0x20] sm:$0xf]
    %v6198 = vld [vmem:[%s6188 + $0x24] sm:$0xf]
    %v6199 = vld [vmem:[%s6188 + $0x28] sm:$0xf]
    %v6200 = vld [vmem:[%s6188 + $0x2c] sm:$0xf]
    %v6201 = vld [vmem:[%s6188 + $0x30] sm:$0xf]
    %v6202 = vld [vmem:[%s6188 + $0x34] sm:$0xf]
    %v6203 = vld [vmem:[%s6188 + $0x38] sm:$0xf]
    %v6204 = vld [vmem:[%s6188 + $0x3c] sm:$0xf]
    %v6205 = vld [vmem:[%s6188 + $0x40] sm:$0xf]
    %v6206 = vld [vmem:[%s6188 + $0x44] sm:$0xf]
    %v6207 = vld [vmem:[%s6188 + $0x48] sm:$0xf]
    %v6208 = vld [vmem:[%s6188 + $0x4c] sm:$0xf]
    %v6209 = vld [vmem:[%s6188 + $0x50] sm:$0xf]
    %v6210 = vld [vmem:[%s6188 + $0x54] sm:$0xf]
    %v6211 = vld [vmem:[%s6188 + $0x58] sm:$0xf]
    %v6212 = vld [vmem:[%s6188 + $0x5c] sm:$0xf]
    %v6213 = vld [vmem:[%s6188 + $0x60] sm:$0xf]
    %v6214 = vld [vmem:[%s6188 + $0x64] sm:$0xf]
    %v6215 = vld [vmem:[%s6188 + $0x68] sm:$0xf]
    %v6216 = vld [vmem:[%s6188 + $0x6c] sm:$0xf]
    %v6217 = vld [vmem:[%s6188 + $0x70] sm:$0xf]
    %v6218 = vld [vmem:[%s6188 + $0x74] sm:$0xf]
    %v6219 = vld [vmem:[%s6188 + $0x78] sm:$0xf]
    %v6220 = vld [vmem:[%s6188 + $0x7c] sm:$0xf]
    %v6253 = vunpack.c.l.b16 %v6189
    %v6254 = vunpack.c.l.b16 %v6190
    %v6255 = vunpack.c.l.b16 %v6191
    %v6256 = vunpack.c.l.b16 %v6192
    %v6257 = vunpack.c.l.b16 %v6193
    %v6258 = vunpack.c.l.b16 %v6194
    %v6259 = vunpack.c.l.b16 %v6195
    %v6260 = vunpack.c.l.b16 %v6196
    %v6261 = vunpack.c.l.b16 %v6197
    %v6262 = vunpack.c.l.b16 %v6198
    %v6263 = vunpack.c.l.b16 %v6199
    %v6264 = vunpack.c.l.b16 %v6200
    %v6265 = vunpack.c.l.b16 %v6201
    %v6266 = vunpack.c.l.b16 %v6202
    %v6267 = vunpack.c.l.b16 %v6203
    %v6268 = vunpack.c.l.b16 %v6204
    %v6269 = vunpack.c.l.b16 %v6205
    %v6270 = vunpack.c.l.b16 %v6206
    %v6271 = vunpack.c.l.b16 %v6207
    %v6272 = vunpack.c.l.b16 %v6208
    %v6273 = vunpack.c.l.b16 %v6209
    %v6274 = vunpack.c.l.b16 %v6210
    %v6275 = vunpack.c.l.b16 %v6211
    %v6276 = vunpack.c.l.b16 %v6212
    %v6277 = vunpack.c.l.b16 %v6213
    %v6278 = vunpack.c.l.b16 %v6214
    %v6279 = vunpack.c.l.b16 %v6215
    %v6280 = vunpack.c.l.b16 %v6216
    %v6281 = vunpack.c.l.b16 %v6217
    %v6282 = vunpack.c.l.b16 %v6218
    %v6283 = vunpack.c.l.b16 %v6219
    %v6284 = vunpack.c.l.b16 %v6220
    %v6285 = vpack.c.b16 %v6254, %v6253
    %v6286 = vpack.c.b16 %v6256, %v6255
    %v6287 = vpack.c.b16 %v6258, %v6257
    %v6288 = vpack.c.b16 %v6260, %v6259
    %v6289 = vpack.c.b16 %v6262, %v6261
    %v6290 = vpack.c.b16 %v6264, %v6263
    %v6291 = vpack.c.b16 %v6266, %v6265
    %v6292 = vpack.c.b16 %v6268, %v6267
    %v6293 = vpack.c.b16 %v6270, %v6269
    %v6294 = vpack.c.b16 %v6272, %v6271
    %v6295 = vpack.c.b16 %v6274, %v6273
    %v6296 = vpack.c.b16 %v6276, %v6275
    %v6297 = vpack.c.b16 %v6278, %v6277
    %v6298 = vpack.c.b16 %v6280, %v6279
    %v6299 = vpack.c.b16 %v6282, %v6281
    %v6300 = vpack.c.b16 %v6284, %v6283
    %6317 = vmatprep.subr.bf16.mxu0 0
    %6318 = vmatpush1.bf16.msra.mxu0 %v6285
    %6319 = vmatprep.subr.bf16.mxu0 0
    %6320 = vmatpush1.bf16.msra.mxu0 %v6286
    %6321 = vmatprep.subr.bf16.mxu0 0
    %6322 = vmatpush1.bf16.msra.mxu0 %v6287
    %6323 = vmatprep.subr.bf16.mxu0 0
    %6324 = vmatpush1.bf16.msra.mxu0 %v6288
    %6325 = vmatprep.subr.bf16.mxu0 0
    %6326 = vmatpush1.bf16.msra.mxu0 %v6289
    %6327 = vmatprep.subr.bf16.mxu0 0
    %6328 = vmatpush1.bf16.msra.mxu0 %v6290
    %6329 = vmatprep.subr.bf16.mxu0 0
    %6330 = vmatpush1.bf16.msra.mxu0 %v6291
    %6331 = vmatprep.subr.bf16.mxu0 0
    %6332 = vmatpush1.bf16.msra.mxu0 %v6292
    %6333 = vmatprep.subr.bf16.mxu0 0
    %6334 = vmatpush1.bf16.msra.mxu0 %v6293
    %6335 = vmatprep.subr.bf16.mxu0 0
    %6336 = vmatpush1.bf16.msra.mxu0 %v6294
    %6337 = vmatprep.subr.bf16.mxu0 0
    %6338 = vmatpush1.bf16.msra.mxu0 %v6295
    %6339 = vmatprep.subr.bf16.mxu0 0
    %6340 = vmatpush1.bf16.msra.mxu0 %v6296
    %6341 = vmatprep.subr.bf16.mxu0 0
    %6342 = vmatpush1.bf16.msra.mxu0 %v6297
    %6343 = vmatprep.subr.bf16.mxu0 0
    %6344 = vmatpush1.bf16.msra.mxu0 %v6298
    %6345 = vmatprep.subr.bf16.mxu0 0
    %6346 = vmatpush1.bf16.msra.mxu0 %v6299
    %6347 = vmatprep.subr.bf16.mxu0 0
    %6348 = vmatpush1.bf16.msra.mxu0 %v6300
    %6349 = vmatprep.mubr.bf16.mxu0 %v6187
    %6350 = vmatmul.mubr.bf16.gmra.mrb[0].mxu0 %v6186
    %v6351 = vpop.f32.mrb[0].mxu0
    %v6352 = vadd.f32 0.0, %v6351
    %v6353 = vpop.f32.mrb[0].mxu0
    %v6354 = vpop.f32.mrb[0].mxu0
    %v6355 = vpop.f32.mrb[0].mxu0
    %6356 = vdwg.mxu0
    %v6389 = vunpack.c.l.b16 %v6108
    %v6390 = vunpack.c.l.b16 %v6109
    %v6391 = vunpack.c.l.b16 %v6110
    %v6392 = vunpack.c.l.b16 %v6111
    %v6393 = vunpack.c.l.b16 %v6112
    %v6394 = vunpack.c.l.b16 %v6113
    %v6395 = vunpack.c.l.b16 %v6114
    %v6396 = vunpack.c.l.b16 %v6115
    %v6397 = vunpack.c.l.b16 %v6116
    %v6398 = vunpack.c.l.b16 %v6117
    %v6399 = vunpack.c.l.b16 %v6118
    %v6400 = vunpack.c.l.b16 %v6119
    %v6401 = vunpack.c.l.b16 %v6120
    %v6402 = vunpack.c.l.b16 %v6121
    %v6403 = vunpack.c.l.b16 %v6122
    %v6404 = vunpack.c.l.b16 %v6123
    %v6405 = vunpack.c.l.b16 %v6124
    %v6406 = vunpack.c.l.b16 %v6125
    %v6407 = vunpack.c.l.b16 %v6126
    %v6408 = vunpack.c.l.b16 %v6127
    %v6409 = vunpack.c.l.b16 %v6128
    %v6410 = vunpack.c.l.b16 %v6129
    %v6411 = vunpack.c.l.b16 %v6130
    %v6412 = vunpack.c.l.b16 %v6131
    %v6413 = vunpack.c.l.b16 %v6132
    %v6414 = vunpack.c.l.b16 %v6133
    %v6415 = vunpack.c.l.b16 %v6134
    %v6416 = vunpack.c.l.b16 %v6135
    %v6417 = vunpack.c.l.b16 %v6136
    %v6418 = vunpack.c.l.b16 %v6137
    %v6419 = vunpack.c.l.b16 %v6138
    %v6420 = vunpack.c.l.b16 %v6139
    %v6421 = vpack.c.b16 %v6390, %v6389
    %v6422 = vpack.c.b16 %v6392, %v6391
    %v6423 = vpack.c.b16 %v6394, %v6393
    %v6424 = vpack.c.b16 %v6396, %v6395
    %v6425 = vpack.c.b16 %v6398, %v6397
    %v6426 = vpack.c.b16 %v6400, %v6399
    %v6427 = vpack.c.b16 %v6402, %v6401
    %v6428 = vpack.c.b16 %v6404, %v6403
    %v6429 = vpack.c.b16 %v6406, %v6405
    %v6430 = vpack.c.b16 %v6408, %v6407
    %v6431 = vpack.c.b16 %v6410, %v6409
    %v6432 = vpack.c.b16 %v6412, %v6411
    %v6433 = vpack.c.b16 %v6414, %v6413
    %v6434 = vpack.c.b16 %v6416, %v6415
    %v6435 = vpack.c.b16 %v6418, %v6417
    %v6436 = vpack.c.b16 %v6420, %v6419
    %6453 = vmatprep.subr.bf16.mxu0 0
    %6454 = vmatpush1.bf16.msra.mxu0 %v6421
    %6455 = vmatprep.subr.bf16.mxu0 0
    %6456 = vmatpush1.bf16.msra.mxu0 %v6422
    %6457 = vmatprep.subr.bf16.mxu0 0
    %6458 = vmatpush1.bf16.msra.mxu0 %v6423
    %6459 = vmatprep.subr.bf16.mxu0 0
    %6460 = vmatpush1.bf16.msra.mxu0 %v6424
    %6461 = vmatprep.subr.bf16.mxu0 0
    %6462 = vmatpush1.bf16.msra.mxu0 %v6425
    %6463 = vmatprep.subr.bf16.mxu0 0
    %6464 = vmatpush1.bf16.msra.mxu0 %v6426
    %6465 = vmatprep.subr.bf16.mxu0 0
    %6466 = vmatpush1.bf16.msra.mxu0 %v6427
    %6467 = vmatprep.subr.bf16.mxu0 0
    %6468 = vmatpush1.bf16.msra.mxu0 %v6428
    %6469 = vmatprep.subr.bf16.mxu0 0
    %6470 = vmatpush1.bf16.msra.mxu0 %v6429
    %6471 = vmatprep.subr.bf16.mxu0 0
    %6472 = vmatpush1.bf16.msra.mxu0 %v6430
    %6473 = vmatprep.subr.bf16.mxu0 0
    %6474 = vmatpush1.bf16.msra.mxu0 %v6431
    %6475 = vmatprep.subr.bf16.mxu0 0
    %6476 = vmatpush1.bf16.msra.mxu0 %v6432
    %6477 = vmatprep.subr.bf16.mxu0 0
    %6478 = vmatpush1.bf16.msra.mxu0 %v6433
    %6479 = vmatprep.subr.bf16.mxu0 0
    %6480 = vmatpush1.bf16.msra.mxu0 %v6434
    %6481 = vmatprep.subr.bf16.mxu0 0
    %6482 = vmatpush1.bf16.msra.mxu0 %v6435
    %6483 = vmatprep.subr.bf16.mxu0 0
    %6484 = vmatpush1.bf16.msra.mxu0 %v6436
    %6485 = vmatprep.mubr.bf16.mxu0 %v6107
    %6486 = vmatmul.mubr.bf16.gmra.mrb[0].mxu0 %v6106
    %v6487 = vpop.f32.mrb[0].mxu0
    %v6488 = vadd.f32 %v6352, %v6487
    %v6489 = vpop.f32.mrb[0].mxu0
    %v6490 = vpop.f32.mrb[0].mxu0
    %v6491 = vpop.f32.mrb[0].mxu0
    %6492 = vdwg.mxu0
    %s6493 = scalar_lea.vmem %s65, 2
    %v6494 = vld [vmem:[%s6493] sm:$0x1]
    %v6496 = vsel %vm5190, %v6494, 0
    %6498 = vmatprep.subr.bf16.mxu0 %v6063
    %6499 = vmatpush1.bf16.msra.mxu0 %v6060
    %6500 = vmatprep.subr.bf16.mxu0 0
    %6501 = vmatpush1.bf16.msra.mxu0 0
    %6502 = vmatprep.subr.bf16.mxu0 0
    %6503 = vmatpush1.bf16.msra.mxu0 0
    %6504 = vmatprep.subr.bf16.mxu0 0
    %6505 = vmatpush1.bf16.msra.mxu0 0
    %6506 = vmatprep.subr.bf16.mxu0 0
    %6507 = vmatpush1.bf16.msra.mxu0 0
    %6508 = vmatprep.subr.bf16.mxu0 0
    %6509 = vmatpush1.bf16.msra.mxu0 0
    %6510 = vmatprep.subr.bf16.mxu0 0
    %6511 = vmatpush1.bf16.msra.mxu0 0
    %6512 = vmatprep.subr.bf16.mxu0 0
    %6513 = vmatpush1.bf16.msra.mxu0 0
    %6514 = vmatprep.subr.bf16.mxu0 0
    %6515 = vmatpush1.bf16.msra.mxu0 0
    %6516 = vmatprep.subr.bf16.mxu0 0
    %6517 = vmatpush1.bf16.msra.mxu0 0
    %6518 = vmatprep.subr.bf16.mxu0 0
    %6519 = vmatpush1.bf16.msra.mxu0 0
    %6520 = vmatprep.subr.bf16.mxu0 0
    %6521 = vmatpush1.bf16.msra.mxu0 0
    %6522 = vmatprep.subr.bf16.mxu0 0
    %6523 = vmatpush1.bf16.msra.mxu0 0
    %6524 = vmatprep.subr.bf16.mxu0 0
    %6525 = vmatpush1.bf16.msra.mxu0 0
    %6526 = vmatprep.subr.bf16.mxu0 0
    %6527 = vmatpush1.bf16.msra.mxu0 0
    %6528 = vmatprep.subr.bf16.mxu0 0
    %6529 = vmatpush1.bf16.msra.mxu0 0
    %6530 = vmatprep.mubr.bf16.mxu0 0
    %6531 = vmatmul.mubr.bf16.gmra.mrb[0].mxu0 %v6496
    %v6532 = vpop.f32.mrb[0].mxu0
    %v6533 = vadd.f32 0.0, %v6532
    %v6534 = vpop.f32.mrb[0].mxu0
    %v6535 = vadd.f32 0.0, %v6534
    %v6536 = vpop.f32.mrb[0].mxu0
    %v6537 = vpop.f32.mrb[0].mxu0
    %6538 = vdwg.mxu0
    %v6539 = vpack.c.bf16 %v6533, %v6533
    %v6540 = vpack.c.bf16 %v6535, %v6535
    %s6541 = scalar_lea.vmem %s67, 256
    %v6542 = vld [vmem:[%s6541] sm:$0xf]
    %v6543 = vld [vmem:[%s6541 + $0x4] sm:$0xf]
    %v6544 = vld [vmem:[%s6541 + $0x8] sm:$0xf]
    %v6545 = vld [vmem:[%s6541 + $0xc] sm:$0xf]
    %v6546 = vld [vmem:[%s6541 + $0x10] sm:$0xf]
    %v6547 = vld [vmem:[%s6541 + $0x14] sm:$0xf]
    %v6548 = vld [vmem:[%s6541 + $0x18] sm:$0xf]
    %v6549 = vld [vmem:[%s6541 + $0x1c] sm:$0xf]
    %v6550 = vld [vmem:[%s6541 + $0x20] sm:$0xf]
    %v6551 = vld [vmem:[%s6541 + $0x24] sm:$0xf]
    %v6552 = vld [vmem:[%s6541 + $0x28] sm:$0xf]
    %v6553 = vld [vmem:[%s6541 + $0x2c] sm:$0xf]
    %v6554 = vld [vmem:[%s6541 + $0x30] sm:$0xf]
    %v6555 = vld [vmem:[%s6541 + $0x34] sm:$0xf]
    %v6556 = vld [vmem:[%s6541 + $0x38] sm:$0xf]
    %v6557 = vld [vmem:[%s6541 + $0x3c] sm:$0xf]
    %v6558 = vld [vmem:[%s6541 + $0x40] sm:$0xf]
    %v6559 = vld [vmem:[%s6541 + $0x44] sm:$0xf]
    %v6560 = vld [vmem:[%s6541 + $0x48] sm:$0xf]
    %v6561 = vld [vmem:[%s6541 + $0x4c] sm:$0xf]
    %v6562 = vld [vmem:[%s6541 + $0x50] sm:$0xf]
    %v6563 = vld [vmem:[%s6541 + $0x54] sm:$0xf]
    %v6564 = vld [vmem:[%s6541 + $0x58] sm:$0xf]
    %v6565 = vld [vmem:[%s6541 + $0x5c] sm:$0xf]
    %v6566 = vld [vmem:[%s6541 + $0x60] sm:$0xf]
    %v6567 = vld [vmem:[%s6541 + $0x64] sm:$0xf]
    %v6568 = vld [vmem:[%s6541 + $0x68] sm:$0xf]
    %v6569 = vld [vmem:[%s6541 + $0x6c] sm:$0xf]
    %v6570 = vld [vmem:[%s6541 + $0x70] sm:$0xf]
    %v6571 = vld [vmem:[%s6541 + $0x74] sm:$0xf]
    %v6572 = vld [vmem:[%s6541 + $0x78] sm:$0xf]
    %v6573 = vld [vmem:[%s6541 + $0x7c] sm:$0xf]
    %v6606 = vunpack.c.l.b16 %v6542
    %v6607 = vunpack.c.l.b16 %v6543
    %v6608 = vunpack.c.l.b16 %v6544
    %v6609 = vunpack.c.l.b16 %v6545
    %v6610 = vunpack.c.l.b16 %v6546
    %v6611 = vunpack.c.l.b16 %v6547
    %v6612 = vunpack.c.l.b16 %v6548
    %v6613 = vunpack.c.l.b16 %v6549
    %v6614 = vunpack.c.l.b16 %v6550
    %v6615 = vunpack.c.l.b16 %v6551
    %v6616 = vunpack.c.l.b16 %v6552
    %v6617 = vunpack.c.l.b16 %v6553
    %v6618 = vunpack.c.l.b16 %v6554
    %v6619 = vunpack.c.l.b16 %v6555
    %v6620 = vunpack.c.l.b16 %v6556
    %v6621 = vunpack.c.l.b16 %v6557
    %v6622 = vunpack.c.l.b16 %v6558
    %v6623 = vunpack.c.l.b16 %v6559
    %v6624 = vunpack.c.l.b16 %v6560
    %v6625 = vunpack.c.l.b16 %v6561
    %v6626 = vunpack.c.l.b16 %v6562
    %v6627 = vunpack.c.l.b16 %v6563
    %v6628 = vunpack.c.l.b16 %v6564
    %v6629 = vunpack.c.l.b16 %v6565
    %v6630 = vunpack.c.l.b16 %v6566
    %v6631 = vunpack.c.l.b16 %v6567
    %v6632 = vunpack.c.l.b16 %v6568
    %v6633 = vunpack.c.l.b16 %v6569
    %v6634 = vunpack.c.l.b16 %v6570
    %v6635 = vunpack.c.l.b16 %v6571
    %v6636 = vunpack.c.l.b16 %v6572
    %v6637 = vunpack.c.l.b16 %v6573
    %v6638 = vpack.c.b16 %v6607, %v6606
    %v6639 = vpack.c.b16 %v6609, %v6608
    %v6640 = vpack.c.b16 %v6611, %v6610
    %v6641 = vpack.c.b16 %v6613, %v6612
    %v6642 = vpack.c.b16 %v6615, %v6614
    %v6643 = vpack.c.b16 %v6617, %v6616
    %v6644 = vpack.c.b16 %v6619, %v6618
    %v6645 = vpack.c.b16 %v6621, %v6620
    %v6646 = vpack.c.b16 %v6623, %v6622
    %v6647 = vpack.c.b16 %v6625, %v6624
    %v6648 = vpack.c.b16 %v6627, %v6626
    %v6649 = vpack.c.b16 %v6629, %v6628
    %v6650 = vpack.c.b16 %v6631, %v6630
    %v6651 = vpack.c.b16 %v6633, %v6632
    %v6652 = vpack.c.b16 %v6635, %v6634
    %v6653 = vpack.c.b16 %v6637, %v6636
    %6670 = vmatprep.subr.bf16.mxu0 0
    %6671 = vmatpush1.bf16.msra.mxu0 %v6638
    %6672 = vmatprep.subr.bf16.mxu0 0
    %6673 = vmatpush1.bf16.msra.mxu0 %v6639
    %6674 = vmatprep.subr.bf16.mxu0 0
    %6675 = vmatpush1.bf16.msra.mxu0 %v6640
    %6676 = vmatprep.subr.bf16.mxu0 0
    %6677 = vmatpush1.bf16.msra.mxu0 %v6641
    %6678 = vmatprep.subr.bf16.mxu0 0
    %6679 = vmatpush1.bf16.msra.mxu0 %v6642
    %6680 = vmatprep.subr.bf16.mxu0 0
    %6681 = vmatpush1.bf16.msra.mxu0 %v6643
    %6682 = vmatprep.subr.bf16.mxu0 0
    %6683 = vmatpush1.bf16.msra.mxu0 %v6644
    %6684 = vmatprep.subr.bf16.mxu0 0
    %6685 = vmatpush1.bf16.msra.mxu0 %v6645
    %6686 = vmatprep.subr.bf16.mxu0 0
    %6687 = vmatpush1.bf16.msra.mxu0 %v6646
    %6688 = vmatprep.subr.bf16.mxu0 0
    %6689 = vmatpush1.bf16.msra.mxu0 %v6647
    %6690 = vmatprep.subr.bf16.mxu0 0
    %6691 = vmatpush1.bf16.msra.mxu0 %v6648
    %6692 = vmatprep.subr.bf16.mxu0 0
    %6693 = vmatpush1.bf16.msra.mxu0 %v6649
    %6694 = vmatprep.subr.bf16.mxu0 0
    %6695 = vmatpush1.bf16.msra.mxu0 %v6650
    %6696 = vmatprep.subr.bf16.mxu0 0
    %6697 = vmatpush1.bf16.msra.mxu0 %v6651
    %6698 = vmatprep.subr.bf16.mxu0 0
    %6699 = vmatpush1.bf16.msra.mxu0 %v6652
    %6700 = vmatprep.subr.bf16.mxu0 0
    %6701 = vmatpush1.bf16.msra.mxu0 %v6653
    %6702 = vmatprep.mubr.bf16.mxu0 %v6540
    %6703 = vmatmul.mubr.bf16.gmra.mrb[0].mxu0 %v6539
    %v6704 = vpop.f32.mrb[0].mxu0
    %v6705 = vadd.f32 0.0, %v6704
    %v6706 = vpop.f32.mrb[0].mxu0
    %v6707 = vpop.f32.mrb[0].mxu0
    %v6708 = vpop.f32.mrb[0].mxu0
    %6709 = vdwg.mxu0
    %v6710 = vadd.f32 %v6488, %v6705
    %v6711 = vld [vmem:[%s69] sm:$0x1]
    %v6713 = vlaneseq
    %v6714 = vshrl.u32 %v6713, 7
    %v6715 = vsub.s32 0, %v6714
    %v6716 = vrot.slane %v6711, %v6715
    %v6718 = vadd.f32 %v6710, %v6716
    %vm6719 = vcmask 25600
    %6720 = vst.msk [vmem:[%s71] sm:$0x3] %vm6719, %v6718
    // Predicated region
    $region242: #{patchgan_forward.1} parent=1 // pred_check
      _
    $region243: #{patchgan_forward.1} parent=1 // pred_check_branch
      %6722 = sbr.rel (0) target = $region245
    $region244: #{patchgan_forward.1} parent=1 // pred_region
      _
    $region245: #{patchgan_forward.1} parent=1 // pred_fallthru
      _
    // Predicated region
    $region246: #{patchgan_forward.1} parent=1 // pred_check
      _
    $region247: #{patchgan_forward.1} parent=1 // pred_check_branch
      %6724 = sbr.rel (0) target = $region249
    $region248: #{patchgan_forward.1} parent=1 // pred_region
      _
    $region249: #{patchgan_forward.1} parent=1 // pred_fallthru
      _
    %6725 = vsyncpa [#allocation3], 1
    %6726 = vsyncpa [#allocation5], 1
    %6727 = vsyncpa [#allocation8], 1
    %6728 = vsyncpa [#allocation11], 1
    %6729 = vsyncpa [#allocation14], 1
    %6730 = vsyncpa [#allocation17], 1
    %6731 = vsyncpa [#allocation20], 1
    %6732 = vsyncpa [#allocation23], 1
    %6733 = vsyncpa [#allocation26], 1
    %6734 = vsyncpa [#allocation29], 1
    %6735 = vsyncpa [#allocation32], 1
    %6736 = vsyncpa [#allocation35], 1
    %6737 = vsyncpa [#allocation38], 1

</llo_original>
